<compile_context>
chip_gen: v7x
topology: tpu7x:2x2x1
jax: 0.10.0
libtpu: 0.0.40
codegen_flags: <defaults>
</compile_context>

<pallas_src>
import math

import jax
import jax.numpy as jnp
from jax.experimental import pallas as pl
from jax.scipy.linalg import block_diag

# ----------------------------- configuration --------------------------------
B = 2                       # batch
IMG = 32                    # image spatial size
PATCH = 8                   # ViT patch size
HP = WP = IMG // PATCH      # image-embedding spatial size (4 x 4)
N_IMG = HP * WP             # image tokens / embedding pixels (16)
C = 32                      # embed dim (encoder == prompt == decoder dim)
NUM_HEADS = 2
DH = C // NUM_HEADS
TEXT_DIM = 16               # text-token feature dim
N_TEXT = 2                  # number of text tokens per image
NUM_MASK_TOKENS = 4         # 3 multimask + 1
S_TOK = 1 + NUM_MASK_TOKENS + N_TEXT       # decoder token count (7)
C4 = C // 4
C8 = C // 8

LN_EPS_T = 1e-5             # transformer LayerNorm (PyTorch nn.LayerNorm default)
LN_EPS_V = 1e-6             # SAM ViT LayerNorm + LayerNorm2d eps

assert B == 2               # _block_mask below assumes exactly two per-batch blocks


# ----------------------------- in-kernel helpers ------------------------------
def _mm(a, w, bias=None):
    """MXU matmul with bf16 operands, f32 accumulation (astype is a no-op if
    the operand was already pre-cast to bf16)."""
    y = jnp.dot(a.astype(jnp.bfloat16), w.astype(jnp.bfloat16),
                preferred_element_type=jnp.float32)
    if bias is not None:
        y = y + bias
    return y


def _mm_nt(a, b):
    """a @ b.T (contract last dims) with bf16 operands, f32 accumulation."""
    return jax.lax.dot_general(a.astype(jnp.bfloat16), b.astype(jnp.bfloat16),
                               (((1,), (1,)), ((), ())),
                               preferred_element_type=jnp.float32)


def _ln(x, g, b, eps):
    mu = jnp.mean(x, axis=-1, keepdims=True)
    var = jnp.mean((x - mu) ** 2, axis=-1, keepdims=True)
    return (x - mu) * jax.lax.rsqrt(var + eps) * g + b


def _softmax_rows(s):
    s = s - jnp.max(s, axis=-1, keepdims=True)
    p = jnp.exp(s)
    return p * pl.reciprocal(jnp.sum(p, axis=-1, keepdims=True), approx=True)


def _block_mask(rows, cols, rblk, cblk):
    """Additive attention mask keeping only the two per-batch diagonal blocks."""
    ri = jax.lax.broadcasted_iota(jnp.int32, (rows, cols), 0)
    ci = jax.lax.broadcasted_iota(jnp.int32, (rows, cols), 1)
    diff = jnp.logical_xor(ri < rblk, ci < cblk)       # valid for B == 2 blocks
    return jnp.where(diff, -1e9, 0.0).astype(jnp.float32)


def _mha_heads(q, k, v, wo, bo, mask):
    """Multi-head attention core on already-projected q/k/v (rows = all batches,
    kept independent by `mask`).  Head outputs are accumulated straight into the
    output projection; weights/operands are cast to bf16 once."""
    scale = 1.0 / math.sqrt(DH)
    qb = q.astype(jnp.bfloat16)
    kb = k.astype(jnp.bfloat16)
    vb = v.astype(jnp.bfloat16)
    wob = wo.astype(jnp.bfloat16)
    out = bo
    for h in range(NUM_HEADS):
        sl = slice(h * DH, (h + 1) * DH)
        s = _mm_nt(qb[:, sl], kb[:, sl]) * scale + mask      # f32 scores
        p = _softmax_rows(s)
        oh = _mm(p, vb[:, sl])                               # (Sq, DH)
        out = out + _mm(oh, wob[h * DH:(h + 1) * DH, :])     # (Sq, C)
    return out


def _mha_self(x, w, b, mask):
    """Self-attention with fused QKV projection.  w:(C,4C)=[wq|wk|wv|wo]."""
    qkv = _mm(x, w[:, :3 * C], b[:, :3 * C])
    return _mha_heads(qkv[:, 0:C], qkv[:, C:2 * C], qkv[:, 2 * C:3 * C],
                      w[:, 3 * C:4 * C], b[:, 3 * C:4 * C], mask)


def _mha_cross(xq, xk, xv, w, b, mask):
    """Cross-attention (xk != xv in SAM's decoder, so K/V projected separately)."""
    q = _mm(xq, w[:, 0:C], b[:, 0:C])
    k = _mm(xk, w[:, C:2 * C], b[:, C:2 * C])
    v = _mm(xv, w[:, 2 * C:3 * C], b[:, 2 * C:3 * C])
    return _mha_heads(q, k, v, w[:, 3 * C:4 * C], b[:, 3 * C:4 * C], mask)


# --------------------------- the single fused kernel ---------------------------
def _medsam_kernel(
    # ---- image encoder inputs ----
    patch_ref, pos_ref, pw_ref, pb_ref,
    aw_ref, ab_ref, elng_ref, elnb_ref,
    em1w_ref, em1b_ref, em2w_ref, em2b_ref,
    nw_ref, nb_ref,
    # ---- prompt encoder + decoder-token inputs ----
    pe_ref, nme_ref, txt_ref, tw_ref, tb_ref, otok_ref,
    sw_ref, sb_ref, tiw_ref, tib_ref, itw_ref, itb_ref, fw_ref, fb_ref,
    dlng_ref, dlnb_ref, dm1w_ref, dm1b_ref, dm2w_ref, dm2b_ref,
    # ---- output upscaling + hypernetwork inputs ----
    u1w_ref, u1b_ref, ug_ref, ub_ref, u2w_ref, u2b_ref,
    h1w_ref, h1b_ref, h2w_ref, h2b_ref, h3w_ref, h3b_ref,
    # ---- output ----
    o_ref,
):
    bf16 = jnp.bfloat16

    # ============================ image encoder ============================
    pos = jnp.concatenate([pos_ref[...]] * B, axis=0)                  # (B*N_IMG, C)
    x = _mm(patch_ref[...], pw_ref[...], pb_ref[...]) + pos            # patch embed + pos

    elng, elnb = elng_ref[...], elnb_ref[...]
    aw, ab = aw_ref[...], ab_ref[...]
    enc_mask = _block_mask(B * N_IMG, B * N_IMG, N_IMG, N_IMG)

    h = _ln(x, elng[0:1, :], elnb[0:1, :], LN_EPS_V)
    qkv = _mm(h, aw[:, :3 * C], ab[:, :3 * C])                         # fused QKV
    x = x + _mha_heads(qkv[:, 0:C], qkv[:, C:2 * C], qkv[:, 2 * C:3 * C],
                       aw[:, 3 * C:4 * C], ab[:, 3 * C:4 * C], enc_mask)

    h = _ln(x, elng[1:2, :], elnb[1:2, :], LN_EPS_V)
    h = jax.nn.gelu(_mm(h, em1w_ref[...], em1b_ref[...]))
    x = x + _mm(h, em2w_ref[...], em2b_ref[...])

    x = _mm(x, nw_ref[...], nb_ref[...])                               # neck 1x1 conv
    img = _ln(x, elng[2:3, :], elnb[2:3, :], LN_EPS_V)                 # LayerNorm2d
    # TODO(synk): SAM's neck also has a 3x3 conv + second LayerNorm2d, and the
    #             real ViT has depth > 1; a single block is instantiated here.

    # ================ prompt encoder + mask-decoder token path ================
    pe = jnp.concatenate([pe_ref[...]] * B, axis=0)                    # (B*N_IMG, C)
    sp = _mm(txt_ref[...], tw_ref[...], tb_ref[...])                   # text -> sparse embeds
    otok = otok_ref[...]                                               # [iou; mask tokens]
    tok = jnp.concatenate(
        [p for b in range(B)
         for p in (otok, sp[b * N_TEXT:(b + 1) * N_TEXT, :])], axis=0)  # (B*S_TOK, C)
    point_pe = tok
    src = img + nme_ref[...]                                           # "no mask" dense embed

    dlng, dlnb = dlng_ref[...], dlnb_ref[...]
    self_mask = _block_mask(B * S_TOK, B * S_TOK, S_TOK, S_TOK)
    t2i_mask = _block_mask(B * S_TOK, B * N_IMG, S_TOK, N_IMG)
    i2t_mask = _block_mask(B * N_IMG, B * S_TOK, N_IMG, S_TOK)

    q, k = tok, src
    # --- TwoWayAttentionBlock (skip_first_layer_pe=True) ---
    q = _mha_self(q, sw_ref[...], sb_ref[...], self_mask)
    q = _ln(q, dlng[0:1, :], dlnb[0:1, :], LN_EPS_T)
    att = _mha_cross(q + point_pe, k + pe, k, tiw_ref[...], tib_ref[...], t2i_mask)
    q = _ln(q + att, dlng[1:2, :], dlnb[1:2, :], LN_EPS_T)
    h = jnp.maximum(_mm(q, dm1w_ref[...], dm1b_ref[...]), 0.0)
    h = _mm(h, dm2w_ref[...], dm2b_ref[...])
    q = _ln(q + h, dlng[2:3, :], dlnb[2:3, :], LN_EPS_T)
    att = _mha_cross(k + pe, q + point_pe, q, itw_ref[...], itb_ref[...], i2t_mask)
    k = _ln(k + att, dlng[3:4, :], dlnb[3:4, :], LN_EPS_T)
    # TODO(synk): SAM's TwoWayTransformer has depth=2; one block instantiated here.

    # --- final token-to-image attention ---
    att = _mha_cross(q + point_pe, k + pe, k, fw_ref[...], fb_ref[...], t2i_mask)
    q = _ln(q + att, dlng[4:5, :], dlnb[4:5, :], LN_EPS_T)
    # IoU head output is discarded by MedSAMText.forward ("_"); not computed.

    # ====== hypernetwork MLPs: all B*M mask tokens through one block-diag chain ======
    mt = jnp.concatenate(
        [q[b * S_TOK + 1:b * S_TOK + 1 + NUM_MASK_TOKENS, :] for b in range(B)],
        axis=0)                                                        # (B*M, C), rows (b, m)
    h1 = jnp.maximum(_mm(mt, h1w_ref[...], h1b_ref[...]), 0.0)         # (B*M, M*C)
    h2 = jnp.maximum(_mm(h1, h2w_ref[...], h2b_ref[...]), 0.0)         # (B*M, M*C)   block-diag w2
    h3 = _mm(h2, h3w_ref[...], h3b_ref[...])                           # (B*M, M*C8)  block-diag w3
    # row (b, m) keeps only its own token's diagonal column block m
    ridx = jax.lax.broadcasted_iota(jnp.int32, (B * NUM_MASK_TOKENS, C8), 0)
    hyp = jnp.zeros((B * NUM_MASK_TOKENS, C8), jnp.float32)
    for m in range(NUM_MASK_TOKENS):
        sel = ridx == m
        for b in range(1, B):
            sel = jnp.logical_or(sel, ridx == b * NUM_MASK_TOKENS + m)
        hyp = hyp + jnp.where(sel, h3[:, m * C8:(m + 1) * C8], 0.0)
    hyp_bf = hyp.astype(bf16)                                          # (B*M, C8)

    # ====== output upscaling (two ConvTranspose2d k=2 s=2) + mask dot-products ======
    xsrc_bf = k.astype(bf16)
    u1w_bf = u1w_ref[...].astype(bf16)
    u1b = u1b_ref[...]
    ug, ub = ug_ref[...], ub_ref[...]
    u2w_bf = u2w_ref[...].astype(bf16)
    u2b = u2b_ref[...]
    blocks = []
    for d1 in range(4):                                                # d1 = di1*2 + dj1
        y1 = _mm(xsrc_bf, u1w_bf[:, d1 * C4:(d1 + 1) * C4], u1b)       # (B*HW, C4)
        y1 = jax.nn.gelu(_ln(y1, ug, ub, LN_EPS_V))                    # LayerNorm2d + GELU
        y2 = jax.nn.gelu(_mm(y1, u2w_bf, u2b))                         # (B*HW, 4*C8), cols (d2, c)
        y2_bf = y2.astype(bf16)
        for d2 in range(4):                                            # d2 = di2*2 + dj2
            blocks.append(_mm_nt(y2_bf[:, d2 * C8:(d2 + 1) * C8], hyp_bf))   # (B*HW, B*M)
    # single lane-dense (128-wide) store; columns (d1, d2, b', m)
    o_ref[...] = jnp.concatenate(blocks, axis=1)
    # TODO(synk): real PyTorch ConvTranspose2d weights (Cin, Cout, 2, 2) must be
    #             flattened to (Cin, 4*Cout) with column order (d, cout), d = di*2 + dj.


# ----------------------------- wrapper pieces ----------------------------------
def get_dense_pe(params):
    ys = (jnp.arange(HP, dtype=jnp.float32) + 0.5) / HP
    xs = (jnp.arange(WP, dtype=jnp.float32) + 0.5) / WP
    gy, gx = jnp.meshgrid(ys, xs, indexing="ij")
    coords = 2.0 * jnp.stack([gx, gy], axis=-1) - 1.0                  # (H', W', 2)
    proj = 2.0 * jnp.pi * (coords @ params["pe_gaussian"])             # (H', W', C/2)
    pe = jnp.concatenate([jnp.sin(proj), jnp.cos(proj)], axis=-1)      # (H', W', C)
    return pe.reshape(N_IMG, C)                                        # channels-last


def _block_diag_per_token(w_stack, cols_per_token):
    """(C_in, M*cols) per-token stacked weights -> (M*C_in, M*cols) block diagonal."""
    blocks = [w_stack[:, t * cols_per_token:(t + 1) * cols_per_token]
              for t in range(NUM_MASK_TOKENS)]
    return block_diag(*blocks)


@jax.jit
def medsam_text_forward(params, image, tokens):
    # patchify the image (rows = (b, i, j), cols = (c, pi, pj))
    x = image.reshape(B, 3, HP, PATCH, WP, PATCH)
    x = x.transpose(0, 2, 4, 1, 3, 5).reshape(B * N_IMG, 3 * PATCH * PATCH)

    pe = get_dense_pe(params)                                          # (N_IMG, C)
    txt = tokens.reshape(B * N_TEXT, TEXT_DIM)

    # per-token hypernet weights -> block diagonal (one matmul chain for all tokens)
    h2w_bd = _block_diag_per_token(params["hyp_w2"], C)                # (M*C, M*C)
    h3w_bd = _block_diag_per_token(params["hyp_w3"], C8)               # (M*C, M*C8)
    u2b_t = jnp.tile(params["up2_b"], (1, 4))                          # (1, 4*C8), cols (d2, c)

    masks_raw = pl.pallas_call(
        _medsam_kernel,
        out_shape=jax.ShapeDtypeStruct((B * N_IMG, 16 * B * NUM_MASK_TOKENS),
                                       jnp.float32),
    )(
        # image encoder
        x, params["pos_embed"], params["patch_w"], params["patch_b"],
        params["enc_attn_w"], params["enc_attn_b"],
        params["enc_ln_g"], params["enc_ln_b"],
        params["enc_mlp_w1"], params["enc_mlp_b1"],
        params["enc_mlp_w2"], params["enc_mlp_b2"],
        params["neck_w"], params["neck_b"],
        # prompt encoder + decoder tokens
        pe, params["no_mask_embed"], txt, params["text_w"], params["text_b"],
        params["out_tokens"],
        params["dec_self_w"], params["dec_self_b"],
        params["dec_t2i_w"], params["dec_t2i_b"],
        params["dec_i2t_w"], params["dec_i2t_b"],
        params["dec_fin_w"], params["dec_fin_b"],
        params["dec_ln_g"], params["dec_ln_b"],
        params["dec_mlp_w1"], params["dec_mlp_b1"],
        params["dec_mlp_w2"], params["dec_mlp_b2"],
        # upscaling + hypernets
        params["up1_w"], params["up1_b"], params["up_ln_g"], params["up_ln_b"],
        params["up2_w"], u2b_t,
        params["hyp_w1"], params["hyp_b1"],
        h2w_bd, params["hyp_b2"],
        h3w_bd, params["hyp_b3"],
    )

    # de-interleave: rows (b, i, j), cols (di1, dj1, di2, dj2, b', m); keep b' == b
    m = masks_raw.reshape(B, HP, WP, 2, 2, 2, 2, B, NUM_MASK_TOKENS)
    m = jnp.stack([m[b, :, :, :, :, :, :, b, :] for b in range(B)], axis=0)
    m = m.transpose(0, 7, 1, 3, 5, 2, 4, 6)            # b, m, i, di1, di2, j, dj1, dj2
    m = m.reshape(B, NUM_MASK_TOKENS, 4 * HP, 4 * WP)
    return m[:, 0:1]                                   # multimask_output=False


# ----------------------------- parameter init ----------------------------------
def init_params(key):
    keys = iter(jax.random.split(key, 32))
    nk = lambda: next(keys)
    w = lambda shape, s=0.05: s * jax.random.normal(nk(), shape, jnp.float32)
    z = lambda *shape: jnp.zeros(shape, jnp.float32)
    o = lambda *shape: jnp.ones(shape, jnp.float32)

    p = {}
    # image encoder (ViT patch embed + 1 transformer block + neck)
    p["patch_w"], p["patch_b"] = w((3 * PATCH * PATCH, C)), z(1, C)
    p["pos_embed"] = w((N_IMG, C))
    p["enc_attn_w"], p["enc_attn_b"] = w((C, 4 * C)), z(1, 4 * C)      # [wq|wk|wv|wo]
    p["enc_ln_g"], p["enc_ln_b"] = o(3, C), z(3, C)                    # [ln1, ln2, neck_ln]
    p["enc_mlp_w1"], p["enc_mlp_b1"] = w((C, 2 * C)), z(1, 2 * C)
    p["enc_mlp_w2"], p["enc_mlp_b2"] = w((2 * C, C)), z(1, C)
    p["neck_w"], p["neck_b"] = w((C, C)), z(1, C)
    # prompt encoder
    p["text_w"], p["text_b"] = w((TEXT_DIM, C)), z(1, C)
    p["no_mask_embed"] = w((1, C))
    p["pe_gaussian"] = jax.random.normal(nk(), (2, C // 2), jnp.float32)
    # mask decoder
    p["out_tokens"] = w((1 + NUM_MASK_TOKENS, C))                      # [iou; mask tokens]
    p["dec_self_w"], p["dec_self_b"] = w((C, 4 * C)), z(1, 4 * C)
    p["dec_t2i_w"], p["dec_t2i_b"] = w((C, 4 * C)), z(1, 4 * C)
    p["dec_i2t_w"], p["dec_i2t_b"] = w((C, 4 * C)), z(1, 4 * C)
    p["dec_fin_w"], p["dec_fin_b"] = w((C, 4 * C)), z(1, 4 * C)
    p["dec_ln_g"], p["dec_ln_b"] = o(5, C), z(5, C)                    # [n1..n4, nf]
    p["dec_mlp_w1"], p["dec_mlp_b1"] = w((C, 2 * C)), z(1, 2 * C)
    p["dec_mlp_w2"], p["dec_mlp_b2"] = w((2 * C, C)), z(1, C)
    # output upscaling (ConvTranspose2d k=2 s=2, flattened as (Cin, 4*Cout),
    # column order (d, cout) with d = di*2 + dj)
    p["up1_w"], p["up1_b"] = w((C, 4 * C4)), z(1, C4)
    p["up_ln_g"], p["up_ln_b"] = o(1, C4), z(1, C4)
    p["up2_w"], p["up2_b"] = w((C4, 4 * C8)), z(1, C8)
    # hypernetwork MLPs, one per mask token, stacked along the lane dim
    p["hyp_w1"], p["hyp_b1"] = w((C, NUM_MASK_TOKENS * C)), z(1, NUM_MASK_TOKENS * C)
    p["hyp_w2"], p["hyp_b2"] = w((C, NUM_MASK_TOKENS * C)), z(1, NUM_MASK_TOKENS * C)
    p["hyp_w3"], p["hyp_b3"] = w((C, NUM_MASK_TOKENS * C8)), z(1, NUM_MASK_TOKENS * C8)
    return p


# ----------------------------- main ---------------------------------------------
if __name__ == "__main__":
    key = jax.random.PRNGKey(0)
    kp, ki, kt = jax.random.split(key, 3)
    params = init_params(kp)
    image = jax.random.normal(ki, (B, 3, IMG, IMG), jnp.float32)       # NCHW input
    tokens = jax.random.normal(kt, (B, N_TEXT, TEXT_DIM), jnp.float32)

    low_res_logits = medsam_text_forward(params, image, tokens)
    low_res_logits = jax.block_until_ready(low_res_logits)

    assert low_res_logits.shape == (B, 1, 4 * HP, 4 * WP), low_res_logits.shape
    assert low_res_logits.dtype == jnp.float32
    assert bool(jnp.all(jnp.isfinite(low_res_logits)))
    print("KERNEL_OK")
</pallas_src>

<mosaic_0001>
module attributes {stable_mosaic.version = 11 : i64} {
  func.func @_medsam_kernel(%arg0: memref<32x192xf32, #tpu.memory_space<vmem>>, %arg1: memref<16x32xf32, #tpu.memory_space<vmem>>, %arg2: memref<192x32xf32, #tpu.memory_space<vmem>>, %arg3: memref<1x32xf32, #tpu.memory_space<vmem>>, %arg4: memref<32x128xf32, #tpu.memory_space<vmem>>, %arg5: memref<1x128xf32, #tpu.memory_space<vmem>>, %arg6: memref<3x32xf32, #tpu.memory_space<vmem>>, %arg7: memref<3x32xf32, #tpu.memory_space<vmem>>, %arg8: memref<32x64xf32, #tpu.memory_space<vmem>>, %arg9: memref<1x64xf32, #tpu.memory_space<vmem>>, %arg10: memref<64x32xf32, #tpu.memory_space<vmem>>, %arg11: memref<1x32xf32, #tpu.memory_space<vmem>>, %arg12: memref<32x32xf32, #tpu.memory_space<vmem>>, %arg13: memref<1x32xf32, #tpu.memory_space<vmem>>, %arg14: memref<16x32xf32, #tpu.memory_space<vmem>>, %arg15: memref<1x32xf32, #tpu.memory_space<vmem>>, %arg16: memref<4x16xf32, #tpu.memory_space<vmem>>, %arg17: memref<16x32xf32, #tpu.memory_space<vmem>>, %arg18: memref<1x32xf32, #tpu.memory_space<vmem>>, %arg19: memref<5x32xf32, #tpu.memory_space<vmem>>, %arg20: memref<32x128xf32, #tpu.memory_space<vmem>>, %arg21: memref<1x128xf32, #tpu.memory_space<vmem>>, %arg22: memref<32x128xf32, #tpu.memory_space<vmem>>, %arg23: memref<1x128xf32, #tpu.memory_space<vmem>>, %arg24: memref<32x128xf32, #tpu.memory_space<vmem>>, %arg25: memref<1x128xf32, #tpu.memory_space<vmem>>, %arg26: memref<32x128xf32, #tpu.memory_space<vmem>>, %arg27: memref<1x128xf32, #tpu.memory_space<vmem>>, %arg28: memref<5x32xf32, #tpu.memory_space<vmem>>, %arg29: memref<5x32xf32, #tpu.memory_space<vmem>>, %arg30: memref<32x64xf32, #tpu.memory_space<vmem>>, %arg31: memref<1x64xf32, #tpu.memory_space<vmem>>, %arg32: memref<64x32xf32, #tpu.memory_space<vmem>>, %arg33: memref<1x32xf32, #tpu.memory_space<vmem>>, %arg34: memref<32x32xf32, #tpu.memory_space<vmem>>, %arg35: memref<1x8xf32, #tpu.memory_space<vmem>>, %arg36: memref<1x8xf32, #tpu.memory_space<vmem>>, %arg37: memref<1x8xf32, #tpu.memory_space<vmem>>, %arg38: memref<8x16xf32, #tpu.memory_space<vmem>>, %arg39: memref<1x16xf32, #tpu.memory_space<vmem>>, %arg40: memref<32x128xf32, #tpu.memory_space<vmem>>, %arg41: memref<1x128xf32, #tpu.memory_space<vmem>>, %arg42: memref<128x128xf32, #tpu.memory_space<vmem>>, %arg43: memref<1x128xf32, #tpu.memory_space<vmem>>, %arg44: memref<128x16xf32, #tpu.memory_space<vmem>>, %arg45: memref<1x16xf32, #tpu.memory_space<vmem>>, %arg46: memref<32x128xf32, #tpu.memory_space<vmem>>) attributes {dimension_semantics = [], scalar_prefetch = 0 : i64, scratch_operands = 0 : i64, tpu.core_type = #tpu.core_type<tc>} {
    %c0 = arith.constant 0 : index
    %c0_0 = arith.constant 0 : index
    %0 = vector.load %arg1[%c0, %c0_0] : memref<16x32xf32, #tpu.memory_space<vmem>>, vector<16x32xf32>
    %1 = tpu.concatenate %0, %0 in 0 : vector<16x32xf32>, vector<16x32xf32> -> vector<32x32xf32>
    %c0_1 = arith.constant 0 : index
    %c0_2 = arith.constant 0 : index
    %2 = vector.load %arg0[%c0_1, %c0_2] : memref<32x192xf32, #tpu.memory_space<vmem>>, vector<32x192xf32>
    %c0_3 = arith.constant 0 : index
    %c0_4 = arith.constant 0 : index
    %3 = vector.load %arg2[%c0_3, %c0_4] : memref<192x32xf32, #tpu.memory_space<vmem>>, vector<192x32xf32>
    %c0_5 = arith.constant 0 : index
    %c0_6 = arith.constant 0 : index
    %4 = vector.load %arg3[%c0_5, %c0_6] : memref<1x32xf32, #tpu.memory_space<vmem>>, vector<1x32xf32>
    %5 = arith.truncf %2 : vector<32x192xf32> to vector<32x192xbf16>
    %6 = arith.truncf %3 : vector<192x32xf32> to vector<192x32xbf16>
    %cst = arith.constant dense<0.000000e+00> : vector<32x32xf32>
    %7 = tpu.matmul %5, %6, %cst {dimension_numbers = #tpu.dot_dimension_numbers<[1], [0], [0], [1], [0, 0, 1, 1], [], []>} : vector<32x192xbf16>, vector<192x32xbf16>, vector<32x32xf32> -> vector<32x32xf32>
    %8 = vector.broadcast %4 : vector<1x32xf32> to vector<32x32xf32>
    %9 = arith.addf %7, %8 : vector<32x32xf32>
    %10 = arith.addf %9, %1 : vector<32x32xf32>
    %c0_7 = arith.constant 0 : index
    %c0_8 = arith.constant 0 : index
    %11 = vector.load %arg6[%c0_7, %c0_8] : memref<3x32xf32, #tpu.memory_space<vmem>>, vector<3x32xf32>
    %c0_9 = arith.constant 0 : index
    %c0_10 = arith.constant 0 : index
    %12 = vector.load %arg7[%c0_9, %c0_10] : memref<3x32xf32, #tpu.memory_space<vmem>>, vector<3x32xf32>
    %c0_11 = arith.constant 0 : index
    %c0_12 = arith.constant 0 : index
    %13 = vector.load %arg4[%c0_11, %c0_12] : memref<32x128xf32, #tpu.memory_space<vmem>>, vector<32x128xf32>
    %c0_13 = arith.constant 0 : index
    %c0_14 = arith.constant 0 : index
    %14 = vector.load %arg5[%c0_13, %c0_14] : memref<1x128xf32, #tpu.memory_space<vmem>>, vector<1x128xf32>
    %15 = tpu.iota {dimensions = array<i32: 0>} : vector<32x32xi32>
    %16 = tpu.iota {dimensions = array<i32: 1>} : vector<32x32xi32>
    %c16_i32 = arith.constant 16 : i32
    %17 = vector.broadcast %c16_i32 : i32 to vector<32x32xi32>
    %18 = arith.cmpi slt, %15, %17 : vector<32x32xi32>
    %c16_i32_15 = arith.constant 16 : i32
    %19 = vector.broadcast %c16_i32_15 : i32 to vector<32x32xi32>
    %20 = arith.cmpi slt, %16, %19 : vector<32x32xi32>
    %21 = arith.xori %18, %20 : vector<32x32xi1>
    %cst_16 = arith.constant -1.000000e+09 : f32
    %cst_17 = arith.constant 0.000000e+00 : f32
    %22 = vector.broadcast %cst_16 : f32 to vector<32x32xf32>
    %23 = vector.broadcast %cst_17 : f32 to vector<32x32xf32>
    %24 = arith.select %21, %22, %23 : vector<32x32xi1>, vector<32x32xf32>
    %25 = vector.extract_strided_slice %11 {offsets = [0, 0], sizes = [1, 32], strides = [1, 1]} : vector<3x32xf32> to vector<1x32xf32>
    %26 = vector.extract_strided_slice %12 {offsets = [0, 0], sizes = [1, 32], strides = [1, 1]} : vector<3x32xf32> to vector<1x32xf32>
    %cst_18 = arith.constant dense<0.000000e+00> : vector<32xf32>
    %27 = vector.multi_reduction <add>, %10, %cst_18 [1] : vector<32x32xf32> to vector<32xf32>
    %28 = vector.shape_cast %27 : vector<32xf32> to vector<32x1xf32>
    %cst_19 = arith.constant 3.200000e+01 : f32
    %29 = vector.broadcast %cst_19 : f32 to vector<32x1xf32>
    %30 = arith.divf %28, %29 : vector<32x1xf32>
    %31 = vector.broadcast %30 : vector<32x1xf32> to vector<32x32xf32>
    %32 = arith.subf %10, %31 : vector<32x32xf32>
    %33 = arith.mulf %32, %32 : vector<32x32xf32>
    %cst_20 = arith.constant dense<0.000000e+00> : vector<32xf32>
    %34 = vector.multi_reduction <add>, %33, %cst_20 [1] : vector<32x32xf32> to vector<32xf32>
    %35 = vector.shape_cast %34 : vector<32xf32> to vector<32x1xf32>
    %cst_21 = arith.constant 3.200000e+01 : f32
    %36 = vector.broadcast %cst_21 : f32 to vector<32x1xf32>
    %37 = arith.divf %35, %36 : vector<32x1xf32>
    %38 = vector.broadcast %30 : vector<32x1xf32> to vector<32x32xf32>
    %39 = arith.subf %10, %38 : vector<32x32xf32>
    %cst_22 = arith.constant 9.99999997E-7 : f32
    %40 = vector.broadcast %cst_22 : f32 to vector<32x1xf32>
    %41 = arith.addf %37, %40 : vector<32x1xf32>
    %42 = math.rsqrt %41 : vector<32x1xf32>
    %43 = vector.broadcast %42 : vector<32x1xf32> to vector<32x32xf32>
    %44 = arith.mulf %39, %43 : vector<32x32xf32>
    %45 = vector.broadcast %25 : vector<1x32xf32> to vector<32x32xf32>
    %46 = arith.mulf %44, %45 : vector<32x32xf32>
    %47 = vector.broadcast %26 : vector<1x32xf32> to vector<32x32xf32>
    %48 = arith.addf %46, %47 : vector<32x32xf32>
    %49 = vector.extract_strided_slice %13 {offsets = [0, 0], sizes = [32, 96], strides = [1, 1]} : vector<32x128xf32> to vector<32x96xf32>
    %50 = vector.extract_strided_slice %14 {offsets = [0, 0], sizes = [1, 96], strides = [1, 1]} : vector<1x128xf32> to vector<1x96xf32>
    %51 = arith.truncf %48 : vector<32x32xf32> to vector<32x32xbf16>
    %52 = arith.truncf %49 : vector<32x96xf32> to vector<32x96xbf16>
    %cst_23 = arith.constant dense<0.000000e+00> : vector<32x96xf32>
    %53 = tpu.matmul %51, %52, %cst_23 {dimension_numbers = #tpu.dot_dimension_numbers<[1], [0], [0], [1], [0, 0, 1, 1], [], []>} : vector<32x32xbf16>, vector<32x96xbf16>, vector<32x96xf32> -> vector<32x96xf32>
    %54 = vector.broadcast %50 : vector<1x96xf32> to vector<32x96xf32>
    %55 = arith.addf %53, %54 : vector<32x96xf32>
    %56 = vector.extract_strided_slice %55 {offsets = [0, 0], sizes = [32, 32], strides = [1, 1]} : vector<32x96xf32> to vector<32x32xf32>
    %57 = vector.extract_strided_slice %55 {offsets = [0, 32], sizes = [32, 32], strides = [1, 1]} : vector<32x96xf32> to vector<32x32xf32>
    %58 = vector.extract_strided_slice %55 {offsets = [0, 64], sizes = [32, 32], strides = [1, 1]} : vector<32x96xf32> to vector<32x32xf32>
    %59 = vector.extract_strided_slice %13 {offsets = [0, 96], sizes = [32, 32], strides = [1, 1]} : vector<32x128xf32> to vector<32x32xf32>
    %60 = vector.extract_strided_slice %14 {offsets = [0, 96], sizes = [1, 32], strides = [1, 1]} : vector<1x128xf32> to vector<1x32xf32>
    %61 = arith.truncf %56 : vector<32x32xf32> to vector<32x32xbf16>
    %62 = arith.truncf %57 : vector<32x32xf32> to vector<32x32xbf16>
    %63 = arith.truncf %58 : vector<32x32xf32> to vector<32x32xbf16>
    %64 = arith.truncf %59 : vector<32x32xf32> to vector<32x32xbf16>
    %65 = vector.extract_strided_slice %61 {offsets = [0, 0], sizes = [32, 16], strides = [1, 1]} : vector<32x32xbf16> to vector<32x16xbf16>
    %66 = vector.extract_strided_slice %62 {offsets = [0, 0], sizes = [32, 16], strides = [1, 1]} : vector<32x32xbf16> to vector<32x16xbf16>
    %cst_24 = arith.constant dense<0.000000e+00> : vector<32x32xf32>
    %67 = tpu.matmul %65, %66, %cst_24 {dimension_numbers = #tpu.dot_dimension_numbers<[1], [1], [0], [0], [0, 0, 1, 0], [], []>} : vector<32x16xbf16>, vector<32x16xbf16>, vector<32x32xf32> -> vector<32x32xf32>
    %cst_25 = arith.constant 2.500000e-01 : f32
    %68 = vector.broadcast %cst_25 : f32 to vector<32x32xf32>
    %69 = arith.mulf %67, %68 : vector<32x32xf32>
    %70 = arith.addf %69, %24 : vector<32x32xf32>
    %cst_26 = arith.constant dense<0xFF800000> : vector<32xf32>
    %71 = vector.multi_reduction <maximumf>, %70, %cst_26 [1] : vector<32x32xf32> to vector<32xf32>
    %72 = vector.shape_cast %71 : vector<32xf32> to vector<32x1xf32>
    %73 = vector.broadcast %72 : vector<32x1xf32> to vector<32x32xf32>
    %74 = arith.subf %70, %73 : vector<32x32xf32>
    %75 = math.exp %74 : vector<32x32xf32>
    %cst_27 = arith.constant dense<0.000000e+00> : vector<32xf32>
    %76 = vector.multi_reduction <add>, %75, %cst_27 [1] : vector<32x32xf32> to vector<32xf32>
    %77 = vector.shape_cast %76 : vector<32xf32> to vector<32x1xf32>
    %78 = tpu.reciprocal %77 {approx = true} : vector<32x1xf32> -> vector<32x1xf32>
    %79 = vector.broadcast %78 : vector<32x1xf32> to vector<32x32xf32>
    %80 = arith.mulf %75, %79 : vector<32x32xf32>
    %81 = vector.extract_strided_slice %63 {offsets = [0, 0], sizes = [32, 16], strides = [1, 1]} : vector<32x32xbf16> to vector<32x16xbf16>
    %82 = arith.truncf %80 : vector<32x32xf32> to vector<32x32xbf16>
    %cst_28 = arith.constant dense<0.000000e+00> : vector<32x16xf32>
    %83 = tpu.matmul %82, %81, %cst_28 {dimension_numbers = #tpu.dot_dimension_numbers<[1], [0], [0], [1], [0, 0, 1, 1], [], []>} : vector<32x32xbf16>, vector<32x16xbf16>, vector<32x16xf32> -> vector<32x16xf32>
    %84 = vector.extract_strided_slice %64 {offsets = [0, 0], sizes = [16, 32], strides = [1, 1]} : vector<32x32xbf16> to vector<16x32xbf16>
    %85 = arith.truncf %83 : vector<32x16xf32> to vector<32x16xbf16>
    %cst_29 = arith.constant dense<0.000000e+00> : vector<32x32xf32>
    %86 = tpu.matmul %85, %84, %cst_29 {dimension_numbers = #tpu.dot_dimension_numbers<[1], [0], [0], [1], [0, 0, 1, 1], [], []>} : vector<32x16xbf16>, vector<16x32xbf16>, vector<32x32xf32> -> vector<32x32xf32>
    %87 = vector.broadcast %60 : vector<1x32xf32> to vector<32x32xf32>
    %88 = arith.addf %87, %86 : vector<32x32xf32>
    %89 = vector.extract_strided_slice %61 {offsets = [0, 16], sizes = [32, 16], strides = [1, 1]} : vector<32x32xbf16> to vector<32x16xbf16>
    %90 = vector.extract_strided_slice %62 {offsets = [0, 16], sizes = [32, 16], strides = [1, 1]} : vector<32x32xbf16> to vector<32x16xbf16>
    %cst_30 = arith.constant dense<0.000000e+00> : vector<32x32xf32>
    %91 = tpu.matmul %89, %90, %cst_30 {dimension_numbers = #tpu.dot_dimension_numbers<[1], [1], [0], [0], [0, 0, 1, 0], [], []>} : vector<32x16xbf16>, vector<32x16xbf16>, vector<32x32xf32> -> vector<32x32xf32>
    %cst_31 = arith.constant 2.500000e-01 : f32
    %92 = vector.broadcast %cst_31 : f32 to vector<32x32xf32>
    %93 = arith.mulf %91, %92 : vector<32x32xf32>
    %94 = arith.addf %93, %24 : vector<32x32xf32>
    %cst_32 = arith.constant dense<0xFF800000> : vector<32xf32>
    %95 = vector.multi_reduction <maximumf>, %94, %cst_32 [1] : vector<32x32xf32> to vector<32xf32>
    %96 = vector.shape_cast %95 : vector<32xf32> to vector<32x1xf32>
    %97 = vector.broadcast %96 : vector<32x1xf32> to vector<32x32xf32>
    %98 = arith.subf %94, %97 : vector<32x32xf32>
    %99 = math.exp %98 : vector<32x32xf32>
    %cst_33 = arith.constant dense<0.000000e+00> : vector<32xf32>
    %100 = vector.multi_reduction <add>, %99, %cst_33 [1] : vector<32x32xf32> to vector<32xf32>
    %101 = vector.shape_cast %100 : vector<32xf32> to vector<32x1xf32>
    %102 = tpu.reciprocal %101 {approx = true} : vector<32x1xf32> -> vector<32x1xf32>
    %103 = vector.broadcast %102 : vector<32x1xf32> to vector<32x32xf32>
    %104 = arith.mulf %99, %103 : vector<32x32xf32>
    %105 = vector.extract_strided_slice %63 {offsets = [0, 16], sizes = [32, 16], strides = [1, 1]} : vector<32x32xbf16> to vector<32x16xbf16>
    %106 = arith.truncf %104 : vector<32x32xf32> to vector<32x32xbf16>
    %cst_34 = arith.constant dense<0.000000e+00> : vector<32x16xf32>
    %107 = tpu.matmul %106, %105, %cst_34 {dimension_numbers = #tpu.dot_dimension_numbers<[1], [0], [0], [1], [0, 0, 1, 1], [], []>} : vector<32x32xbf16>, vector<32x16xbf16>, vector<32x16xf32> -> vector<32x16xf32>
    %108 = vector.extract_strided_slice %64 {offsets = [16, 0], sizes = [16, 32], strides = [1, 1]} : vector<32x32xbf16> to vector<16x32xbf16>
    %109 = arith.truncf %107 : vector<32x16xf32> to vector<32x16xbf16>
    %cst_35 = arith.constant dense<0.000000e+00> : vector<32x32xf32>
    %110 = tpu.matmul %109, %108, %cst_35 {dimension_numbers = #tpu.dot_dimension_numbers<[1], [0], [0], [1], [0, 0, 1, 1], [], []>} : vector<32x16xbf16>, vector<16x32xbf16>, vector<32x32xf32> -> vector<32x32xf32>
    %111 = arith.addf %88, %110 : vector<32x32xf32>
    %112 = arith.addf %10, %111 : vector<32x32xf32>
    %113 = vector.extract_strided_slice %11 {offsets = [1, 0], sizes = [1, 32], strides = [1, 1]} : vector<3x32xf32> to vector<1x32xf32>
    %114 = vector.extract_strided_slice %12 {offsets = [1, 0], sizes = [1, 32], strides = [1, 1]} : vector<3x32xf32> to vector<1x32xf32>
    %cst_36 = arith.constant dense<0.000000e+00> : vector<32xf32>
    %115 = vector.multi_reduction <add>, %112, %cst_36 [1] : vector<32x32xf32> to vector<32xf32>
    %116 = vector.shape_cast %115 : vector<32xf32> to vector<32x1xf32>
    %cst_37 = arith.constant 3.200000e+01 : f32
    %117 = vector.broadcast %cst_37 : f32 to vector<32x1xf32>
    %118 = arith.divf %116, %117 : vector<32x1xf32>
    %119 = vector.broadcast %118 : vector<32x1xf32> to vector<32x32xf32>
    %120 = arith.subf %112, %119 : vector<32x32xf32>
    %121 = arith.mulf %120, %120 : vector<32x32xf32>
    %cst_38 = arith.constant dense<0.000000e+00> : vector<32xf32>
    %122 = vector.multi_reduction <add>, %121, %cst_38 [1] : vector<32x32xf32> to vector<32xf32>
    %123 = vector.shape_cast %122 : vector<32xf32> to vector<32x1xf32>
    %cst_39 = arith.constant 3.200000e+01 : f32
    %124 = vector.broadcast %cst_39 : f32 to vector<32x1xf32>
    %125 = arith.divf %123, %124 : vector<32x1xf32>
    %126 = vector.broadcast %118 : vector<32x1xf32> to vector<32x32xf32>
    %127 = arith.subf %112, %126 : vector<32x32xf32>
    %cst_40 = arith.constant 9.99999997E-7 : f32
    %128 = vector.broadcast %cst_40 : f32 to vector<32x1xf32>
    %129 = arith.addf %125, %128 : vector<32x1xf32>
    %130 = math.rsqrt %129 : vector<32x1xf32>
    %131 = vector.broadcast %130 : vector<32x1xf32> to vector<32x32xf32>
    %132 = arith.mulf %127, %131 : vector<32x32xf32>
    %133 = vector.broadcast %113 : vector<1x32xf32> to vector<32x32xf32>
    %134 = arith.mulf %132, %133 : vector<32x32xf32>
    %135 = vector.broadcast %114 : vector<1x32xf32> to vector<32x32xf32>
    %136 = arith.addf %134, %135 : vector<32x32xf32>
    %c0_41 = arith.constant 0 : index
    %c0_42 = arith.constant 0 : index
    %137 = vector.load %arg8[%c0_41, %c0_42] : memref<32x64xf32, #tpu.memory_space<vmem>>, vector<32x64xf32>
    %c0_43 = arith.constant 0 : index
    %c0_44 = arith.constant 0 : index
    %138 = vector.load %arg9[%c0_43, %c0_44] : memref<1x64xf32, #tpu.memory_space<vmem>>, vector<1x64xf32>
    %139 = arith.truncf %136 : vector<32x32xf32> to vector<32x32xbf16>
    %140 = arith.truncf %137 : vector<32x64xf32> to vector<32x64xbf16>
    %cst_45 = arith.constant dense<0.000000e+00> : vector<32x64xf32>
    %141 = tpu.matmul %139, %140, %cst_45 {dimension_numbers = #tpu.dot_dimension_numbers<[1], [0], [0], [1], [0, 0, 1, 1], [], []>} : vector<32x32xbf16>, vector<32x64xbf16>, vector<32x64xf32> -> vector<32x64xf32>
    %142 = vector.broadcast %138 : vector<1x64xf32> to vector<32x64xf32>
    %143 = arith.addf %141, %142 : vector<32x64xf32>
    %144 = arith.mulf %143, %143 : vector<32x64xf32>
    %145 = arith.mulf %143, %144 : vector<32x64xf32>
    %cst_46 = arith.constant 4.471500e-02 : f32
    %146 = vector.broadcast %cst_46 : f32 to vector<32x64xf32>
    %147 = arith.mulf %146, %145 : vector<32x64xf32>
    %148 = arith.addf %143, %147 : vector<32x64xf32>
    %cst_47 = arith.constant 0.797884583 : f32
    %149 = vector.broadcast %cst_47 : f32 to vector<32x64xf32>
    %150 = arith.mulf %149, %148 : vector<32x64xf32>
    %151 = math.tanh %150 : vector<32x64xf32>
    %cst_48 = arith.constant 1.000000e+00 : f32
    %152 = vector.broadcast %cst_48 : f32 to vector<32x64xf32>
    %153 = arith.addf %152, %151 : vector<32x64xf32>
    %cst_49 = arith.constant 5.000000e-01 : f32
    %154 = vector.broadcast %cst_49 : f32 to vector<32x64xf32>
    %155 = arith.mulf %154, %153 : vector<32x64xf32>
    %156 = arith.mulf %143, %155 : vector<32x64xf32>
    %c0_50 = arith.constant 0 : index
    %c0_51 = arith.constant 0 : index
    %157 = vector.load %arg10[%c0_50, %c0_51] : memref<64x32xf32, #tpu.memory_space<vmem>>, vector<64x32xf32>
    %c0_52 = arith.constant 0 : index
    %c0_53 = arith.constant 0 : index
    %158 = vector.load %arg11[%c0_52, %c0_53] : memref<1x32xf32, #tpu.memory_space<vmem>>, vector<1x32xf32>
    %159 = arith.truncf %156 : vector<32x64xf32> to vector<32x64xbf16>
    %160 = arith.truncf %157 : vector<64x32xf32> to vector<64x32xbf16>
    %cst_54 = arith.constant dense<0.000000e+00> : vector<32x32xf32>
    %161 = tpu.matmul %159, %160, %cst_54 {dimension_numbers = #tpu.dot_dimension_numbers<[1], [0], [0], [1], [0, 0, 1, 1], [], []>} : vector<32x64xbf16>, vector<64x32xbf16>, vector<32x32xf32> -> vector<32x32xf32>
    %162 = vector.broadcast %158 : vector<1x32xf32> to vector<32x32xf32>
    %163 = arith.addf %161, %162 : vector<32x32xf32>
    %164 = arith.addf %112, %163 : vector<32x32xf32>
    %c0_55 = arith.constant 0 : index
    %c0_56 = arith.constant 0 : index
    %165 = vector.load %arg12[%c0_55, %c0_56] : memref<32x32xf32, #tpu.memory_space<vmem>>, vector<32x32xf32>
    %c0_57 = arith.constant 0 : index
    %c0_58 = arith.constant 0 : index
    %166 = vector.load %arg13[%c0_57, %c0_58] : memref<1x32xf32, #tpu.memory_space<vmem>>, vector<1x32xf32>
    %167 = arith.truncf %164 : vector<32x32xf32> to vector<32x32xbf16>
    %168 = arith.truncf %165 : vector<32x32xf32> to vector<32x32xbf16>
    %cst_59 = arith.constant dense<0.000000e+00> : vector<32x32xf32>
    %169 = tpu.matmul %167, %168, %cst_59 {dimension_numbers = #tpu.dot_dimension_numbers<[1], [0], [0], [1], [0, 0, 1, 1], [], []>} : vector<32x32xbf16>, vector<32x32xbf16>, vector<32x32xf32> -> vector<32x32xf32>
    %170 = vector.broadcast %166 : vector<1x32xf32> to vector<32x32xf32>
    %171 = arith.addf %169, %170 : vector<32x32xf32>
    %172 = vector.extract_strided_slice %11 {offsets = [2, 0], sizes = [1, 32], strides = [1, 1]} : vector<3x32xf32> to vector<1x32xf32>
    %173 = vector.extract_strided_slice %12 {offsets = [2, 0], sizes = [1, 32], strides = [1, 1]} : vector<3x32xf32> to vector<1x32xf32>
    %cst_60 = arith.constant dense<0.000000e+00> : vector<32xf32>
    %174 = vector.multi_reduction <add>, %171, %cst_60 [1] : vector<32x32xf32> to vector<32xf32>
    %175 = vector.shape_cast %174 : vector<32xf32> to vector<32x1xf32>
    %cst_61 = arith.constant 3.200000e+01 : f32
    %176 = vector.broadcast %cst_61 : f32 to vector<32x1xf32>
    %177 = arith.divf %175, %176 : vector<32x1xf32>
    %178 = vector.broadcast %177 : vector<32x1xf32> to vector<32x32xf32>
    %179 = arith.subf %171, %178 : vector<32x32xf32>
    %180 = arith.mulf %179, %179 : vector<32x32xf32>
    %cst_62 = arith.constant dense<0.000000e+00> : vector<32xf32>
    %181 = vector.multi_reduction <add>, %180, %cst_62 [1] : vector<32x32xf32> to vector<32xf32>
    %182 = vector.shape_cast %181 : vector<32xf32> to vector<32x1xf32>
    %cst_63 = arith.constant 3.200000e+01 : f32
    %183 = vector.broadcast %cst_63 : f32 to vector<32x1xf32>
    %184 = arith.divf %182, %183 : vector<32x1xf32>
    %185 = vector.broadcast %177 : vector<32x1xf32> to vector<32x32xf32>
    %186 = arith.subf %171, %185 : vector<32x32xf32>
    %cst_64 = arith.constant 9.99999997E-7 : f32
    %187 = vector.broadcast %cst_64 : f32 to vector<32x1xf32>
    %188 = arith.addf %184, %187 : vector<32x1xf32>
    %189 = math.rsqrt %188 : vector<32x1xf32>
    %190 = vector.broadcast %189 : vector<32x1xf32> to vector<32x32xf32>
    %191 = arith.mulf %186, %190 : vector<32x32xf32>
    %192 = vector.broadcast %172 : vector<1x32xf32> to vector<32x32xf32>
    %193 = arith.mulf %191, %192 : vector<32x32xf32>
    %194 = vector.broadcast %173 : vector<1x32xf32> to vector<32x32xf32>
    %195 = arith.addf %193, %194 : vector<32x32xf32>
    %c0_65 = arith.constant 0 : index
    %c0_66 = arith.constant 0 : index
    %196 = vector.load %arg14[%c0_65, %c0_66] : memref<16x32xf32, #tpu.memory_space<vmem>>, vector<16x32xf32>
    %197 = tpu.concatenate %196, %196 in 0 : vector<16x32xf32>, vector<16x32xf32> -> vector<32x32xf32>
    %c0_67 = arith.constant 0 : index
    %c0_68 = arith.constant 0 : index
    %198 = vector.load %arg16[%c0_67, %c0_68] : memref<4x16xf32, #tpu.memory_space<vmem>>, vector<4x16xf32>
    %c0_69 = arith.constant 0 : index
    %c0_70 = arith.constant 0 : index
    %199 = vector.load %arg17[%c0_69, %c0_70] : memref<16x32xf32, #tpu.memory_space<vmem>>, vector<16x32xf32>
    %c0_71 = arith.constant 0 : index
    %c0_72 = arith.constant 0 : index
    %200 = vector.load %arg18[%c0_71, %c0_72] : memref<1x32xf32, #tpu.memory_space<vmem>>, vector<1x32xf32>
    %201 = arith.truncf %198 : vector<4x16xf32> to vector<4x16xbf16>
    %202 = arith.truncf %199 : vector<16x32xf32> to vector<16x32xbf16>
    %cst_73 = arith.constant dense<0.000000e+00> : vector<4x32xf32>
    %203 = tpu.matmul %201, %202, %cst_73 {dimension_numbers = #tpu.dot_dimension_numbers<[1], [0], [0], [1], [0, 0, 1, 1], [], []>} : vector<4x16xbf16>, vector<16x32xbf16>, vector<4x32xf32> -> vector<4x32xf32>
    %204 = vector.broadcast %200 : vector<1x32xf32> to vector<4x32xf32>
    %205 = arith.addf %203, %204 : vector<4x32xf32>
    %c0_74 = arith.constant 0 : index
    %c0_75 = arith.constant 0 : index
    %206 = vector.load %arg19[%c0_74, %c0_75] : memref<5x32xf32, #tpu.memory_space<vmem>>, vector<5x32xf32>
    %207 = vector.extract_strided_slice %205 {offsets = [0, 0], sizes = [2, 32], strides = [1, 1]} : vector<4x32xf32> to vector<2x32xf32>
    %208 = vector.extract_strided_slice %205 {offsets = [2, 0], sizes = [2, 32], strides = [1, 1]} : vector<4x32xf32> to vector<2x32xf32>
    %209 = tpu.concatenate %206, %207, %206, %208 in 0 : vector<5x32xf32>, vector<2x32xf32>, vector<5x32xf32>, vector<2x32xf32> -> vector<14x32xf32>
    %c0_76 = arith.constant 0 : index
    %c0_77 = arith.constant 0 : index
    %210 = vector.load %arg15[%c0_76, %c0_77] : memref<1x32xf32, #tpu.memory_space<vmem>>, vector<1x32xf32>
    %211 = vector.broadcast %210 : vector<1x32xf32> to vector<32x32xf32>
    %212 = arith.addf %195, %211 : vector<32x32xf32>
    %c0_78 = arith.constant 0 : index
    %c0_79 = arith.constant 0 : index
    %213 = vector.load %arg28[%c0_78, %c0_79] : memref<5x32xf32, #tpu.memory_space<vmem>>, vector<5x32xf32>
    %c0_80 = arith.constant 0 : index
    %c0_81 = arith.constant 0 : index
    %214 = vector.load %arg29[%c0_80, %c0_81] : memref<5x32xf32, #tpu.memory_space<vmem>>, vector<5x32xf32>
    %215 = tpu.iota {dimensions = array<i32: 0>} : vector<14x14xi32>
    %216 = tpu.iota {dimensions = array<i32: 1>} : vector<14x14xi32>
    %c7_i32 = arith.constant 7 : i32
    %217 = vector.broadcast %c7_i32 : i32 to vector<14x14xi32>
    %218 = arith.cmpi slt, %215, %217 : vector<14x14xi32>
    %c7_i32_82 = arith.constant 7 : i32
    %219 = vector.broadcast %c7_i32_82 : i32 to vector<14x14xi32>
    %220 = arith.cmpi slt, %216, %219 : vector<14x14xi32>
    %221 = arith.xori %218, %220 : vector<14x14xi1>
    %cst_83 = arith.constant -1.000000e+09 : f32
    %cst_84 = arith.constant 0.000000e+00 : f32
    %222 = vector.broadcast %cst_83 : f32 to vector<14x14xf32>
    %223 = vector.broadcast %cst_84 : f32 to vector<14x14xf32>
    %224 = arith.select %221, %222, %223 : vector<14x14xi1>, vector<14x14xf32>
    %225 = tpu.iota {dimensions = array<i32: 0>} : vector<14x32xi32>
    %226 = tpu.iota {dimensions = array<i32: 1>} : vector<14x32xi32>
    %c7_i32_85 = arith.constant 7 : i32
    %227 = vector.broadcast %c7_i32_85 : i32 to vector<14x32xi32>
    %228 = arith.cmpi slt, %225, %227 : vector<14x32xi32>
    %c16_i32_86 = arith.constant 16 : i32
    %229 = vector.broadcast %c16_i32_86 : i32 to vector<14x32xi32>
    %230 = arith.cmpi slt, %226, %229 : vector<14x32xi32>
    %231 = arith.xori %228, %230 : vector<14x32xi1>
    %cst_87 = arith.constant -1.000000e+09 : f32
    %cst_88 = arith.constant 0.000000e+00 : f32
    %232 = vector.broadcast %cst_87 : f32 to vector<14x32xf32>
    %233 = vector.broadcast %cst_88 : f32 to vector<14x32xf32>
    %234 = arith.select %231, %232, %233 : vector<14x32xi1>, vector<14x32xf32>
    %235 = tpu.iota {dimensions = array<i32: 0>} : vector<32x14xi32>
    %236 = tpu.iota {dimensions = array<i32: 1>} : vector<32x14xi32>
    %c16_i32_89 = arith.constant 16 : i32
    %237 = vector.broadcast %c16_i32_89 : i32 to vector<32x14xi32>
    %238 = arith.cmpi slt, %235, %237 : vector<32x14xi32>
    %c7_i32_90 = arith.constant 7 : i32
    %239 = vector.broadcast %c7_i32_90 : i32 to vector<32x14xi32>
    %240 = arith.cmpi slt, %236, %239 : vector<32x14xi32>
    %241 = arith.xori %238, %240 : vector<32x14xi1>
    %cst_91 = arith.constant -1.000000e+09 : f32
    %cst_92 = arith.constant 0.000000e+00 : f32
    %242 = vector.broadcast %cst_91 : f32 to vector<32x14xf32>
    %243 = vector.broadcast %cst_92 : f32 to vector<32x14xf32>
    %244 = arith.select %241, %242, %243 : vector<32x14xi1>, vector<32x14xf32>
    %c0_93 = arith.constant 0 : index
    %c0_94 = arith.constant 0 : index
    %245 = vector.load %arg20[%c0_93, %c0_94] : memref<32x128xf32, #tpu.memory_space<vmem>>, vector<32x128xf32>
    %c0_95 = arith.constant 0 : index
    %c0_96 = arith.constant 0 : index
    %246 = vector.load %arg21[%c0_95, %c0_96] : memref<1x128xf32, #tpu.memory_space<vmem>>, vector<1x128xf32>
    %247 = vector.extract_strided_slice %245 {offsets = [0, 0], sizes = [32, 96], strides = [1, 1]} : vector<32x128xf32> to vector<32x96xf32>
    %248 = vector.extract_strided_slice %246 {offsets = [0, 0], sizes = [1, 96], strides = [1, 1]} : vector<1x128xf32> to vector<1x96xf32>
    %249 = arith.truncf %209 : vector<14x32xf32> to vector<14x32xbf16>
    %250 = arith.truncf %247 : vector<32x96xf32> to vector<32x96xbf16>
    %cst_97 = arith.constant dense<0.000000e+00> : vector<14x96xf32>
    %251 = tpu.matmul %249, %250, %cst_97 {dimension_numbers = #tpu.dot_dimension_numbers<[1], [0], [0], [1], [0, 0, 1, 1], [], []>} : vector<14x32xbf16>, vector<32x96xbf16>, vector<14x96xf32> -> vector<14x96xf32>
    %252 = vector.broadcast %248 : vector<1x96xf32> to vector<14x96xf32>
    %253 = arith.addf %251, %252 : vector<14x96xf32>
    %254 = vector.extract_strided_slice %253 {offsets = [0, 0], sizes = [14, 32], strides = [1, 1]} : vector<14x96xf32> to vector<14x32xf32>
    %255 = vector.extract_strided_slice %253 {offsets = [0, 32], sizes = [14, 32], strides = [1, 1]} : vector<14x96xf32> to vector<14x32xf32>
    %256 = vector.extract_strided_slice %253 {offsets = [0, 64], sizes = [14, 32], strides = [1, 1]} : vector<14x96xf32> to vector<14x32xf32>
    %257 = vector.extract_strided_slice %245 {offsets = [0, 96], sizes = [32, 32], strides = [1, 1]} : vector<32x128xf32> to vector<32x32xf32>
    %258 = vector.extract_strided_slice %246 {offsets = [0, 96], sizes = [1, 32], strides = [1, 1]} : vector<1x128xf32> to vector<1x32xf32>
    %259 = arith.truncf %254 : vector<14x32xf32> to vector<14x32xbf16>
    %260 = arith.truncf %255 : vector<14x32xf32> to vector<14x32xbf16>
    %261 = arith.truncf %256 : vector<14x32xf32> to vector<14x32xbf16>
    %262 = arith.truncf %257 : vector<32x32xf32> to vector<32x32xbf16>
    %263 = vector.extract_strided_slice %259 {offsets = [0, 0], sizes = [14, 16], strides = [1, 1]} : vector<14x32xbf16> to vector<14x16xbf16>
    %264 = vector.extract_strided_slice %260 {offsets = [0, 0], sizes = [14, 16], strides = [1, 1]} : vector<14x32xbf16> to vector<14x16xbf16>
    %cst_98 = arith.constant dense<0.000000e+00> : vector<14x14xf32>
    %265 = tpu.matmul %263, %264, %cst_98 {dimension_numbers = #tpu.dot_dimension_numbers<[1], [1], [0], [0], [0, 0, 1, 0], [], []>} : vector<14x16xbf16>, vector<14x16xbf16>, vector<14x14xf32> -> vector<14x14xf32>
    %cst_99 = arith.constant 2.500000e-01 : f32
    %266 = vector.broadcast %cst_99 : f32 to vector<14x14xf32>
    %267 = arith.mulf %265, %266 : vector<14x14xf32>
    %268 = arith.addf %267, %224 : vector<14x14xf32>
    %cst_100 = arith.constant dense<0xFF800000> : vector<14xf32>
    %269 = vector.multi_reduction <maximumf>, %268, %cst_100 [1] : vector<14x14xf32> to vector<14xf32>
    %270 = vector.shape_cast %269 : vector<14xf32> to vector<14x1xf32>
    %271 = vector.broadcast %270 : vector<14x1xf32> to vector<14x14xf32>
    %272 = arith.subf %268, %271 : vector<14x14xf32>
    %273 = math.exp %272 : vector<14x14xf32>
    %cst_101 = arith.constant dense<0.000000e+00> : vector<14xf32>
    %274 = vector.multi_reduction <add>, %273, %cst_101 [1] : vector<14x14xf32> to vector<14xf32>
    %275 = vector.shape_cast %274 : vector<14xf32> to vector<14x1xf32>
    %276 = tpu.reciprocal %275 {approx = true} : vector<14x1xf32> -> vector<14x1xf32>
    %277 = vector.broadcast %276 : vector<14x1xf32> to vector<14x14xf32>
    %278 = arith.mulf %273, %277 : vector<14x14xf32>
    %279 = vector.extract_strided_slice %261 {offsets = [0, 0], sizes = [14, 16], strides = [1, 1]} : vector<14x32xbf16> to vector<14x16xbf16>
    %280 = arith.truncf %278 : vector<14x14xf32> to vector<14x14xbf16>
    %cst_102 = arith.constant dense<0.000000e+00> : vector<14x16xf32>
    %281 = tpu.matmul %280, %279, %cst_102 {dimension_numbers = #tpu.dot_dimension_numbers<[1], [0], [0], [1], [0, 0, 1, 1], [], []>} : vector<14x14xbf16>, vector<14x16xbf16>, vector<14x16xf32> -> vector<14x16xf32>
    %282 = vector.extract_strided_slice %262 {offsets = [0, 0], sizes = [16, 32], strides = [1, 1]} : vector<32x32xbf16> to vector<16x32xbf16>
    %283 = arith.truncf %281 : vector<14x16xf32> to vector<14x16xbf16>
    %cst_103 = arith.constant dense<0.000000e+00> : vector<14x32xf32>
    %284 = tpu.matmul %283, %282, %cst_103 {dimension_numbers = #tpu.dot_dimension_numbers<[1], [0], [0], [1], [0, 0, 1, 1], [], []>} : vector<14x16xbf16>, vector<16x32xbf16>, vector<14x32xf32> -> vector<14x32xf32>
    %285 = vector.broadcast %258 : vector<1x32xf32> to vector<14x32xf32>
    %286 = arith.addf %285, %284 : vector<14x32xf32>
    %287 = vector.extract_strided_slice %259 {offsets = [0, 16], sizes = [14, 16], strides = [1, 1]} : vector<14x32xbf16> to vector<14x16xbf16>
    %288 = vector.extract_strided_slice %260 {offsets = [0, 16], sizes = [14, 16], strides = [1, 1]} : vector<14x32xbf16> to vector<14x16xbf16>
    %cst_104 = arith.constant dense<0.000000e+00> : vector<14x14xf32>
    %289 = tpu.matmul %287, %288, %cst_104 {dimension_numbers = #tpu.dot_dimension_numbers<[1], [1], [0], [0], [0, 0, 1, 0], [], []>} : vector<14x16xbf16>, vector<14x16xbf16>, vector<14x14xf32> -> vector<14x14xf32>
    %cst_105 = arith.constant 2.500000e-01 : f32
    %290 = vector.broadcast %cst_105 : f32 to vector<14x14xf32>
    %291 = arith.mulf %289, %290 : vector<14x14xf32>
    %292 = arith.addf %291, %224 : vector<14x14xf32>
    %cst_106 = arith.constant dense<0xFF800000> : vector<14xf32>
    %293 = vector.multi_reduction <maximumf>, %292, %cst_106 [1] : vector<14x14xf32> to vector<14xf32>
    %294 = vector.shape_cast %293 : vector<14xf32> to vector<14x1xf32>
    %295 = vector.broadcast %294 : vector<14x1xf32> to vector<14x14xf32>
    %296 = arith.subf %292, %295 : vector<14x14xf32>
    %297 = math.exp %296 : vector<14x14xf32>
    %cst_107 = arith.constant dense<0.000000e+00> : vector<14xf32>
    %298 = vector.multi_reduction <add>, %297, %cst_107 [1] : vector<14x14xf32> to vector<14xf32>
    %299 = vector.shape_cast %298 : vector<14xf32> to vector<14x1xf32>
    %300 = tpu.reciprocal %299 {approx = true} : vector<14x1xf32> -> vector<14x1xf32>
    %301 = vector.broadcast %300 : vector<14x1xf32> to vector<14x14xf32>
    %302 = arith.mulf %297, %301 : vector<14x14xf32>
    %303 = vector.extract_strided_slice %261 {offsets = [0, 16], sizes = [14, 16], strides = [1, 1]} : vector<14x32xbf16> to vector<14x16xbf16>
    %304 = arith.truncf %302 : vector<14x14xf32> to vector<14x14xbf16>
    %cst_108 = arith.constant dense<0.000000e+00> : vector<14x16xf32>
    %305 = tpu.matmul %304, %303, %cst_108 {dimension_numbers = #tpu.dot_dimension_numbers<[1], [0], [0], [1], [0, 0, 1, 1], [], []>} : vector<14x14xbf16>, vector<14x16xbf16>, vector<14x16xf32> -> vector<14x16xf32>
    %306 = vector.extract_strided_slice %262 {offsets = [16, 0], sizes = [16, 32], strides = [1, 1]} : vector<32x32xbf16> to vector<16x32xbf16>
    %307 = arith.truncf %305 : vector<14x16xf32> to vector<14x16xbf16>
    %cst_109 = arith.constant dense<0.000000e+00> : vector<14x32xf32>
    %308 = tpu.matmul %307, %306, %cst_109 {dimension_numbers = #tpu.dot_dimension_numbers<[1], [0], [0], [1], [0, 0, 1, 1], [], []>} : vector<14x16xbf16>, vector<16x32xbf16>, vector<14x32xf32> -> vector<14x32xf32>
    %309 = arith.addf %286, %308 : vector<14x32xf32>
    %310 = vector.extract_strided_slice %213 {offsets = [0, 0], sizes = [1, 32], strides = [1, 1]} : vector<5x32xf32> to vector<1x32xf32>
    %311 = vector.extract_strided_slice %214 {offsets = [0, 0], sizes = [1, 32], strides = [1, 1]} : vector<5x32xf32> to vector<1x32xf32>
    %cst_110 = arith.constant dense<0.000000e+00> : vector<14xf32>
    %312 = vector.multi_reduction <add>, %309, %cst_110 [1] : vector<14x32xf32> to vector<14xf32>
    %313 = vector.shape_cast %312 : vector<14xf32> to vector<14x1xf32>
    %cst_111 = arith.constant 3.200000e+01 : f32
    %314 = vector.broadcast %cst_111 : f32 to vector<14x1xf32>
    %315 = arith.divf %313, %314 : vector<14x1xf32>
    %316 = vector.broadcast %315 : vector<14x1xf32> to vector<14x32xf32>
    %317 = arith.subf %309, %316 : vector<14x32xf32>
    %318 = arith.mulf %317, %317 : vector<14x32xf32>
    %cst_112 = arith.constant dense<0.000000e+00> : vector<14xf32>
    %319 = vector.multi_reduction <add>, %318, %cst_112 [1] : vector<14x32xf32> to vector<14xf32>
    %320 = vector.shape_cast %319 : vector<14xf32> to vector<14x1xf32>
    %cst_113 = arith.constant 3.200000e+01 : f32
    %321 = vector.broadcast %cst_113 : f32 to vector<14x1xf32>
    %322 = arith.divf %320, %321 : vector<14x1xf32>
    %323 = vector.broadcast %315 : vector<14x1xf32> to vector<14x32xf32>
    %324 = arith.subf %309, %323 : vector<14x32xf32>
    %cst_114 = arith.constant 9.99999974E-6 : f32
    %325 = vector.broadcast %cst_114 : f32 to vector<14x1xf32>
    %326 = arith.addf %322, %325 : vector<14x1xf32>
    %327 = math.rsqrt %326 : vector<14x1xf32>
    %328 = vector.broadcast %327 : vector<14x1xf32> to vector<14x32xf32>
    %329 = arith.mulf %324, %328 : vector<14x32xf32>
    %330 = vector.broadcast %310 : vector<1x32xf32> to vector<14x32xf32>
    %331 = arith.mulf %329, %330 : vector<14x32xf32>
    %332 = vector.broadcast %311 : vector<1x32xf32> to vector<14x32xf32>
    %333 = arith.addf %331, %332 : vector<14x32xf32>
    %334 = arith.addf %333, %209 : vector<14x32xf32>
    %335 = arith.addf %212, %197 : vector<32x32xf32>
    %c0_115 = arith.constant 0 : index
    %c0_116 = arith.constant 0 : index
    %336 = vector.load %arg22[%c0_115, %c0_116] : memref<32x128xf32, #tpu.memory_space<vmem>>, vector<32x128xf32>
    %c0_117 = arith.constant 0 : index
    %c0_118 = arith.constant 0 : index
    %337 = vector.load %arg23[%c0_117, %c0_118] : memref<1x128xf32, #tpu.memory_space<vmem>>, vector<1x128xf32>
    %338 = vector.extract_strided_slice %336 {offsets = [0, 0], sizes = [32, 32], strides = [1, 1]} : vector<32x128xf32> to vector<32x32xf32>
    %339 = vector.extract_strided_slice %337 {offsets = [0, 0], sizes = [1, 32], strides = [1, 1]} : vector<1x128xf32> to vector<1x32xf32>
    %340 = arith.truncf %334 : vector<14x32xf32> to vector<14x32xbf16>
    %341 = arith.truncf %338 : vector<32x32xf32> to vector<32x32xbf16>
    %cst_119 = arith.constant dense<0.000000e+00> : vector<14x32xf32>
    %342 = tpu.matmul %340, %341, %cst_119 {dimension_numbers = #tpu.dot_dimension_numbers<[1], [0], [0], [1], [0, 0, 1, 1], [], []>} : vector<14x32xbf16>, vector<32x32xbf16>, vector<14x32xf32> -> vector<14x32xf32>
    %343 = vector.broadcast %339 : vector<1x32xf32> to vector<14x32xf32>
    %344 = arith.addf %342, %343 : vector<14x32xf32>
    %345 = vector.extract_strided_slice %336 {offsets = [0, 32], sizes = [32, 32], strides = [1, 1]} : vector<32x128xf32> to vector<32x32xf32>
    %346 = vector.extract_strided_slice %337 {offsets = [0, 32], sizes = [1, 32], strides = [1, 1]} : vector<1x128xf32> to vector<1x32xf32>
    %347 = arith.truncf %335 : vector<32x32xf32> to vector<32x32xbf16>
    %348 = arith.truncf %345 : vector<32x32xf32> to vector<32x32xbf16>
    %cst_120 = arith.constant dense<0.000000e+00> : vector<32x32xf32>
    %349 = tpu.matmul %347, %348, %cst_120 {dimension_numbers = #tpu.dot_dimension_numbers<[1], [0], [0], [1], [0, 0, 1, 1], [], []>} : vector<32x32xbf16>, vector<32x32xbf16>, vector<32x32xf32> -> vector<32x32xf32>
    %350 = vector.broadcast %346 : vector<1x32xf32> to vector<32x32xf32>
    %351 = arith.addf %349, %350 : vector<32x32xf32>
    %352 = vector.extract_strided_slice %336 {offsets = [0, 64], sizes = [32, 32], strides = [1, 1]} : vector<32x128xf32> to vector<32x32xf32>
    %353 = vector.extract_strided_slice %337 {offsets = [0, 64], sizes = [1, 32], strides = [1, 1]} : vector<1x128xf32> to vector<1x32xf32>
    %354 = arith.truncf %212 : vector<32x32xf32> to vector<32x32xbf16>
    %355 = arith.truncf %352 : vector<32x32xf32> to vector<32x32xbf16>
    %cst_121 = arith.constant dense<0.000000e+00> : vector<32x32xf32>
    %356 = tpu.matmul %354, %355, %cst_121 {dimension_numbers = #tpu.dot_dimension_numbers<[1], [0], [0], [1], [0, 0, 1, 1], [], []>} : vector<32x32xbf16>, vector<32x32xbf16>, vector<32x32xf32> -> vector<32x32xf32>
    %357 = vector.broadcast %353 : vector<1x32xf32> to vector<32x32xf32>
    %358 = arith.addf %356, %357 : vector<32x32xf32>
    %359 = vector.extract_strided_slice %336 {offsets = [0, 96], sizes = [32, 32], strides = [1, 1]} : vector<32x128xf32> to vector<32x32xf32>
    %360 = vector.extract_strided_slice %337 {offsets = [0, 96], sizes = [1, 32], strides = [1, 1]} : vector<1x128xf32> to vector<1x32xf32>
    %361 = arith.truncf %344 : vector<14x32xf32> to vector<14x32xbf16>
    %362 = arith.truncf %351 : vector<32x32xf32> to vector<32x32xbf16>
    %363 = arith.truncf %358 : vector<32x32xf32> to vector<32x32xbf16>
    %364 = arith.truncf %359 : vector<32x32xf32> to vector<32x32xbf16>
    %365 = vector.extract_strided_slice %361 {offsets = [0, 0], sizes = [14, 16], strides = [1, 1]} : vector<14x32xbf16> to vector<14x16xbf16>
    %366 = vector.extract_strided_slice %362 {offsets = [0, 0], sizes = [32, 16], strides = [1, 1]} : vector<32x32xbf16> to vector<32x16xbf16>
    %cst_122 = arith.constant dense<0.000000e+00> : vector<14x32xf32>
    %367 = tpu.matmul %365, %366, %cst_122 {dimension_numbers = #tpu.dot_dimension_numbers<[1], [1], [0], [0], [0, 0, 1, 0], [], []>} : vector<14x16xbf16>, vector<32x16xbf16>, vector<14x32xf32> -> vector<14x32xf32>
    %cst_123 = arith.constant 2.500000e-01 : f32
    %368 = vector.broadcast %cst_123 : f32 to vector<14x32xf32>
    %369 = arith.mulf %367, %368 : vector<14x32xf32>
    %370 = arith.addf %369, %234 : vector<14x32xf32>
    %cst_124 = arith.constant dense<0xFF800000> : vector<14xf32>
    %371 = vector.multi_reduction <maximumf>, %370, %cst_124 [1] : vector<14x32xf32> to vector<14xf32>
    %372 = vector.shape_cast %371 : vector<14xf32> to vector<14x1xf32>
    %373 = vector.broadcast %372 : vector<14x1xf32> to vector<14x32xf32>
    %374 = arith.subf %370, %373 : vector<14x32xf32>
    %375 = math.exp %374 : vector<14x32xf32>
    %cst_125 = arith.constant dense<0.000000e+00> : vector<14xf32>
    %376 = vector.multi_reduction <add>, %375, %cst_125 [1] : vector<14x32xf32> to vector<14xf32>
    %377 = vector.shape_cast %376 : vector<14xf32> to vector<14x1xf32>
    %378 = tpu.reciprocal %377 {approx = true} : vector<14x1xf32> -> vector<14x1xf32>
    %379 = vector.broadcast %378 : vector<14x1xf32> to vector<14x32xf32>
    %380 = arith.mulf %375, %379 : vector<14x32xf32>
    %381 = vector.extract_strided_slice %363 {offsets = [0, 0], sizes = [32, 16], strides = [1, 1]} : vector<32x32xbf16> to vector<32x16xbf16>
    %382 = arith.truncf %380 : vector<14x32xf32> to vector<14x32xbf16>
    %cst_126 = arith.constant dense<0.000000e+00> : vector<14x16xf32>
    %383 = tpu.matmul %382, %381, %cst_126 {dimension_numbers = #tpu.dot_dimension_numbers<[1], [0], [0], [1], [0, 0, 1, 1], [], []>} : vector<14x32xbf16>, vector<32x16xbf16>, vector<14x16xf32> -> vector<14x16xf32>
    %384 = vector.extract_strided_slice %364 {offsets = [0, 0], sizes = [16, 32], strides = [1, 1]} : vector<32x32xbf16> to vector<16x32xbf16>
    %385 = arith.truncf %383 : vector<14x16xf32> to vector<14x16xbf16>
    %cst_127 = arith.constant dense<0.000000e+00> : vector<14x32xf32>
    %386 = tpu.matmul %385, %384, %cst_127 {dimension_numbers = #tpu.dot_dimension_numbers<[1], [0], [0], [1], [0, 0, 1, 1], [], []>} : vector<14x16xbf16>, vector<16x32xbf16>, vector<14x32xf32> -> vector<14x32xf32>
    %387 = vector.broadcast %360 : vector<1x32xf32> to vector<14x32xf32>
    %388 = arith.addf %387, %386 : vector<14x32xf32>
    %389 = vector.extract_strided_slice %361 {offsets = [0, 16], sizes = [14, 16], strides = [1, 1]} : vector<14x32xbf16> to vector<14x16xbf16>
    %390 = vector.extract_strided_slice %362 {offsets = [0, 16], sizes = [32, 16], strides = [1, 1]} : vector<32x32xbf16> to vector<32x16xbf16>
    %cst_128 = arith.constant dense<0.000000e+00> : vector<14x32xf32>
    %391 = tpu.matmul %389, %390, %cst_128 {dimension_numbers = #tpu.dot_dimension_numbers<[1], [1], [0], [0], [0, 0, 1, 0], [], []>} : vector<14x16xbf16>, vector<32x16xbf16>, vector<14x32xf32> -> vector<14x32xf32>
    %cst_129 = arith.constant 2.500000e-01 : f32
    %392 = vector.broadcast %cst_129 : f32 to vector<14x32xf32>
    %393 = arith.mulf %391, %392 : vector<14x32xf32>
    %394 = arith.addf %393, %234 : vector<14x32xf32>
    %cst_130 = arith.constant dense<0xFF800000> : vector<14xf32>
    %395 = vector.multi_reduction <maximumf>, %394, %cst_130 [1] : vector<14x32xf32> to vector<14xf32>
    %396 = vector.shape_cast %395 : vector<14xf32> to vector<14x1xf32>
    %397 = vector.broadcast %396 : vector<14x1xf32> to vector<14x32xf32>
    %398 = arith.subf %394, %397 : vector<14x32xf32>
    %399 = math.exp %398 : vector<14x32xf32>
    %cst_131 = arith.constant dense<0.000000e+00> : vector<14xf32>
    %400 = vector.multi_reduction <add>, %399, %cst_131 [1] : vector<14x32xf32> to vector<14xf32>
    %401 = vector.shape_cast %400 : vector<14xf32> to vector<14x1xf32>
    %402 = tpu.reciprocal %401 {approx = true} : vector<14x1xf32> -> vector<14x1xf32>
    %403 = vector.broadcast %402 : vector<14x1xf32> to vector<14x32xf32>
    %404 = arith.mulf %399, %403 : vector<14x32xf32>
    %405 = vector.extract_strided_slice %363 {offsets = [0, 16], sizes = [32, 16], strides = [1, 1]} : vector<32x32xbf16> to vector<32x16xbf16>
    %406 = arith.truncf %404 : vector<14x32xf32> to vector<14x32xbf16>
    %cst_132 = arith.constant dense<0.000000e+00> : vector<14x16xf32>
    %407 = tpu.matmul %406, %405, %cst_132 {dimension_numbers = #tpu.dot_dimension_numbers<[1], [0], [0], [1], [0, 0, 1, 1], [], []>} : vector<14x32xbf16>, vector<32x16xbf16>, vector<14x16xf32> -> vector<14x16xf32>
    %408 = vector.extract_strided_slice %364 {offsets = [16, 0], sizes = [16, 32], strides = [1, 1]} : vector<32x32xbf16> to vector<16x32xbf16>
    %409 = arith.truncf %407 : vector<14x16xf32> to vector<14x16xbf16>
    %cst_133 = arith.constant dense<0.000000e+00> : vector<14x32xf32>
    %410 = tpu.matmul %409, %408, %cst_133 {dimension_numbers = #tpu.dot_dimension_numbers<[1], [0], [0], [1], [0, 0, 1, 1], [], []>} : vector<14x16xbf16>, vector<16x32xbf16>, vector<14x32xf32> -> vector<14x32xf32>
    %411 = arith.addf %388, %410 : vector<14x32xf32>
    %412 = arith.addf %333, %411 : vector<14x32xf32>
    %413 = vector.extract_strided_slice %213 {offsets = [1, 0], sizes = [1, 32], strides = [1, 1]} : vector<5x32xf32> to vector<1x32xf32>
    %414 = vector.extract_strided_slice %214 {offsets = [1, 0], sizes = [1, 32], strides = [1, 1]} : vector<5x32xf32> to vector<1x32xf32>
    %cst_134 = arith.constant dense<0.000000e+00> : vector<14xf32>
    %415 = vector.multi_reduction <add>, %412, %cst_134 [1] : vector<14x32xf32> to vector<14xf32>
    %416 = vector.shape_cast %415 : vector<14xf32> to vector<14x1xf32>
    %cst_135 = arith.constant 3.200000e+01 : f32
    %417 = vector.broadcast %cst_135 : f32 to vector<14x1xf32>
    %418 = arith.divf %416, %417 : vector<14x1xf32>
    %419 = vector.broadcast %418 : vector<14x1xf32> to vector<14x32xf32>
    %420 = arith.subf %412, %419 : vector<14x32xf32>
    %421 = arith.mulf %420, %420 : vector<14x32xf32>
    %cst_136 = arith.constant dense<0.000000e+00> : vector<14xf32>
    %422 = vector.multi_reduction <add>, %421, %cst_136 [1] : vector<14x32xf32> to vector<14xf32>
    %423 = vector.shape_cast %422 : vector<14xf32> to vector<14x1xf32>
    %cst_137 = arith.constant 3.200000e+01 : f32
    %424 = vector.broadcast %cst_137 : f32 to vector<14x1xf32>
    %425 = arith.divf %423, %424 : vector<14x1xf32>
    %426 = vector.broadcast %418 : vector<14x1xf32> to vector<14x32xf32>
    %427 = arith.subf %412, %426 : vector<14x32xf32>
    %cst_138 = arith.constant 9.99999974E-6 : f32
    %428 = vector.broadcast %cst_138 : f32 to vector<14x1xf32>
    %429 = arith.addf %425, %428 : vector<14x1xf32>
    %430 = math.rsqrt %429 : vector<14x1xf32>
    %431 = vector.broadcast %430 : vector<14x1xf32> to vector<14x32xf32>
    %432 = arith.mulf %427, %431 : vector<14x32xf32>
    %433 = vector.broadcast %413 : vector<1x32xf32> to vector<14x32xf32>
    %434 = arith.mulf %432, %433 : vector<14x32xf32>
    %435 = vector.broadcast %414 : vector<1x32xf32> to vector<14x32xf32>
    %436 = arith.addf %434, %435 : vector<14x32xf32>
    %c0_139 = arith.constant 0 : index
    %c0_140 = arith.constant 0 : index
    %437 = vector.load %arg30[%c0_139, %c0_140] : memref<32x64xf32, #tpu.memory_space<vmem>>, vector<32x64xf32>
    %c0_141 = arith.constant 0 : index
    %c0_142 = arith.constant 0 : index
    %438 = vector.load %arg31[%c0_141, %c0_142] : memref<1x64xf32, #tpu.memory_space<vmem>>, vector<1x64xf32>
    %439 = arith.truncf %436 : vector<14x32xf32> to vector<14x32xbf16>
    %440 = arith.truncf %437 : vector<32x64xf32> to vector<32x64xbf16>
    %cst_143 = arith.constant dense<0.000000e+00> : vector<14x64xf32>
    %441 = tpu.matmul %439, %440, %cst_143 {dimension_numbers = #tpu.dot_dimension_numbers<[1], [0], [0], [1], [0, 0, 1, 1], [], []>} : vector<14x32xbf16>, vector<32x64xbf16>, vector<14x64xf32> -> vector<14x64xf32>
    %442 = vector.broadcast %438 : vector<1x64xf32> to vector<14x64xf32>
    %443 = arith.addf %441, %442 : vector<14x64xf32>
    %cst_144 = arith.constant 0.000000e+00 : f32
    %444 = vector.broadcast %cst_144 : f32 to vector<14x64xf32>
    %445 = arith.maximumf %443, %444 : vector<14x64xf32>
    %c0_145 = arith.constant 0 : index
    %c0_146 = arith.constant 0 : index
    %446 = vector.load %arg32[%c0_145, %c0_146] : memref<64x32xf32, #tpu.memory_space<vmem>>, vector<64x32xf32>
    %c0_147 = arith.constant 0 : index
    %c0_148 = arith.constant 0 : index
    %447 = vector.load %arg33[%c0_147, %c0_148] : memref<1x32xf32, #tpu.memory_space<vmem>>, vector<1x32xf32>
    %448 = arith.truncf %445 : vector<14x64xf32> to vector<14x64xbf16>
    %449 = arith.truncf %446 : vector<64x32xf32> to vector<64x32xbf16>
    %cst_149 = arith.constant dense<0.000000e+00> : vector<14x32xf32>
    %450 = tpu.matmul %448, %449, %cst_149 {dimension_numbers = #tpu.dot_dimension_numbers<[1], [0], [0], [1], [0, 0, 1, 1], [], []>} : vector<14x64xbf16>, vector<64x32xbf16>, vector<14x32xf32> -> vector<14x32xf32>
    %451 = vector.broadcast %447 : vector<1x32xf32> to vector<14x32xf32>
    %452 = arith.addf %450, %451 : vector<14x32xf32>
    %453 = arith.addf %436, %452 : vector<14x32xf32>
    %454 = vector.extract_strided_slice %213 {offsets = [2, 0], sizes = [1, 32], strides = [1, 1]} : vector<5x32xf32> to vector<1x32xf32>
    %455 = vector.extract_strided_slice %214 {offsets = [2, 0], sizes = [1, 32], strides = [1, 1]} : vector<5x32xf32> to vector<1x32xf32>
    %cst_150 = arith.constant dense<0.000000e+00> : vector<14xf32>
    %456 = vector.multi_reduction <add>, %453, %cst_150 [1] : vector<14x32xf32> to vector<14xf32>
    %457 = vector.shape_cast %456 : vector<14xf32> to vector<14x1xf32>
    %cst_151 = arith.constant 3.200000e+01 : f32
    %458 = vector.broadcast %cst_151 : f32 to vector<14x1xf32>
    %459 = arith.divf %457, %458 : vector<14x1xf32>
    %460 = vector.broadcast %459 : vector<14x1xf32> to vector<14x32xf32>
    %461 = arith.subf %453, %460 : vector<14x32xf32>
    %462 = arith.mulf %461, %461 : vector<14x32xf32>
    %cst_152 = arith.constant dense<0.000000e+00> : vector<14xf32>
    %463 = vector.multi_reduction <add>, %462, %cst_152 [1] : vector<14x32xf32> to vector<14xf32>
    %464 = vector.shape_cast %463 : vector<14xf32> to vector<14x1xf32>
    %cst_153 = arith.constant 3.200000e+01 : f32
    %465 = vector.broadcast %cst_153 : f32 to vector<14x1xf32>
    %466 = arith.divf %464, %465 : vector<14x1xf32>
    %467 = vector.broadcast %459 : vector<14x1xf32> to vector<14x32xf32>
    %468 = arith.subf %453, %467 : vector<14x32xf32>
    %cst_154 = arith.constant 9.99999974E-6 : f32
    %469 = vector.broadcast %cst_154 : f32 to vector<14x1xf32>
    %470 = arith.addf %466, %469 : vector<14x1xf32>
    %471 = math.rsqrt %470 : vector<14x1xf32>
    %472 = vector.broadcast %471 : vector<14x1xf32> to vector<14x32xf32>
    %473 = arith.mulf %468, %472 : vector<14x32xf32>
    %474 = vector.broadcast %454 : vector<1x32xf32> to vector<14x32xf32>
    %475 = arith.mulf %473, %474 : vector<14x32xf32>
    %476 = vector.broadcast %455 : vector<1x32xf32> to vector<14x32xf32>
    %477 = arith.addf %475, %476 : vector<14x32xf32>
    %478 = arith.addf %212, %197 : vector<32x32xf32>
    %479 = arith.addf %477, %209 : vector<14x32xf32>
    %c0_155 = arith.constant 0 : index
    %c0_156 = arith.constant 0 : index
    %480 = vector.load %arg24[%c0_155, %c0_156] : memref<32x128xf32, #tpu.memory_space<vmem>>, vector<32x128xf32>
    %c0_157 = arith.constant 0 : index
    %c0_158 = arith.constant 0 : index
    %481 = vector.load %arg25[%c0_157, %c0_158] : memref<1x128xf32, #tpu.memory_space<vmem>>, vector<1x128xf32>
    %482 = vector.extract_strided_slice %480 {offsets = [0, 0], sizes = [32, 32], strides = [1, 1]} : vector<32x128xf32> to vector<32x32xf32>
    %483 = vector.extract_strided_slice %481 {offsets = [0, 0], sizes = [1, 32], strides = [1, 1]} : vector<1x128xf32> to vector<1x32xf32>
    %484 = arith.truncf %478 : vector<32x32xf32> to vector<32x32xbf16>
    %485 = arith.truncf %482 : vector<32x32xf32> to vector<32x32xbf16>
    %cst_159 = arith.constant dense<0.000000e+00> : vector<32x32xf32>
    %486 = tpu.matmul %484, %485, %cst_159 {dimension_numbers = #tpu.dot_dimension_numbers<[1], [0], [0], [1], [0, 0, 1, 1], [], []>} : vector<32x32xbf16>, vector<32x32xbf16>, vector<32x32xf32> -> vector<32x32xf32>
    %487 = vector.broadcast %483 : vector<1x32xf32> to vector<32x32xf32>
    %488 = arith.addf %486, %487 : vector<32x32xf32>
    %489 = vector.extract_strided_slice %480 {offsets = [0, 32], sizes = [32, 32], strides = [1, 1]} : vector<32x128xf32> to vector<32x32xf32>
    %490 = vector.extract_strided_slice %481 {offsets = [0, 32], sizes = [1, 32], strides = [1, 1]} : vector<1x128xf32> to vector<1x32xf32>
    %491 = arith.truncf %479 : vector<14x32xf32> to vector<14x32xbf16>
    %492 = arith.truncf %489 : vector<32x32xf32> to vector<32x32xbf16>
    %cst_160 = arith.constant dense<0.000000e+00> : vector<14x32xf32>
    %493 = tpu.matmul %491, %492, %cst_160 {dimension_numbers = #tpu.dot_dimension_numbers<[1], [0], [0], [1], [0, 0, 1, 1], [], []>} : vector<14x32xbf16>, vector<32x32xbf16>, vector<14x32xf32> -> vector<14x32xf32>
    %494 = vector.broadcast %490 : vector<1x32xf32> to vector<14x32xf32>
    %495 = arith.addf %493, %494 : vector<14x32xf32>
    %496 = vector.extract_strided_slice %480 {offsets = [0, 64], sizes = [32, 32], strides = [1, 1]} : vector<32x128xf32> to vector<32x32xf32>
    %497 = vector.extract_strided_slice %481 {offsets = [0, 64], sizes = [1, 32], strides = [1, 1]} : vector<1x128xf32> to vector<1x32xf32>
    %498 = arith.truncf %477 : vector<14x32xf32> to vector<14x32xbf16>
    %499 = arith.truncf %496 : vector<32x32xf32> to vector<32x32xbf16>
    %cst_161 = arith.constant dense<0.000000e+00> : vector<14x32xf32>
    %500 = tpu.matmul %498, %499, %cst_161 {dimension_numbers = #tpu.dot_dimension_numbers<[1], [0], [0], [1], [0, 0, 1, 1], [], []>} : vector<14x32xbf16>, vector<32x32xbf16>, vector<14x32xf32> -> vector<14x32xf32>
    %501 = vector.broadcast %497 : vector<1x32xf32> to vector<14x32xf32>
    %502 = arith.addf %500, %501 : vector<14x32xf32>
    %503 = vector.extract_strided_slice %480 {offsets = [0, 96], sizes = [32, 32], strides = [1, 1]} : vector<32x128xf32> to vector<32x32xf32>
    %504 = vector.extract_strided_slice %481 {offsets = [0, 96], sizes = [1, 32], strides = [1, 1]} : vector<1x128xf32> to vector<1x32xf32>
    %505 = arith.truncf %488 : vector<32x32xf32> to vector<32x32xbf16>
    %506 = arith.truncf %495 : vector<14x32xf32> to vector<14x32xbf16>
    %507 = arith.truncf %502 : vector<14x32xf32> to vector<14x32xbf16>
    %508 = arith.truncf %503 : vector<32x32xf32> to vector<32x32xbf16>
    %509 = vector.extract_strided_slice %505 {offsets = [0, 0], sizes = [32, 16], strides = [1, 1]} : vector<32x32xbf16> to vector<32x16xbf16>
    %510 = vector.extract_strided_slice %506 {offsets = [0, 0], sizes = [14, 16], strides = [1, 1]} : vector<14x32xbf16> to vector<14x16xbf16>
    %cst_162 = arith.constant dense<0.000000e+00> : vector<32x14xf32>
    %511 = tpu.matmul %509, %510, %cst_162 {dimension_numbers = #tpu.dot_dimension_numbers<[1], [1], [0], [0], [0, 0, 1, 0], [], []>} : vector<32x16xbf16>, vector<14x16xbf16>, vector<32x14xf32> -> vector<32x14xf32>
    %cst_163 = arith.constant 2.500000e-01 : f32
    %512 = vector.broadcast %cst_163 : f32 to vector<32x14xf32>
    %513 = arith.mulf %511, %512 : vector<32x14xf32>
    %514 = arith.addf %513, %244 : vector<32x14xf32>
    %cst_164 = arith.constant dense<0xFF800000> : vector<32xf32>
    %515 = vector.multi_reduction <maximumf>, %514, %cst_164 [1] : vector<32x14xf32> to vector<32xf32>
    %516 = vector.shape_cast %515 : vector<32xf32> to vector<32x1xf32>
    %517 = vector.broadcast %516 : vector<32x1xf32> to vector<32x14xf32>
    %518 = arith.subf %514, %517 : vector<32x14xf32>
    %519 = math.exp %518 : vector<32x14xf32>
    %cst_165 = arith.constant dense<0.000000e+00> : vector<32xf32>
    %520 = vector.multi_reduction <add>, %519, %cst_165 [1] : vector<32x14xf32> to vector<32xf32>
    %521 = vector.shape_cast %520 : vector<32xf32> to vector<32x1xf32>
    %522 = tpu.reciprocal %521 {approx = true} : vector<32x1xf32> -> vector<32x1xf32>
    %523 = vector.broadcast %522 : vector<32x1xf32> to vector<32x14xf32>
    %524 = arith.mulf %519, %523 : vector<32x14xf32>
    %525 = vector.extract_strided_slice %507 {offsets = [0, 0], sizes = [14, 16], strides = [1, 1]} : vector<14x32xbf16> to vector<14x16xbf16>
    %526 = arith.truncf %524 : vector<32x14xf32> to vector<32x14xbf16>
    %cst_166 = arith.constant dense<0.000000e+00> : vector<32x16xf32>
    %527 = tpu.matmul %526, %525, %cst_166 {dimension_numbers = #tpu.dot_dimension_numbers<[1], [0], [0], [1], [0, 0, 1, 1], [], []>} : vector<32x14xbf16>, vector<14x16xbf16>, vector<32x16xf32> -> vector<32x16xf32>
    %528 = vector.extract_strided_slice %508 {offsets = [0, 0], sizes = [16, 32], strides = [1, 1]} : vector<32x32xbf16> to vector<16x32xbf16>
    %529 = arith.truncf %527 : vector<32x16xf32> to vector<32x16xbf16>
    %cst_167 = arith.constant dense<0.000000e+00> : vector<32x32xf32>
    %530 = tpu.matmul %529, %528, %cst_167 {dimension_numbers = #tpu.dot_dimension_numbers<[1], [0], [0], [1], [0, 0, 1, 1], [], []>} : vector<32x16xbf16>, vector<16x32xbf16>, vector<32x32xf32> -> vector<32x32xf32>
    %531 = vector.broadcast %504 : vector<1x32xf32> to vector<32x32xf32>
    %532 = arith.addf %531, %530 : vector<32x32xf32>
    %533 = vector.extract_strided_slice %505 {offsets = [0, 16], sizes = [32, 16], strides = [1, 1]} : vector<32x32xbf16> to vector<32x16xbf16>
    %534 = vector.extract_strided_slice %506 {offsets = [0, 16], sizes = [14, 16], strides = [1, 1]} : vector<14x32xbf16> to vector<14x16xbf16>
    %cst_168 = arith.constant dense<0.000000e+00> : vector<32x14xf32>
    %535 = tpu.matmul %533, %534, %cst_168 {dimension_numbers = #tpu.dot_dimension_numbers<[1], [1], [0], [0], [0, 0, 1, 0], [], []>} : vector<32x16xbf16>, vector<14x16xbf16>, vector<32x14xf32> -> vector<32x14xf32>
    %cst_169 = arith.constant 2.500000e-01 : f32
    %536 = vector.broadcast %cst_169 : f32 to vector<32x14xf32>
    %537 = arith.mulf %535, %536 : vector<32x14xf32>
    %538 = arith.addf %537, %244 : vector<32x14xf32>
    %cst_170 = arith.constant dense<0xFF800000> : vector<32xf32>
    %539 = vector.multi_reduction <maximumf>, %538, %cst_170 [1] : vector<32x14xf32> to vector<32xf32>
    %540 = vector.shape_cast %539 : vector<32xf32> to vector<32x1xf32>
    %541 = vector.broadcast %540 : vector<32x1xf32> to vector<32x14xf32>
    %542 = arith.subf %538, %541 : vector<32x14xf32>
    %543 = math.exp %542 : vector<32x14xf32>
    %cst_171 = arith.constant dense<0.000000e+00> : vector<32xf32>
    %544 = vector.multi_reduction <add>, %543, %cst_171 [1] : vector<32x14xf32> to vector<32xf32>
    %545 = vector.shape_cast %544 : vector<32xf32> to vector<32x1xf32>
    %546 = tpu.reciprocal %545 {approx = true} : vector<32x1xf32> -> vector<32x1xf32>
    %547 = vector.broadcast %546 : vector<32x1xf32> to vector<32x14xf32>
    %548 = arith.mulf %543, %547 : vector<32x14xf32>
    %549 = vector.extract_strided_slice %507 {offsets = [0, 16], sizes = [14, 16], strides = [1, 1]} : vector<14x32xbf16> to vector<14x16xbf16>
    %550 = arith.truncf %548 : vector<32x14xf32> to vector<32x14xbf16>
    %cst_172 = arith.constant dense<0.000000e+00> : vector<32x16xf32>
    %551 = tpu.matmul %550, %549, %cst_172 {dimension_numbers = #tpu.dot_dimension_numbers<[1], [0], [0], [1], [0, 0, 1, 1], [], []>} : vector<32x14xbf16>, vector<14x16xbf16>, vector<32x16xf32> -> vector<32x16xf32>
    %552 = vector.extract_strided_slice %508 {offsets = [16, 0], sizes = [16, 32], strides = [1, 1]} : vector<32x32xbf16> to vector<16x32xbf16>
    %553 = arith.truncf %551 : vector<32x16xf32> to vector<32x16xbf16>
    %cst_173 = arith.constant dense<0.000000e+00> : vector<32x32xf32>
    %554 = tpu.matmul %553, %552, %cst_173 {dimension_numbers = #tpu.dot_dimension_numbers<[1], [0], [0], [1], [0, 0, 1, 1], [], []>} : vector<32x16xbf16>, vector<16x32xbf16>, vector<32x32xf32> -> vector<32x32xf32>
    %555 = arith.addf %532, %554 : vector<32x32xf32>
    %556 = arith.addf %212, %555 : vector<32x32xf32>
    %557 = vector.extract_strided_slice %213 {offsets = [3, 0], sizes = [1, 32], strides = [1, 1]} : vector<5x32xf32> to vector<1x32xf32>
    %558 = vector.extract_strided_slice %214 {offsets = [3, 0], sizes = [1, 32], strides = [1, 1]} : vector<5x32xf32> to vector<1x32xf32>
    %cst_174 = arith.constant dense<0.000000e+00> : vector<32xf32>
    %559 = vector.multi_reduction <add>, %556, %cst_174 [1] : vector<32x32xf32> to vector<32xf32>
    %560 = vector.shape_cast %559 : vector<32xf32> to vector<32x1xf32>
    %cst_175 = arith.constant 3.200000e+01 : f32
    %561 = vector.broadcast %cst_175 : f32 to vector<32x1xf32>
    %562 = arith.divf %560, %561 : vector<32x1xf32>
    %563 = vector.broadcast %562 : vector<32x1xf32> to vector<32x32xf32>
    %564 = arith.subf %556, %563 : vector<32x32xf32>
    %565 = arith.mulf %564, %564 : vector<32x32xf32>
    %cst_176 = arith.constant dense<0.000000e+00> : vector<32xf32>
    %566 = vector.multi_reduction <add>, %565, %cst_176 [1] : vector<32x32xf32> to vector<32xf32>
    %567 = vector.shape_cast %566 : vector<32xf32> to vector<32x1xf32>
    %cst_177 = arith.constant 3.200000e+01 : f32
    %568 = vector.broadcast %cst_177 : f32 to vector<32x1xf32>
    %569 = arith.divf %567, %568 : vector<32x1xf32>
    %570 = vector.broadcast %562 : vector<32x1xf32> to vector<32x32xf32>
    %571 = arith.subf %556, %570 : vector<32x32xf32>
    %cst_178 = arith.constant 9.99999974E-6 : f32
    %572 = vector.broadcast %cst_178 : f32 to vector<32x1xf32>
    %573 = arith.addf %569, %572 : vector<32x1xf32>
    %574 = math.rsqrt %573 : vector<32x1xf32>
    %575 = vector.broadcast %574 : vector<32x1xf32> to vector<32x32xf32>
    %576 = arith.mulf %571, %575 : vector<32x32xf32>
    %577 = vector.broadcast %557 : vector<1x32xf32> to vector<32x32xf32>
    %578 = arith.mulf %576, %577 : vector<32x32xf32>
    %579 = vector.broadcast %558 : vector<1x32xf32> to vector<32x32xf32>
    %580 = arith.addf %578, %579 : vector<32x32xf32>
    %581 = arith.addf %477, %209 : vector<14x32xf32>
    %582 = arith.addf %580, %197 : vector<32x32xf32>
    %c0_179 = arith.constant 0 : index
    %c0_180 = arith.constant 0 : index
    %583 = vector.load %arg26[%c0_179, %c0_180] : memref<32x128xf32, #tpu.memory_space<vmem>>, vector<32x128xf32>
    %c0_181 = arith.constant 0 : index
    %c0_182 = arith.constant 0 : index
    %584 = vector.load %arg27[%c0_181, %c0_182] : memref<1x128xf32, #tpu.memory_space<vmem>>, vector<1x128xf32>
    %585 = vector.extract_strided_slice %583 {offsets = [0, 0], sizes = [32, 32], strides = [1, 1]} : vector<32x128xf32> to vector<32x32xf32>
    %586 = vector.extract_strided_slice %584 {offsets = [0, 0], sizes = [1, 32], strides = [1, 1]} : vector<1x128xf32> to vector<1x32xf32>
    %587 = arith.truncf %581 : vector<14x32xf32> to vector<14x32xbf16>
    %588 = arith.truncf %585 : vector<32x32xf32> to vector<32x32xbf16>
    %cst_183 = arith.constant dense<0.000000e+00> : vector<14x32xf32>
    %589 = tpu.matmul %587, %588, %cst_183 {dimension_numbers = #tpu.dot_dimension_numbers<[1], [0], [0], [1], [0, 0, 1, 1], [], []>} : vector<14x32xbf16>, vector<32x32xbf16>, vector<14x32xf32> -> vector<14x32xf32>
    %590 = vector.broadcast %586 : vector<1x32xf32> to vector<14x32xf32>
    %591 = arith.addf %589, %590 : vector<14x32xf32>
    %592 = vector.extract_strided_slice %583 {offsets = [0, 32], sizes = [32, 32], strides = [1, 1]} : vector<32x128xf32> to vector<32x32xf32>
    %593 = vector.extract_strided_slice %584 {offsets = [0, 32], sizes = [1, 32], strides = [1, 1]} : vector<1x128xf32> to vector<1x32xf32>
    %594 = arith.truncf %582 : vector<32x32xf32> to vector<32x32xbf16>
    %595 = arith.truncf %592 : vector<32x32xf32> to vector<32x32xbf16>
    %cst_184 = arith.constant dense<0.000000e+00> : vector<32x32xf32>
    %596 = tpu.matmul %594, %595, %cst_184 {dimension_numbers = #tpu.dot_dimension_numbers<[1], [0], [0], [1], [0, 0, 1, 1], [], []>} : vector<32x32xbf16>, vector<32x32xbf16>, vector<32x32xf32> -> vector<32x32xf32>
    %597 = vector.broadcast %593 : vector<1x32xf32> to vector<32x32xf32>
    %598 = arith.addf %596, %597 : vector<32x32xf32>
    %599 = vector.extract_strided_slice %583 {offsets = [0, 64], sizes = [32, 32], strides = [1, 1]} : vector<32x128xf32> to vector<32x32xf32>
    %600 = vector.extract_strided_slice %584 {offsets = [0, 64], sizes = [1, 32], strides = [1, 1]} : vector<1x128xf32> to vector<1x32xf32>
    %601 = arith.truncf %580 : vector<32x32xf32> to vector<32x32xbf16>
    %602 = arith.truncf %599 : vector<32x32xf32> to vector<32x32xbf16>
    %cst_185 = arith.constant dense<0.000000e+00> : vector<32x32xf32>
    %603 = tpu.matmul %601, %602, %cst_185 {dimension_numbers = #tpu.dot_dimension_numbers<[1], [0], [0], [1], [0, 0, 1, 1], [], []>} : vector<32x32xbf16>, vector<32x32xbf16>, vector<32x32xf32> -> vector<32x32xf32>
    %604 = vector.broadcast %600 : vector<1x32xf32> to vector<32x32xf32>
    %605 = arith.addf %603, %604 : vector<32x32xf32>
    %606 = vector.extract_strided_slice %583 {offsets = [0, 96], sizes = [32, 32], strides = [1, 1]} : vector<32x128xf32> to vector<32x32xf32>
    %607 = vector.extract_strided_slice %584 {offsets = [0, 96], sizes = [1, 32], strides = [1, 1]} : vector<1x128xf32> to vector<1x32xf32>
    %608 = arith.truncf %591 : vector<14x32xf32> to vector<14x32xbf16>
    %609 = arith.truncf %598 : vector<32x32xf32> to vector<32x32xbf16>
    %610 = arith.truncf %605 : vector<32x32xf32> to vector<32x32xbf16>
    %611 = arith.truncf %606 : vector<32x32xf32> to vector<32x32xbf16>
    %612 = vector.extract_strided_slice %608 {offsets = [0, 0], sizes = [14, 16], strides = [1, 1]} : vector<14x32xbf16> to vector<14x16xbf16>
    %613 = vector.extract_strided_slice %609 {offsets = [0, 0], sizes = [32, 16], strides = [1, 1]} : vector<32x32xbf16> to vector<32x16xbf16>
    %cst_186 = arith.constant dense<0.000000e+00> : vector<14x32xf32>
    %614 = tpu.matmul %612, %613, %cst_186 {dimension_numbers = #tpu.dot_dimension_numbers<[1], [1], [0], [0], [0, 0, 1, 0], [], []>} : vector<14x16xbf16>, vector<32x16xbf16>, vector<14x32xf32> -> vector<14x32xf32>
    %cst_187 = arith.constant 2.500000e-01 : f32
    %615 = vector.broadcast %cst_187 : f32 to vector<14x32xf32>
    %616 = arith.mulf %614, %615 : vector<14x32xf32>
    %617 = arith.addf %616, %234 : vector<14x32xf32>
    %cst_188 = arith.constant dense<0xFF800000> : vector<14xf32>
    %618 = vector.multi_reduction <maximumf>, %617, %cst_188 [1] : vector<14x32xf32> to vector<14xf32>
    %619 = vector.shape_cast %618 : vector<14xf32> to vector<14x1xf32>
    %620 = vector.broadcast %619 : vector<14x1xf32> to vector<14x32xf32>
    %621 = arith.subf %617, %620 : vector<14x32xf32>
    %622 = math.exp %621 : vector<14x32xf32>
    %cst_189 = arith.constant dense<0.000000e+00> : vector<14xf32>
    %623 = vector.multi_reduction <add>, %622, %cst_189 [1] : vector<14x32xf32> to vector<14xf32>
    %624 = vector.shape_cast %623 : vector<14xf32> to vector<14x1xf32>
    %625 = tpu.reciprocal %624 {approx = true} : vector<14x1xf32> -> vector<14x1xf32>
    %626 = vector.broadcast %625 : vector<14x1xf32> to vector<14x32xf32>
    %627 = arith.mulf %622, %626 : vector<14x32xf32>
    %628 = vector.extract_strided_slice %610 {offsets = [0, 0], sizes = [32, 16], strides = [1, 1]} : vector<32x32xbf16> to vector<32x16xbf16>
    %629 = arith.truncf %627 : vector<14x32xf32> to vector<14x32xbf16>
    %cst_190 = arith.constant dense<0.000000e+00> : vector<14x16xf32>
    %630 = tpu.matmul %629, %628, %cst_190 {dimension_numbers = #tpu.dot_dimension_numbers<[1], [0], [0], [1], [0, 0, 1, 1], [], []>} : vector<14x32xbf16>, vector<32x16xbf16>, vector<14x16xf32> -> vector<14x16xf32>
    %631 = vector.extract_strided_slice %611 {offsets = [0, 0], sizes = [16, 32], strides = [1, 1]} : vector<32x32xbf16> to vector<16x32xbf16>
    %632 = arith.truncf %630 : vector<14x16xf32> to vector<14x16xbf16>
    %cst_191 = arith.constant dense<0.000000e+00> : vector<14x32xf32>
    %633 = tpu.matmul %632, %631, %cst_191 {dimension_numbers = #tpu.dot_dimension_numbers<[1], [0], [0], [1], [0, 0, 1, 1], [], []>} : vector<14x16xbf16>, vector<16x32xbf16>, vector<14x32xf32> -> vector<14x32xf32>
    %634 = vector.broadcast %607 : vector<1x32xf32> to vector<14x32xf32>
    %635 = arith.addf %634, %633 : vector<14x32xf32>
    %636 = vector.extract_strided_slice %608 {offsets = [0, 16], sizes = [14, 16], strides = [1, 1]} : vector<14x32xbf16> to vector<14x16xbf16>
    %637 = vector.extract_strided_slice %609 {offsets = [0, 16], sizes = [32, 16], strides = [1, 1]} : vector<32x32xbf16> to vector<32x16xbf16>
    %cst_192 = arith.constant dense<0.000000e+00> : vector<14x32xf32>
    %638 = tpu.matmul %636, %637, %cst_192 {dimension_numbers = #tpu.dot_dimension_numbers<[1], [1], [0], [0], [0, 0, 1, 0], [], []>} : vector<14x16xbf16>, vector<32x16xbf16>, vector<14x32xf32> -> vector<14x32xf32>
    %cst_193 = arith.constant 2.500000e-01 : f32
    %639 = vector.broadcast %cst_193 : f32 to vector<14x32xf32>
    %640 = arith.mulf %638, %639 : vector<14x32xf32>
    %641 = arith.addf %640, %234 : vector<14x32xf32>
    %cst_194 = arith.constant dense<0xFF800000> : vector<14xf32>
    %642 = vector.multi_reduction <maximumf>, %641, %cst_194 [1] : vector<14x32xf32> to vector<14xf32>
    %643 = vector.shape_cast %642 : vector<14xf32> to vector<14x1xf32>
    %644 = vector.broadcast %643 : vector<14x1xf32> to vector<14x32xf32>
    %645 = arith.subf %641, %644 : vector<14x32xf32>
    %646 = math.exp %645 : vector<14x32xf32>
    %cst_195 = arith.constant dense<0.000000e+00> : vector<14xf32>
    %647 = vector.multi_reduction <add>, %646, %cst_195 [1] : vector<14x32xf32> to vector<14xf32>
    %648 = vector.shape_cast %647 : vector<14xf32> to vector<14x1xf32>
    %649 = tpu.reciprocal %648 {approx = true} : vector<14x1xf32> -> vector<14x1xf32>
    %650 = vector.broadcast %649 : vector<14x1xf32> to vector<14x32xf32>
    %651 = arith.mulf %646, %650 : vector<14x32xf32>
    %652 = vector.extract_strided_slice %610 {offsets = [0, 16], sizes = [32, 16], strides = [1, 1]} : vector<32x32xbf16> to vector<32x16xbf16>
    %653 = arith.truncf %651 : vector<14x32xf32> to vector<14x32xbf16>
    %cst_196 = arith.constant dense<0.000000e+00> : vector<14x16xf32>
    %654 = tpu.matmul %653, %652, %cst_196 {dimension_numbers = #tpu.dot_dimension_numbers<[1], [0], [0], [1], [0, 0, 1, 1], [], []>} : vector<14x32xbf16>, vector<32x16xbf16>, vector<14x16xf32> -> vector<14x16xf32>
    %655 = vector.extract_strided_slice %611 {offsets = [16, 0], sizes = [16, 32], strides = [1, 1]} : vector<32x32xbf16> to vector<16x32xbf16>
    %656 = arith.truncf %654 : vector<14x16xf32> to vector<14x16xbf16>
    %cst_197 = arith.constant dense<0.000000e+00> : vector<14x32xf32>
    %657 = tpu.matmul %656, %655, %cst_197 {dimension_numbers = #tpu.dot_dimension_numbers<[1], [0], [0], [1], [0, 0, 1, 1], [], []>} : vector<14x16xbf16>, vector<16x32xbf16>, vector<14x32xf32> -> vector<14x32xf32>
    %658 = arith.addf %635, %657 : vector<14x32xf32>
    %659 = arith.addf %477, %658 : vector<14x32xf32>
    %660 = vector.extract_strided_slice %213 {offsets = [4, 0], sizes = [1, 32], strides = [1, 1]} : vector<5x32xf32> to vector<1x32xf32>
    %661 = vector.extract_strided_slice %214 {offsets = [4, 0], sizes = [1, 32], strides = [1, 1]} : vector<5x32xf32> to vector<1x32xf32>
    %cst_198 = arith.constant dense<0.000000e+00> : vector<14xf32>
    %662 = vector.multi_reduction <add>, %659, %cst_198 [1] : vector<14x32xf32> to vector<14xf32>
    %663 = vector.shape_cast %662 : vector<14xf32> to vector<14x1xf32>
    %cst_199 = arith.constant 3.200000e+01 : f32
    %664 = vector.broadcast %cst_199 : f32 to vector<14x1xf32>
    %665 = arith.divf %663, %664 : vector<14x1xf32>
    %666 = vector.broadcast %665 : vector<14x1xf32> to vector<14x32xf32>
    %667 = arith.subf %659, %666 : vector<14x32xf32>
    %668 = arith.mulf %667, %667 : vector<14x32xf32>
    %cst_200 = arith.constant dense<0.000000e+00> : vector<14xf32>
    %669 = vector.multi_reduction <add>, %668, %cst_200 [1] : vector<14x32xf32> to vector<14xf32>
    %670 = vector.shape_cast %669 : vector<14xf32> to vector<14x1xf32>
    %cst_201 = arith.constant 3.200000e+01 : f32
    %671 = vector.broadcast %cst_201 : f32 to vector<14x1xf32>
    %672 = arith.divf %670, %671 : vector<14x1xf32>
    %673 = vector.broadcast %665 : vector<14x1xf32> to vector<14x32xf32>
    %674 = arith.subf %659, %673 : vector<14x32xf32>
    %cst_202 = arith.constant 9.99999974E-6 : f32
    %675 = vector.broadcast %cst_202 : f32 to vector<14x1xf32>
    %676 = arith.addf %672, %675 : vector<14x1xf32>
    %677 = math.rsqrt %676 : vector<14x1xf32>
    %678 = vector.broadcast %677 : vector<14x1xf32> to vector<14x32xf32>
    %679 = arith.mulf %674, %678 : vector<14x32xf32>
    %680 = vector.broadcast %660 : vector<1x32xf32> to vector<14x32xf32>
    %681 = arith.mulf %679, %680 : vector<14x32xf32>
    %682 = vector.broadcast %661 : vector<1x32xf32> to vector<14x32xf32>
    %683 = arith.addf %681, %682 : vector<14x32xf32>
    %684 = vector.extract_strided_slice %683 {offsets = [1, 0], sizes = [4, 32], strides = [1, 1]} : vector<14x32xf32> to vector<4x32xf32>
    %685 = vector.extract_strided_slice %683 {offsets = [8, 0], sizes = [4, 32], strides = [1, 1]} : vector<14x32xf32> to vector<4x32xf32>
    %686 = tpu.concatenate %684, %685 in 0 : vector<4x32xf32>, vector<4x32xf32> -> vector<8x32xf32>
    %c0_203 = arith.constant 0 : index
    %c0_204 = arith.constant 0 : index
    %687 = vector.load %arg40[%c0_203, %c0_204] : memref<32x128xf32, #tpu.memory_space<vmem>>, vector<32x128xf32>
    %c0_205 = arith.constant 0 : index
    %c0_206 = arith.constant 0 : index
    %688 = vector.load %arg41[%c0_205, %c0_206] : memref<1x128xf32, #tpu.memory_space<vmem>>, vector<1x128xf32>
    %689 = arith.truncf %686 : vector<8x32xf32> to vector<8x32xbf16>
    %690 = arith.truncf %687 : vector<32x128xf32> to vector<32x128xbf16>
    %cst_207 = arith.constant dense<0.000000e+00> : vector<8x128xf32>
    %691 = tpu.matmul %689, %690, %cst_207 {dimension_numbers = #tpu.dot_dimension_numbers<[1], [0], [0], [1], [0, 0, 1, 1], [], []>} : vector<8x32xbf16>, vector<32x128xbf16>, vector<8x128xf32> -> vector<8x128xf32>
    %692 = vector.broadcast %688 : vector<1x128xf32> to vector<8x128xf32>
    %693 = arith.addf %691, %692 : vector<8x128xf32>
    %cst_208 = arith.constant 0.000000e+00 : f32
    %694 = vector.broadcast %cst_208 : f32 to vector<8x128xf32>
    %695 = arith.maximumf %693, %694 : vector<8x128xf32>
    %c0_209 = arith.constant 0 : index
    %c0_210 = arith.constant 0 : index
    %696 = vector.load %arg42[%c0_209, %c0_210] : memref<128x128xf32, #tpu.memory_space<vmem>>, vector<128x128xf32>
    %c0_211 = arith.constant 0 : index
    %c0_212 = arith.constant 0 : index
    %697 = vector.load %arg43[%c0_211, %c0_212] : memref<1x128xf32, #tpu.memory_space<vmem>>, vector<1x128xf32>
    %698 = arith.truncf %695 : vector<8x128xf32> to vector<8x128xbf16>
    %699 = arith.truncf %696 : vector<128x128xf32> to vector<128x128xbf16>
    %cst_213 = arith.constant dense<0.000000e+00> : vector<8x128xf32>
    %700 = tpu.matmul %698, %699, %cst_213 {dimension_numbers = #tpu.dot_dimension_numbers<[1], [0], [0], [1], [0, 0, 1, 1], [], []>} : vector<8x128xbf16>, vector<128x128xbf16>, vector<8x128xf32> -> vector<8x128xf32>
    %701 = vector.broadcast %697 : vector<1x128xf32> to vector<8x128xf32>
    %702 = arith.addf %700, %701 : vector<8x128xf32>
    %cst_214 = arith.constant 0.000000e+00 : f32
    %703 = vector.broadcast %cst_214 : f32 to vector<8x128xf32>
    %704 = arith.maximumf %702, %703 : vector<8x128xf32>
    %c0_215 = arith.constant 0 : index
    %c0_216 = arith.constant 0 : index
    %705 = vector.load %arg44[%c0_215, %c0_216] : memref<128x16xf32, #tpu.memory_space<vmem>>, vector<128x16xf32>
    %c0_217 = arith.constant 0 : index
    %c0_218 = arith.constant 0 : index
    %706 = vector.load %arg45[%c0_217, %c0_218] : memref<1x16xf32, #tpu.memory_space<vmem>>, vector<1x16xf32>
    %707 = arith.truncf %704 : vector<8x128xf32> to vector<8x128xbf16>
    %708 = arith.truncf %705 : vector<128x16xf32> to vector<128x16xbf16>
    %cst_219 = arith.constant dense<0.000000e+00> : vector<8x16xf32>
    %709 = tpu.matmul %707, %708, %cst_219 {dimension_numbers = #tpu.dot_dimension_numbers<[1], [0], [0], [1], [0, 0, 1, 1], [], []>} : vector<8x128xbf16>, vector<128x16xbf16>, vector<8x16xf32> -> vector<8x16xf32>
    %710 = vector.broadcast %706 : vector<1x16xf32> to vector<8x16xf32>
    %711 = arith.addf %709, %710 : vector<8x16xf32>
    %712 = tpu.iota {dimensions = array<i32: 0>} : vector<8x4xi32>
    %cst_220 = arith.constant 0.000000e+00 : f32
    %713 = vector.broadcast %cst_220 : f32 to vector<8x4xf32>
    %c0_i32 = arith.constant 0 : i32
    %714 = vector.broadcast %c0_i32 : i32 to vector<8x4xi32>
    %715 = arith.cmpi eq, %712, %714 : vector<8x4xi32>
    %c4_i32 = arith.constant 4 : i32
    %716 = vector.broadcast %c4_i32 : i32 to vector<8x4xi32>
    %717 = arith.cmpi eq, %712, %716 : vector<8x4xi32>
    %718 = arith.ori %715, %717 : vector<8x4xi1>
    %719 = vector.extract_strided_slice %711 {offsets = [0, 0], sizes = [8, 4], strides = [1, 1]} : vector<8x16xf32> to vector<8x4xf32>
    %cst_221 = arith.constant 0.000000e+00 : f32
    %720 = vector.broadcast %cst_221 : f32 to vector<8x4xf32>
    %721 = arith.select %718, %719, %720 : vector<8x4xi1>, vector<8x4xf32>
    %722 = arith.addf %713, %721 : vector<8x4xf32>
    %c1_i32 = arith.constant 1 : i32
    %723 = vector.broadcast %c1_i32 : i32 to vector<8x4xi32>
    %724 = arith.cmpi eq, %712, %723 : vector<8x4xi32>
    %c5_i32 = arith.constant 5 : i32
    %725 = vector.broadcast %c5_i32 : i32 to vector<8x4xi32>
    %726 = arith.cmpi eq, %712, %725 : vector<8x4xi32>
    %727 = arith.ori %724, %726 : vector<8x4xi1>
    %728 = vector.extract_strided_slice %711 {offsets = [0, 4], sizes = [8, 4], strides = [1, 1]} : vector<8x16xf32> to vector<8x4xf32>
    %cst_222 = arith.constant 0.000000e+00 : f32
    %729 = vector.broadcast %cst_222 : f32 to vector<8x4xf32>
    %730 = arith.select %727, %728, %729 : vector<8x4xi1>, vector<8x4xf32>
    %731 = arith.addf %722, %730 : vector<8x4xf32>
    %c2_i32 = arith.constant 2 : i32
    %732 = vector.broadcast %c2_i32 : i32 to vector<8x4xi32>
    %733 = arith.cmpi eq, %712, %732 : vector<8x4xi32>
    %c6_i32 = arith.constant 6 : i32
    %734 = vector.broadcast %c6_i32 : i32 to vector<8x4xi32>
    %735 = arith.cmpi eq, %712, %734 : vector<8x4xi32>
    %736 = arith.ori %733, %735 : vector<8x4xi1>
    %737 = vector.extract_strided_slice %711 {offsets = [0, 8], sizes = [8, 4], strides = [1, 1]} : vector<8x16xf32> to vector<8x4xf32>
    %cst_223 = arith.constant 0.000000e+00 : f32
    %738 = vector.broadcast %cst_223 : f32 to vector<8x4xf32>
    %739 = arith.select %736, %737, %738 : vector<8x4xi1>, vector<8x4xf32>
    %740 = arith.addf %731, %739 : vector<8x4xf32>
    %c3_i32 = arith.constant 3 : i32
    %741 = vector.broadcast %c3_i32 : i32 to vector<8x4xi32>
    %742 = arith.cmpi eq, %712, %741 : vector<8x4xi32>
    %c7_i32_224 = arith.constant 7 : i32
    %743 = vector.broadcast %c7_i32_224 : i32 to vector<8x4xi32>
    %744 = arith.cmpi eq, %712, %743 : vector<8x4xi32>
    %745 = arith.ori %742, %744 : vector<8x4xi1>
    %746 = vector.extract_strided_slice %711 {offsets = [0, 12], sizes = [8, 4], strides = [1, 1]} : vector<8x16xf32> to vector<8x4xf32>
    %cst_225 = arith.constant 0.000000e+00 : f32
    %747 = vector.broadcast %cst_225 : f32 to vector<8x4xf32>
    %748 = arith.select %745, %746, %747 : vector<8x4xi1>, vector<8x4xf32>
    %749 = arith.addf %740, %748 : vector<8x4xf32>
    %750 = arith.truncf %749 : vector<8x4xf32> to vector<8x4xbf16>
    %751 = arith.truncf %580 : vector<32x32xf32> to vector<32x32xbf16>
    %c0_226 = arith.constant 0 : index
    %c0_227 = arith.constant 0 : index
    %752 = vector.load %arg34[%c0_226, %c0_227] : memref<32x32xf32, #tpu.memory_space<vmem>>, vector<32x32xf32>
    %753 = arith.truncf %752 : vector<32x32xf32> to vector<32x32xbf16>
    %c0_228 = arith.constant 0 : index
    %c0_229 = arith.constant 0 : index
    %754 = vector.load %arg35[%c0_228, %c0_229] : memref<1x8xf32, #tpu.memory_space<vmem>>, vector<1x8xf32>
    %c0_230 = arith.constant 0 : index
    %c0_231 = arith.constant 0 : index
    %755 = vector.load %arg36[%c0_230, %c0_231] : memref<1x8xf32, #tpu.memory_space<vmem>>, vector<1x8xf32>
    %c0_232 = arith.constant 0 : index
    %c0_233 = arith.constant 0 : index
    %756 = vector.load %arg37[%c0_232, %c0_233] : memref<1x8xf32, #tpu.memory_space<vmem>>, vector<1x8xf32>
    %c0_234 = arith.constant 0 : index
    %c0_235 = arith.constant 0 : index
    %757 = vector.load %arg38[%c0_234, %c0_235] : memref<8x16xf32, #tpu.memory_space<vmem>>, vector<8x16xf32>
    %758 = arith.truncf %757 : vector<8x16xf32> to vector<8x16xbf16>
    %c0_236 = arith.constant 0 : index
    %c0_237 = arith.constant 0 : index
    %759 = vector.load %arg39[%c0_236, %c0_237] : memref<1x16xf32, #tpu.memory_space<vmem>>, vector<1x16xf32>
    %760 = vector.extract_strided_slice %753 {offsets = [0, 0], sizes = [32, 8], strides = [1, 1]} : vector<32x32xbf16> to vector<32x8xbf16>
    %cst_238 = arith.constant dense<0.000000e+00> : vector<32x8xf32>
    %761 = tpu.matmul %751, %760, %cst_238 {dimension_numbers = #tpu.dot_dimension_numbers<[1], [0], [0], [1], [0, 0, 1, 1], [], []>} : vector<32x32xbf16>, vector<32x8xbf16>, vector<32x8xf32> -> vector<32x8xf32>
    %762 = vector.broadcast %754 : vector<1x8xf32> to vector<32x8xf32>
    %763 = arith.addf %761, %762 : vector<32x8xf32>
    %cst_239 = arith.constant dense<0.000000e+00> : vector<32xf32>
    %764 = vector.multi_reduction <add>, %763, %cst_239 [1] : vector<32x8xf32> to vector<32xf32>
    %765 = vector.shape_cast %764 : vector<32xf32> to vector<32x1xf32>
    %cst_240 = arith.constant 8.000000e+00 : f32
    %766 = vector.broadcast %cst_240 : f32 to vector<32x1xf32>
    %767 = arith.divf %765, %766 : vector<32x1xf32>
    %768 = vector.broadcast %767 : vector<32x1xf32> to vector<32x8xf32>
    %769 = arith.subf %763, %768 : vector<32x8xf32>
    %770 = arith.mulf %769, %769 : vector<32x8xf32>
    %cst_241 = arith.constant dense<0.000000e+00> : vector<32xf32>
    %771 = vector.multi_reduction <add>, %770, %cst_241 [1] : vector<32x8xf32> to vector<32xf32>
    %772 = vector.shape_cast %771 : vector<32xf32> to vector<32x1xf32>
    %cst_242 = arith.constant 8.000000e+00 : f32
    %773 = vector.broadcast %cst_242 : f32 to vector<32x1xf32>
    %774 = arith.divf %772, %773 : vector<32x1xf32>
    %775 = vector.broadcast %767 : vector<32x1xf32> to vector<32x8xf32>
    %776 = arith.subf %763, %775 : vector<32x8xf32>
    %cst_243 = arith.constant 9.99999997E-7 : f32
    %777 = vector.broadcast %cst_243 : f32 to vector<32x1xf32>
    %778 = arith.addf %774, %777 : vector<32x1xf32>
    %779 = math.rsqrt %778 : vector<32x1xf32>
    %780 = vector.broadcast %779 : vector<32x1xf32> to vector<32x8xf32>
    %781 = arith.mulf %776, %780 : vector<32x8xf32>
    %782 = vector.broadcast %755 : vector<1x8xf32> to vector<32x8xf32>
    %783 = arith.mulf %781, %782 : vector<32x8xf32>
    %784 = vector.broadcast %756 : vector<1x8xf32> to vector<32x8xf32>
    %785 = arith.addf %783, %784 : vector<32x8xf32>
    %786 = arith.mulf %785, %785 : vector<32x8xf32>
    %787 = arith.mulf %785, %786 : vector<32x8xf32>
    %cst_244 = arith.constant 4.471500e-02 : f32
    %788 = vector.broadcast %cst_244 : f32 to vector<32x8xf32>
    %789 = arith.mulf %788, %787 : vector<32x8xf32>
    %790 = arith.addf %785, %789 : vector<32x8xf32>
    %cst_245 = arith.constant 0.797884583 : f32
    %791 = vector.broadcast %cst_245 : f32 to vector<32x8xf32>
    %792 = arith.mulf %791, %790 : vector<32x8xf32>
    %793 = math.tanh %792 : vector<32x8xf32>
    %cst_246 = arith.constant 1.000000e+00 : f32
    %794 = vector.broadcast %cst_246 : f32 to vector<32x8xf32>
    %795 = arith.addf %794, %793 : vector<32x8xf32>
    %cst_247 = arith.constant 5.000000e-01 : f32
    %796 = vector.broadcast %cst_247 : f32 to vector<32x8xf32>
    %797 = arith.mulf %796, %795 : vector<32x8xf32>
    %798 = arith.mulf %785, %797 : vector<32x8xf32>
    %799 = arith.truncf %798 : vector<32x8xf32> to vector<32x8xbf16>
    %cst_248 = arith.constant dense<0.000000e+00> : vector<32x16xf32>
    %800 = tpu.matmul %799, %758, %cst_248 {dimension_numbers = #tpu.dot_dimension_numbers<[1], [0], [0], [1], [0, 0, 1, 1], [], []>} : vector<32x8xbf16>, vector<8x16xbf16>, vector<32x16xf32> -> vector<32x16xf32>
    %801 = vector.broadcast %759 : vector<1x16xf32> to vector<32x16xf32>
    %802 = arith.addf %800, %801 : vector<32x16xf32>
    %803 = arith.mulf %802, %802 : vector<32x16xf32>
    %804 = arith.mulf %802, %803 : vector<32x16xf32>
    %cst_249 = arith.constant 4.471500e-02 : f32
    %805 = vector.broadcast %cst_249 : f32 to vector<32x16xf32>
    %806 = arith.mulf %805, %804 : vector<32x16xf32>
    %807 = arith.addf %802, %806 : vector<32x16xf32>
    %cst_250 = arith.constant 0.797884583 : f32
    %808 = vector.broadcast %cst_250 : f32 to vector<32x16xf32>
    %809 = arith.mulf %808, %807 : vector<32x16xf32>
    %810 = math.tanh %809 : vector<32x16xf32>
    %cst_251 = arith.constant 1.000000e+00 : f32
    %811 = vector.broadcast %cst_251 : f32 to vector<32x16xf32>
    %812 = arith.addf %811, %810 : vector<32x16xf32>
    %cst_252 = arith.constant 5.000000e-01 : f32
    %813 = vector.broadcast %cst_252 : f32 to vector<32x16xf32>
    %814 = arith.mulf %813, %812 : vector<32x16xf32>
    %815 = arith.mulf %802, %814 : vector<32x16xf32>
    %816 = arith.truncf %815 : vector<32x16xf32> to vector<32x16xbf16>
    %817 = vector.extract_strided_slice %816 {offsets = [0, 0], sizes = [32, 4], strides = [1, 1]} : vector<32x16xbf16> to vector<32x4xbf16>
    %cst_253 = arith.constant dense<0.000000e+00> : vector<32x8xf32>
    %818 = tpu.matmul %817, %750, %cst_253 {dimension_numbers = #tpu.dot_dimension_numbers<[1], [1], [0], [0], [0, 0, 1, 0], [], []>} : vector<32x4xbf16>, vector<8x4xbf16>, vector<32x8xf32> -> vector<32x8xf32>
    %819 = vector.extract_strided_slice %816 {offsets = [0, 4], sizes = [32, 4], strides = [1, 1]} : vector<32x16xbf16> to vector<32x4xbf16>
    %cst_254 = arith.constant dense<0.000000e+00> : vector<32x8xf32>
    %820 = tpu.matmul %819, %750, %cst_254 {dimension_numbers = #tpu.dot_dimension_numbers<[1], [1], [0], [0], [0, 0, 1, 0], [], []>} : vector<32x4xbf16>, vector<8x4xbf16>, vector<32x8xf32> -> vector<32x8xf32>
    %821 = vector.extract_strided_slice %816 {offsets = [0, 8], sizes = [32, 4], strides = [1, 1]} : vector<32x16xbf16> to vector<32x4xbf16>
    %cst_255 = arith.constant dense<0.000000e+00> : vector<32x8xf32>
    %822 = tpu.matmul %821, %750, %cst_255 {dimension_numbers = #tpu.dot_dimension_numbers<[1], [1], [0], [0], [0, 0, 1, 0], [], []>} : vector<32x4xbf16>, vector<8x4xbf16>, vector<32x8xf32> -> vector<32x8xf32>
    %823 = vector.extract_strided_slice %816 {offsets = [0, 12], sizes = [32, 4], strides = [1, 1]} : vector<32x16xbf16> to vector<32x4xbf16>
    %cst_256 = arith.constant dense<0.000000e+00> : vector<32x8xf32>
    %824 = tpu.matmul %823, %750, %cst_256 {dimension_numbers = #tpu.dot_dimension_numbers<[1], [1], [0], [0], [0, 0, 1, 0], [], []>} : vector<32x4xbf16>, vector<8x4xbf16>, vector<32x8xf32> -> vector<32x8xf32>
    %825 = vector.extract_strided_slice %753 {offsets = [0, 8], sizes = [32, 8], strides = [1, 1]} : vector<32x32xbf16> to vector<32x8xbf16>
    %cst_257 = arith.constant dense<0.000000e+00> : vector<32x8xf32>
    %826 = tpu.matmul %751, %825, %cst_257 {dimension_numbers = #tpu.dot_dimension_numbers<[1], [0], [0], [1], [0, 0, 1, 1], [], []>} : vector<32x32xbf16>, vector<32x8xbf16>, vector<32x8xf32> -> vector<32x8xf32>
    %827 = vector.broadcast %754 : vector<1x8xf32> to vector<32x8xf32>
    %828 = arith.addf %826, %827 : vector<32x8xf32>
    %cst_258 = arith.constant dense<0.000000e+00> : vector<32xf32>
    %829 = vector.multi_reduction <add>, %828, %cst_258 [1] : vector<32x8xf32> to vector<32xf32>
    %830 = vector.shape_cast %829 : vector<32xf32> to vector<32x1xf32>
    %cst_259 = arith.constant 8.000000e+00 : f32
    %831 = vector.broadcast %cst_259 : f32 to vector<32x1xf32>
    %832 = arith.divf %830, %831 : vector<32x1xf32>
    %833 = vector.broadcast %832 : vector<32x1xf32> to vector<32x8xf32>
    %834 = arith.subf %828, %833 : vector<32x8xf32>
    %835 = arith.mulf %834, %834 : vector<32x8xf32>
    %cst_260 = arith.constant dense<0.000000e+00> : vector<32xf32>
    %836 = vector.multi_reduction <add>, %835, %cst_260 [1] : vector<32x8xf32> to vector<32xf32>
    %837 = vector.shape_cast %836 : vector<32xf32> to vector<32x1xf32>
    %cst_261 = arith.constant 8.000000e+00 : f32
    %838 = vector.broadcast %cst_261 : f32 to vector<32x1xf32>
    %839 = arith.divf %837, %838 : vector<32x1xf32>
    %840 = vector.broadcast %832 : vector<32x1xf32> to vector<32x8xf32>
    %841 = arith.subf %828, %840 : vector<32x8xf32>
    %cst_262 = arith.constant 9.99999997E-7 : f32
    %842 = vector.broadcast %cst_262 : f32 to vector<32x1xf32>
    %843 = arith.addf %839, %842 : vector<32x1xf32>
    %844 = math.rsqrt %843 : vector<32x1xf32>
    %845 = vector.broadcast %844 : vector<32x1xf32> to vector<32x8xf32>
    %846 = arith.mulf %841, %845 : vector<32x8xf32>
    %847 = vector.broadcast %755 : vector<1x8xf32> to vector<32x8xf32>
    %848 = arith.mulf %846, %847 : vector<32x8xf32>
    %849 = vector.broadcast %756 : vector<1x8xf32> to vector<32x8xf32>
    %850 = arith.addf %848, %849 : vector<32x8xf32>
    %851 = arith.mulf %850, %850 : vector<32x8xf32>
    %852 = arith.mulf %850, %851 : vector<32x8xf32>
    %cst_263 = arith.constant 4.471500e-02 : f32
    %853 = vector.broadcast %cst_263 : f32 to vector<32x8xf32>
    %854 = arith.mulf %853, %852 : vector<32x8xf32>
    %855 = arith.addf %850, %854 : vector<32x8xf32>
    %cst_264 = arith.constant 0.797884583 : f32
    %856 = vector.broadcast %cst_264 : f32 to vector<32x8xf32>
    %857 = arith.mulf %856, %855 : vector<32x8xf32>
    %858 = math.tanh %857 : vector<32x8xf32>
    %cst_265 = arith.constant 1.000000e+00 : f32
    %859 = vector.broadcast %cst_265 : f32 to vector<32x8xf32>
    %860 = arith.addf %859, %858 : vector<32x8xf32>
    %cst_266 = arith.constant 5.000000e-01 : f32
    %861 = vector.broadcast %cst_266 : f32 to vector<32x8xf32>
    %862 = arith.mulf %861, %860 : vector<32x8xf32>
    %863 = arith.mulf %850, %862 : vector<32x8xf32>
    %864 = arith.truncf %863 : vector<32x8xf32> to vector<32x8xbf16>
    %cst_267 = arith.constant dense<0.000000e+00> : vector<32x16xf32>
    %865 = tpu.matmul %864, %758, %cst_267 {dimension_numbers = #tpu.dot_dimension_numbers<[1], [0], [0], [1], [0, 0, 1, 1], [], []>} : vector<32x8xbf16>, vector<8x16xbf16>, vector<32x16xf32> -> vector<32x16xf32>
    %866 = vector.broadcast %759 : vector<1x16xf32> to vector<32x16xf32>
    %867 = arith.addf %865, %866 : vector<32x16xf32>
    %868 = arith.mulf %867, %867 : vector<32x16xf32>
    %869 = arith.mulf %867, %868 : vector<32x16xf32>
    %cst_268 = arith.constant 4.471500e-02 : f32
    %870 = vector.broadcast %cst_268 : f32 to vector<32x16xf32>
    %871 = arith.mulf %870, %869 : vector<32x16xf32>
    %872 = arith.addf %867, %871 : vector<32x16xf32>
    %cst_269 = arith.constant 0.797884583 : f32
    %873 = vector.broadcast %cst_269 : f32 to vector<32x16xf32>
    %874 = arith.mulf %873, %872 : vector<32x16xf32>
    %875 = math.tanh %874 : vector<32x16xf32>
    %cst_270 = arith.constant 1.000000e+00 : f32
    %876 = vector.broadcast %cst_270 : f32 to vector<32x16xf32>
    %877 = arith.addf %876, %875 : vector<32x16xf32>
    %cst_271 = arith.constant 5.000000e-01 : f32
    %878 = vector.broadcast %cst_271 : f32 to vector<32x16xf32>
    %879 = arith.mulf %878, %877 : vector<32x16xf32>
    %880 = arith.mulf %867, %879 : vector<32x16xf32>
    %881 = arith.truncf %880 : vector<32x16xf32> to vector<32x16xbf16>
    %882 = vector.extract_strided_slice %881 {offsets = [0, 0], sizes = [32, 4], strides = [1, 1]} : vector<32x16xbf16> to vector<32x4xbf16>
    %cst_272 = arith.constant dense<0.000000e+00> : vector<32x8xf32>
    %883 = tpu.matmul %882, %750, %cst_272 {dimension_numbers = #tpu.dot_dimension_numbers<[1], [1], [0], [0], [0, 0, 1, 0], [], []>} : vector<32x4xbf16>, vector<8x4xbf16>, vector<32x8xf32> -> vector<32x8xf32>
    %884 = vector.extract_strided_slice %881 {offsets = [0, 4], sizes = [32, 4], strides = [1, 1]} : vector<32x16xbf16> to vector<32x4xbf16>
    %cst_273 = arith.constant dense<0.000000e+00> : vector<32x8xf32>
    %885 = tpu.matmul %884, %750, %cst_273 {dimension_numbers = #tpu.dot_dimension_numbers<[1], [1], [0], [0], [0, 0, 1, 0], [], []>} : vector<32x4xbf16>, vector<8x4xbf16>, vector<32x8xf32> -> vector<32x8xf32>
    %886 = vector.extract_strided_slice %881 {offsets = [0, 8], sizes = [32, 4], strides = [1, 1]} : vector<32x16xbf16> to vector<32x4xbf16>
    %cst_274 = arith.constant dense<0.000000e+00> : vector<32x8xf32>
    %887 = tpu.matmul %886, %750, %cst_274 {dimension_numbers = #tpu.dot_dimension_numbers<[1], [1], [0], [0], [0, 0, 1, 0], [], []>} : vector<32x4xbf16>, vector<8x4xbf16>, vector<32x8xf32> -> vector<32x8xf32>
    %888 = vector.extract_strided_slice %881 {offsets = [0, 12], sizes = [32, 4], strides = [1, 1]} : vector<32x16xbf16> to vector<32x4xbf16>
    %cst_275 = arith.constant dense<0.000000e+00> : vector<32x8xf32>
    %889 = tpu.matmul %888, %750, %cst_275 {dimension_numbers = #tpu.dot_dimension_numbers<[1], [1], [0], [0], [0, 0, 1, 0], [], []>} : vector<32x4xbf16>, vector<8x4xbf16>, vector<32x8xf32> -> vector<32x8xf32>
    %890 = vector.extract_strided_slice %753 {offsets = [0, 16], sizes = [32, 8], strides = [1, 1]} : vector<32x32xbf16> to vector<32x8xbf16>
    %cst_276 = arith.constant dense<0.000000e+00> : vector<32x8xf32>
    %891 = tpu.matmul %751, %890, %cst_276 {dimension_numbers = #tpu.dot_dimension_numbers<[1], [0], [0], [1], [0, 0, 1, 1], [], []>} : vector<32x32xbf16>, vector<32x8xbf16>, vector<32x8xf32> -> vector<32x8xf32>
    %892 = vector.broadcast %754 : vector<1x8xf32> to vector<32x8xf32>
    %893 = arith.addf %891, %892 : vector<32x8xf32>
    %cst_277 = arith.constant dense<0.000000e+00> : vector<32xf32>
    %894 = vector.multi_reduction <add>, %893, %cst_277 [1] : vector<32x8xf32> to vector<32xf32>
    %895 = vector.shape_cast %894 : vector<32xf32> to vector<32x1xf32>
    %cst_278 = arith.constant 8.000000e+00 : f32
    %896 = vector.broadcast %cst_278 : f32 to vector<32x1xf32>
    %897 = arith.divf %895, %896 : vector<32x1xf32>
    %898 = vector.broadcast %897 : vector<32x1xf32> to vector<32x8xf32>
    %899 = arith.subf %893, %898 : vector<32x8xf32>
    %900 = arith.mulf %899, %899 : vector<32x8xf32>
    %cst_279 = arith.constant dense<0.000000e+00> : vector<32xf32>
    %901 = vector.multi_reduction <add>, %900, %cst_279 [1] : vector<32x8xf32> to vector<32xf32>
    %902 = vector.shape_cast %901 : vector<32xf32> to vector<32x1xf32>
    %cst_280 = arith.constant 8.000000e+00 : f32
    %903 = vector.broadcast %cst_280 : f32 to vector<32x1xf32>
    %904 = arith.divf %902, %903 : vector<32x1xf32>
    %905 = vector.broadcast %897 : vector<32x1xf32> to vector<32x8xf32>
    %906 = arith.subf %893, %905 : vector<32x8xf32>
    %cst_281 = arith.constant 9.99999997E-7 : f32
    %907 = vector.broadcast %cst_281 : f32 to vector<32x1xf32>
    %908 = arith.addf %904, %907 : vector<32x1xf32>
    %909 = math.rsqrt %908 : vector<32x1xf32>
    %910 = vector.broadcast %909 : vector<32x1xf32> to vector<32x8xf32>
    %911 = arith.mulf %906, %910 : vector<32x8xf32>
    %912 = vector.broadcast %755 : vector<1x8xf32> to vector<32x8xf32>
    %913 = arith.mulf %911, %912 : vector<32x8xf32>
    %914 = vector.broadcast %756 : vector<1x8xf32> to vector<32x8xf32>
    %915 = arith.addf %913, %914 : vector<32x8xf32>
    %916 = arith.mulf %915, %915 : vector<32x8xf32>
    %917 = arith.mulf %915, %916 : vector<32x8xf32>
    %cst_282 = arith.constant 4.471500e-02 : f32
    %918 = vector.broadcast %cst_282 : f32 to vector<32x8xf32>
    %919 = arith.mulf %918, %917 : vector<32x8xf32>
    %920 = arith.addf %915, %919 : vector<32x8xf32>
    %cst_283 = arith.constant 0.797884583 : f32
    %921 = vector.broadcast %cst_283 : f32 to vector<32x8xf32>
    %922 = arith.mulf %921, %920 : vector<32x8xf32>
    %923 = math.tanh %922 : vector<32x8xf32>
    %cst_284 = arith.constant 1.000000e+00 : f32
    %924 = vector.broadcast %cst_284 : f32 to vector<32x8xf32>
    %925 = arith.addf %924, %923 : vector<32x8xf32>
    %cst_285 = arith.constant 5.000000e-01 : f32
    %926 = vector.broadcast %cst_285 : f32 to vector<32x8xf32>
    %927 = arith.mulf %926, %925 : vector<32x8xf32>
    %928 = arith.mulf %915, %927 : vector<32x8xf32>
    %929 = arith.truncf %928 : vector<32x8xf32> to vector<32x8xbf16>
    %cst_286 = arith.constant dense<0.000000e+00> : vector<32x16xf32>
    %930 = tpu.matmul %929, %758, %cst_286 {dimension_numbers = #tpu.dot_dimension_numbers<[1], [0], [0], [1], [0, 0, 1, 1], [], []>} : vector<32x8xbf16>, vector<8x16xbf16>, vector<32x16xf32> -> vector<32x16xf32>
    %931 = vector.broadcast %759 : vector<1x16xf32> to vector<32x16xf32>
    %932 = arith.addf %930, %931 : vector<32x16xf32>
    %933 = arith.mulf %932, %932 : vector<32x16xf32>
    %934 = arith.mulf %932, %933 : vector<32x16xf32>
    %cst_287 = arith.constant 4.471500e-02 : f32
    %935 = vector.broadcast %cst_287 : f32 to vector<32x16xf32>
    %936 = arith.mulf %935, %934 : vector<32x16xf32>
    %937 = arith.addf %932, %936 : vector<32x16xf32>
    %cst_288 = arith.constant 0.797884583 : f32
    %938 = vector.broadcast %cst_288 : f32 to vector<32x16xf32>
    %939 = arith.mulf %938, %937 : vector<32x16xf32>
    %940 = math.tanh %939 : vector<32x16xf32>
    %cst_289 = arith.constant 1.000000e+00 : f32
    %941 = vector.broadcast %cst_289 : f32 to vector<32x16xf32>
    %942 = arith.addf %941, %940 : vector<32x16xf32>
    %cst_290 = arith.constant 5.000000e-01 : f32
    %943 = vector.broadcast %cst_290 : f32 to vector<32x16xf32>
    %944 = arith.mulf %943, %942 : vector<32x16xf32>
    %945 = arith.mulf %932, %944 : vector<32x16xf32>
    %946 = arith.truncf %945 : vector<32x16xf32> to vector<32x16xbf16>
    %947 = vector.extract_strided_slice %946 {offsets = [0, 0], sizes = [32, 4], strides = [1, 1]} : vector<32x16xbf16> to vector<32x4xbf16>
    %cst_291 = arith.constant dense<0.000000e+00> : vector<32x8xf32>
    %948 = tpu.matmul %947, %750, %cst_291 {dimension_numbers = #tpu.dot_dimension_numbers<[1], [1], [0], [0], [0, 0, 1, 0], [], []>} : vector<32x4xbf16>, vector<8x4xbf16>, vector<32x8xf32> -> vector<32x8xf32>
    %949 = vector.extract_strided_slice %946 {offsets = [0, 4], sizes = [32, 4], strides = [1, 1]} : vector<32x16xbf16> to vector<32x4xbf16>
    %cst_292 = arith.constant dense<0.000000e+00> : vector<32x8xf32>
    %950 = tpu.matmul %949, %750, %cst_292 {dimension_numbers = #tpu.dot_dimension_numbers<[1], [1], [0], [0], [0, 0, 1, 0], [], []>} : vector<32x4xbf16>, vector<8x4xbf16>, vector<32x8xf32> -> vector<32x8xf32>
    %951 = vector.extract_strided_slice %946 {offsets = [0, 8], sizes = [32, 4], strides = [1, 1]} : vector<32x16xbf16> to vector<32x4xbf16>
    %cst_293 = arith.constant dense<0.000000e+00> : vector<32x8xf32>
    %952 = tpu.matmul %951, %750, %cst_293 {dimension_numbers = #tpu.dot_dimension_numbers<[1], [1], [0], [0], [0, 0, 1, 0], [], []>} : vector<32x4xbf16>, vector<8x4xbf16>, vector<32x8xf32> -> vector<32x8xf32>
    %953 = vector.extract_strided_slice %946 {offsets = [0, 12], sizes = [32, 4], strides = [1, 1]} : vector<32x16xbf16> to vector<32x4xbf16>
    %cst_294 = arith.constant dense<0.000000e+00> : vector<32x8xf32>
    %954 = tpu.matmul %953, %750, %cst_294 {dimension_numbers = #tpu.dot_dimension_numbers<[1], [1], [0], [0], [0, 0, 1, 0], [], []>} : vector<32x4xbf16>, vector<8x4xbf16>, vector<32x8xf32> -> vector<32x8xf32>
    %955 = vector.extract_strided_slice %753 {offsets = [0, 24], sizes = [32, 8], strides = [1, 1]} : vector<32x32xbf16> to vector<32x8xbf16>
    %cst_295 = arith.constant dense<0.000000e+00> : vector<32x8xf32>
    %956 = tpu.matmul %751, %955, %cst_295 {dimension_numbers = #tpu.dot_dimension_numbers<[1], [0], [0], [1], [0, 0, 1, 1], [], []>} : vector<32x32xbf16>, vector<32x8xbf16>, vector<32x8xf32> -> vector<32x8xf32>
    %957 = vector.broadcast %754 : vector<1x8xf32> to vector<32x8xf32>
    %958 = arith.addf %956, %957 : vector<32x8xf32>
    %cst_296 = arith.constant dense<0.000000e+00> : vector<32xf32>
    %959 = vector.multi_reduction <add>, %958, %cst_296 [1] : vector<32x8xf32> to vector<32xf32>
    %960 = vector.shape_cast %959 : vector<32xf32> to vector<32x1xf32>
    %cst_297 = arith.constant 8.000000e+00 : f32
    %961 = vector.broadcast %cst_297 : f32 to vector<32x1xf32>
    %962 = arith.divf %960, %961 : vector<32x1xf32>
    %963 = vector.broadcast %962 : vector<32x1xf32> to vector<32x8xf32>
    %964 = arith.subf %958, %963 : vector<32x8xf32>
    %965 = arith.mulf %964, %964 : vector<32x8xf32>
    %cst_298 = arith.constant dense<0.000000e+00> : vector<32xf32>
    %966 = vector.multi_reduction <add>, %965, %cst_298 [1] : vector<32x8xf32> to vector<32xf32>
    %967 = vector.shape_cast %966 : vector<32xf32> to vector<32x1xf32>
    %cst_299 = arith.constant 8.000000e+00 : f32
    %968 = vector.broadcast %cst_299 : f32 to vector<32x1xf32>
    %969 = arith.divf %967, %968 : vector<32x1xf32>
    %970 = vector.broadcast %962 : vector<32x1xf32> to vector<32x8xf32>
    %971 = arith.subf %958, %970 : vector<32x8xf32>
    %cst_300 = arith.constant 9.99999997E-7 : f32
    %972 = vector.broadcast %cst_300 : f32 to vector<32x1xf32>
    %973 = arith.addf %969, %972 : vector<32x1xf32>
    %974 = math.rsqrt %973 : vector<32x1xf32>
    %975 = vector.broadcast %974 : vector<32x1xf32> to vector<32x8xf32>
    %976 = arith.mulf %971, %975 : vector<32x8xf32>
    %977 = vector.broadcast %755 : vector<1x8xf32> to vector<32x8xf32>
    %978 = arith.mulf %976, %977 : vector<32x8xf32>
    %979 = vector.broadcast %756 : vector<1x8xf32> to vector<32x8xf32>
    %980 = arith.addf %978, %979 : vector<32x8xf32>
    %981 = arith.mulf %980, %980 : vector<32x8xf32>
    %982 = arith.mulf %980, %981 : vector<32x8xf32>
    %cst_301 = arith.constant 4.471500e-02 : f32
    %983 = vector.broadcast %cst_301 : f32 to vector<32x8xf32>
    %984 = arith.mulf %983, %982 : vector<32x8xf32>
    %985 = arith.addf %980, %984 : vector<32x8xf32>
    %cst_302 = arith.constant 0.797884583 : f32
    %986 = vector.broadcast %cst_302 : f32 to vector<32x8xf32>
    %987 = arith.mulf %986, %985 : vector<32x8xf32>
    %988 = math.tanh %987 : vector<32x8xf32>
    %cst_303 = arith.constant 1.000000e+00 : f32
    %989 = vector.broadcast %cst_303 : f32 to vector<32x8xf32>
    %990 = arith.addf %989, %988 : vector<32x8xf32>
    %cst_304 = arith.constant 5.000000e-01 : f32
    %991 = vector.broadcast %cst_304 : f32 to vector<32x8xf32>
    %992 = arith.mulf %991, %990 : vector<32x8xf32>
    %993 = arith.mulf %980, %992 : vector<32x8xf32>
    %994 = arith.truncf %993 : vector<32x8xf32> to vector<32x8xbf16>
    %cst_305 = arith.constant dense<0.000000e+00> : vector<32x16xf32>
    %995 = tpu.matmul %994, %758, %cst_305 {dimension_numbers = #tpu.dot_dimension_numbers<[1], [0], [0], [1], [0, 0, 1, 1], [], []>} : vector<32x8xbf16>, vector<8x16xbf16>, vector<32x16xf32> -> vector<32x16xf32>
    %996 = vector.broadcast %759 : vector<1x16xf32> to vector<32x16xf32>
    %997 = arith.addf %995, %996 : vector<32x16xf32>
    %998 = arith.mulf %997, %997 : vector<32x16xf32>
    %999 = arith.mulf %997, %998 : vector<32x16xf32>
    %cst_306 = arith.constant 4.471500e-02 : f32
    %1000 = vector.broadcast %cst_306 : f32 to vector<32x16xf32>
    %1001 = arith.mulf %1000, %999 : vector<32x16xf32>
    %1002 = arith.addf %997, %1001 : vector<32x16xf32>
    %cst_307 = arith.constant 0.797884583 : f32
    %1003 = vector.broadcast %cst_307 : f32 to vector<32x16xf32>
    %1004 = arith.mulf %1003, %1002 : vector<32x16xf32>
    %1005 = math.tanh %1004 : vector<32x16xf32>
    %cst_308 = arith.constant 1.000000e+00 : f32
    %1006 = vector.broadcast %cst_308 : f32 to vector<32x16xf32>
    %1007 = arith.addf %1006, %1005 : vector<32x16xf32>
    %cst_309 = arith.constant 5.000000e-01 : f32
    %1008 = vector.broadcast %cst_309 : f32 to vector<32x16xf32>
    %1009 = arith.mulf %1008, %1007 : vector<32x16xf32>
    %1010 = arith.mulf %997, %1009 : vector<32x16xf32>
    %1011 = arith.truncf %1010 : vector<32x16xf32> to vector<32x16xbf16>
    %1012 = vector.extract_strided_slice %1011 {offsets = [0, 0], sizes = [32, 4], strides = [1, 1]} : vector<32x16xbf16> to vector<32x4xbf16>
    %cst_310 = arith.constant dense<0.000000e+00> : vector<32x8xf32>
    %1013 = tpu.matmul %1012, %750, %cst_310 {dimension_numbers = #tpu.dot_dimension_numbers<[1], [1], [0], [0], [0, 0, 1, 0], [], []>} : vector<32x4xbf16>, vector<8x4xbf16>, vector<32x8xf32> -> vector<32x8xf32>
    %1014 = vector.extract_strided_slice %1011 {offsets = [0, 4], sizes = [32, 4], strides = [1, 1]} : vector<32x16xbf16> to vector<32x4xbf16>
    %cst_311 = arith.constant dense<0.000000e+00> : vector<32x8xf32>
    %1015 = tpu.matmul %1014, %750, %cst_311 {dimension_numbers = #tpu.dot_dimension_numbers<[1], [1], [0], [0], [0, 0, 1, 0], [], []>} : vector<32x4xbf16>, vector<8x4xbf16>, vector<32x8xf32> -> vector<32x8xf32>
    %1016 = vector.extract_strided_slice %1011 {offsets = [0, 8], sizes = [32, 4], strides = [1, 1]} : vector<32x16xbf16> to vector<32x4xbf16>
    %cst_312 = arith.constant dense<0.000000e+00> : vector<32x8xf32>
    %1017 = tpu.matmul %1016, %750, %cst_312 {dimension_numbers = #tpu.dot_dimension_numbers<[1], [1], [0], [0], [0, 0, 1, 0], [], []>} : vector<32x4xbf16>, vector<8x4xbf16>, vector<32x8xf32> -> vector<32x8xf32>
    %1018 = vector.extract_strided_slice %1011 {offsets = [0, 12], sizes = [32, 4], strides = [1, 1]} : vector<32x16xbf16> to vector<32x4xbf16>
    %cst_313 = arith.constant dense<0.000000e+00> : vector<32x8xf32>
    %1019 = tpu.matmul %1018, %750, %cst_313 {dimension_numbers = #tpu.dot_dimension_numbers<[1], [1], [0], [0], [0, 0, 1, 0], [], []>} : vector<32x4xbf16>, vector<8x4xbf16>, vector<32x8xf32> -> vector<32x8xf32>
    %1020 = tpu.concatenate %818, %820, %822, %824, %883, %885, %887, %889, %948, %950, %952, %954, %1013, %1015, %1017, %1019 in 1 : vector<32x8xf32>, vector<32x8xf32>, vector<32x8xf32>, vector<32x8xf32>, vector<32x8xf32>, vector<32x8xf32>, vector<32x8xf32>, vector<32x8xf32>, vector<32x8xf32>, vector<32x8xf32>, vector<32x8xf32>, vector<32x8xf32>, vector<32x8xf32>, vector<32x8xf32>, vector<32x8xf32>, vector<32x8xf32> -> vector<32x128xf32>
    %c0_314 = arith.constant 0 : index
    %c0_315 = arith.constant 0 : index
    %1021 = vector.load %arg46[%c0_314, %c0_315] : memref<32x128xf32, #tpu.memory_space<vmem>>, vector<32x128xf32>
    tpu.vector_store %arg46[%c0_314, %c0_315], %1020 {strides = array<i32>} : memref<32x128xf32, #tpu.memory_space<vmem>>, vector<32x128xf32>,
    return
  }
}

</mosaic_0001>

<llo_original>
// kernel: medsam_text_forward.1
$region0: #{medsam_text_forward.1}
  #allocation0 [shape = 'u32[]', space=smem, size = 0x4, offset = 0x4, fixed_abs, tag = 'smem constant byte address 0x4 - core index']
  #allocation1 [shape = 'u32[144,128]{1,0:T(1,128)}', space=vmem, size = 0x12000, scoped, tag = 'internal scratch']
  %s0 = inlined_call_operand.smem [shape: u32[47], index: -1, kind: input, shape index: {}]
  %s1 = sld [smem:[%s0]]
  %s2 = scalar_lea.smem %s0, 1
  %s3 = sld [smem:[%s2]]
  %s4 = scalar_lea.smem %s0, 2
  %s5 = sld [smem:[%s4]]
  %s6 = scalar_lea.smem %s0, 3
  %s7 = sld [smem:[%s6]]
  %s8 = scalar_lea.smem %s0, 4
  %s9 = sld [smem:[%s8]]
  %s10 = scalar_lea.smem %s0, 5
  %s11 = sld [smem:[%s10]]
  %s12 = scalar_lea.smem %s0, 6
  %s13 = sld [smem:[%s12]]
  %s14 = scalar_lea.smem %s0, 7
  %s15 = sld [smem:[%s14]]
  %s16 = scalar_lea.smem %s0, 8
  %s17 = sld [smem:[%s16]]
  %s18 = scalar_lea.smem %s0, 9
  %s19 = sld [smem:[%s18]]
  %s20 = scalar_lea.smem %s0, 10
  %s21 = sld [smem:[%s20]]
  %s22 = scalar_lea.smem %s0, 11
  %s23 = sld [smem:[%s22]]
  %s24 = scalar_lea.smem %s0, 12
  %s25 = sld [smem:[%s24]]
  %s26 = scalar_lea.smem %s0, 13
  %s27 = sld [smem:[%s26]]
  %s28 = scalar_lea.smem %s0, 14
  %s29 = sld [smem:[%s28]]
  %s30 = scalar_lea.smem %s0, 15
  %s31 = sld [smem:[%s30]]
  %s32 = scalar_lea.smem %s0, 16
  %s33 = sld [smem:[%s32]]
  %s34 = scalar_lea.smem %s0, 17
  %s35 = sld [smem:[%s34]]
  %s36 = scalar_lea.smem %s0, 18
  %s37 = sld [smem:[%s36]]
  %s38 = scalar_lea.smem %s0, 19
  %s39 = sld [smem:[%s38]]
  %s40 = scalar_lea.smem %s0, 20
  %s41 = sld [smem:[%s40]]
  %s42 = scalar_lea.smem %s0, 21
  %s43 = sld [smem:[%s42]]
  %s44 = scalar_lea.smem %s0, 22
  %s45 = sld [smem:[%s44]]
  %s46 = scalar_lea.smem %s0, 23
  %s47 = sld [smem:[%s46]]
  %s48 = scalar_lea.smem %s0, 24
  %s49 = sld [smem:[%s48]]
  %s50 = scalar_lea.smem %s0, 25
  %s51 = sld [smem:[%s50]]
  %s52 = scalar_lea.smem %s0, 26
  %s53 = sld [smem:[%s52]]
  %s54 = scalar_lea.smem %s0, 27
  %s55 = sld [smem:[%s54]]
  %s56 = scalar_lea.smem %s0, 28
  %s57 = sld [smem:[%s56]]
  %s58 = scalar_lea.smem %s0, 29
  %s59 = sld [smem:[%s58]]
  %s60 = scalar_lea.smem %s0, 30
  %s61 = sld [smem:[%s60]]
  %s62 = scalar_lea.smem %s0, 31
  %s63 = sld [smem:[%s62]]
  %s64 = scalar_lea.smem %s0, 32
  %s65 = sld [smem:[%s64]]
  %s66 = scalar_lea.smem %s0, 33
  %s67 = sld [smem:[%s66]]
  %s68 = scalar_lea.smem %s0, 34
  %s69 = sld [smem:[%s68]]
  %s70 = scalar_lea.smem %s0, 35
  %s71 = sld [smem:[%s70]]
  %s72 = scalar_lea.smem %s0, 36
  %s73 = sld [smem:[%s72]]
  %s74 = scalar_lea.smem %s0, 37
  %s75 = sld [smem:[%s74]]
  %s76 = scalar_lea.smem %s0, 38
  %s77 = sld [smem:[%s76]]
  %s78 = scalar_lea.smem %s0, 39
  %s79 = sld [smem:[%s78]]
  %s80 = scalar_lea.smem %s0, 40
  %s81 = sld [smem:[%s80]]
  %s82 = scalar_lea.smem %s0, 41
  %s83 = sld [smem:[%s82]]
  %s84 = scalar_lea.smem %s0, 42
  %s85 = sld [smem:[%s84]]
  %s86 = scalar_lea.smem %s0, 43
  %s87 = sld [smem:[%s86]]
  %s88 = scalar_lea.smem %s0, 44
  %s89 = sld [smem:[%s88]]
  %s90 = scalar_lea.smem %s0, 45
  %s91 = sld [smem:[%s90]]
  %s92 = scalar_lea.smem %s0, 46
  %s93 = sld [smem:[%s92]]
  %s94 = sld [smem:[#allocation0]]
  $region198: #{medsam_text_forward.1} parent=0
    _
  %s96 = ssub.s32 1, %s94
  %s97 = scalar_select 0, %s96, %s94
  $region1: #{medsam_text_forward.1} parent=0
    #allocation2 [shape = 'u8[512]{0}', space=vmem, size = 0x400, scoped, tag = 'input window, operand 45, single buffered']
    #allocation3 [shape = 's32[1]{0}', space=sflag, size = 0x4, scoped, tag = 'scoped memory for medsam_text_forward.1']
    %98 = vsyncpa [#allocation3], 0
    // Predicated region
    $region2: #{medsam_text_forward.1} parent=1 // pred_check
      _
    $region3: #{medsam_text_forward.1} parent=1 // pred_check_branch
      %100 = sbr.rel (0) target = $region5
    $region4: #{medsam_text_forward.1} parent=1 // pred_region
      _
    $region5: #{medsam_text_forward.1} parent=1 // pred_fallthru
      _
    // Predicated region
    $region6: #{medsam_text_forward.1} parent=1 // pred_check
      _
    $region7: #{medsam_text_forward.1} parent=1 // pred_check_branch
      %102 = sbr.rel (0) target = $region9
    $region8: #{medsam_text_forward.1} parent=1 // pred_region
      _
    $region9: #{medsam_text_forward.1} parent=1 // pred_fallthru
      _
    // Predicated region
    $region10: #{medsam_text_forward.1} parent=1 // pred_check
      _
    $region11: #{medsam_text_forward.1} parent=1 // pred_check_branch
      %104 = sbr.rel (0) target = $region13
    $region12: #{medsam_text_forward.1} parent=1 // pred_region
      _
    $region13: #{medsam_text_forward.1} parent=1 // pred_fallthru
      _
    // Predicated region
    $region14: #{medsam_text_forward.1} parent=1 // pred_check
      _
    $region15: #{medsam_text_forward.1} parent=1 // pred_check_branch
      %106 = sbr.rel (0) target = $region17
    $region16: #{medsam_text_forward.1} parent=1 // pred_region
      _
    $region17: #{medsam_text_forward.1} parent=1 // pred_fallthru
      _
    // Predicated region
    $region18: #{medsam_text_forward.1} parent=1 // pred_check
      _
    $region19: #{medsam_text_forward.1} parent=1 // pred_check_branch
      %108 = sbr.rel (0) target = $region21
    $region20: #{medsam_text_forward.1} parent=1 // pred_region
      _
    $region21: #{medsam_text_forward.1} parent=1 // pred_fallthru
      _
    // Predicated region
    $region22: #{medsam_text_forward.1} parent=1 // pred_check
      _
    $region23: #{medsam_text_forward.1} parent=1 // pred_check_branch
      %110 = sbr.rel (0) target = $region25
    $region24: #{medsam_text_forward.1} parent=1 // pred_region
      _
    $region25: #{medsam_text_forward.1} parent=1 // pred_fallthru
      _
    // Predicated region
    $region26: #{medsam_text_forward.1} parent=1 // pred_check
      _
    $region27: #{medsam_text_forward.1} parent=1 // pred_check_branch
      %112 = sbr.rel (0) target = $region29
    $region28: #{medsam_text_forward.1} parent=1 // pred_region
      _
    $region29: #{medsam_text_forward.1} parent=1 // pred_fallthru
      _
    // Predicated region
    $region30: #{medsam_text_forward.1} parent=1 // pred_check
      _
    $region31: #{medsam_text_forward.1} parent=1 // pred_check_branch
      %114 = sbr.rel (0) target = $region33
    $region32: #{medsam_text_forward.1} parent=1 // pred_region
      _
    $region33: #{medsam_text_forward.1} parent=1 // pred_fallthru
      _
    // Predicated region
    $region34: #{medsam_text_forward.1} parent=1 // pred_check
      _
    $region35: #{medsam_text_forward.1} parent=1 // pred_check_branch
      %116 = sbr.rel (0) target = $region37
    $region36: #{medsam_text_forward.1} parent=1 // pred_region
      _
    $region37: #{medsam_text_forward.1} parent=1 // pred_fallthru
      _
    // Predicated region
    $region38: #{medsam_text_forward.1} parent=1 // pred_check
      _
    $region39: #{medsam_text_forward.1} parent=1 // pred_check_branch
      %118 = sbr.rel (0) target = $region41
    $region40: #{medsam_text_forward.1} parent=1 // pred_region
      _
    $region41: #{medsam_text_forward.1} parent=1 // pred_fallthru
      _
    // Predicated region
    $region42: #{medsam_text_forward.1} parent=1 // pred_check
      _
    $region43: #{medsam_text_forward.1} parent=1 // pred_check_branch
      %120 = sbr.rel (0) target = $region45
    $region44: #{medsam_text_forward.1} parent=1 // pred_region
      _
    $region45: #{medsam_text_forward.1} parent=1 // pred_fallthru
      _
    // Predicated region
    $region46: #{medsam_text_forward.1} parent=1 // pred_check
      _
    $region47: #{medsam_text_forward.1} parent=1 // pred_check_branch
      %122 = sbr.rel (0) target = $region49
    $region48: #{medsam_text_forward.1} parent=1 // pred_region
      _
    $region49: #{medsam_text_forward.1} parent=1 // pred_fallthru
      _
    // Predicated region
    $region50: #{medsam_text_forward.1} parent=1 // pred_check
      _
    $region51: #{medsam_text_forward.1} parent=1 // pred_check_branch
      %124 = sbr.rel (0) target = $region53
    $region52: #{medsam_text_forward.1} parent=1 // pred_region
      _
    $region53: #{medsam_text_forward.1} parent=1 // pred_fallthru
      _
    // Predicated region
    $region54: #{medsam_text_forward.1} parent=1 // pred_check
      _
    $region55: #{medsam_text_forward.1} parent=1 // pred_check_branch
      %126 = sbr.rel (0) target = $region57
    $region56: #{medsam_text_forward.1} parent=1 // pred_region
      _
    $region57: #{medsam_text_forward.1} parent=1 // pred_fallthru
      _
    // Predicated region
    $region58: #{medsam_text_forward.1} parent=1 // pred_check
      _
    $region59: #{medsam_text_forward.1} parent=1 // pred_check_branch
      %128 = sbr.rel (0) target = $region61
    $region60: #{medsam_text_forward.1} parent=1 // pred_region
      _
    $region61: #{medsam_text_forward.1} parent=1 // pred_fallthru
      _
    // Predicated region
    $region62: #{medsam_text_forward.1} parent=1 // pred_check
      _
    $region63: #{medsam_text_forward.1} parent=1 // pred_check_branch
      %130 = sbr.rel (0) target = $region65
    $region64: #{medsam_text_forward.1} parent=1 // pred_region
      _
    $region65: #{medsam_text_forward.1} parent=1 // pred_fallthru
      _
    // Predicated region
    $region66: #{medsam_text_forward.1} parent=1 // pred_check
      _
    $region67: #{medsam_text_forward.1} parent=1 // pred_check_branch
      %132 = sbr.rel (0) target = $region69
    $region68: #{medsam_text_forward.1} parent=1 // pred_region
      _
    $region69: #{medsam_text_forward.1} parent=1 // pred_fallthru
      _
    // Predicated region
    $region70: #{medsam_text_forward.1} parent=1 // pred_check
      _
    $region71: #{medsam_text_forward.1} parent=1 // pred_check_branch
      %134 = sbr.rel (0) target = $region73
    $region72: #{medsam_text_forward.1} parent=1 // pred_region
      _
    $region73: #{medsam_text_forward.1} parent=1 // pred_fallthru
      _
    // Predicated region
    $region74: #{medsam_text_forward.1} parent=1 // pred_check
      _
    $region75: #{medsam_text_forward.1} parent=1 // pred_check_branch
      %136 = sbr.rel (0) target = $region77
    $region76: #{medsam_text_forward.1} parent=1 // pred_region
      _
    $region77: #{medsam_text_forward.1} parent=1 // pred_fallthru
      _
    // Predicated region
    $region78: #{medsam_text_forward.1} parent=1 // pred_check
      _
    $region79: #{medsam_text_forward.1} parent=1 // pred_check_branch
      %138 = sbr.rel (0) target = $region81
    $region80: #{medsam_text_forward.1} parent=1 // pred_region
      _
    $region81: #{medsam_text_forward.1} parent=1 // pred_fallthru
      _
    // Predicated region
    $region82: #{medsam_text_forward.1} parent=1 // pred_check
      _
    $region83: #{medsam_text_forward.1} parent=1 // pred_check_branch
      %140 = sbr.rel (0) target = $region85
    $region84: #{medsam_text_forward.1} parent=1 // pred_region
      _
    $region85: #{medsam_text_forward.1} parent=1 // pred_fallthru
      _
    // Predicated region
    $region86: #{medsam_text_forward.1} parent=1 // pred_check
      _
    $region87: #{medsam_text_forward.1} parent=1 // pred_check_branch
      %142 = sbr.rel (0) target = $region89
    $region88: #{medsam_text_forward.1} parent=1 // pred_region
      _
    $region89: #{medsam_text_forward.1} parent=1 // pred_fallthru
      _
    // Predicated region
    $region90: #{medsam_text_forward.1} parent=1 // pred_check
      _
    $region91: #{medsam_text_forward.1} parent=1 // pred_check_branch
      %144 = sbr.rel (0) target = $region93
    $region92: #{medsam_text_forward.1} parent=1 // pred_region
      _
    $region93: #{medsam_text_forward.1} parent=1 // pred_fallthru
      _
    // Predicated region
    $region94: #{medsam_text_forward.1} parent=1 // pred_check
      _
    $region95: #{medsam_text_forward.1} parent=1 // pred_check_branch
      %146 = sbr.rel (0) target = $region97
    $region96: #{medsam_text_forward.1} parent=1 // pred_region
      _
    $region97: #{medsam_text_forward.1} parent=1 // pred_fallthru
      _
    // Predicated region
    $region98: #{medsam_text_forward.1} parent=1 // pred_check
      _
    $region99: #{medsam_text_forward.1} parent=1 // pred_check_branch
      %148 = sbr.rel (0) target = $region101
    $region100: #{medsam_text_forward.1} parent=1 // pred_region
      _
    $region101: #{medsam_text_forward.1} parent=1 // pred_fallthru
      _
    // Predicated region
    $region102: #{medsam_text_forward.1} parent=1 // pred_check
      _
    $region103: #{medsam_text_forward.1} parent=1 // pred_check_branch
      %150 = sbr.rel (0) target = $region105
    $region104: #{medsam_text_forward.1} parent=1 // pred_region
      _
    $region105: #{medsam_text_forward.1} parent=1 // pred_fallthru
      _
    // Predicated region
    $region106: #{medsam_text_forward.1} parent=1 // pred_check
      _
    $region107: #{medsam_text_forward.1} parent=1 // pred_check_branch
      %152 = sbr.rel (0) target = $region109
    $region108: #{medsam_text_forward.1} parent=1 // pred_region
      _
    $region109: #{medsam_text_forward.1} parent=1 // pred_fallthru
      _
    // Predicated region
    $region110: #{medsam_text_forward.1} parent=1 // pred_check
      _
    $region111: #{medsam_text_forward.1} parent=1 // pred_check_branch
      %154 = sbr.rel (0) target = $region113
    $region112: #{medsam_text_forward.1} parent=1 // pred_region
      _
    $region113: #{medsam_text_forward.1} parent=1 // pred_fallthru
      _
    // Predicated region
    $region114: #{medsam_text_forward.1} parent=1 // pred_check
      _
    $region115: #{medsam_text_forward.1} parent=1 // pred_check_branch
      %156 = sbr.rel (0) target = $region117
    $region116: #{medsam_text_forward.1} parent=1 // pred_region
      _
    $region117: #{medsam_text_forward.1} parent=1 // pred_fallthru
      _
    // Predicated region
    $region118: #{medsam_text_forward.1} parent=1 // pred_check
      _
    $region119: #{medsam_text_forward.1} parent=1 // pred_check_branch
      %158 = sbr.rel (0) target = $region121
    $region120: #{medsam_text_forward.1} parent=1 // pred_region
      _
    $region121: #{medsam_text_forward.1} parent=1 // pred_fallthru
      _
    // Predicated region
    $region122: #{medsam_text_forward.1} parent=1 // pred_check
      _
    $region123: #{medsam_text_forward.1} parent=1 // pred_check_branch
      %160 = sbr.rel (0) target = $region125
    $region124: #{medsam_text_forward.1} parent=1 // pred_region
      _
    $region125: #{medsam_text_forward.1} parent=1 // pred_fallthru
      _
    // Predicated region
    $region126: #{medsam_text_forward.1} parent=1 // pred_check
      _
    $region127: #{medsam_text_forward.1} parent=1 // pred_check_branch
      %162 = sbr.rel (0) target = $region129
    $region128: #{medsam_text_forward.1} parent=1 // pred_region
      _
    $region129: #{medsam_text_forward.1} parent=1 // pred_fallthru
      _
    // Predicated region
    $region130: #{medsam_text_forward.1} parent=1 // pred_check
      _
    $region131: #{medsam_text_forward.1} parent=1 // pred_check_branch
      %164 = sbr.rel (0) target = $region133
    $region132: #{medsam_text_forward.1} parent=1 // pred_region
      _
    $region133: #{medsam_text_forward.1} parent=1 // pred_fallthru
      _
    // Predicated region
    $region134: #{medsam_text_forward.1} parent=1 // pred_check
      _
    $region135: #{medsam_text_forward.1} parent=1 // pred_check_branch
      %166 = sbr.rel (0) target = $region137
    $region136: #{medsam_text_forward.1} parent=1 // pred_region
      _
    $region137: #{medsam_text_forward.1} parent=1 // pred_fallthru
      _
    // Predicated region
    $region138: #{medsam_text_forward.1} parent=1 // pred_check
      _
    $region139: #{medsam_text_forward.1} parent=1 // pred_check_branch
      %168 = sbr.rel (0) target = $region141
    $region140: #{medsam_text_forward.1} parent=1 // pred_region
      _
    $region141: #{medsam_text_forward.1} parent=1 // pred_fallthru
      _
    // Predicated region
    $region142: #{medsam_text_forward.1} parent=1 // pred_check
      _
    $region143: #{medsam_text_forward.1} parent=1 // pred_check_branch
      %170 = sbr.rel (0) target = $region145
    $region144: #{medsam_text_forward.1} parent=1 // pred_region
      _
    $region145: #{medsam_text_forward.1} parent=1 // pred_fallthru
      _
    // Predicated region
    $region146: #{medsam_text_forward.1} parent=1 // pred_check
      _
    $region147: #{medsam_text_forward.1} parent=1 // pred_check_branch
      %172 = sbr.rel (0) target = $region149
    $region148: #{medsam_text_forward.1} parent=1 // pred_region
      _
    $region149: #{medsam_text_forward.1} parent=1 // pred_fallthru
      _
    // Predicated region
    $region150: #{medsam_text_forward.1} parent=1 // pred_check
      _
    $region151: #{medsam_text_forward.1} parent=1 // pred_check_branch
      %174 = sbr.rel (0) target = $region153
    $region152: #{medsam_text_forward.1} parent=1 // pred_region
      _
    $region153: #{medsam_text_forward.1} parent=1 // pred_fallthru
      _
    // Predicated region
    $region154: #{medsam_text_forward.1} parent=1 // pred_check
      _
    $region155: #{medsam_text_forward.1} parent=1 // pred_check_branch
      %176 = sbr.rel (0) target = $region157
    $region156: #{medsam_text_forward.1} parent=1 // pred_region
      _
    $region157: #{medsam_text_forward.1} parent=1 // pred_fallthru
      _
    // Predicated region
    $region158: #{medsam_text_forward.1} parent=1 // pred_check
      _
    $region159: #{medsam_text_forward.1} parent=1 // pred_check_branch
      %178 = sbr.rel (0) target = $region161
    $region160: #{medsam_text_forward.1} parent=1 // pred_region
      _
    $region161: #{medsam_text_forward.1} parent=1 // pred_fallthru
      _
    // Predicated region
    $region162: #{medsam_text_forward.1} parent=1 // pred_check
      _
    $region163: #{medsam_text_forward.1} parent=1 // pred_check_branch
      %180 = sbr.rel (0) target = $region165
    $region164: #{medsam_text_forward.1} parent=1 // pred_region
      _
    $region165: #{medsam_text_forward.1} parent=1 // pred_fallthru
      _
    // Predicated region
    $region166: #{medsam_text_forward.1} parent=1 // pred_check
      _
    $region167: #{medsam_text_forward.1} parent=1 // pred_check_branch
      %182 = sbr.rel (0) target = $region169
    $region168: #{medsam_text_forward.1} parent=1 // pred_region
      _
    $region169: #{medsam_text_forward.1} parent=1 // pred_fallthru
      _
    // Predicated region
    $region170: #{medsam_text_forward.1} parent=1 // pred_check
      _
    $region171: #{medsam_text_forward.1} parent=1 // pred_check_branch
      %184 = sbr.rel (0) target = $region173
    $region172: #{medsam_text_forward.1} parent=1 // pred_region
      _
    $region173: #{medsam_text_forward.1} parent=1 // pred_fallthru
      _
    // Predicated region
    $region174: #{medsam_text_forward.1} parent=1 // pred_check
      _
    $region175: #{medsam_text_forward.1} parent=1 // pred_check_branch
      %186 = sbr.rel (0) target = $region177
    $region176: #{medsam_text_forward.1} parent=1 // pred_region
      _
    $region177: #{medsam_text_forward.1} parent=1 // pred_fallthru
      _
    // Predicated region
    $region178: #{medsam_text_forward.1} parent=1 // pred_check
      _
    $region179: #{medsam_text_forward.1} parent=1 // pred_check_branch
      %188 = sbr.rel (0) target = $region181
    $region180: #{medsam_text_forward.1} parent=1 // pred_region
      _
    $region181: #{medsam_text_forward.1} parent=1 // pred_fallthru
      _
    // Predicated region
    $region182: #{medsam_text_forward.1} parent=1 // pred_check
      _
    $region183: #{medsam_text_forward.1} parent=1 // pred_check_branch
      %190 = sbr.rel (0) target = $region185
    $region184: #{medsam_text_forward.1} parent=1 // pred_region
      %s192 = ssub.s32 16, 16
      %193 = vsyncadd [#allocation3], %s192
      %s195 = sshll.u32 [#allocation2], 4
      %s196 = int_to_ptr.vmem [resolvable:$true] %s195
      %198 = dma.hbm_to_vmem [thread:$0]  %s91, 16, %s196, [#allocation3]
    $region185: #{medsam_text_forward.1} parent=1 // pred_fallthru
      _
    // Predicated region
    $region186: #{medsam_text_forward.1} parent=1 // pred_check
      _
    $region187: #{medsam_text_forward.1} parent=1 // pred_check_branch
      %200 = sbr.rel (0) target = $region189
    $region188: #{medsam_text_forward.1} parent=1 // pred_region
      %201 = dma.done [#allocation3], 16
    $region189: #{medsam_text_forward.1} parent=1 // pred_fallthru
      _
    %v203 = vld [vmem:[%s3] sm:$0xff]
    %v204 = vld [vmem:[%s3 + $0x8] sm:$0xff]
    %v205 = vld [vmem:[%s1] sm:$0xff]
    %v206 = vld [vmem:[%s1 + $0x8] sm:$0xff]
    %v207 = vld [vmem:[%s1 + $0x10] sm:$0xff]
    %v208 = vld [vmem:[%s1 + $0x18] sm:$0xff]
    %v209 = vld [vmem:[%s1 + $0x20] sm:$0xff]
    %v210 = vld [vmem:[%s1 + $0x28] sm:$0xff]
    %v211 = vld [vmem:[%s1 + $0x30] sm:$0xff]
    %v212 = vld [vmem:[%s1 + $0x38] sm:$0xff]
    %v213 = vld [vmem:[%s5] sm:$0xff]
    %v214 = vld [vmem:[%s5 + $0x8] sm:$0xff]
    %v215 = vld [vmem:[%s5 + $0x10] sm:$0xff]
    %v216 = vld [vmem:[%s5 + $0x18] sm:$0xff]
    %v217 = vld [vmem:[%s5 + $0x20] sm:$0xff]
    %v218 = vld [vmem:[%s5 + $0x28] sm:$0xff]
    %v219 = vld [vmem:[%s5 + $0x30] sm:$0xff]
    %v220 = vld [vmem:[%s5 + $0x38] sm:$0xff]
    %v221 = vld [vmem:[%s5 + $0x40] sm:$0xff]
    %v222 = vld [vmem:[%s5 + $0x48] sm:$0xff]
    %v223 = vld [vmem:[%s5 + $0x50] sm:$0xff]
    %v224 = vld [vmem:[%s5 + $0x58] sm:$0xff]
    %v225 = vld [vmem:[%s5 + $0x60] sm:$0xff]
    %v226 = vld [vmem:[%s5 + $0x68] sm:$0xff]
    %v227 = vld [vmem:[%s5 + $0x70] sm:$0xff]
    %v228 = vld [vmem:[%s5 + $0x78] sm:$0xff]
    %v229 = vld [vmem:[%s5 + $0x80] sm:$0xff]
    %v230 = vld [vmem:[%s5 + $0x88] sm:$0xff]
    %v231 = vld [vmem:[%s5 + $0x90] sm:$0xff]
    %v232 = vld [vmem:[%s5 + $0x98] sm:$0xff]
    %v233 = vld [vmem:[%s5 + $0xa0] sm:$0xff]
    %v234 = vld [vmem:[%s5 + $0xa8] sm:$0xff]
    %v235 = vld [vmem:[%s5 + $0xb0] sm:$0xff]
    %v236 = vld [vmem:[%s5 + $0xb8] sm:$0xff]
    %v237 = vld [vmem:[%s7] sm:$0x1]
    %v238 = vpack.c.bf16 %v207, %v205
    %v239 = vpack.c.bf16 %v208, %v206
    %v240 = vpack.c.bf16 %v211, %v209
    %v241 = vpack.c.bf16 %v212, %v210
    %v242 = vpack.c.bf16 %v214, %v213
    %v243 = vpack.c.bf16 %v216, %v215
    %v244 = vpack.c.bf16 %v218, %v217
    %v245 = vpack.c.bf16 %v220, %v219
    %v246 = vpack.c.bf16 %v222, %v221
    %v247 = vpack.c.bf16 %v224, %v223
    %v248 = vpack.c.bf16 %v226, %v225
    %v249 = vpack.c.bf16 %v228, %v227
    %v250 = vpack.c.bf16 %v230, %v229
    %v251 = vpack.c.bf16 %v232, %v231
    %v252 = vpack.c.bf16 %v234, %v233
    %v253 = vpack.c.bf16 %v236, %v235
    %v255 = vlaneseq
    %v256 = vshrl.u32 %v255, 7
    %v257 = vsub.s32 0, %v256
    %v258 = vrot.slane %v237, %v257
    %vm260 = vcmask 523264
    %v262 = vsel %vm260, %v239, 0
    %v265 = vsel %vm260, %v241, 0
    %267 = vmatprep.subr.bf16.mxu0 0
    %268 = vmatpush1.bf16.msra.mxu0 %v242
    %269 = vmatprep.subr.bf16.mxu0 0
    %270 = vmatpush1.bf16.msra.mxu0 %v243
    %271 = vmatprep.subr.bf16.mxu0 0
    %272 = vmatpush1.bf16.msra.mxu0 %v244
    %273 = vmatprep.subr.bf16.mxu0 0
    %274 = vmatpush1.bf16.msra.mxu0 %v245
    %275 = vmatprep.subr.bf16.mxu0 0
    %276 = vmatpush1.bf16.msra.mxu0 %v246
    %277 = vmatprep.subr.bf16.mxu0 0
    %278 = vmatpush1.bf16.msra.mxu0 %v247
    %279 = vmatprep.subr.bf16.mxu0 0
    %280 = vmatpush1.bf16.msra.mxu0 %v248
    %281 = vmatprep.subr.bf16.mxu0 0
    %282 = vmatpush1.bf16.msra.mxu0 %v249
    %283 = vmatprep.subr.bf16.mxu0 0
    %284 = vmatpush1.bf16.msra.mxu0 %v250
    %285 = vmatprep.subr.bf16.mxu0 0
    %286 = vmatpush1.bf16.msra.mxu0 %v251
    %287 = vmatprep.subr.bf16.mxu0 0
    %288 = vmatpush1.bf16.msra.mxu0 %v252
    %289 = vmatprep.subr.bf16.mxu0 0
    %290 = vmatpush1.bf16.msra.mxu0 %v253
    %291 = vmatprep.subr.bf16.mxu0 0
    %292 = vmatpush1.bf16.msra.mxu0 0
    %293 = vmatprep.subr.bf16.mxu0 0
    %294 = vmatpush1.bf16.msra.mxu0 0
    %295 = vmatprep.subr.bf16.mxu0 0
    %296 = vmatpush1.bf16.msra.mxu0 0
    %297 = vmatprep.subr.bf16.mxu0 0
    %298 = vmatpush1.bf16.msra.mxu0 0
    %299 = vmatprep.mubr.bf16.mxu0 %v262
    %300 = vmatmul.mubr.bf16.gmra.mrb[0].mxu0 %v238
    %v301 = vpop.f32.mrb[0].mxu0
    %v302 = vadd.f32 %v258, %v301
    %v303 = vpop.f32.mrb[0].mxu0
    %v304 = vpop.f32.mrb[0].mxu0
    %v305 = vadd.f32 %v258, %v304
    %v306 = vpop.f32.mrb[0].mxu0
    %307 = vmatprep.mubr.bf16.mxu0 %v265
    %308 = vmatmul.mubr.bf16.gmra.mrb[0].mxu0 %v240
    %v309 = vpop.f32.mrb[0].mxu0
    %v310 = vadd.f32 %v258, %v309
    %v311 = vpop.f32.mrb[0].mxu0
    %v312 = vpop.f32.mrb[0].mxu0
    %v313 = vadd.f32 %v258, %v312
    %v314 = vpop.f32.mrb[0].mxu0
    %315 = vdwg.mxu0
    %v316 = vadd.f32 %v302, %v203
    %v317 = vadd.f32 %v305, %v204
    %v318 = vadd.f32 %v310, %v203
    %v319 = vadd.f32 %v313, %v204
    %v320 = vld [vmem:[%s13] sm:$0x7]
    %v321 = vld [vmem:[%s15] sm:$0x7]
    %v322 = vld [vmem:[%s9] sm:$0xff]
    %v323 = vld [vmem:[%s9 + $0x8] sm:$0xff]
    %v324 = vld [vmem:[%s9 + $0x10] sm:$0xff]
    %v325 = vld [vmem:[%s9 + $0x18] sm:$0xff]
    %v326 = vld [vmem:[%s11] sm:$0x1]
    %v327 = vlaneseq
    %v328 = vshrl.u32 %v327, 7
    %v329 = vadd.s32 %v328, 8
    %v330 = vadd.s32 %v328, 16
    %v331 = vadd.s32 %v328, 24
    %v332 = vlaneseq
    %v333 = vand.u32 %v332, 127
    %vm334 = vcmp.lt.s32.totalorder %v328, 16
    %vm335 = vcmp.lt.s32.totalorder %v329, 16
    %vm336 = vcmp.lt.s32.totalorder %v330, 16
    %vm337 = vcmp.lt.s32.totalorder %v331, 16
    %vm338 = vcmp.lt.s32.totalorder %v333, 16
    %vm339 = vmxor %vm334, %vm338
    %vm340 = vmxor %vm335, %vm338
    %vm341 = vmxor %vm336, %vm338
    %vm342 = vmxor %vm337, %vm338
    %v343 = vsel %vm339, -1e+09, 0.0
    %v344 = vsel %vm340, -1e+09, 0.0
    %v345 = vsel %vm341, -1e+09, 0.0
    %v346 = vsel %vm342, -1e+09, 0.0
    %vm347 = vcmask 261120
    %v348 = vsel %vm347, %v316, 0.0
    %349 = vadd.xlane.f32.xlu0 %v348
    %v350 = vpop.xlane.xlu0 %349
    %v351 = vsel %vm347, %v317, 0.0
    %352 = vadd.xlane.f32.xlu0 %v351
    %v353 = vpop.xlane.xlu0 %352
    %v354 = vsel %vm347, %v318, 0.0
    %355 = vadd.xlane.f32.xlu0 %v354
    %v356 = vpop.xlane.xlu0 %355
    %v357 = vsel %vm347, %v319, 0.0
    %358 = vadd.xlane.f32.xlu0 %v357
    %v359 = vpop.xlane.xlu0 %358
    %v360 = vrcp.pop 32.0
    %v361 = vmul.f32 %v350, %v360
    %v362 = vmul.f32 %v353, %v360
    %v363 = vmul.f32 %v356, %v360
    %v364 = vmul.f32 %v359, %v360
    %v365 = vsub.f32 %v316, %v361
    %v366 = vsub.f32 %v317, %v362
    %v367 = vsub.f32 %v318, %v363
    %v368 = vsub.f32 %v319, %v364
    %v369 = vmul.f32 %v365, %v365
    %v370 = vmul.f32 %v366, %v366
    %v371 = vmul.f32 %v367, %v367
    %v372 = vmul.f32 %v368, %v368
    %v373 = vsel %vm347, %v369, 0.0
    %374 = vadd.xlane.f32.xlu0 %v373
    %v375 = vpop.xlane.xlu0 %374
    %v376 = vsel %vm347, %v370, 0.0
    %377 = vadd.xlane.f32.xlu0 %v376
    %v378 = vpop.xlane.xlu0 %377
    %v379 = vsel %vm347, %v371, 0.0
    %380 = vadd.xlane.f32.xlu0 %v379
    %v381 = vpop.xlane.xlu0 %380
    %v382 = vsel %vm347, %v372, 0.0
    %383 = vadd.xlane.f32.xlu0 %v382
    %v384 = vpop.xlane.xlu0 %383
    %v385 = vmul.f32 %v375, %v360
    %v386 = vmul.f32 %v378, %v360
    %v387 = vmul.f32 %v381, %v360
    %v388 = vmul.f32 %v384, %v360
    %v389 = vadd.f32 %v385, 1e-06
    %v390 = vadd.f32 %v386, 1e-06
    %v391 = vadd.f32 %v387, 1e-06
    %v392 = vadd.f32 %v388, 1e-06
    %v393 = vrsqrt.pop %v389
    %v394 = vrsqrt.pop %v390
    %v395 = vrsqrt.pop %v391
    %v396 = vrsqrt.pop %v392
    %v397 = vmul.f32 %v365, %v393
    %v398 = vmul.f32 %v366, %v394
    %v399 = vmul.f32 %v367, %v395
    %v400 = vmul.f32 %v368, %v396
    %v401 = vlaneseq
    %v402 = vshrl.u32 %v401, 7
    %v403 = vsub.s32 0, %v402
    %v404 = vrot.slane %v320, %v403
    %v405 = vmul.f32 %v397, %v404
    %v406 = vmul.f32 %v398, %v404
    %v407 = vmul.f32 %v399, %v404
    %v408 = vmul.f32 %v400, %v404
    %v409 = vlaneseq
    %v410 = vshrl.u32 %v409, 7
    %v411 = vsub.s32 0, %v410
    %v412 = vrot.slane %v321, %v411
    %v413 = vadd.f32 %v405, %v412
    %v414 = vadd.f32 %v406, %v412
    %v415 = vadd.f32 %v407, %v412
    %v416 = vadd.f32 %v408, %v412
    %v417 = vpack.c.bf16 %v414, %v413
    %v418 = vpack.c.bf16 %v416, %v415
    %v419 = vpack.c.bf16 %v323, %v322
    %v420 = vpack.c.bf16 %v325, %v324
    %v422 = vlaneseq
    %v423 = vshrl.u32 %v422, 7
    %v424 = vsub.s32 0, %v423
    %v425 = vrot.slane %v326, %v424
    %v428 = vsel %vm347, %v417, 0
    %v431 = vsel %vm347, %v418, 0
    %433 = vmatprep.subr.bf16.mxu0 0
    %434 = vmatpush1.bf16.msra.mxu0 %v419
    %435 = vmatprep.subr.bf16.mxu0 0
    %436 = vmatpush1.bf16.msra.mxu0 %v420
    %437 = vmatprep.subr.bf16.mxu0 0
    %438 = vmatpush1.bf16.msra.mxu0 0
    %439 = vmatprep.subr.bf16.mxu0 0
    %440 = vmatpush1.bf16.msra.mxu0 0
    %441 = vmatprep.subr.bf16.mxu0 0
    %442 = vmatpush1.bf16.msra.mxu0 0
    %443 = vmatprep.subr.bf16.mxu0 0
    %444 = vmatpush1.bf16.msra.mxu0 0
    %445 = vmatprep.subr.bf16.mxu0 0
    %446 = vmatpush1.bf16.msra.mxu0 0
    %447 = vmatprep.subr.bf16.mxu0 0
    %448 = vmatpush1.bf16.msra.mxu0 0
    %449 = vmatprep.subr.bf16.mxu0 0
    %450 = vmatpush1.bf16.msra.mxu0 0
    %451 = vmatprep.subr.bf16.mxu0 0
    %452 = vmatpush1.bf16.msra.mxu0 0
    %453 = vmatprep.subr.bf16.mxu0 0
    %454 = vmatpush1.bf16.msra.mxu0 0
    %455 = vmatprep.subr.bf16.mxu0 0
    %456 = vmatpush1.bf16.msra.mxu0 0
    %457 = vmatprep.subr.bf16.mxu0 0
    %458 = vmatpush1.bf16.msra.mxu0 0
    %459 = vmatprep.subr.bf16.mxu0 0
    %460 = vmatpush1.bf16.msra.mxu0 0
    %461 = vmatprep.subr.bf16.mxu0 0
    %462 = vmatpush1.bf16.msra.mxu0 0
    %463 = vmatprep.subr.bf16.mxu0 0
    %464 = vmatpush1.bf16.msra.mxu0 0
    %465 = vmatprep.mubr.bf16.mxu0 0
    %466 = vmatmul.mubr.bf16.gmra.mrb[0].mxu0 %v428
    %v467 = vpop.f32.mrb[0].mxu0
    %v468 = vadd.f32 %v425, %v467
    %v469 = vpop.f32.mrb[0].mxu0
    %v470 = vpop.f32.mrb[0].mxu0
    %v471 = vadd.f32 %v425, %v470
    %v472 = vpop.f32.mrb[0].mxu0
    %473 = vmatprep.mubr.bf16.mxu0 0
    %474 = vmatmul.mubr.bf16.gmra.mrb[0].mxu0 %v431
    %v475 = vpop.f32.mrb[0].mxu0
    %v476 = vadd.f32 %v425, %v475
    %v477 = vpop.f32.mrb[0].mxu0
    %v478 = vpop.f32.mrb[0].mxu0
    %v479 = vadd.f32 %v425, %v478
    %v480 = vpop.f32.mrb[0].mxu0
    %481 = vdwg.mxu0
    %v482 = vpack.c.bf16 %v471, %v468
    %v483 = vpack.c.bf16 %v479, %v476
    %486 = vrot.lane.b32.xlu0 %v482, 96
    %v487 = vpop.permute.xlu0 %486
    %488 = vrot.lane.b32.xlu0 %v483, 96
    %v489 = vpop.permute.xlu0 %488
    %vm490 = vcmask 130048
    %v492 = vsel %vm490, %v482, 0
    %v495 = vsel %vm490, %v483, 0
    %v498 = vsel %vm490, %v487, 0
    %v501 = vsel %vm490, %v489, 0
    %503 = vmatprep.subr.bf16.mxu0 0
    %504 = vmatpush1.bf16.xpose.msra.mxu0 %v498
    %505 = vmatprep.subr.bf16.mxu0 0
    %506 = vmatpush1.bf16.xpose.msra.mxu0 %v501
    %507 = vmatprep.subr.bf16.mxu0 0
    %508 = vmatpush1.bf16.xpose.msra.mxu0 0
    %509 = vmatprep.subr.bf16.mxu0 0
    %510 = vmatpush1.bf16.xpose.msra.mxu0 0
    %511 = vmatprep.subr.bf16.mxu0 0
    %512 = vmatpush1.bf16.xpose.msra.mxu0 0
    %513 = vmatprep.subr.bf16.mxu0 0
    %514 = vmatpush1.bf16.xpose.msra.mxu0 0
    %515 = vmatprep.subr.bf16.mxu0 0
    %516 = vmatpush1.bf16.xpose.msra.mxu0 0
    %517 = vmatprep.subr.bf16.mxu0 0
    %518 = vmatpush1.bf16.xpose.msra.mxu0 0
    %519 = vmatprep.subr.bf16.mxu0 0
    %520 = vmatpush1.bf16.xpose.msra.mxu0 0
    %521 = vmatprep.subr.bf16.mxu0 0
    %522 = vmatpush1.bf16.xpose.msra.mxu0 0
    %523 = vmatprep.subr.bf16.mxu0 0
    %524 = vmatpush1.bf16.xpose.msra.mxu0 0
    %525 = vmatprep.subr.bf16.mxu0 0
    %526 = vmatpush1.bf16.xpose.msra.mxu0 0
    %527 = vmatprep.subr.bf16.mxu0 0
    %528 = vmatpush1.bf16.xpose.msra.mxu0 0
    %529 = vmatprep.subr.bf16.mxu0 0
    %530 = vmatpush1.bf16.xpose.msra.mxu0 0
    %531 = vmatprep.subr.bf16.mxu0 0
    %532 = vmatpush1.bf16.xpose.msra.mxu0 0
    %533 = vmatprep.subr.bf16.mxu0 0
    %534 = vmatpush1.bf16.xpose.msra.mxu0 0
    %535 = vmatprep.mubr.bf16.mxu0 0
    %536 = vmatmul.mubr.bf16.gmra.mrb[0].mxu0 %v492
    %v537 = vpop.f32.mrb[0].mxu0
    %v538 = vadd.f32 0.0, %v537
    %v539 = vpop.f32.mrb[0].mxu0
    %v540 = vpop.f32.mrb[0].mxu0
    %v541 = vadd.f32 0.0, %v540
    %v542 = vpop.f32.mrb[0].mxu0
    %543 = vmatprep.mubr.bf16.mxu0 0
    %544 = vmatmul.mubr.bf16.gmra.mrb[0].mxu0 %v495
    %v545 = vpop.f32.mrb[0].mxu0
    %v546 = vadd.f32 0.0, %v545
    %v547 = vpop.f32.mrb[0].mxu0
    %v548 = vpop.f32.mrb[0].mxu0
    %v549 = vadd.f32 0.0, %v548
    %v550 = vpop.f32.mrb[0].mxu0
    %551 = vdwg.mxu0
    %v552 = vmul.f32 %v538, 0.25
    %v553 = vmul.f32 %v541, 0.25
    %v554 = vmul.f32 %v546, 0.25
    %v555 = vmul.f32 %v549, 0.25
    %v556 = vadd.f32 %v552, %v343
    %v557 = vadd.f32 %v553, %v344
    %v558 = vadd.f32 %v554, %v345
    %v559 = vadd.f32 %v555, %v346
    %v560 = vsel %vm347, %v556, -inf
    %561 = vmax.xlane.f32.xlu0 %v560
    %v562 = vpop.xlane.xlu0 %561
    %v563 = vsel %vm347, %v557, -inf
    %564 = vmax.xlane.f32.xlu0 %v563
    %v565 = vpop.xlane.xlu0 %564
    %v566 = vsel %vm347, %v558, -inf
    %567 = vmax.xlane.f32.xlu0 %v566
    %v568 = vpop.xlane.xlu0 %567
    %v569 = vsel %vm347, %v559, -inf
    %570 = vmax.xlane.f32.xlu0 %v569
    %v571 = vpop.xlane.xlu0 %570
    %v572 = vsub.f32 %v556, %v562
    %v573 = vsub.f32 %v557, %v565
    %v574 = vsub.f32 %v558, %v568
    %v575 = vsub.f32 %v559, %v571
    %v576 = vmul.f32 %v572, 1.442695
    %v577 = vpow.pop %v576
    %v578 = vmul.f32 %v573, 1.442695
    %v579 = vpow.pop %v578
    %v580 = vmul.f32 %v574, 1.442695
    %v581 = vpow.pop %v580
    %v582 = vmul.f32 %v575, 1.442695
    %v583 = vpow.pop %v582
    %v584 = vsel %vm347, %v577, 0.0
    %585 = vadd.xlane.f32.xlu0 %v584
    %v586 = vpop.xlane.xlu0 %585
    %v587 = vsel %vm347, %v579, 0.0
    %588 = vadd.xlane.f32.xlu0 %v587
    %v589 = vpop.xlane.xlu0 %588
    %v590 = vsel %vm347, %v581, 0.0
    %591 = vadd.xlane.f32.xlu0 %v590
    %v592 = vpop.xlane.xlu0 %591
    %v593 = vsel %vm347, %v583, 0.0
    %594 = vadd.xlane.f32.xlu0 %v593
    %v595 = vpop.xlane.xlu0 %594
    %v596 = vrcp.pop %v586
    %v597 = vrcp.pop %v589
    %v598 = vrcp.pop %v592
    %v599 = vrcp.pop %v595
    %v600 = vmul.f32 %v577, %v596
    %v601 = vmul.f32 %v579, %v597
    %v602 = vmul.f32 %v581, %v598
    %v603 = vmul.f32 %v583, %v599
    %v604 = vpack.c.bf16 %v601, %v600
    %v605 = vpack.c.bf16 %v603, %v602
    %606 = vrot.lane.b32.xlu0 %v482, 64
    %v607 = vpop.permute.xlu0 %606
    %608 = vrot.lane.b32.xlu0 %v483, 64
    %v609 = vpop.permute.xlu0 %608
    %v613 = vsel %vm347, %v604, 0
    %v616 = vsel %vm347, %v605, 0
    %618 = vmatprep.subr.bf16.mxu0 0
    %619 = vmatpush1.bf16.msra.mxu0 %v607
    %620 = vmatprep.subr.bf16.mxu0 0
    %621 = vmatpush1.bf16.msra.mxu0 %v609
    %622 = vmatprep.subr.bf16.mxu0 0
    %623 = vmatpush1.bf16.msra.mxu0 0
    %624 = vmatprep.subr.bf16.mxu0 0
    %625 = vmatpush1.bf16.msra.mxu0 0
    %626 = vmatprep.subr.bf16.mxu0 0
    %627 = vmatpush1.bf16.msra.mxu0 0
    %628 = vmatprep.subr.bf16.mxu0 0
    %629 = vmatpush1.bf16.msra.mxu0 0
    %630 = vmatprep.subr.bf16.mxu0 0
    %631 = vmatpush1.bf16.msra.mxu0 0
    %632 = vmatprep.subr.bf16.mxu0 0
    %633 = vmatpush1.bf16.msra.mxu0 0
    %634 = vmatprep.subr.bf16.mxu0 0
    %635 = vmatpush1.bf16.msra.mxu0 0
    %636 = vmatprep.subr.bf16.mxu0 0
    %637 = vmatpush1.bf16.msra.mxu0 0
    %638 = vmatprep.subr.bf16.mxu0 0
    %639 = vmatpush1.bf16.msra.mxu0 0
    %640 = vmatprep.subr.bf16.mxu0 0
    %641 = vmatpush1.bf16.msra.mxu0 0
    %642 = vmatprep.subr.bf16.mxu0 0
    %643 = vmatpush1.bf16.msra.mxu0 0
    %644 = vmatprep.subr.bf16.mxu0 0
    %645 = vmatpush1.bf16.msra.mxu0 0
    %646 = vmatprep.subr.bf16.mxu0 0
    %647 = vmatpush1.bf16.msra.mxu0 0
    %648 = vmatprep.subr.bf16.mxu0 0
    %649 = vmatpush1.bf16.msra.mxu0 0
    %650 = vmatprep.mubr.bf16.mxu0 0
    %651 = vmatmul.mubr.bf16.gmra.mrb[0].mxu0 %v613
    %v652 = vpop.f32.mrb[0].mxu0
    %v653 = vadd.f32 0.0, %v652
    %v654 = vpop.f32.mrb[0].mxu0
    %v655 = vpop.f32.mrb[0].mxu0
    %v656 = vadd.f32 0.0, %v655
    %v657 = vpop.f32.mrb[0].mxu0
    %658 = vmatprep.mubr.bf16.mxu0 0
    %659 = vmatmul.mubr.bf16.gmra.mrb[0].mxu0 %v616
    %v660 = vpop.f32.mrb[0].mxu0
    %v661 = vadd.f32 0.0, %v660
    %v662 = vpop.f32.mrb[0].mxu0
    %v663 = vpop.f32.mrb[0].mxu0
    %v664 = vadd.f32 0.0, %v663
    %v665 = vpop.f32.mrb[0].mxu0
    %666 = vdwg.mxu0
    %v667 = vpack.c.bf16 %v656, %v653
    %v668 = vpack.c.bf16 %v664, %v661
    %670 = vrot.lane.b32.xlu0 %v419, 32
    %v671 = vpop.permute.xlu0 %670
    %v674 = vsel %vm490, %v667, 0
    %v677 = vsel %vm490, %v668, 0
    %679 = vmatprep.subr.bf16.mxu0 0
    %680 = vmatpush1.bf16.msra.mxu0 %v671
    %681 = vmatprep.subr.bf16.mxu0 0
    %682 = vmatpush1.bf16.msra.mxu0 0
    %683 = vmatprep.subr.bf16.mxu0 0
    %684 = vmatpush1.bf16.msra.mxu0 0
    %685 = vmatprep.subr.bf16.mxu0 0
    %686 = vmatpush1.bf16.msra.mxu0 0
    %687 = vmatprep.subr.bf16.mxu0 0
    %688 = vmatpush1.bf16.msra.mxu0 0
    %689 = vmatprep.subr.bf16.mxu0 0
    %690 = vmatpush1.bf16.msra.mxu0 0
    %691 = vmatprep.subr.bf16.mxu0 0
    %692 = vmatpush1.bf16.msra.mxu0 0
    %693 = vmatprep.subr.bf16.mxu0 0
    %694 = vmatpush1.bf16.msra.mxu0 0
    %695 = vmatprep.subr.bf16.mxu0 0
    %696 = vmatpush1.bf16.msra.mxu0 0
    %697 = vmatprep.subr.bf16.mxu0 0
    %698 = vmatpush1.bf16.msra.mxu0 0
    %699 = vmatprep.subr.bf16.mxu0 0
    %700 = vmatpush1.bf16.msra.mxu0 0
    %701 = vmatprep.subr.bf16.mxu0 0
    %702 = vmatpush1.bf16.msra.mxu0 0
    %703 = vmatprep.subr.bf16.mxu0 0
    %704 = vmatpush1.bf16.msra.mxu0 0
    %705 = vmatprep.subr.bf16.mxu0 0
    %706 = vmatpush1.bf16.msra.mxu0 0
    %707 = vmatprep.subr.bf16.mxu0 0
    %708 = vmatpush1.bf16.msra.mxu0 0
    %709 = vmatprep.subr.bf16.mxu0 0
    %710 = vmatpush1.bf16.msra.mxu0 0
    %711 = vmatprep.mubr.bf16.mxu0 0
    %712 = vmatmul.mubr.bf16.gmra.mrb[0].mxu0 %v674
    %v713 = vpop.f32.mrb[0].mxu0
    %v714 = vadd.f32 0.0, %v713
    %v715 = vpop.f32.mrb[0].mxu0
    %v716 = vpop.f32.mrb[0].mxu0
    %v717 = vadd.f32 0.0, %v716
    %v718 = vpop.f32.mrb[0].mxu0
    %719 = vmatprep.mubr.bf16.mxu0 0
    %720 = vmatmul.mubr.bf16.gmra.mrb[0].mxu0 %v677
    %v721 = vpop.f32.mrb[0].mxu0
    %v722 = vadd.f32 0.0, %v721
    %v723 = vpop.f32.mrb[0].mxu0
    %v724 = vpop.f32.mrb[0].mxu0
    %v725 = vadd.f32 0.0, %v724
    %v726 = vpop.f32.mrb[0].mxu0
    %727 = vdwg.mxu0
    %732 = vrot.lane.b32.xlu0 %v714, 96
    %v733 = vpop.permute.xlu0 %732
    %734 = vrot.lane.b32.xlu0 %v717, 96
    %v735 = vpop.permute.xlu0 %734
    %736 = vrot.lane.b32.xlu0 %v722, 96
    %v737 = vpop.permute.xlu0 %736
    %738 = vrot.lane.b32.xlu0 %v725, 96
    %v739 = vpop.permute.xlu0 %738
    %v744 = vadd.f32 %v425, %v733
    %v745 = vadd.f32 %v425, %v735
    %v746 = vadd.f32 %v425, %v737
    %v747 = vadd.f32 %v425, %v739
    %748 = vrot.lane.b32.xlu0 %v482, 112
    %v749 = vpop.permute.xlu0 %748
    %750 = vrot.lane.b32.xlu0 %v483, 112
    %v751 = vpop.permute.xlu0 %750
    %752 = vrot.lane.b32.xlu0 %v482, 80
    %v753 = vpop.permute.xlu0 %752
    %754 = vrot.lane.b32.xlu0 %v483, 80
    %v755 = vpop.permute.xlu0 %754
    %v757 = vsel %vm490, %v749, 0
    %v760 = vsel %vm490, %v751, 0
    %v763 = vsel %vm490, %v753, 0
    %v766 = vsel %vm490, %v755, 0
    %768 = vmatprep.subr.bf16.mxu0 0
    %769 = vmatpush1.bf16.xpose.msra.mxu0 %v763
    %770 = vmatprep.subr.bf16.mxu0 0
    %771 = vmatpush1.bf16.xpose.msra.mxu0 %v766
    %772 = vmatprep.subr.bf16.mxu0 0
    %773 = vmatpush1.bf16.xpose.msra.mxu0 0
    %774 = vmatprep.subr.bf16.mxu0 0
    %775 = vmatpush1.bf16.xpose.msra.mxu0 0
    %776 = vmatprep.subr.bf16.mxu0 0
    %777 = vmatpush1.bf16.xpose.msra.mxu0 0
    %778 = vmatprep.subr.bf16.mxu0 0
    %779 = vmatpush1.bf16.xpose.msra.mxu0 0
    %780 = vmatprep.subr.bf16.mxu0 0
    %781 = vmatpush1.bf16.xpose.msra.mxu0 0
    %782 = vmatprep.subr.bf16.mxu0 0
    %783 = vmatpush1.bf16.xpose.msra.mxu0 0
    %784 = vmatprep.subr.bf16.mxu0 0
    %785 = vmatpush1.bf16.xpose.msra.mxu0 0
    %786 = vmatprep.subr.bf16.mxu0 0
    %787 = vmatpush1.bf16.xpose.msra.mxu0 0
    %788 = vmatprep.subr.bf16.mxu0 0
    %789 = vmatpush1.bf16.xpose.msra.mxu0 0
    %790 = vmatprep.subr.bf16.mxu0 0
    %791 = vmatpush1.bf16.xpose.msra.mxu0 0
    %792 = vmatprep.subr.bf16.mxu0 0
    %793 = vmatpush1.bf16.xpose.msra.mxu0 0
    %794 = vmatprep.subr.bf16.mxu0 0
    %795 = vmatpush1.bf16.xpose.msra.mxu0 0
    %796 = vmatprep.subr.bf16.mxu0 0
    %797 = vmatpush1.bf16.xpose.msra.mxu0 0
    %798 = vmatprep.subr.bf16.mxu0 0
    %799 = vmatpush1.bf16.xpose.msra.mxu0 0
    %800 = vmatprep.mubr.bf16.mxu0 0
    %801 = vmatmul.mubr.bf16.gmra.mrb[0].mxu0 %v757
    %v802 = vpop.f32.mrb[0].mxu0
    %v803 = vadd.f32 0.0, %v802
    %v804 = vpop.f32.mrb[0].mxu0
    %v805 = vpop.f32.mrb[0].mxu0
    %v806 = vadd.f32 0.0, %v805
    %v807 = vpop.f32.mrb[0].mxu0
    %808 = vmatprep.mubr.bf16.mxu0 0
    %809 = vmatmul.mubr.bf16.gmra.mrb[0].mxu0 %v760
    %v810 = vpop.f32.mrb[0].mxu0
    %v811 = vadd.f32 0.0, %v810
    %v812 = vpop.f32.mrb[0].mxu0
    %v813 = vpop.f32.mrb[0].mxu0
    %v814 = vadd.f32 0.0, %v813
    %v815 = vpop.f32.mrb[0].mxu0
    %816 = vdwg.mxu0
    %v817 = vmul.f32 %v803, 0.25
    %v818 = vmul.f32 %v806, 0.25
    %v819 = vmul.f32 %v811, 0.25
    %v820 = vmul.f32 %v814, 0.25
    %v821 = vadd.f32 %v817, %v343
    %v822 = vadd.f32 %v818, %v344
    %v823 = vadd.f32 %v819, %v345
    %v824 = vadd.f32 %v820, %v346
    %v825 = vsel %vm347, %v821, -inf
    %826 = vmax.xlane.f32.xlu0 %v825
    %v827 = vpop.xlane.xlu0 %826
    %v828 = vsel %vm347, %v822, -inf
    %829 = vmax.xlane.f32.xlu0 %v828
    %v830 = vpop.xlane.xlu0 %829
    %v831 = vsel %vm347, %v823, -inf
    %832 = vmax.xlane.f32.xlu0 %v831
    %v833 = vpop.xlane.xlu0 %832
    %v834 = vsel %vm347, %v824, -inf
    %835 = vmax.xlane.f32.xlu0 %v834
    %v836 = vpop.xlane.xlu0 %835
    %v837 = vsub.f32 %v821, %v827
    %v838 = vsub.f32 %v822, %v830
    %v839 = vsub.f32 %v823, %v833
    %v840 = vsub.f32 %v824, %v836
    %v841 = vmul.f32 %v837, 1.442695
    %v842 = vpow.pop %v841
    %v843 = vmul.f32 %v838, 1.442695
    %v844 = vpow.pop %v843
    %v845 = vmul.f32 %v839, 1.442695
    %v846 = vpow.pop %v845
    %v847 = vmul.f32 %v840, 1.442695
    %v848 = vpow.pop %v847
    %v849 = vsel %vm347, %v842, 0.0
    %850 = vadd.xlane.f32.xlu0 %v849
    %v851 = vpop.xlane.xlu0 %850
    %v852 = vsel %vm347, %v844, 0.0
    %853 = vadd.xlane.f32.xlu0 %v852
    %v854 = vpop.xlane.xlu0 %853
    %v855 = vsel %vm347, %v846, 0.0
    %856 = vadd.xlane.f32.xlu0 %v855
    %v857 = vpop.xlane.xlu0 %856
    %v858 = vsel %vm347, %v848, 0.0
    %859 = vadd.xlane.f32.xlu0 %v858
    %v860 = vpop.xlane.xlu0 %859
    %v861 = vrcp.pop %v851
    %v862 = vrcp.pop %v854
    %v863 = vrcp.pop %v857
    %v864 = vrcp.pop %v860
    %v865 = vmul.f32 %v842, %v861
    %v866 = vmul.f32 %v844, %v862
    %v867 = vmul.f32 %v846, %v863
    %v868 = vmul.f32 %v848, %v864
    %v869 = vpack.c.bf16 %v866, %v865
    %v870 = vpack.c.bf16 %v868, %v867
    %871 = vrot.lane.b32.xlu0 %v482, 48
    %v872 = vpop.permute.xlu0 %871
    %873 = vrot.lane.b32.xlu0 %v483, 48
    %v874 = vpop.permute.xlu0 %873
    %v878 = vsel %vm347, %v869, 0
    %v881 = vsel %vm347, %v870, 0
    %883 = vmatprep.subr.bf16.mxu0 0
    %884 = vmatpush1.bf16.msra.mxu0 %v872
    %885 = vmatprep.subr.bf16.mxu0 0
    %886 = vmatpush1.bf16.msra.mxu0 %v874
    %887 = vmatprep.subr.bf16.mxu0 0
    %888 = vmatpush1.bf16.msra.mxu0 0
    %889 = vmatprep.subr.bf16.mxu0 0
    %890 = vmatpush1.bf16.msra.mxu0 0
    %891 = vmatprep.subr.bf16.mxu0 0
    %892 = vmatpush1.bf16.msra.mxu0 0
    %893 = vmatprep.subr.bf16.mxu0 0
    %894 = vmatpush1.bf16.msra.mxu0 0
    %895 = vmatprep.subr.bf16.mxu0 0
    %896 = vmatpush1.bf16.msra.mxu0 0
    %897 = vmatprep.subr.bf16.mxu0 0
    %898 = vmatpush1.bf16.msra.mxu0 0
    %899 = vmatprep.subr.bf16.mxu0 0
    %900 = vmatpush1.bf16.msra.mxu0 0
    %901 = vmatprep.subr.bf16.mxu0 0
    %902 = vmatpush1.bf16.msra.mxu0 0
    %903 = vmatprep.subr.bf16.mxu0 0
    %904 = vmatpush1.bf16.msra.mxu0 0
    %905 = vmatprep.subr.bf16.mxu0 0
    %906 = vmatpush1.bf16.msra.mxu0 0
    %907 = vmatprep.subr.bf16.mxu0 0
    %908 = vmatpush1.bf16.msra.mxu0 0
    %909 = vmatprep.subr.bf16.mxu0 0
    %910 = vmatpush1.bf16.msra.mxu0 0
    %911 = vmatprep.subr.bf16.mxu0 0
    %912 = vmatpush1.bf16.msra.mxu0 0
    %913 = vmatprep.subr.bf16.mxu0 0
    %914 = vmatpush1.bf16.msra.mxu0 0
    %915 = vmatprep.mubr.bf16.mxu0 0
    %916 = vmatmul.mubr.bf16.gmra.mrb[0].mxu0 %v878
    %v917 = vpop.f32.mrb[0].mxu0
    %v918 = vadd.f32 0.0, %v917
    %v919 = vpop.f32.mrb[0].mxu0
    %v920 = vpop.f32.mrb[0].mxu0
    %v921 = vadd.f32 0.0, %v920
    %v922 = vpop.f32.mrb[0].mxu0
    %923 = vmatprep.mubr.bf16.mxu0 0
    %924 = vmatmul.mubr.bf16.gmra.mrb[0].mxu0 %v881
    %v925 = vpop.f32.mrb[0].mxu0
    %v926 = vadd.f32 0.0, %v925
    %v927 = vpop.f32.mrb[0].mxu0
    %v928 = vpop.f32.mrb[0].mxu0
    %v929 = vadd.f32 0.0, %v928
    %v930 = vpop.f32.mrb[0].mxu0
    %931 = vdwg.mxu0
    %v932 = vpack.c.bf16 %v921, %v918
    %v933 = vpack.c.bf16 %v929, %v926
    %935 = vrot.lane.b32.xlu0 %v420, 32
    %v936 = vpop.permute.xlu0 %935
    %v939 = vsel %vm490, %v932, 0
    %v942 = vsel %vm490, %v933, 0
    %944 = vmatprep.subr.bf16.mxu0 0
    %945 = vmatpush1.bf16.msra.mxu0 %v936
    %946 = vmatprep.subr.bf16.mxu0 0
    %947 = vmatpush1.bf16.msra.mxu0 0
    %948 = vmatprep.subr.bf16.mxu0 0
    %949 = vmatpush1.bf16.msra.mxu0 0
    %950 = vmatprep.subr.bf16.mxu0 0
    %951 = vmatpush1.bf16.msra.mxu0 0
    %952 = vmatprep.subr.bf16.mxu0 0
    %953 = vmatpush1.bf16.msra.mxu0 0
    %954 = vmatprep.subr.bf16.mxu0 0
    %955 = vmatpush1.bf16.msra.mxu0 0
    %956 = vmatprep.subr.bf16.mxu0 0
    %957 = vmatpush1.bf16.msra.mxu0 0
    %958 = vmatprep.subr.bf16.mxu0 0
    %959 = vmatpush1.bf16.msra.mxu0 0
    %960 = vmatprep.subr.bf16.mxu0 0
    %961 = vmatpush1.bf16.msra.mxu0 0
    %962 = vmatprep.subr.bf16.mxu0 0
    %963 = vmatpush1.bf16.msra.mxu0 0
    %964 = vmatprep.subr.bf16.mxu0 0
    %965 = vmatpush1.bf16.msra.mxu0 0
    %966 = vmatprep.subr.bf16.mxu0 0
    %967 = vmatpush1.bf16.msra.mxu0 0
    %968 = vmatprep.subr.bf16.mxu0 0
    %969 = vmatpush1.bf16.msra.mxu0 0
    %970 = vmatprep.subr.bf16.mxu0 0
    %971 = vmatpush1.bf16.msra.mxu0 0
    %972 = vmatprep.subr.bf16.mxu0 0
    %973 = vmatpush1.bf16.msra.mxu0 0
    %974 = vmatprep.subr.bf16.mxu0 0
    %975 = vmatpush1.bf16.msra.mxu0 0
    %976 = vmatprep.mubr.bf16.mxu0 0
    %977 = vmatmul.mubr.bf16.gmra.mrb[0].mxu0 %v939
    %v978 = vpop.f32.mrb[0].mxu0
    %v979 = vadd.f32 0.0, %v978
    %v980 = vpop.f32.mrb[0].mxu0
    %v981 = vpop.f32.mrb[0].mxu0
    %v982 = vadd.f32 0.0, %v981
    %v983 = vpop.f32.mrb[0].mxu0
    %984 = vmatprep.mubr.bf16.mxu0 0
    %985 = vmatmul.mubr.bf16.gmra.mrb[0].mxu0 %v942
    %v986 = vpop.f32.mrb[0].mxu0
    %v987 = vadd.f32 0.0, %v986
    %v988 = vpop.f32.mrb[0].mxu0
    %v989 = vpop.f32.mrb[0].mxu0
    %v990 = vadd.f32 0.0, %v989
    %v991 = vpop.f32.mrb[0].mxu0
    %992 = vdwg.mxu0
    %997 = vrot.lane.b32.xlu0 %v979, 96
    %v998 = vpop.permute.xlu0 %997
    %999 = vrot.lane.b32.xlu0 %v982, 96
    %v1000 = vpop.permute.xlu0 %999
    %1001 = vrot.lane.b32.xlu0 %v987, 96
    %v1002 = vpop.permute.xlu0 %1001
    %1003 = vrot.lane.b32.xlu0 %v990, 96
    %v1004 = vpop.permute.xlu0 %1003
    %v1009 = vadd.f32 %v744, %v998
    %v1010 = vadd.f32 %v745, %v1000
    %v1011 = vadd.f32 %v746, %v1002
    %v1012 = vadd.f32 %v747, %v1004
    %1017 = vrot.lane.b32.xlu0 %v1009, 32
    %v1018 = vpop.permute.xlu0 %1017
    %1019 = vrot.lane.b32.xlu0 %v1010, 32
    %v1020 = vpop.permute.xlu0 %1019
    %1021 = vrot.lane.b32.xlu0 %v1011, 32
    %v1022 = vpop.permute.xlu0 %1021
    %1023 = vrot.lane.b32.xlu0 %v1012, 32
    %v1024 = vpop.permute.xlu0 %1023
    %v1029 = vadd.f32 %v316, %v1018
    %v1030 = vadd.f32 %v317, %v1020
    %v1031 = vadd.f32 %v318, %v1022
    %v1032 = vadd.f32 %v319, %v1024
    %v1033 = vsel %vm347, %v1029, 0.0
    %1034 = vadd.xlane.f32.xlu0 %v1033
    %v1035 = vpop.xlane.xlu0 %1034
    %v1036 = vsel %vm347, %v1030, 0.0
    %1037 = vadd.xlane.f32.xlu0 %v1036
    %v1038 = vpop.xlane.xlu0 %1037
    %v1039 = vsel %vm347, %v1031, 0.0
    %1040 = vadd.xlane.f32.xlu0 %v1039
    %v1041 = vpop.xlane.xlu0 %1040
    %v1042 = vsel %vm347, %v1032, 0.0
    %1043 = vadd.xlane.f32.xlu0 %v1042
    %v1044 = vpop.xlane.xlu0 %1043
    %v1045 = vmul.f32 %v1035, %v360
    %v1046 = vmul.f32 %v1038, %v360
    %v1047 = vmul.f32 %v1041, %v360
    %v1048 = vmul.f32 %v1044, %v360
    %v1049 = vsub.f32 %v1029, %v1045
    %v1050 = vsub.f32 %v1030, %v1046
    %v1051 = vsub.f32 %v1031, %v1047
    %v1052 = vsub.f32 %v1032, %v1048
    %v1053 = vmul.f32 %v1049, %v1049
    %v1054 = vmul.f32 %v1050, %v1050
    %v1055 = vmul.f32 %v1051, %v1051
    %v1056 = vmul.f32 %v1052, %v1052
    %v1057 = vsel %vm347, %v1053, 0.0
    %1058 = vadd.xlane.f32.xlu0 %v1057
    %v1059 = vpop.xlane.xlu0 %1058
    %v1060 = vsel %vm347, %v1054, 0.0
    %1061 = vadd.xlane.f32.xlu0 %v1060
    %v1062 = vpop.xlane.xlu0 %1061
    %v1063 = vsel %vm347, %v1055, 0.0
    %1064 = vadd.xlane.f32.xlu0 %v1063
    %v1065 = vpop.xlane.xlu0 %1064
    %v1066 = vsel %vm347, %v1056, 0.0
    %1067 = vadd.xlane.f32.xlu0 %v1066
    %v1068 = vpop.xlane.xlu0 %1067
    %v1069 = vmul.f32 %v1059, %v360
    %v1070 = vmul.f32 %v1062, %v360
    %v1071 = vmul.f32 %v1065, %v360
    %v1072 = vmul.f32 %v1068, %v360
    %v1073 = vadd.f32 %v1069, 1e-06
    %v1074 = vadd.f32 %v1070, 1e-06
    %v1075 = vadd.f32 %v1071, 1e-06
    %v1076 = vadd.f32 %v1072, 1e-06
    %v1077 = vrsqrt.pop %v1073
    %v1078 = vrsqrt.pop %v1074
    %v1079 = vrsqrt.pop %v1075
    %v1080 = vrsqrt.pop %v1076
    %v1081 = vmul.f32 %v1049, %v1077
    %v1082 = vmul.f32 %v1050, %v1078
    %v1083 = vmul.f32 %v1051, %v1079
    %v1084 = vmul.f32 %v1052, %v1080
    %v1085 = vlaneseq
    %v1086 = vshrl.u32 %v1085, 7
    %v1087 = vsub.s32 1, %v1086
    %v1088 = vrot.slane %v320, %v1087
    %v1089 = vmul.f32 %v1081, %v1088
    %v1090 = vmul.f32 %v1082, %v1088
    %v1091 = vmul.f32 %v1083, %v1088
    %v1092 = vmul.f32 %v1084, %v1088
    %v1093 = vlaneseq
    %v1094 = vshrl.u32 %v1093, 7
    %v1095 = vsub.s32 1, %v1094
    %v1096 = vrot.slane %v321, %v1095
    %v1097 = vadd.f32 %v1089, %v1096
    %v1098 = vadd.f32 %v1090, %v1096
    %v1099 = vadd.f32 %v1091, %v1096
    %v1100 = vadd.f32 %v1092, %v1096
    %v1101 = vld [vmem:[%s17] sm:$0xff]
    %v1102 = vld [vmem:[%s17 + $0x8] sm:$0xff]
    %v1103 = vld [vmem:[%s17 + $0x10] sm:$0xff]
    %v1104 = vld [vmem:[%s17 + $0x18] sm:$0xff]
    %v1105 = vld [vmem:[%s19] sm:$0x1]
    %v1106 = vpack.c.bf16 %v1098, %v1097
    %v1107 = vpack.c.bf16 %v1100, %v1099
    %v1108 = vpack.c.bf16 %v1102, %v1101
    %v1109 = vpack.c.bf16 %v1104, %v1103
    %v1111 = vlaneseq
    %v1112 = vshrl.u32 %v1111, 7
    %v1113 = vsub.s32 0, %v1112
    %v1114 = vrot.slane %v1105, %v1113
    %v1117 = vsel %vm347, %v1106, 0
    %v1120 = vsel %vm347, %v1107, 0
    %1122 = vmatprep.subr.bf16.mxu0 0
    %1123 = vmatpush1.bf16.msra.mxu0 %v1108
    %1124 = vmatprep.subr.bf16.mxu0 0
    %1125 = vmatpush1.bf16.msra.mxu0 %v1109
    %1126 = vmatprep.subr.bf16.mxu0 0
    %1127 = vmatpush1.bf16.msra.mxu0 0
    %1128 = vmatprep.subr.bf16.mxu0 0
    %1129 = vmatpush1.bf16.msra.mxu0 0
    %1130 = vmatprep.subr.bf16.mxu0 0
    %1131 = vmatpush1.bf16.msra.mxu0 0
    %1132 = vmatprep.subr.bf16.mxu0 0
    %1133 = vmatpush1.bf16.msra.mxu0 0
    %1134 = vmatprep.subr.bf16.mxu0 0
    %1135 = vmatpush1.bf16.msra.mxu0 0
    %1136 = vmatprep.subr.bf16.mxu0 0
    %1137 = vmatpush1.bf16.msra.mxu0 0
    %1138 = vmatprep.subr.bf16.mxu0 0
    %1139 = vmatpush1.bf16.msra.mxu0 0
    %1140 = vmatprep.subr.bf16.mxu0 0
    %1141 = vmatpush1.bf16.msra.mxu0 0
    %1142 = vmatprep.subr.bf16.mxu0 0
    %1143 = vmatpush1.bf16.msra.mxu0 0
    %1144 = vmatprep.subr.bf16.mxu0 0
    %1145 = vmatpush1.bf16.msra.mxu0 0
    %1146 = vmatprep.subr.bf16.mxu0 0
    %1147 = vmatpush1.bf16.msra.mxu0 0
    %1148 = vmatprep.subr.bf16.mxu0 0
    %1149 = vmatpush1.bf16.msra.mxu0 0
    %1150 = vmatprep.subr.bf16.mxu0 0
    %1151 = vmatpush1.bf16.msra.mxu0 0
    %1152 = vmatprep.subr.bf16.mxu0 0
    %1153 = vmatpush1.bf16.msra.mxu0 0
    %1154 = vmatprep.mubr.bf16.mxu0 0
    %1155 = vmatmul.mubr.bf16.gmra.mrb[0].mxu0 %v1117
    %v1156 = vpop.f32.mrb[0].mxu0
    %v1157 = vadd.f32 %v1114, %v1156
    %v1158 = vpop.f32.mrb[0].mxu0
    %v1159 = vpop.f32.mrb[0].mxu0
    %v1160 = vadd.f32 %v1114, %v1159
    %v1161 = vpop.f32.mrb[0].mxu0
    %1162 = vmatprep.mubr.bf16.mxu0 0
    %1163 = vmatmul.mubr.bf16.gmra.mrb[0].mxu0 %v1120
    %v1164 = vpop.f32.mrb[0].mxu0
    %v1165 = vadd.f32 %v1114, %v1164
    %v1166 = vpop.f32.mrb[0].mxu0
    %v1167 = vpop.f32.mrb[0].mxu0
    %v1168 = vadd.f32 %v1114, %v1167
    %v1169 = vpop.f32.mrb[0].mxu0
    %1170 = vdwg.mxu0
    %v1171 = vmul.f32 %v1157, %v1157
    %v1172 = vmul.f32 %v1160, %v1160
    %v1173 = vmul.f32 %v1165, %v1165
    %v1174 = vmul.f32 %v1168, %v1168
    %v1175 = vmul.f32 %v1157, %v1171
    %v1176 = vmul.f32 %v1160, %v1172
    %v1177 = vmul.f32 %v1165, %v1173
    %v1178 = vmul.f32 %v1168, %v1174
    %v1179 = vmul.f32 %v1175, 0.044715
    %v1180 = vmul.f32 %v1176, 0.044715
    %v1181 = vmul.f32 %v1177, 0.044715
    %v1182 = vmul.f32 %v1178, 0.044715
    %v1183 = vadd.f32 %v1157, %v1179
    %v1184 = vadd.f32 %v1160, %v1180
    %v1185 = vadd.f32 %v1165, %v1181
    %v1186 = vadd.f32 %v1168, %v1182
    %v1187 = vmul.f32 %v1183, 0.7978846
    %v1188 = vmul.f32 %v1184, 0.7978846
    %v1189 = vmul.f32 %v1185, 0.7978846
    %v1190 = vmul.f32 %v1186, 0.7978846
    %v1191 = vtanh.pop %v1187
    %v1192 = vtanh.pop %v1188
    %v1193 = vtanh.pop %v1189
    %v1194 = vtanh.pop %v1190
    %v1195 = vadd.f32 %v1191, 1.0
    %v1196 = vadd.f32 %v1192, 1.0
    %v1197 = vadd.f32 %v1193, 1.0
    %v1198 = vadd.f32 %v1194, 1.0
    %v1199 = vmul.f32 %v1195, 0.5
    %v1200 = vmul.f32 %v1196, 0.5
    %v1201 = vmul.f32 %v1197, 0.5
    %v1202 = vmul.f32 %v1198, 0.5
    %v1203 = vmul.f32 %v1157, %v1199
    %v1204 = vmul.f32 %v1160, %v1200
    %v1205 = vmul.f32 %v1165, %v1201
    %v1206 = vmul.f32 %v1168, %v1202
    %v1207 = vld [vmem:[%s21] sm:$0xff]
    %v1208 = vld [vmem:[%s21 + $0x8] sm:$0xff]
    %v1209 = vld [vmem:[%s21 + $0x10] sm:$0xff]
    %v1210 = vld [vmem:[%s21 + $0x18] sm:$0xff]
    %v1211 = vld [vmem:[%s21 + $0x20] sm:$0xff]
    %v1212 = vld [vmem:[%s21 + $0x28] sm:$0xff]
    %v1213 = vld [vmem:[%s21 + $0x30] sm:$0xff]
    %v1214 = vld [vmem:[%s21 + $0x38] sm:$0xff]
    %v1215 = vld [vmem:[%s23] sm:$0x1]
    %v1216 = vpack.c.bf16 %v1204, %v1203
    %v1217 = vpack.c.bf16 %v1206, %v1205
    %v1218 = vpack.c.bf16 %v1208, %v1207
    %v1219 = vpack.c.bf16 %v1210, %v1209
    %v1220 = vpack.c.bf16 %v1212, %v1211
    %v1221 = vpack.c.bf16 %v1214, %v1213
    %v1223 = vlaneseq
    %v1224 = vshrl.u32 %v1223, 7
    %v1225 = vsub.s32 0, %v1224
    %v1226 = vrot.slane %v1215, %v1225
    %v1229 = vsel %vm260, %v1216, 0
    %v1232 = vsel %vm260, %v1217, 0
    %1234 = vmatprep.subr.bf16.mxu0 0
    %1235 = vmatpush1.bf16.msra.mxu0 %v1218
    %1236 = vmatprep.subr.bf16.mxu0 0
    %1237 = vmatpush1.bf16.msra.mxu0 %v1219
    %1238 = vmatprep.subr.bf16.mxu0 0
    %1239 = vmatpush1.bf16.msra.mxu0 %v1220
    %1240 = vmatprep.subr.bf16.mxu0 0
    %1241 = vmatpush1.bf16.msra.mxu0 %v1221
    %1242 = vmatprep.subr.bf16.mxu0 0
    %1243 = vmatpush1.bf16.msra.mxu0 0
    %1244 = vmatprep.subr.bf16.mxu0 0
    %1245 = vmatpush1.bf16.msra.mxu0 0
    %1246 = vmatprep.subr.bf16.mxu0 0
    %1247 = vmatpush1.bf16.msra.mxu0 0
    %1248 = vmatprep.subr.bf16.mxu0 0
    %1249 = vmatpush1.bf16.msra.mxu0 0
    %1250 = vmatprep.subr.bf16.mxu0 0
    %1251 = vmatpush1.bf16.msra.mxu0 0
    %1252 = vmatprep.subr.bf16.mxu0 0
    %1253 = vmatpush1.bf16.msra.mxu0 0
    %1254 = vmatprep.subr.bf16.mxu0 0
    %1255 = vmatpush1.bf16.msra.mxu0 0
    %1256 = vmatprep.subr.bf16.mxu0 0
    %1257 = vmatpush1.bf16.msra.mxu0 0
    %1258 = vmatprep.subr.bf16.mxu0 0
    %1259 = vmatpush1.bf16.msra.mxu0 0
    %1260 = vmatprep.subr.bf16.mxu0 0
    %1261 = vmatpush1.bf16.msra.mxu0 0
    %1262 = vmatprep.subr.bf16.mxu0 0
    %1263 = vmatpush1.bf16.msra.mxu0 0
    %1264 = vmatprep.subr.bf16.mxu0 0
    %1265 = vmatpush1.bf16.msra.mxu0 0
    %1266 = vmatprep.mubr.bf16.mxu0 0
    %1267 = vmatmul.mubr.bf16.gmra.mrb[0].mxu0 %v1229
    %v1268 = vpop.f32.mrb[0].mxu0
    %v1269 = vadd.f32 %v1226, %v1268
    %v1270 = vpop.f32.mrb[0].mxu0
    %v1271 = vpop.f32.mrb[0].mxu0
    %v1272 = vadd.f32 %v1226, %v1271
    %v1273 = vpop.f32.mrb[0].mxu0
    %1274 = vmatprep.mubr.bf16.mxu0 0
    %1275 = vmatmul.mubr.bf16.gmra.mrb[0].mxu0 %v1232
    %v1276 = vpop.f32.mrb[0].mxu0
    %v1277 = vadd.f32 %v1226, %v1276
    %v1278 = vpop.f32.mrb[0].mxu0
    %v1279 = vpop.f32.mrb[0].mxu0
    %v1280 = vadd.f32 %v1226, %v1279
    %v1281 = vpop.f32.mrb[0].mxu0
    %1282 = vdwg.mxu0
    %v1283 = vadd.f32 %v1029, %v1269
    %v1284 = vadd.f32 %v1030, %v1272
    %v1285 = vadd.f32 %v1031, %v1277
    %v1286 = vadd.f32 %v1032, %v1280
    %v1287 = vld [vmem:[%s25] sm:$0xff]
    %v1288 = vld [vmem:[%s25 + $0x8] sm:$0xff]
    %v1289 = vld [vmem:[%s25 + $0x10] sm:$0xff]
    %v1290 = vld [vmem:[%s25 + $0x18] sm:$0xff]
    %v1291 = vld [vmem:[%s27] sm:$0x1]
    %v1292 = vpack.c.bf16 %v1284, %v1283
    %v1293 = vpack.c.bf16 %v1286, %v1285
    %v1294 = vpack.c.bf16 %v1288, %v1287
    %v1295 = vpack.c.bf16 %v1290, %v1289
    %v1297 = vlaneseq
    %v1298 = vshrl.u32 %v1297, 7
    %v1299 = vsub.s32 0, %v1298
    %v1300 = vrot.slane %v1291, %v1299
    %v1303 = vsel %vm347, %v1292, 0
    %v1306 = vsel %vm347, %v1293, 0
    %1308 = vmatprep.subr.bf16.mxu0 0
    %1309 = vmatpush1.bf16.msra.mxu0 %v1294
    %1310 = vmatprep.subr.bf16.mxu0 0
    %1311 = vmatpush1.bf16.msra.mxu0 %v1295
    %1312 = vmatprep.subr.bf16.mxu0 0
    %1313 = vmatpush1.bf16.msra.mxu0 0
    %1314 = vmatprep.subr.bf16.mxu0 0
    %1315 = vmatpush1.bf16.msra.mxu0 0
    %1316 = vmatprep.subr.bf16.mxu0 0
    %1317 = vmatpush1.bf16.msra.mxu0 0
    %1318 = vmatprep.subr.bf16.mxu0 0
    %1319 = vmatpush1.bf16.msra.mxu0 0
    %1320 = vmatprep.subr.bf16.mxu0 0
    %1321 = vmatpush1.bf16.msra.mxu0 0
    %1322 = vmatprep.subr.bf16.mxu0 0
    %1323 = vmatpush1.bf16.msra.mxu0 0
    %1324 = vmatprep.subr.bf16.mxu0 0
    %1325 = vmatpush1.bf16.msra.mxu0 0
    %1326 = vmatprep.subr.bf16.mxu0 0
    %1327 = vmatpush1.bf16.msra.mxu0 0
    %1328 = vmatprep.subr.bf16.mxu0 0
    %1329 = vmatpush1.bf16.msra.mxu0 0
    %1330 = vmatprep.subr.bf16.mxu0 0
    %1331 = vmatpush1.bf16.msra.mxu0 0
    %1332 = vmatprep.subr.bf16.mxu0 0
    %1333 = vmatpush1.bf16.msra.mxu0 0
    %1334 = vmatprep.subr.bf16.mxu0 0
    %1335 = vmatpush1.bf16.msra.mxu0 0
    %1336 = vmatprep.subr.bf16.mxu0 0
    %1337 = vmatpush1.bf16.msra.mxu0 0
    %1338 = vmatprep.subr.bf16.mxu0 0
    %1339 = vmatpush1.bf16.msra.mxu0 0
    %1340 = vmatprep.mubr.bf16.mxu0 0
    %1341 = vmatmul.mubr.bf16.gmra.mrb[0].mxu0 %v1303
    %v1342 = vpop.f32.mrb[0].mxu0
    %v1343 = vadd.f32 %v1300, %v1342
    %v1344 = vpop.f32.mrb[0].mxu0
    %v1345 = vpop.f32.mrb[0].mxu0
    %v1346 = vadd.f32 %v1300, %v1345
    %v1347 = vpop.f32.mrb[0].mxu0
    %1348 = vmatprep.mubr.bf16.mxu0 0
    %1349 = vmatmul.mubr.bf16.gmra.mrb[0].mxu0 %v1306
    %v1350 = vpop.f32.mrb[0].mxu0
    %v1351 = vadd.f32 %v1300, %v1350
    %v1352 = vpop.f32.mrb[0].mxu0
    %v1353 = vpop.f32.mrb[0].mxu0
    %v1354 = vadd.f32 %v1300, %v1353
    %v1355 = vpop.f32.mrb[0].mxu0
    %1356 = vdwg.mxu0
    %v1357 = vsel %vm347, %v1343, 0.0
    %1358 = vadd.xlane.f32.xlu0 %v1357
    %v1359 = vpop.xlane.xlu0 %1358
    %v1360 = vsel %vm347, %v1346, 0.0
    %1361 = vadd.xlane.f32.xlu0 %v1360
    %v1362 = vpop.xlane.xlu0 %1361
    %v1363 = vsel %vm347, %v1351, 0.0
    %1364 = vadd.xlane.f32.xlu0 %v1363
    %v1365 = vpop.xlane.xlu0 %1364
    %v1366 = vsel %vm347, %v1354, 0.0
    %1367 = vadd.xlane.f32.xlu0 %v1366
    %v1368 = vpop.xlane.xlu0 %1367
    %v1369 = vmul.f32 %v1359, %v360
    %v1370 = vmul.f32 %v1362, %v360
    %v1371 = vmul.f32 %v1365, %v360
    %v1372 = vmul.f32 %v1368, %v360
    %v1373 = vsub.f32 %v1343, %v1369
    %v1374 = vsub.f32 %v1346, %v1370
    %v1375 = vsub.f32 %v1351, %v1371
    %v1376 = vsub.f32 %v1354, %v1372
    %v1377 = vmul.f32 %v1373, %v1373
    %v1378 = vmul.f32 %v1374, %v1374
    %v1379 = vmul.f32 %v1375, %v1375
    %v1380 = vmul.f32 %v1376, %v1376
    %v1381 = vsel %vm347, %v1377, 0.0
    %1382 = vadd.xlane.f32.xlu0 %v1381
    %v1383 = vpop.xlane.xlu0 %1382
    %v1384 = vsel %vm347, %v1378, 0.0
    %1385 = vadd.xlane.f32.xlu0 %v1384
    %v1386 = vpop.xlane.xlu0 %1385
    %v1387 = vsel %vm347, %v1379, 0.0
    %1388 = vadd.xlane.f32.xlu0 %v1387
    %v1389 = vpop.xlane.xlu0 %1388
    %v1390 = vsel %vm347, %v1380, 0.0
    %1391 = vadd.xlane.f32.xlu0 %v1390
    %v1392 = vpop.xlane.xlu0 %1391
    %v1393 = vmul.f32 %v1383, %v360
    %v1394 = vmul.f32 %v1386, %v360
    %v1395 = vmul.f32 %v1389, %v360
    %v1396 = vmul.f32 %v1392, %v360
    %v1397 = vadd.f32 %v1393, 1e-06
    %v1398 = vadd.f32 %v1394, 1e-06
    %v1399 = vadd.f32 %v1395, 1e-06
    %v1400 = vadd.f32 %v1396, 1e-06
    %v1401 = vrsqrt.pop %v1397
    %v1402 = vrsqrt.pop %v1398
    %v1403 = vrsqrt.pop %v1399
    %v1404 = vrsqrt.pop %v1400
    %v1405 = vmul.f32 %v1373, %v1401
    %v1406 = vmul.f32 %v1374, %v1402
    %v1407 = vmul.f32 %v1375, %v1403
    %v1408 = vmul.f32 %v1376, %v1404
    %v1409 = vlaneseq
    %v1410 = vshrl.u32 %v1409, 7
    %v1411 = vsub.s32 2, %v1410
    %v1412 = vrot.slane %v320, %v1411
    %v1413 = vmul.f32 %v1405, %v1412
    %v1414 = vmul.f32 %v1406, %v1412
    %v1415 = vmul.f32 %v1407, %v1412
    %v1416 = vmul.f32 %v1408, %v1412
    %v1417 = vlaneseq
    %v1418 = vshrl.u32 %v1417, 7
    %v1419 = vsub.s32 2, %v1418
    %v1420 = vrot.slane %v321, %v1419
    %v1421 = vadd.f32 %v1413, %v1420
    %v1422 = vadd.f32 %v1414, %v1420
    %v1423 = vadd.f32 %v1415, %v1420
    %v1424 = vadd.f32 %v1416, %v1420
    %v1425 = vld [vmem:[%s29] sm:$0xff]
    %v1426 = vld [vmem:[%s29 + $0x8] sm:$0xff]
    %v1427 = vld [vmem:[%s33] sm:$0xf]
    %v1428 = vld [vmem:[%s35] sm:$0xff]
    %v1429 = vld [vmem:[%s35 + $0x8] sm:$0xff]
    %v1430 = vld [vmem:[%s37] sm:$0x1]
    %v1431 = vpack.c.bf16 %v1427, %v1427
    %v1432 = vpack.c.bf16 %v1429, %v1428
    %v1434 = vlaneseq
    %v1435 = vshrl.u32 %v1434, 7
    %v1436 = vsub.s32 0, %v1435
    %v1437 = vrot.slane %v1430, %v1436
    %v1440 = vsel %vm490, %v1431, 0
    %1442 = vmatprep.subr.bf16.mxu0 0
    %1443 = vmatpush1.bf16.msra.mxu0 %v1432
    %1444 = vmatprep.subr.bf16.mxu0 0
    %1445 = vmatpush1.bf16.msra.mxu0 0
    %1446 = vmatprep.subr.bf16.mxu0 0
    %1447 = vmatpush1.bf16.msra.mxu0 0
    %1448 = vmatprep.subr.bf16.mxu0 0
    %1449 = vmatpush1.bf16.msra.mxu0 0
    %1450 = vmatprep.subr.bf16.mxu0 0
    %1451 = vmatpush1.bf16.msra.mxu0 0
    %1452 = vmatprep.subr.bf16.mxu0 0
    %1453 = vmatpush1.bf16.msra.mxu0 0
    %1454 = vmatprep.subr.bf16.mxu0 0
    %1455 = vmatpush1.bf16.msra.mxu0 0
    %1456 = vmatprep.subr.bf16.mxu0 0
    %1457 = vmatpush1.bf16.msra.mxu0 0
    %1458 = vmatprep.subr.bf16.mxu0 0
    %1459 = vmatpush1.bf16.msra.mxu0 0
    %1460 = vmatprep.subr.bf16.mxu0 0
    %1461 = vmatpush1.bf16.msra.mxu0 0
    %1462 = vmatprep.subr.bf16.mxu0 0
    %1463 = vmatpush1.bf16.msra.mxu0 0
    %1464 = vmatprep.subr.bf16.mxu0 0
    %1465 = vmatpush1.bf16.msra.mxu0 0
    %1466 = vmatprep.subr.bf16.mxu0 0
    %1467 = vmatpush1.bf16.msra.mxu0 0
    %1468 = vmatprep.subr.bf16.mxu0 0
    %1469 = vmatpush1.bf16.msra.mxu0 0
    %1470 = vmatprep.subr.bf16.mxu0 0
    %1471 = vmatpush1.bf16.msra.mxu0 0
    %1472 = vmatprep.subr.bf16.mxu0 0
    %1473 = vmatpush1.bf16.msra.mxu0 0
    %1474 = vmatprep.mubr.bf16.mxu0 0
    %1475 = vmatmul.mubr.bf16.gmra.mrb[0].mxu0 %v1440
    %v1476 = vpop.f32.mrb[0].mxu0
    %v1477 = vadd.f32 %v1437, %v1476
    %v1478 = vpop.f32.mrb[0].mxu0
    %v1479 = vpop.f32.mrb[0].mxu0
    %v1480 = vpop.f32.mrb[0].mxu0
    %1481 = vdwg.mxu0
    %v1482 = vld [vmem:[%s39] sm:$0x1f]
    %v1484 = vrot.slane %v1477, 3
    %v1487 = vrot.slane %v1482, 1
    %v1489 = vrot.slane %v1477, 6
    %vm1491 = vcmask 1044480
    %v1492 = vsel %vm1491, %v1482, %v1484
    %vm1493 = vcmask 1046528
    %v1494 = vsel %vm1493, %v1492, %v1487
    %vm1495 = vcmask 1043456
    %v1496 = vsel %vm1495, %v1487, %v1489
    %v1497 = vld [vmem:[%s31] sm:$0x1]
    %v1499 = vlaneseq
    %v1500 = vshrl.u32 %v1499, 7
    %v1501 = vsub.s32 0, %v1500
    %v1502 = vrot.slane %v1497, %v1501
    %v1504 = vadd.f32 %v1421, %v1502
    %v1505 = vadd.f32 %v1422, %v1502
    %v1506 = vadd.f32 %v1423, %v1502
    %v1507 = vadd.f32 %v1424, %v1502
    %v1508 = vld [vmem:[%s57] sm:$0x1f]
    %v1509 = vld [vmem:[%s59] sm:$0x1f]
    %vm1510 = vcmp.lt.s32.totalorder %v328, 7
    %vm1511 = vcmp.lt.s32.totalorder %v329, 7
    %vm1512 = vcmp.lt.s32.totalorder %v333, 7
    %vm1513 = vmxor %vm1510, %vm1512
    %vm1514 = vmxor %vm1511, %vm1512
    %v1515 = vsel %vm1513, -1e+09, 0.0
    %v1516 = vsel %vm1514, -1e+09, 0.0
    %vm1517 = vmxor %vm1510, %vm338
    %vm1518 = vmxor %vm1511, %vm338
    %v1519 = vsel %vm1517, -1e+09, 0.0
    %v1520 = vsel %vm1518, -1e+09, 0.0
    %vm1521 = vmxor %vm334, %vm1512
    %vm1522 = vmxor %vm335, %vm1512
    %vm1523 = vmxor %vm336, %vm1512
    %vm1524 = vmxor %vm337, %vm1512
    %v1525 = vsel %vm1521, -1e+09, 0.0
    %v1526 = vsel %vm1522, -1e+09, 0.0
    %v1527 = vsel %vm1523, -1e+09, 0.0
    %v1528 = vsel %vm1524, -1e+09, 0.0
    %v1529 = vld [vmem:[%s41] sm:$0xff]
    %v1530 = vld [vmem:[%s41 + $0x8] sm:$0xff]
    %v1531 = vld [vmem:[%s41 + $0x10] sm:$0xff]
    %v1532 = vld [vmem:[%s41 + $0x18] sm:$0xff]
    %v1533 = vld [vmem:[%s43] sm:$0x1]
    %v1534 = vpack.c.bf16 %v1496, %v1494
    %v1535 = vpack.c.bf16 %v1530, %v1529
    %v1536 = vpack.c.bf16 %v1532, %v1531
    %v1538 = vlaneseq
    %v1539 = vshrl.u32 %v1538, 7
    %v1540 = vsub.s32 0, %v1539
    %v1541 = vrot.slane %v1533, %v1540
    %v1544 = vsel %vm347, %v1534, 0
    %1546 = vmatprep.subr.bf16.mxu0 0
    %1547 = vmatpush1.bf16.msra.mxu0 %v1535
    %1548 = vmatprep.subr.bf16.mxu0 0
    %1549 = vmatpush1.bf16.msra.mxu0 %v1536
    %1550 = vmatprep.subr.bf16.mxu0 0
    %1551 = vmatpush1.bf16.msra.mxu0 0
    %1552 = vmatprep.subr.bf16.mxu0 0
    %1553 = vmatpush1.bf16.msra.mxu0 0
    %1554 = vmatprep.subr.bf16.mxu0 0
    %1555 = vmatpush1.bf16.msra.mxu0 0
    %1556 = vmatprep.subr.bf16.mxu0 0
    %1557 = vmatpush1.bf16.msra.mxu0 0
    %1558 = vmatprep.subr.bf16.mxu0 0
    %1559 = vmatpush1.bf16.msra.mxu0 0
    %1560 = vmatprep.subr.bf16.mxu0 0
    %1561 = vmatpush1.bf16.msra.mxu0 0
    %1562 = vmatprep.subr.bf16.mxu0 0
    %1563 = vmatpush1.bf16.msra.mxu0 0
    %1564 = vmatprep.subr.bf16.mxu0 0
    %1565 = vmatpush1.bf16.msra.mxu0 0
    %1566 = vmatprep.subr.bf16.mxu0 0
    %1567 = vmatpush1.bf16.msra.mxu0 0
    %1568 = vmatprep.subr.bf16.mxu0 0
    %1569 = vmatpush1.bf16.msra.mxu0 0
    %1570 = vmatprep.subr.bf16.mxu0 0
    %1571 = vmatpush1.bf16.msra.mxu0 0
    %1572 = vmatprep.subr.bf16.mxu0 0
    %1573 = vmatpush1.bf16.msra.mxu0 0
    %1574 = vmatprep.subr.bf16.mxu0 0
    %1575 = vmatpush1.bf16.msra.mxu0 0
    %1576 = vmatprep.subr.bf16.mxu0 0
    %1577 = vmatpush1.bf16.msra.mxu0 0
    %1578 = vmatprep.mubr.bf16.mxu0 0
    %1579 = vmatmul.mubr.bf16.gmra.mrb[0].mxu0 %v1544
    %v1580 = vpop.f32.mrb[0].mxu0
    %v1581 = vadd.f32 %v1541, %v1580
    %v1582 = vpop.f32.mrb[0].mxu0
    %v1583 = vpop.f32.mrb[0].mxu0
    %v1584 = vadd.f32 %v1541, %v1583
    %v1585 = vpop.f32.mrb[0].mxu0
    %1586 = vdwg.mxu0
    %v1587 = vpack.c.bf16 %v1584, %v1581
    %1589 = vrot.lane.b32.xlu0 %v1587, 96
    %v1590 = vpop.permute.xlu0 %1589
    %v1592 = vsel %vm490, %v1587, 0
    %v1595 = vsel %vm490, %v1590, 0
    %1597 = vmatprep.subr.bf16.mxu0 0
    %1598 = vmatpush1.bf16.xpose.msra.mxu0 %v1595
    %1599 = vmatprep.subr.bf16.mxu0 0
    %1600 = vmatpush1.bf16.xpose.msra.mxu0 0
    %1601 = vmatprep.subr.bf16.mxu0 0
    %1602 = vmatpush1.bf16.xpose.msra.mxu0 0
    %1603 = vmatprep.subr.bf16.mxu0 0
    %1604 = vmatpush1.bf16.xpose.msra.mxu0 0
    %1605 = vmatprep.subr.bf16.mxu0 0
    %1606 = vmatpush1.bf16.xpose.msra.mxu0 0
    %1607 = vmatprep.subr.bf16.mxu0 0
    %1608 = vmatpush1.bf16.xpose.msra.mxu0 0
    %1609 = vmatprep.subr.bf16.mxu0 0
    %1610 = vmatpush1.bf16.xpose.msra.mxu0 0
    %1611 = vmatprep.subr.bf16.mxu0 0
    %1612 = vmatpush1.bf16.xpose.msra.mxu0 0
    %1613 = vmatprep.subr.bf16.mxu0 0
    %1614 = vmatpush1.bf16.xpose.msra.mxu0 0
    %1615 = vmatprep.subr.bf16.mxu0 0
    %1616 = vmatpush1.bf16.xpose.msra.mxu0 0
    %1617 = vmatprep.subr.bf16.mxu0 0
    %1618 = vmatpush1.bf16.xpose.msra.mxu0 0
    %1619 = vmatprep.subr.bf16.mxu0 0
    %1620 = vmatpush1.bf16.xpose.msra.mxu0 0
    %1621 = vmatprep.subr.bf16.mxu0 0
    %1622 = vmatpush1.bf16.xpose.msra.mxu0 0
    %1623 = vmatprep.subr.bf16.mxu0 0
    %1624 = vmatpush1.bf16.xpose.msra.mxu0 0
    %1625 = vmatprep.subr.bf16.mxu0 0
    %1626 = vmatpush1.bf16.xpose.msra.mxu0 0
    %1627 = vmatprep.subr.bf16.mxu0 0
    %1628 = vmatpush1.bf16.xpose.msra.mxu0 0
    %1629 = vmatprep.mubr.bf16.mxu0 0
    %1630 = vmatmul.mubr.bf16.gmra.mrb[0].mxu0 %v1592
    %v1631 = vpop.f32.mrb[0].mxu0
    %v1632 = vadd.f32 0.0, %v1631
    %v1633 = vpop.f32.mrb[0].mxu0
    %v1634 = vpop.f32.mrb[0].mxu0
    %v1635 = vadd.f32 0.0, %v1634
    %v1636 = vpop.f32.mrb[0].mxu0
    %1637 = vdwg.mxu0
    %v1638 = vmul.f32 %v1632, 0.25
    %v1639 = vmul.f32 %v1635, 0.25
    %v1640 = vadd.f32 %v1638, %v1515
    %v1641 = vadd.f32 %v1639, %v1516
    %vm1642 = vcmask 113664
    %v1643 = vsel %vm1642, %v1640, -inf
    %1644 = vmax.xlane.f32.xlu0 %v1643
    %v1645 = vpop.xlane.xlu0 %1644
    %vm1646 = vcmask 111616
    %v1647 = vsel %vm1646, %v1641, -inf
    %1648 = vmax.xlane.f32.xlu0 %v1647
    %v1649 = vpop.xlane.xlu0 %1648
    %v1650 = vsub.f32 %v1640, %v1645
    %v1651 = vsub.f32 %v1641, %v1649
    %v1652 = vmul.f32 %v1650, 1.442695
    %v1653 = vpow.pop %v1652
    %v1654 = vmul.f32 %v1651, 1.442695
    %v1655 = vpow.pop %v1654
    %v1656 = vsel %vm1642, %v1653, 0.0
    %1657 = vadd.xlane.f32.xlu0 %v1656
    %v1658 = vpop.xlane.xlu0 %1657
    %v1659 = vsel %vm1646, %v1655, 0.0
    %1660 = vadd.xlane.f32.xlu0 %v1659
    %v1661 = vpop.xlane.xlu0 %1660
    %v1662 = vrcp.pop %v1658
    %v1663 = vrcp.pop %v1661
    %v1664 = vmul.f32 %v1653, %v1662
    %v1665 = vmul.f32 %v1655, %v1663
    %v1666 = vpack.c.bf16 %v1665, %v1664
    %1667 = vrot.lane.b32.xlu0 %v1587, 64
    %v1668 = vpop.permute.xlu0 %1667
    %v1670 = vsel %vm1642, %v1666, 0
    %v1673 = vsel %vm1493, %v1668, 0
    %1675 = vmatprep.subr.bf16.mxu0 0
    %1676 = vmatpush1.bf16.msra.mxu0 %v1673
    %1677 = vmatprep.subr.bf16.mxu0 0
    %1678 = vmatpush1.bf16.msra.mxu0 0
    %1679 = vmatprep.subr.bf16.mxu0 0
    %1680 = vmatpush1.bf16.msra.mxu0 0
    %1681 = vmatprep.subr.bf16.mxu0 0
    %1682 = vmatpush1.bf16.msra.mxu0 0
    %1683 = vmatprep.subr.bf16.mxu0 0
    %1684 = vmatpush1.bf16.msra.mxu0 0
    %1685 = vmatprep.subr.bf16.mxu0 0
    %1686 = vmatpush1.bf16.msra.mxu0 0
    %1687 = vmatprep.subr.bf16.mxu0 0
    %1688 = vmatpush1.bf16.msra.mxu0 0
    %1689 = vmatprep.subr.bf16.mxu0 0
    %1690 = vmatpush1.bf16.msra.mxu0 0
    %1691 = vmatprep.subr.bf16.mxu0 0
    %1692 = vmatpush1.bf16.msra.mxu0 0
    %1693 = vmatprep.subr.bf16.mxu0 0
    %1694 = vmatpush1.bf16.msra.mxu0 0
    %1695 = vmatprep.subr.bf16.mxu0 0
    %1696 = vmatpush1.bf16.msra.mxu0 0
    %1697 = vmatprep.subr.bf16.mxu0 0
    %1698 = vmatpush1.bf16.msra.mxu0 0
    %1699 = vmatprep.subr.bf16.mxu0 0
    %1700 = vmatpush1.bf16.msra.mxu0 0
    %1701 = vmatprep.subr.bf16.mxu0 0
    %1702 = vmatpush1.bf16.msra.mxu0 0
    %1703 = vmatprep.subr.bf16.mxu0 0
    %1704 = vmatpush1.bf16.msra.mxu0 0
    %1705 = vmatprep.subr.bf16.mxu0 0
    %1706 = vmatpush1.bf16.msra.mxu0 0
    %1707 = vmatprep.mubr.bf16.mxu0 0
    %1708 = vmatmul.mubr.bf16.gmra.mrb[0].mxu0 %v1670
    %v1709 = vpop.f32.mrb[0].mxu0
    %v1710 = vadd.f32 0.0, %v1709
    %v1711 = vpop.f32.mrb[0].mxu0
    %v1712 = vpop.f32.mrb[0].mxu0
    %v1713 = vadd.f32 0.0, %v1712
    %v1714 = vpop.f32.mrb[0].mxu0
    %1715 = vdwg.mxu0
    %v1716 = vpack.c.bf16 %v1713, %v1710
    %1718 = vrot.lane.b32.xlu0 %v1535, 32
    %v1719 = vpop.permute.xlu0 %1718
    %v1722 = vsel %vm490, %v1716, 0
    %1724 = vmatprep.subr.bf16.mxu0 0
    %1725 = vmatpush1.bf16.msra.mxu0 %v1719
    %1726 = vmatprep.subr.bf16.mxu0 0
    %1727 = vmatpush1.bf16.msra.mxu0 0
    %1728 = vmatprep.subr.bf16.mxu0 0
    %1729 = vmatpush1.bf16.msra.mxu0 0
    %1730 = vmatprep.subr.bf16.mxu0 0
    %1731 = vmatpush1.bf16.msra.mxu0 0
    %1732 = vmatprep.subr.bf16.mxu0 0
    %1733 = vmatpush1.bf16.msra.mxu0 0
    %1734 = vmatprep.subr.bf16.mxu0 0
    %1735 = vmatpush1.bf16.msra.mxu0 0
    %1736 = vmatprep.subr.bf16.mxu0 0
    %1737 = vmatpush1.bf16.msra.mxu0 0
    %1738 = vmatprep.subr.bf16.mxu0 0
    %1739 = vmatpush1.bf16.msra.mxu0 0
    %1740 = vmatprep.subr.bf16.mxu0 0
    %1741 = vmatpush1.bf16.msra.mxu0 0
    %1742 = vmatprep.subr.bf16.mxu0 0
    %1743 = vmatpush1.bf16.msra.mxu0 0
    %1744 = vmatprep.subr.bf16.mxu0 0
    %1745 = vmatpush1.bf16.msra.mxu0 0
    %1746 = vmatprep.subr.bf16.mxu0 0
    %1747 = vmatpush1.bf16.msra.mxu0 0
    %1748 = vmatprep.subr.bf16.mxu0 0
    %1749 = vmatpush1.bf16.msra.mxu0 0
    %1750 = vmatprep.subr.bf16.mxu0 0
    %1751 = vmatpush1.bf16.msra.mxu0 0
    %1752 = vmatprep.subr.bf16.mxu0 0
    %1753 = vmatpush1.bf16.msra.mxu0 0
    %1754 = vmatprep.subr.bf16.mxu0 0
    %1755 = vmatpush1.bf16.msra.mxu0 0
    %1756 = vmatprep.mubr.bf16.mxu0 0
    %1757 = vmatmul.mubr.bf16.gmra.mrb[0].mxu0 %v1722
    %v1758 = vpop.f32.mrb[0].mxu0
    %v1759 = vadd.f32 0.0, %v1758
    %v1760 = vpop.f32.mrb[0].mxu0
    %v1761 = vpop.f32.mrb[0].mxu0
    %v1762 = vadd.f32 0.0, %v1761
    %v1763 = vpop.f32.mrb[0].mxu0
    %1764 = vdwg.mxu0
    %1767 = vrot.lane.b32.xlu0 %v1759, 96
    %v1768 = vpop.permute.xlu0 %1767
    %1769 = vrot.lane.b32.xlu0 %v1762, 96
    %v1770 = vpop.permute.xlu0 %1769
    %v1773 = vadd.f32 %v1541, %v1768
    %v1774 = vadd.f32 %v1541, %v1770
    %1775 = vrot.lane.b32.xlu0 %v1587, 112
    %v1776 = vpop.permute.xlu0 %1775
    %1777 = vrot.lane.b32.xlu0 %v1587, 80
    %v1778 = vpop.permute.xlu0 %1777
    %v1780 = vsel %vm490, %v1776, 0
    %v1783 = vsel %vm490, %v1778, 0
    %1785 = vmatprep.subr.bf16.mxu0 0
    %1786 = vmatpush1.bf16.xpose.msra.mxu0 %v1783
    %1787 = vmatprep.subr.bf16.mxu0 0
    %1788 = vmatpush1.bf16.xpose.msra.mxu0 0
    %1789 = vmatprep.subr.bf16.mxu0 0
    %1790 = vmatpush1.bf16.xpose.msra.mxu0 0
    %1791 = vmatprep.subr.bf16.mxu0 0
    %1792 = vmatpush1.bf16.xpose.msra.mxu0 0
    %1793 = vmatprep.subr.bf16.mxu0 0
    %1794 = vmatpush1.bf16.xpose.msra.mxu0 0
    %1795 = vmatprep.subr.bf16.mxu0 0
    %1796 = vmatpush1.bf16.xpose.msra.mxu0 0
    %1797 = vmatprep.subr.bf16.mxu0 0
    %1798 = vmatpush1.bf16.xpose.msra.mxu0 0
    %1799 = vmatprep.subr.bf16.mxu0 0
    %1800 = vmatpush1.bf16.xpose.msra.mxu0 0
    %1801 = vmatprep.subr.bf16.mxu0 0
    %1802 = vmatpush1.bf16.xpose.msra.mxu0 0
    %1803 = vmatprep.subr.bf16.mxu0 0
    %1804 = vmatpush1.bf16.xpose.msra.mxu0 0
    %1805 = vmatprep.subr.bf16.mxu0 0
    %1806 = vmatpush1.bf16.xpose.msra.mxu0 0
    %1807 = vmatprep.subr.bf16.mxu0 0
    %1808 = vmatpush1.bf16.xpose.msra.mxu0 0
    %1809 = vmatprep.subr.bf16.mxu0 0
    %1810 = vmatpush1.bf16.xpose.msra.mxu0 0
    %1811 = vmatprep.subr.bf16.mxu0 0
    %1812 = vmatpush1.bf16.xpose.msra.mxu0 0
    %1813 = vmatprep.subr.bf16.mxu0 0
    %1814 = vmatpush1.bf16.xpose.msra.mxu0 0
    %1815 = vmatprep.subr.bf16.mxu0 0
    %1816 = vmatpush1.bf16.xpose.msra.mxu0 0
    %1817 = vmatprep.mubr.bf16.mxu0 0
    %1818 = vmatmul.mubr.bf16.gmra.mrb[0].mxu0 %v1780
    %v1819 = vpop.f32.mrb[0].mxu0
    %v1820 = vadd.f32 0.0, %v1819
    %v1821 = vpop.f32.mrb[0].mxu0
    %v1822 = vpop.f32.mrb[0].mxu0
    %v1823 = vadd.f32 0.0, %v1822
    %v1824 = vpop.f32.mrb[0].mxu0
    %1825 = vdwg.mxu0
    %v1826 = vmul.f32 %v1820, 0.25
    %v1827 = vmul.f32 %v1823, 0.25
    %v1828 = vadd.f32 %v1826, %v1515
    %v1829 = vadd.f32 %v1827, %v1516
    %v1830 = vsel %vm1642, %v1828, -inf
    %1831 = vmax.xlane.f32.xlu0 %v1830
    %v1832 = vpop.xlane.xlu0 %1831
    %v1833 = vsel %vm1646, %v1829, -inf
    %1834 = vmax.xlane.f32.xlu0 %v1833
    %v1835 = vpop.xlane.xlu0 %1834
    %v1836 = vsub.f32 %v1828, %v1832
    %v1837 = vsub.f32 %v1829, %v1835
    %v1838 = vmul.f32 %v1836, 1.442695
    %v1839 = vpow.pop %v1838
    %v1840 = vmul.f32 %v1837, 1.442695
    %v1841 = vpow.pop %v1840
    %v1842 = vsel %vm1642, %v1839, 0.0
    %1843 = vadd.xlane.f32.xlu0 %v1842
    %v1844 = vpop.xlane.xlu0 %1843
    %v1845 = vsel %vm1646, %v1841, 0.0
    %1846 = vadd.xlane.f32.xlu0 %v1845
    %v1847 = vpop.xlane.xlu0 %1846
    %v1848 = vrcp.pop %v1844
    %v1849 = vrcp.pop %v1847
    %v1850 = vmul.f32 %v1839, %v1848
    %v1851 = vmul.f32 %v1841, %v1849
    %v1852 = vpack.c.bf16 %v1851, %v1850
    %1853 = vrot.lane.b32.xlu0 %v1587, 48
    %v1854 = vpop.permute.xlu0 %1853
    %v1856 = vsel %vm1642, %v1852, 0
    %v1859 = vsel %vm1493, %v1854, 0
    %1861 = vmatprep.subr.bf16.mxu0 0
    %1862 = vmatpush1.bf16.msra.mxu0 %v1859
    %1863 = vmatprep.subr.bf16.mxu0 0
    %1864 = vmatpush1.bf16.msra.mxu0 0
    %1865 = vmatprep.subr.bf16.mxu0 0
    %1866 = vmatpush1.bf16.msra.mxu0 0
    %1867 = vmatprep.subr.bf16.mxu0 0
    %1868 = vmatpush1.bf16.msra.mxu0 0
    %1869 = vmatprep.subr.bf16.mxu0 0
    %1870 = vmatpush1.bf16.msra.mxu0 0
    %1871 = vmatprep.subr.bf16.mxu0 0
    %1872 = vmatpush1.bf16.msra.mxu0 0
    %1873 = vmatprep.subr.bf16.mxu0 0
    %1874 = vmatpush1.bf16.msra.mxu0 0
    %1875 = vmatprep.subr.bf16.mxu0 0
    %1876 = vmatpush1.bf16.msra.mxu0 0
    %1877 = vmatprep.subr.bf16.mxu0 0
    %1878 = vmatpush1.bf16.msra.mxu0 0
    %1879 = vmatprep.subr.bf16.mxu0 0
    %1880 = vmatpush1.bf16.msra.mxu0 0
    %1881 = vmatprep.subr.bf16.mxu0 0
    %1882 = vmatpush1.bf16.msra.mxu0 0
    %1883 = vmatprep.subr.bf16.mxu0 0
    %1884 = vmatpush1.bf16.msra.mxu0 0
    %1885 = vmatprep.subr.bf16.mxu0 0
    %1886 = vmatpush1.bf16.msra.mxu0 0
    %1887 = vmatprep.subr.bf16.mxu0 0
    %1888 = vmatpush1.bf16.msra.mxu0 0
    %1889 = vmatprep.subr.bf16.mxu0 0
    %1890 = vmatpush1.bf16.msra.mxu0 0
    %1891 = vmatprep.subr.bf16.mxu0 0
    %1892 = vmatpush1.bf16.msra.mxu0 0
    %1893 = vmatprep.mubr.bf16.mxu0 0
    %1894 = vmatmul.mubr.bf16.gmra.mrb[0].mxu0 %v1856
    %v1895 = vpop.f32.mrb[0].mxu0
    %v1896 = vadd.f32 0.0, %v1895
    %v1897 = vpop.f32.mrb[0].mxu0
    %v1898 = vpop.f32.mrb[0].mxu0
    %v1899 = vadd.f32 0.0, %v1898
    %v1900 = vpop.f32.mrb[0].mxu0
    %1901 = vdwg.mxu0
    %v1902 = vpack.c.bf16 %v1899, %v1896
    %1904 = vrot.lane.b32.xlu0 %v1536, 32
    %v1905 = vpop.permute.xlu0 %1904
    %v1908 = vsel %vm490, %v1902, 0
    %1910 = vmatprep.subr.bf16.mxu0 0
    %1911 = vmatpush1.bf16.msra.mxu0 %v1905
    %1912 = vmatprep.subr.bf16.mxu0 0
    %1913 = vmatpush1.bf16.msra.mxu0 0
    %1914 = vmatprep.subr.bf16.mxu0 0
    %1915 = vmatpush1.bf16.msra.mxu0 0
    %1916 = vmatprep.subr.bf16.mxu0 0
    %1917 = vmatpush1.bf16.msra.mxu0 0
    %1918 = vmatprep.subr.bf16.mxu0 0
    %1919 = vmatpush1.bf16.msra.mxu0 0
    %1920 = vmatprep.subr.bf16.mxu0 0
    %1921 = vmatpush1.bf16.msra.mxu0 0
    %1922 = vmatprep.subr.bf16.mxu0 0
    %1923 = vmatpush1.bf16.msra.mxu0 0
    %1924 = vmatprep.subr.bf16.mxu0 0
    %1925 = vmatpush1.bf16.msra.mxu0 0
    %1926 = vmatprep.subr.bf16.mxu0 0
    %1927 = vmatpush1.bf16.msra.mxu0 0
    %1928 = vmatprep.subr.bf16.mxu0 0
    %1929 = vmatpush1.bf16.msra.mxu0 0
    %1930 = vmatprep.subr.bf16.mxu0 0
    %1931 = vmatpush1.bf16.msra.mxu0 0
    %1932 = vmatprep.subr.bf16.mxu0 0
    %1933 = vmatpush1.bf16.msra.mxu0 0
    %1934 = vmatprep.subr.bf16.mxu0 0
    %1935 = vmatpush1.bf16.msra.mxu0 0
    %1936 = vmatprep.subr.bf16.mxu0 0
    %1937 = vmatpush1.bf16.msra.mxu0 0
    %1938 = vmatprep.subr.bf16.mxu0 0
    %1939 = vmatpush1.bf16.msra.mxu0 0
    %1940 = vmatprep.subr.bf16.mxu0 0
    %1941 = vmatpush1.bf16.msra.mxu0 0
    %1942 = vmatprep.mubr.bf16.mxu0 0
    %1943 = vmatmul.mubr.bf16.gmra.mrb[0].mxu0 %v1908
    %v1944 = vpop.f32.mrb[0].mxu0
    %v1945 = vadd.f32 0.0, %v1944
    %v1946 = vpop.f32.mrb[0].mxu0
    %v1947 = vpop.f32.mrb[0].mxu0
    %v1948 = vadd.f32 0.0, %v1947
    %v1949 = vpop.f32.mrb[0].mxu0
    %1950 = vdwg.mxu0
    %1953 = vrot.lane.b32.xlu0 %v1945, 96
    %v1954 = vpop.permute.xlu0 %1953
    %1955 = vrot.lane.b32.xlu0 %v1948, 96
    %v1956 = vpop.permute.xlu0 %1955
    %v1959 = vadd.f32 %v1773, %v1954
    %v1960 = vadd.f32 %v1774, %v1956
    %1963 = vrot.lane.b32.xlu0 %v1959, 32
    %v1964 = vpop.permute.xlu0 %1963
    %1965 = vrot.lane.b32.xlu0 %v1960, 32
    %v1966 = vpop.permute.xlu0 %1965
    %v1969 = vsel %vm347, %v1964, 0.0
    %1970 = vadd.xlane.f32.xlu0 %v1969
    %v1971 = vpop.xlane.xlu0 %1970
    %vm1972 = vcmask 259072
    %v1973 = vsel %vm1972, %v1966, 0.0
    %1974 = vadd.xlane.f32.xlu0 %v1973
    %v1975 = vpop.xlane.xlu0 %1974
    %v1976 = vmul.f32 %v1971, %v360
    %v1977 = vmul.f32 %v1975, %v360
    %v1978 = vsub.f32 %v1959, %v1976
    %v1979 = vsub.f32 %v1960, %v1977
    %v1980 = vmul.f32 %v1978, %v1978
    %v1981 = vmul.f32 %v1979, %v1979
    %1984 = vrot.lane.b32.xlu0 %v1980, 32
    %v1985 = vpop.permute.xlu0 %1984
    %1986 = vrot.lane.b32.xlu0 %v1981, 32
    %v1987 = vpop.permute.xlu0 %1986
    %v1990 = vsel %vm347, %v1985, 0.0
    %1991 = vadd.xlane.f32.xlu0 %v1990
    %v1992 = vpop.xlane.xlu0 %1991
    %v1993 = vsel %vm1972, %v1987, 0.0
    %1994 = vadd.xlane.f32.xlu0 %v1993
    %v1995 = vpop.xlane.xlu0 %1994
    %v1996 = vmul.f32 %v1992, %v360
    %v1997 = vmul.f32 %v1995, %v360
    %v1998 = vadd.f32 %v1996, 1e-05
    %v1999 = vadd.f32 %v1997, 1e-05
    %v2000 = vrsqrt.pop %v1998
    %v2001 = vrsqrt.pop %v1999
    %v2002 = vmul.f32 %v1978, %v2000
    %v2003 = vmul.f32 %v1979, %v2001
    %v2004 = vlaneseq
    %v2005 = vshrl.u32 %v2004, 7
    %v2006 = vsub.s32 0, %v2005
    %v2007 = vrot.slane %v1508, %v2006
    %2009 = vrot.lane.b32.xlu0 %v2007, 96
    %v2010 = vpop.permute.xlu0 %2009
    %v2012 = vmul.f32 %v2002, %v2010
    %v2013 = vmul.f32 %v2003, %v2010
    %v2014 = vlaneseq
    %v2015 = vshrl.u32 %v2014, 7
    %v2016 = vsub.s32 0, %v2015
    %v2017 = vrot.slane %v1509, %v2016
    %2019 = vrot.lane.b32.xlu0 %v2017, 96
    %v2020 = vpop.permute.xlu0 %2019
    %v2022 = vadd.f32 %v2012, %v2020
    %v2023 = vadd.f32 %v2013, %v2020
    %2026 = vrot.lane.b32.xlu0 %v1494, 96
    %v2027 = vpop.permute.xlu0 %2026
    %2028 = vrot.lane.b32.xlu0 %v1496, 96
    %v2029 = vpop.permute.xlu0 %2028
    %v2032 = vadd.f32 %v2022, %v2027
    %v2033 = vadd.f32 %v2023, %v2029
    %v2034 = vadd.f32 %v1504, %v1425
    %v2035 = vadd.f32 %v1505, %v1426
    %v2036 = vadd.f32 %v1506, %v1425
    %v2037 = vadd.f32 %v1507, %v1426
    %v2038 = vld [vmem:[%s45] sm:$0xff]
    %v2039 = vld [vmem:[%s45 + $0x8] sm:$0xff]
    %v2040 = vld [vmem:[%s45 + $0x10] sm:$0xff]
    %v2041 = vld [vmem:[%s45 + $0x18] sm:$0xff]
    %v2042 = vld [vmem:[%s47] sm:$0x1]
    %v2043 = vpack.c.bf16 %v2033, %v2032
    %v2044 = vpack.c.bf16 %v2039, %v2038
    %v2045 = vpack.c.bf16 %v2041, %v2040
    %v2047 = vlaneseq
    %v2048 = vshrl.u32 %v2047, 7
    %v2049 = vsub.s32 0, %v2048
    %v2050 = vrot.slane %v2042, %v2049
    %2053 = vrot.lane.b32.xlu0 %v2043, 32
    %v2054 = vpop.permute.xlu0 %2053
    %v2056 = vsel %vm347, %v2054, 0
    %2058 = vmatprep.subr.bf16.mxu0 0
    %2059 = vmatpush1.bf16.msra.mxu0 %v2044
    %2060 = vmatprep.subr.bf16.mxu0 0
    %2061 = vmatpush1.bf16.msra.mxu0 %v2045
    %2062 = vmatprep.subr.bf16.mxu0 0
    %2063 = vmatpush1.bf16.msra.mxu0 0
    %2064 = vmatprep.subr.bf16.mxu0 0
    %2065 = vmatpush1.bf16.msra.mxu0 0
    %2066 = vmatprep.subr.bf16.mxu0 0
    %2067 = vmatpush1.bf16.msra.mxu0 0
    %2068 = vmatprep.subr.bf16.mxu0 0
    %2069 = vmatpush1.bf16.msra.mxu0 0
    %2070 = vmatprep.subr.bf16.mxu0 0
    %2071 = vmatpush1.bf16.msra.mxu0 0
    %2072 = vmatprep.subr.bf16.mxu0 0
    %2073 = vmatpush1.bf16.msra.mxu0 0
    %2074 = vmatprep.subr.bf16.mxu0 0
    %2075 = vmatpush1.bf16.msra.mxu0 0
    %2076 = vmatprep.subr.bf16.mxu0 0
    %2077 = vmatpush1.bf16.msra.mxu0 0
    %2078 = vmatprep.subr.bf16.mxu0 0
    %2079 = vmatpush1.bf16.msra.mxu0 0
    %2080 = vmatprep.subr.bf16.mxu0 0
    %2081 = vmatpush1.bf16.msra.mxu0 0
    %2082 = vmatprep.subr.bf16.mxu0 0
    %2083 = vmatpush1.bf16.msra.mxu0 0
    %2084 = vmatprep.subr.bf16.mxu0 0
    %2085 = vmatpush1.bf16.msra.mxu0 0
    %2086 = vmatprep.subr.bf16.mxu0 0
    %2087 = vmatpush1.bf16.msra.mxu0 0
    %2088 = vmatprep.subr.bf16.mxu0 0
    %2089 = vmatpush1.bf16.msra.mxu0 0
    %2090 = vmatprep.mubr.bf16.mxu0 0
    %2091 = vmatmul.mubr.bf16.gmra.mrb[0].mxu0 %v2056
    %v2092 = vpop.f32.mrb[0].mxu0
    %v2093 = vadd.f32 %v2050, %v2092
    %v2094 = vpop.f32.mrb[0].mxu0
    %v2095 = vpop.f32.mrb[0].mxu0
    %v2096 = vadd.f32 %v2050, %v2095
    %v2097 = vpop.f32.mrb[0].mxu0
    %2098 = vdwg.mxu0
    %v2099 = vpack.c.bf16 %v2035, %v2034
    %v2100 = vpack.c.bf16 %v2037, %v2036
    %2103 = vrot.lane.b32.xlu0 %v2044, 96
    %v2104 = vpop.permute.xlu0 %2103
    %2105 = vrot.lane.b32.xlu0 %v2045, 96
    %v2106 = vpop.permute.xlu0 %2105
    %2109 = vrot.lane.b32.xlu0 %v2050, 96
    %v2110 = vpop.permute.xlu0 %2109
    %v2113 = vsel %vm347, %v2099, 0
    %v2116 = vsel %vm347, %v2100, 0
    %2118 = vmatprep.subr.bf16.mxu0 0
    %2119 = vmatpush1.bf16.msra.mxu0 %v2104
    %2120 = vmatprep.subr.bf16.mxu0 0
    %2121 = vmatpush1.bf16.msra.mxu0 %v2106
    %2122 = vmatprep.subr.bf16.mxu0 0
    %2123 = vmatpush1.bf16.msra.mxu0 0
    %2124 = vmatprep.subr.bf16.mxu0 0
    %2125 = vmatpush1.bf16.msra.mxu0 0
    %2126 = vmatprep.subr.bf16.mxu0 0
    %2127 = vmatpush1.bf16.msra.mxu0 0
    %2128 = vmatprep.subr.bf16.mxu0 0
    %2129 = vmatpush1.bf16.msra.mxu0 0
    %2130 = vmatprep.subr.bf16.mxu0 0
    %2131 = vmatpush1.bf16.msra.mxu0 0
    %2132 = vmatprep.subr.bf16.mxu0 0
    %2133 = vmatpush1.bf16.msra.mxu0 0
    %2134 = vmatprep.subr.bf16.mxu0 0
    %2135 = vmatpush1.bf16.msra.mxu0 0
    %2136 = vmatprep.subr.bf16.mxu0 0
    %2137 = vmatpush1.bf16.msra.mxu0 0
    %2138 = vmatprep.subr.bf16.mxu0 0
    %2139 = vmatpush1.bf16.msra.mxu0 0
    %2140 = vmatprep.subr.bf16.mxu0 0
    %2141 = vmatpush1.bf16.msra.mxu0 0
    %2142 = vmatprep.subr.bf16.mxu0 0
    %2143 = vmatpush1.bf16.msra.mxu0 0
    %2144 = vmatprep.subr.bf16.mxu0 0
    %2145 = vmatpush1.bf16.msra.mxu0 0
    %2146 = vmatprep.subr.bf16.mxu0 0
    %2147 = vmatpush1.bf16.msra.mxu0 0
    %2148 = vmatprep.subr.bf16.mxu0 0
    %2149 = vmatpush1.bf16.msra.mxu0 0
    %2150 = vmatprep.mubr.bf16.mxu0 0
    %2151 = vmatmul.mubr.bf16.gmra.mrb[0].mxu0 %v2113
    %v2152 = vpop.f32.mrb[0].mxu0
    %v2153 = vadd.f32 %v2110, %v2152
    %v2154 = vpop.f32.mrb[0].mxu0
    %v2155 = vpop.f32.mrb[0].mxu0
    %v2156 = vadd.f32 %v2110, %v2155
    %v2157 = vpop.f32.mrb[0].mxu0
    %2158 = vmatprep.mubr.bf16.mxu0 0
    %2159 = vmatmul.mubr.bf16.gmra.mrb[0].mxu0 %v2116
    %v2160 = vpop.f32.mrb[0].mxu0
    %v2161 = vadd.f32 %v2110, %v2160
    %v2162 = vpop.f32.mrb[0].mxu0
    %v2163 = vpop.f32.mrb[0].mxu0
    %v2164 = vadd.f32 %v2110, %v2163
    %v2165 = vpop.f32.mrb[0].mxu0
    %2166 = vdwg.mxu0
    %v2167 = vpack.c.bf16 %v1505, %v1504
    %v2168 = vpack.c.bf16 %v1507, %v1506
    %2169 = vrot.lane.b32.xlu0 %v2044, 64
    %v2170 = vpop.permute.xlu0 %2169
    %2171 = vrot.lane.b32.xlu0 %v2045, 64
    %v2172 = vpop.permute.xlu0 %2171
    %2175 = vrot.lane.b32.xlu0 %v2050, 64
    %v2176 = vpop.permute.xlu0 %2175
    %v2179 = vsel %vm347, %v2167, 0
    %v2182 = vsel %vm347, %v2168, 0
    %2184 = vmatprep.subr.bf16.mxu0 0
    %2185 = vmatpush1.bf16.msra.mxu0 %v2170
    %2186 = vmatprep.subr.bf16.mxu0 0
    %2187 = vmatpush1.bf16.msra.mxu0 %v2172
    %2188 = vmatprep.subr.bf16.mxu0 0
    %2189 = vmatpush1.bf16.msra.mxu0 0
    %2190 = vmatprep.subr.bf16.mxu0 0
    %2191 = vmatpush1.bf16.msra.mxu0 0
    %2192 = vmatprep.subr.bf16.mxu0 0
    %2193 = vmatpush1.bf16.msra.mxu0 0
    %2194 = vmatprep.subr.bf16.mxu0 0
    %2195 = vmatpush1.bf16.msra.mxu0 0
    %2196 = vmatprep.subr.bf16.mxu0 0
    %2197 = vmatpush1.bf16.msra.mxu0 0
    %2198 = vmatprep.subr.bf16.mxu0 0
    %2199 = vmatpush1.bf16.msra.mxu0 0
    %2200 = vmatprep.subr.bf16.mxu0 0
    %2201 = vmatpush1.bf16.msra.mxu0 0
    %2202 = vmatprep.subr.bf16.mxu0 0
    %2203 = vmatpush1.bf16.msra.mxu0 0
    %2204 = vmatprep.subr.bf16.mxu0 0
    %2205 = vmatpush1.bf16.msra.mxu0 0
    %2206 = vmatprep.subr.bf16.mxu0 0
    %2207 = vmatpush1.bf16.msra.mxu0 0
    %2208 = vmatprep.subr.bf16.mxu0 0
    %2209 = vmatpush1.bf16.msra.mxu0 0
    %2210 = vmatprep.subr.bf16.mxu0 0
    %2211 = vmatpush1.bf16.msra.mxu0 0
    %2212 = vmatprep.subr.bf16.mxu0 0
    %2213 = vmatpush1.bf16.msra.mxu0 0
    %2214 = vmatprep.subr.bf16.mxu0 0
    %2215 = vmatpush1.bf16.msra.mxu0 0
    %2216 = vmatprep.mubr.bf16.mxu0 0
    %2217 = vmatmul.mubr.bf16.gmra.mrb[0].mxu0 %v2179
    %v2218 = vpop.f32.mrb[0].mxu0
    %v2219 = vadd.f32 %v2176, %v2218
    %v2220 = vpop.f32.mrb[0].mxu0
    %v2221 = vpop.f32.mrb[0].mxu0
    %v2222 = vadd.f32 %v2176, %v2221
    %v2223 = vpop.f32.mrb[0].mxu0
    %2224 = vmatprep.mubr.bf16.mxu0 0
    %2225 = vmatmul.mubr.bf16.gmra.mrb[0].mxu0 %v2182
    %v2226 = vpop.f32.mrb[0].mxu0
    %v2227 = vadd.f32 %v2176, %v2226
    %v2228 = vpop.f32.mrb[0].mxu0
    %v2229 = vpop.f32.mrb[0].mxu0
    %v2230 = vadd.f32 %v2176, %v2229
    %v2231 = vpop.f32.mrb[0].mxu0
    %2232 = vdwg.mxu0
    %v2233 = vpack.c.bf16 %v2096, %v2093
    %v2234 = vpack.c.bf16 %v2156, %v2153
    %v2235 = vpack.c.bf16 %v2164, %v2161
    %v2236 = vpack.c.bf16 %v2222, %v2219
    %v2237 = vpack.c.bf16 %v2230, %v2227
    %v2239 = vsel %vm490, %v2233, 0
    %v2242 = vsel %vm490, %v2234, 0
    %v2245 = vsel %vm490, %v2235, 0
    %2247 = vmatprep.subr.bf16.mxu0 0
    %2248 = vmatpush1.bf16.xpose.msra.mxu0 %v2242
    %2249 = vmatprep.subr.bf16.mxu0 0
    %2250 = vmatpush1.bf16.xpose.msra.mxu0 %v2245
    %2251 = vmatprep.subr.bf16.mxu0 0
    %2252 = vmatpush1.bf16.xpose.msra.mxu0 0
    %2253 = vmatprep.subr.bf16.mxu0 0
    %2254 = vmatpush1.bf16.xpose.msra.mxu0 0
    %2255 = vmatprep.subr.bf16.mxu0 0
    %2256 = vmatpush1.bf16.xpose.msra.mxu0 0
    %2257 = vmatprep.subr.bf16.mxu0 0
    %2258 = vmatpush1.bf16.xpose.msra.mxu0 0
    %2259 = vmatprep.subr.bf16.mxu0 0
    %2260 = vmatpush1.bf16.xpose.msra.mxu0 0
    %2261 = vmatprep.subr.bf16.mxu0 0
    %2262 = vmatpush1.bf16.xpose.msra.mxu0 0
    %2263 = vmatprep.subr.bf16.mxu0 0
    %2264 = vmatpush1.bf16.xpose.msra.mxu0 0
    %2265 = vmatprep.subr.bf16.mxu0 0
    %2266 = vmatpush1.bf16.xpose.msra.mxu0 0
    %2267 = vmatprep.subr.bf16.mxu0 0
    %2268 = vmatpush1.bf16.xpose.msra.mxu0 0
    %2269 = vmatprep.subr.bf16.mxu0 0
    %2270 = vmatpush1.bf16.xpose.msra.mxu0 0
    %2271 = vmatprep.subr.bf16.mxu0 0
    %2272 = vmatpush1.bf16.xpose.msra.mxu0 0
    %2273 = vmatprep.subr.bf16.mxu0 0
    %2274 = vmatpush1.bf16.xpose.msra.mxu0 0
    %2275 = vmatprep.subr.bf16.mxu0 0
    %2276 = vmatpush1.bf16.xpose.msra.mxu0 0
    %2277 = vmatprep.subr.bf16.mxu0 0
    %2278 = vmatpush1.bf16.xpose.msra.mxu0 0
    %2279 = vmatprep.mubr.bf16.mxu0 0
    %2280 = vmatmul.mubr.bf16.gmra.mrb[0].mxu0 %v2239
    %v2281 = vpop.f32.mrb[0].mxu0
    %v2282 = vadd.f32 0.0, %v2281
    %v2283 = vpop.f32.mrb[0].mxu0
    %v2284 = vpop.f32.mrb[0].mxu0
    %v2285 = vadd.f32 0.0, %v2284
    %v2286 = vpop.f32.mrb[0].mxu0
    %2287 = vdwg.mxu0
    %v2288 = vmul.f32 %v2282, 0.25
    %v2289 = vmul.f32 %v2285, 0.25
    %v2290 = vadd.f32 %v2288, %v1519
    %v2291 = vadd.f32 %v2289, %v1520
    %v2292 = vsel %vm347, %v2290, -inf
    %2293 = vmax.xlane.f32.xlu0 %v2292
    %v2294 = vpop.xlane.xlu0 %2293
    %v2295 = vsel %vm1972, %v2291, -inf
    %2296 = vmax.xlane.f32.xlu0 %v2295
    %v2297 = vpop.xlane.xlu0 %2296
    %v2298 = vsub.f32 %v2290, %v2294
    %v2299 = vsub.f32 %v2291, %v2297
    %v2300 = vmul.f32 %v2298, 1.442695
    %v2301 = vpow.pop %v2300
    %v2302 = vmul.f32 %v2299, 1.442695
    %v2303 = vpow.pop %v2302
    %v2304 = vsel %vm347, %v2301, 0.0
    %2305 = vadd.xlane.f32.xlu0 %v2304
    %v2306 = vpop.xlane.xlu0 %2305
    %v2307 = vsel %vm1972, %v2303, 0.0
    %2308 = vadd.xlane.f32.xlu0 %v2307
    %v2309 = vpop.xlane.xlu0 %2308
    %v2310 = vrcp.pop %v2306
    %v2311 = vrcp.pop %v2309
    %v2312 = vmul.f32 %v2301, %v2310
    %v2313 = vmul.f32 %v2303, %v2311
    %v2314 = vpack.c.bf16 %v2313, %v2312
    %v2316 = vsel %vm347, %v2314, 0
    %2318 = vmatprep.subr.bf16.mxu0 0
    %2319 = vmatpush1.bf16.msra.mxu0 %v2236
    %2320 = vmatprep.subr.bf16.mxu0 0
    %2321 = vmatpush1.bf16.msra.mxu0 %v2237
    %2322 = vmatprep.subr.bf16.mxu0 0
    %2323 = vmatpush1.bf16.msra.mxu0 0
    %2324 = vmatprep.subr.bf16.mxu0 0
    %2325 = vmatpush1.bf16.msra.mxu0 0
    %2326 = vmatprep.subr.bf16.mxu0 0
    %2327 = vmatpush1.bf16.msra.mxu0 0
    %2328 = vmatprep.subr.bf16.mxu0 0
    %2329 = vmatpush1.bf16.msra.mxu0 0
    %2330 = vmatprep.subr.bf16.mxu0 0
    %2331 = vmatpush1.bf16.msra.mxu0 0
    %2332 = vmatprep.subr.bf16.mxu0 0
    %2333 = vmatpush1.bf16.msra.mxu0 0
    %2334 = vmatprep.subr.bf16.mxu0 0
    %2335 = vmatpush1.bf16.msra.mxu0 0
    %2336 = vmatprep.subr.bf16.mxu0 0
    %2337 = vmatpush1.bf16.msra.mxu0 0
    %2338 = vmatprep.subr.bf16.mxu0 0
    %2339 = vmatpush1.bf16.msra.mxu0 0
    %2340 = vmatprep.subr.bf16.mxu0 0
    %2341 = vmatpush1.bf16.msra.mxu0 0
    %2342 = vmatprep.subr.bf16.mxu0 0
    %2343 = vmatpush1.bf16.msra.mxu0 0
    %2344 = vmatprep.subr.bf16.mxu0 0
    %2345 = vmatpush1.bf16.msra.mxu0 0
    %2346 = vmatprep.subr.bf16.mxu0 0
    %2347 = vmatpush1.bf16.msra.mxu0 0
    %2348 = vmatprep.subr.bf16.mxu0 0
    %2349 = vmatpush1.bf16.msra.mxu0 0
    %2350 = vmatprep.mubr.bf16.mxu0 0
    %2351 = vmatmul.mubr.bf16.gmra.mrb[0].mxu0 %v2316
    %v2352 = vpop.f32.mrb[0].mxu0
    %v2353 = vadd.f32 0.0, %v2352
    %v2354 = vpop.f32.mrb[0].mxu0
    %v2355 = vpop.f32.mrb[0].mxu0
    %v2356 = vadd.f32 0.0, %v2355
    %v2357 = vpop.f32.mrb[0].mxu0
    %2358 = vdwg.mxu0
    %v2359 = vpack.c.bf16 %v2356, %v2353
    %2360 = vrot.lane.b32.xlu0 %v2044, 32
    %v2361 = vpop.permute.xlu0 %2360
    %v2364 = vsel %vm490, %v2359, 0
    %2366 = vmatprep.subr.bf16.mxu0 0
    %2367 = vmatpush1.bf16.msra.mxu0 %v2361
    %2368 = vmatprep.subr.bf16.mxu0 0
    %2369 = vmatpush1.bf16.msra.mxu0 0
    %2370 = vmatprep.subr.bf16.mxu0 0
    %2371 = vmatpush1.bf16.msra.mxu0 0
    %2372 = vmatprep.subr.bf16.mxu0 0
    %2373 = vmatpush1.bf16.msra.mxu0 0
    %2374 = vmatprep.subr.bf16.mxu0 0
    %2375 = vmatpush1.bf16.msra.mxu0 0
    %2376 = vmatprep.subr.bf16.mxu0 0
    %2377 = vmatpush1.bf16.msra.mxu0 0
    %2378 = vmatprep.subr.bf16.mxu0 0
    %2379 = vmatpush1.bf16.msra.mxu0 0
    %2380 = vmatprep.subr.bf16.mxu0 0
    %2381 = vmatpush1.bf16.msra.mxu0 0
    %2382 = vmatprep.subr.bf16.mxu0 0
    %2383 = vmatpush1.bf16.msra.mxu0 0
    %2384 = vmatprep.subr.bf16.mxu0 0
    %2385 = vmatpush1.bf16.msra.mxu0 0
    %2386 = vmatprep.subr.bf16.mxu0 0
    %2387 = vmatpush1.bf16.msra.mxu0 0
    %2388 = vmatprep.subr.bf16.mxu0 0
    %2389 = vmatpush1.bf16.msra.mxu0 0
    %2390 = vmatprep.subr.bf16.mxu0 0
    %2391 = vmatpush1.bf16.msra.mxu0 0
    %2392 = vmatprep.subr.bf16.mxu0 0
    %2393 = vmatpush1.bf16.msra.mxu0 0
    %2394 = vmatprep.subr.bf16.mxu0 0
    %2395 = vmatpush1.bf16.msra.mxu0 0
    %2396 = vmatprep.subr.bf16.mxu0 0
    %2397 = vmatpush1.bf16.msra.mxu0 0
    %2398 = vmatprep.mubr.bf16.mxu0 0
    %2399 = vmatmul.mubr.bf16.gmra.mrb[0].mxu0 %v2364
    %v2400 = vpop.f32.mrb[0].mxu0
    %v2401 = vadd.f32 0.0, %v2400
    %v2402 = vpop.f32.mrb[0].mxu0
    %v2403 = vpop.f32.mrb[0].mxu0
    %v2404 = vadd.f32 0.0, %v2403
    %v2405 = vpop.f32.mrb[0].mxu0
    %2406 = vdwg.mxu0
    %2409 = vrot.lane.b32.xlu0 %v2401, 96
    %v2410 = vpop.permute.xlu0 %2409
    %2411 = vrot.lane.b32.xlu0 %v2404, 96
    %v2412 = vpop.permute.xlu0 %2411
    %v2415 = vadd.f32 %v2050, %v2410
    %v2416 = vadd.f32 %v2050, %v2412
    %2418 = vrot.lane.b32.xlu0 %v2233, 112
    %v2419 = vpop.permute.xlu0 %2418
    %2422 = vrot.lane.b32.xlu0 %v2234, 112
    %v2423 = vpop.permute.xlu0 %2422
    %2424 = vrot.lane.b32.xlu0 %v2235, 112
    %v2425 = vpop.permute.xlu0 %2424
    %v2427 = vsel %vm490, %v2419, 0
    %v2430 = vsel %vm490, %v2423, 0
    %v2433 = vsel %vm490, %v2425, 0
    %2435 = vmatprep.subr.bf16.mxu0 0
    %2436 = vmatpush1.bf16.xpose.msra.mxu0 %v2430
    %2437 = vmatprep.subr.bf16.mxu0 0
    %2438 = vmatpush1.bf16.xpose.msra.mxu0 %v2433
    %2439 = vmatprep.subr.bf16.mxu0 0
    %2440 = vmatpush1.bf16.xpose.msra.mxu0 0
    %2441 = vmatprep.subr.bf16.mxu0 0
    %2442 = vmatpush1.bf16.xpose.msra.mxu0 0
    %2443 = vmatprep.subr.bf16.mxu0 0
    %2444 = vmatpush1.bf16.xpose.msra.mxu0 0
    %2445 = vmatprep.subr.bf16.mxu0 0
    %2446 = vmatpush1.bf16.xpose.msra.mxu0 0
    %2447 = vmatprep.subr.bf16.mxu0 0
    %2448 = vmatpush1.bf16.xpose.msra.mxu0 0
    %2449 = vmatprep.subr.bf16.mxu0 0
    %2450 = vmatpush1.bf16.xpose.msra.mxu0 0
    %2451 = vmatprep.subr.bf16.mxu0 0
    %2452 = vmatpush1.bf16.xpose.msra.mxu0 0
    %2453 = vmatprep.subr.bf16.mxu0 0
    %2454 = vmatpush1.bf16.xpose.msra.mxu0 0
    %2455 = vmatprep.subr.bf16.mxu0 0
    %2456 = vmatpush1.bf16.xpose.msra.mxu0 0
    %2457 = vmatprep.subr.bf16.mxu0 0
    %2458 = vmatpush1.bf16.xpose.msra.mxu0 0
    %2459 = vmatprep.subr.bf16.mxu0 0
    %2460 = vmatpush1.bf16.xpose.msra.mxu0 0
    %2461 = vmatprep.subr.bf16.mxu0 0
    %2462 = vmatpush1.bf16.xpose.msra.mxu0 0
    %2463 = vmatprep.subr.bf16.mxu0 0
    %2464 = vmatpush1.bf16.xpose.msra.mxu0 0
    %2465 = vmatprep.subr.bf16.mxu0 0
    %2466 = vmatpush1.bf16.xpose.msra.mxu0 0
    %2467 = vmatprep.mubr.bf16.mxu0 0
    %2468 = vmatmul.mubr.bf16.gmra.mrb[0].mxu0 %v2427
    %v2469 = vpop.f32.mrb[0].mxu0
    %v2470 = vadd.f32 0.0, %v2469
    %v2471 = vpop.f32.mrb[0].mxu0
    %v2472 = vpop.f32.mrb[0].mxu0
    %v2473 = vadd.f32 0.0, %v2472
    %v2474 = vpop.f32.mrb[0].mxu0
    %2475 = vdwg.mxu0
    %v2476 = vmul.f32 %v2470, 0.25
    %v2477 = vmul.f32 %v2473, 0.25
    %v2478 = vadd.f32 %v2476, %v1519
    %v2479 = vadd.f32 %v2477, %v1520
    %v2480 = vsel %vm347, %v2478, -inf
    %2481 = vmax.xlane.f32.xlu0 %v2480
    %v2482 = vpop.xlane.xlu0 %2481
    %v2483 = vsel %vm1972, %v2479, -inf
    %2484 = vmax.xlane.f32.xlu0 %v2483
    %v2485 = vpop.xlane.xlu0 %2484
    %v2486 = vsub.f32 %v2478, %v2482
    %v2487 = vsub.f32 %v2479, %v2485
    %v2488 = vmul.f32 %v2486, 1.442695
    %v2489 = vpow.pop %v2488
    %v2490 = vmul.f32 %v2487, 1.442695
    %v2491 = vpow.pop %v2490
    %v2492 = vsel %vm347, %v2489, 0.0
    %2493 = vadd.xlane.f32.xlu0 %v2492
    %v2494 = vpop.xlane.xlu0 %2493
    %v2495 = vsel %vm1972, %v2491, 0.0
    %2496 = vadd.xlane.f32.xlu0 %v2495
    %v2497 = vpop.xlane.xlu0 %2496
    %v2498 = vrcp.pop %v2494
    %v2499 = vrcp.pop %v2497
    %v2500 = vmul.f32 %v2489, %v2498
    %v2501 = vmul.f32 %v2491, %v2499
    %v2502 = vpack.c.bf16 %v2501, %v2500
    %2505 = vrot.lane.b32.xlu0 %v2236, 112
    %v2506 = vpop.permute.xlu0 %2505
    %2507 = vrot.lane.b32.xlu0 %v2237, 112
    %v2508 = vpop.permute.xlu0 %2507
    %v2512 = vsel %vm347, %v2502, 0
    %2514 = vmatprep.subr.bf16.mxu0 0
    %2515 = vmatpush1.bf16.msra.mxu0 %v2506
    %2516 = vmatprep.subr.bf16.mxu0 0
    %2517 = vmatpush1.bf16.msra.mxu0 %v2508
    %2518 = vmatprep.subr.bf16.mxu0 0
    %2519 = vmatpush1.bf16.msra.mxu0 0
    %2520 = vmatprep.subr.bf16.mxu0 0
    %2521 = vmatpush1.bf16.msra.mxu0 0
    %2522 = vmatprep.subr.bf16.mxu0 0
    %2523 = vmatpush1.bf16.msra.mxu0 0
    %2524 = vmatprep.subr.bf16.mxu0 0
    %2525 = vmatpush1.bf16.msra.mxu0 0
    %2526 = vmatprep.subr.bf16.mxu0 0
    %2527 = vmatpush1.bf16.msra.mxu0 0
    %2528 = vmatprep.subr.bf16.mxu0 0
    %2529 = vmatpush1.bf16.msra.mxu0 0
    %2530 = vmatprep.subr.bf16.mxu0 0
    %2531 = vmatpush1.bf16.msra.mxu0 0
    %2532 = vmatprep.subr.bf16.mxu0 0
    %2533 = vmatpush1.bf16.msra.mxu0 0
    %2534 = vmatprep.subr.bf16.mxu0 0
    %2535 = vmatpush1.bf16.msra.mxu0 0
    %2536 = vmatprep.subr.bf16.mxu0 0
    %2537 = vmatpush1.bf16.msra.mxu0 0
    %2538 = vmatprep.subr.bf16.mxu0 0
    %2539 = vmatpush1.bf16.msra.mxu0 0
    %2540 = vmatprep.subr.bf16.mxu0 0
    %2541 = vmatpush1.bf16.msra.mxu0 0
    %2542 = vmatprep.subr.bf16.mxu0 0
    %2543 = vmatpush1.bf16.msra.mxu0 0
    %2544 = vmatprep.subr.bf16.mxu0 0
    %2545 = vmatpush1.bf16.msra.mxu0 0
    %2546 = vmatprep.mubr.bf16.mxu0 0
    %2547 = vmatmul.mubr.bf16.gmra.mrb[0].mxu0 %v2512
    %v2548 = vpop.f32.mrb[0].mxu0
    %v2549 = vadd.f32 0.0, %v2548
    %v2550 = vpop.f32.mrb[0].mxu0
    %v2551 = vpop.f32.mrb[0].mxu0
    %v2552 = vadd.f32 0.0, %v2551
    %v2553 = vpop.f32.mrb[0].mxu0
    %2554 = vdwg.mxu0
    %v2555 = vpack.c.bf16 %v2552, %v2549
    %2556 = vrot.lane.b32.xlu0 %v2045, 32
    %v2557 = vpop.permute.xlu0 %2556
    %v2560 = vsel %vm490, %v2555, 0
    %2562 = vmatprep.subr.bf16.mxu0 0
    %2563 = vmatpush1.bf16.msra.mxu0 %v2557
    %2564 = vmatprep.subr.bf16.mxu0 0
    %2565 = vmatpush1.bf16.msra.mxu0 0
    %2566 = vmatprep.subr.bf16.mxu0 0
    %2567 = vmatpush1.bf16.msra.mxu0 0
    %2568 = vmatprep.subr.bf16.mxu0 0
    %2569 = vmatpush1.bf16.msra.mxu0 0
    %2570 = vmatprep.subr.bf16.mxu0 0
    %2571 = vmatpush1.bf16.msra.mxu0 0
    %2572 = vmatprep.subr.bf16.mxu0 0
    %2573 = vmatpush1.bf16.msra.mxu0 0
    %2574 = vmatprep.subr.bf16.mxu0 0
    %2575 = vmatpush1.bf16.msra.mxu0 0
    %2576 = vmatprep.subr.bf16.mxu0 0
    %2577 = vmatpush1.bf16.msra.mxu0 0
    %2578 = vmatprep.subr.bf16.mxu0 0
    %2579 = vmatpush1.bf16.msra.mxu0 0
    %2580 = vmatprep.subr.bf16.mxu0 0
    %2581 = vmatpush1.bf16.msra.mxu0 0
    %2582 = vmatprep.subr.bf16.mxu0 0
    %2583 = vmatpush1.bf16.msra.mxu0 0
    %2584 = vmatprep.subr.bf16.mxu0 0
    %2585 = vmatpush1.bf16.msra.mxu0 0
    %2586 = vmatprep.subr.bf16.mxu0 0
    %2587 = vmatpush1.bf16.msra.mxu0 0
    %2588 = vmatprep.subr.bf16.mxu0 0
    %2589 = vmatpush1.bf16.msra.mxu0 0
    %2590 = vmatprep.subr.bf16.mxu0 0
    %2591 = vmatpush1.bf16.msra.mxu0 0
    %2592 = vmatprep.subr.bf16.mxu0 0
    %2593 = vmatpush1.bf16.msra.mxu0 0
    %2594 = vmatprep.mubr.bf16.mxu0 0
    %2595 = vmatmul.mubr.bf16.gmra.mrb[0].mxu0 %v2560
    %v2596 = vpop.f32.mrb[0].mxu0
    %v2597 = vadd.f32 0.0, %v2596
    %v2598 = vpop.f32.mrb[0].mxu0
    %v2599 = vpop.f32.mrb[0].mxu0
    %v2600 = vadd.f32 0.0, %v2599
    %v2601 = vpop.f32.mrb[0].mxu0
    %2602 = vdwg.mxu0
    %2605 = vrot.lane.b32.xlu0 %v2597, 96
    %v2606 = vpop.permute.xlu0 %2605
    %2607 = vrot.lane.b32.xlu0 %v2600, 96
    %v2608 = vpop.permute.xlu0 %2607
    %v2611 = vadd.f32 %v2415, %v2606
    %v2612 = vadd.f32 %v2416, %v2608
    %v2613 = vadd.f32 %v2022, %v2611
    %v2614 = vadd.f32 %v2023, %v2612
    %2617 = vrot.lane.b32.xlu0 %v2613, 32
    %v2618 = vpop.permute.xlu0 %2617
    %2619 = vrot.lane.b32.xlu0 %v2614, 32
    %v2620 = vpop.permute.xlu0 %2619
    %v2623 = vsel %vm347, %v2618, 0.0
    %2624 = vadd.xlane.f32.xlu0 %v2623
    %v2625 = vpop.xlane.xlu0 %2624
    %v2626 = vsel %vm1972, %v2620, 0.0
    %2627 = vadd.xlane.f32.xlu0 %v2626
    %v2628 = vpop.xlane.xlu0 %2627
    %v2629 = vmul.f32 %v2625, %v360
    %v2630 = vmul.f32 %v2628, %v360
    %v2631 = vsub.f32 %v2613, %v2629
    %v2632 = vsub.f32 %v2614, %v2630
    %v2633 = vmul.f32 %v2631, %v2631
    %v2634 = vmul.f32 %v2632, %v2632
    %2637 = vrot.lane.b32.xlu0 %v2633, 32
    %v2638 = vpop.permute.xlu0 %2637
    %2639 = vrot.lane.b32.xlu0 %v2634, 32
    %v2640 = vpop.permute.xlu0 %2639
    %v2643 = vsel %vm347, %v2638, 0.0
    %2644 = vadd.xlane.f32.xlu0 %v2643
    %v2645 = vpop.xlane.xlu0 %2644
    %v2646 = vsel %vm1972, %v2640, 0.0
    %2647 = vadd.xlane.f32.xlu0 %v2646
    %v2648 = vpop.xlane.xlu0 %2647
    %v2649 = vmul.f32 %v2645, %v360
    %v2650 = vmul.f32 %v2648, %v360
    %v2651 = vadd.f32 %v2649, 1e-05
    %v2652 = vadd.f32 %v2650, 1e-05
    %v2653 = vrsqrt.pop %v2651
    %v2654 = vrsqrt.pop %v2652
    %v2655 = vmul.f32 %v2631, %v2653
    %v2656 = vmul.f32 %v2632, %v2654
    %v2657 = vlaneseq
    %v2658 = vshrl.u32 %v2657, 7
    %v2659 = vsub.s32 1, %v2658
    %v2660 = vrot.slane %v1508, %v2659
    %2662 = vrot.lane.b32.xlu0 %v2660, 96
    %v2663 = vpop.permute.xlu0 %2662
    %v2665 = vmul.f32 %v2655, %v2663
    %v2666 = vmul.f32 %v2656, %v2663
    %v2667 = vlaneseq
    %v2668 = vshrl.u32 %v2667, 7
    %v2669 = vsub.s32 1, %v2668
    %v2670 = vrot.slane %v1509, %v2669
    %2672 = vrot.lane.b32.xlu0 %v2670, 96
    %v2673 = vpop.permute.xlu0 %2672
    %v2675 = vadd.f32 %v2665, %v2673
    %v2676 = vadd.f32 %v2666, %v2673
    %v2677 = vld [vmem:[%s61] sm:$0xff]
    %v2678 = vld [vmem:[%s61 + $0x8] sm:$0xff]
    %v2679 = vld [vmem:[%s61 + $0x10] sm:$0xff]
    %v2680 = vld [vmem:[%s61 + $0x18] sm:$0xff]
    %v2681 = vld [vmem:[%s63] sm:$0x1]
    %v2682 = vpack.c.bf16 %v2676, %v2675
    %v2683 = vpack.c.bf16 %v2678, %v2677
    %v2684 = vpack.c.bf16 %v2680, %v2679
    %v2686 = vlaneseq
    %v2687 = vshrl.u32 %v2686, 7
    %v2688 = vsub.s32 0, %v2687
    %v2689 = vrot.slane %v2681, %v2688
    %2692 = vrot.lane.b32.xlu0 %v2682, 32
    %v2693 = vpop.permute.xlu0 %2692
    %v2695 = vsel %vm347, %v2693, 0
    %2697 = vmatprep.subr.bf16.mxu0 0
    %2698 = vmatpush1.bf16.msra.mxu0 %v2683
    %2699 = vmatprep.subr.bf16.mxu0 0
    %2700 = vmatpush1.bf16.msra.mxu0 %v2684
    %2701 = vmatprep.subr.bf16.mxu0 0
    %2702 = vmatpush1.bf16.msra.mxu0 0
    %2703 = vmatprep.subr.bf16.mxu0 0
    %2704 = vmatpush1.bf16.msra.mxu0 0
    %2705 = vmatprep.subr.bf16.mxu0 0
    %2706 = vmatpush1.bf16.msra.mxu0 0
    %2707 = vmatprep.subr.bf16.mxu0 0
    %2708 = vmatpush1.bf16.msra.mxu0 0
    %2709 = vmatprep.subr.bf16.mxu0 0
    %2710 = vmatpush1.bf16.msra.mxu0 0
    %2711 = vmatprep.subr.bf16.mxu0 0
    %2712 = vmatpush1.bf16.msra.mxu0 0
    %2713 = vmatprep.subr.bf16.mxu0 0
    %2714 = vmatpush1.bf16.msra.mxu0 0
    %2715 = vmatprep.subr.bf16.mxu0 0
    %2716 = vmatpush1.bf16.msra.mxu0 0
    %2717 = vmatprep.subr.bf16.mxu0 0
    %2718 = vmatpush1.bf16.msra.mxu0 0
    %2719 = vmatprep.subr.bf16.mxu0 0
    %2720 = vmatpush1.bf16.msra.mxu0 0
    %2721 = vmatprep.subr.bf16.mxu0 0
    %2722 = vmatpush1.bf16.msra.mxu0 0
    %2723 = vmatprep.subr.bf16.mxu0 0
    %2724 = vmatpush1.bf16.msra.mxu0 0
    %2725 = vmatprep.subr.bf16.mxu0 0
    %2726 = vmatpush1.bf16.msra.mxu0 0
    %2727 = vmatprep.subr.bf16.mxu0 0
    %2728 = vmatpush1.bf16.msra.mxu0 0
    %2729 = vmatprep.mubr.bf16.mxu0 0
    %2730 = vmatmul.mubr.bf16.gmra.mrb[0].mxu0 %v2695
    %v2731 = vpop.f32.mrb[0].mxu0
    %v2732 = vadd.f32 %v2689, %v2731
    %v2733 = vpop.f32.mrb[0].mxu0
    %v2734 = vpop.f32.mrb[0].mxu0
    %v2735 = vadd.f32 %v2689, %v2734
    %v2736 = vpop.f32.mrb[0].mxu0
    %2737 = vdwg.mxu0
    %v2738 = vmax.f32 %v2732, 0.0
    %v2739 = vmax.f32 %v2735, 0.0
    %v2740 = vld [vmem:[%s65] sm:$0xff]
    %v2741 = vld [vmem:[%s65 + $0x8] sm:$0xff]
    %v2742 = vld [vmem:[%s65 + $0x10] sm:$0xff]
    %v2743 = vld [vmem:[%s65 + $0x18] sm:$0xff]
    %v2744 = vld [vmem:[%s65 + $0x20] sm:$0xff]
    %v2745 = vld [vmem:[%s65 + $0x28] sm:$0xff]
    %v2746 = vld [vmem:[%s65 + $0x30] sm:$0xff]
    %v2747 = vld [vmem:[%s65 + $0x38] sm:$0xff]
    %v2748 = vld [vmem:[%s67] sm:$0x1]
    %v2749 = vpack.c.bf16 %v2739, %v2738
    %v2750 = vpack.c.bf16 %v2741, %v2740
    %v2751 = vpack.c.bf16 %v2743, %v2742
    %v2752 = vpack.c.bf16 %v2745, %v2744
    %v2753 = vpack.c.bf16 %v2747, %v2746
    %v2755 = vlaneseq
    %v2756 = vshrl.u32 %v2755, 7
    %v2757 = vsub.s32 0, %v2756
    %v2758 = vrot.slane %v2748, %v2757
    %v2761 = vsel %vm260, %v2749, 0
    %2763 = vmatprep.subr.bf16.mxu0 0
    %2764 = vmatpush1.bf16.msra.mxu0 %v2750
    %2765 = vmatprep.subr.bf16.mxu0 0
    %2766 = vmatpush1.bf16.msra.mxu0 %v2751
    %2767 = vmatprep.subr.bf16.mxu0 0
    %2768 = vmatpush1.bf16.msra.mxu0 %v2752
    %2769 = vmatprep.subr.bf16.mxu0 0
    %2770 = vmatpush1.bf16.msra.mxu0 %v2753
    %2771 = vmatprep.subr.bf16.mxu0 0
    %2772 = vmatpush1.bf16.msra.mxu0 0
    %2773 = vmatprep.subr.bf16.mxu0 0
    %2774 = vmatpush1.bf16.msra.mxu0 0
    %2775 = vmatprep.subr.bf16.mxu0 0
    %2776 = vmatpush1.bf16.msra.mxu0 0
    %2777 = vmatprep.subr.bf16.mxu0 0
    %2778 = vmatpush1.bf16.msra.mxu0 0
    %2779 = vmatprep.subr.bf16.mxu0 0
    %2780 = vmatpush1.bf16.msra.mxu0 0
    %2781 = vmatprep.subr.bf16.mxu0 0
    %2782 = vmatpush1.bf16.msra.mxu0 0
    %2783 = vmatprep.subr.bf16.mxu0 0
    %2784 = vmatpush1.bf16.msra.mxu0 0
    %2785 = vmatprep.subr.bf16.mxu0 0
    %2786 = vmatpush1.bf16.msra.mxu0 0
    %2787 = vmatprep.subr.bf16.mxu0 0
    %2788 = vmatpush1.bf16.msra.mxu0 0
    %2789 = vmatprep.subr.bf16.mxu0 0
    %2790 = vmatpush1.bf16.msra.mxu0 0
    %2791 = vmatprep.subr.bf16.mxu0 0
    %2792 = vmatpush1.bf16.msra.mxu0 0
    %2793 = vmatprep.subr.bf16.mxu0 0
    %2794 = vmatpush1.bf16.msra.mxu0 0
    %2795 = vmatprep.mubr.bf16.mxu0 0
    %2796 = vmatmul.mubr.bf16.gmra.mrb[0].mxu0 %v2761
    %v2797 = vpop.f32.mrb[0].mxu0
    %v2798 = vadd.f32 %v2758, %v2797
    %v2799 = vpop.f32.mrb[0].mxu0
    %v2800 = vpop.f32.mrb[0].mxu0
    %v2801 = vadd.f32 %v2758, %v2800
    %v2802 = vpop.f32.mrb[0].mxu0
    %2803 = vdwg.mxu0
    %2806 = vrot.lane.b32.xlu0 %v2798, 96
    %v2807 = vpop.permute.xlu0 %2806
    %2808 = vrot.lane.b32.xlu0 %v2801, 96
    %v2809 = vpop.permute.xlu0 %2808
    %v2812 = vadd.f32 %v2675, %v2807
    %v2813 = vadd.f32 %v2676, %v2809
    %2816 = vrot.lane.b32.xlu0 %v2812, 32
    %v2817 = vpop.permute.xlu0 %2816
    %2818 = vrot.lane.b32.xlu0 %v2813, 32
    %v2819 = vpop.permute.xlu0 %2818
    %v2822 = vsel %vm347, %v2817, 0.0
    %2823 = vadd.xlane.f32.xlu0 %v2822
    %v2824 = vpop.xlane.xlu0 %2823
    %v2825 = vsel %vm1972, %v2819, 0.0
    %2826 = vadd.xlane.f32.xlu0 %v2825
    %v2827 = vpop.xlane.xlu0 %2826
    %v2828 = vmul.f32 %v2824, %v360
    %v2829 = vmul.f32 %v2827, %v360
    %v2830 = vsub.f32 %v2812, %v2828
    %v2831 = vsub.f32 %v2813, %v2829
    %v2832 = vmul.f32 %v2830, %v2830
    %v2833 = vmul.f32 %v2831, %v2831
    %2836 = vrot.lane.b32.xlu0 %v2832, 32
    %v2837 = vpop.permute.xlu0 %2836
    %2838 = vrot.lane.b32.xlu0 %v2833, 32
    %v2839 = vpop.permute.xlu0 %2838
    %v2842 = vsel %vm347, %v2837, 0.0
    %2843 = vadd.xlane.f32.xlu0 %v2842
    %v2844 = vpop.xlane.xlu0 %2843
    %v2845 = vsel %vm1972, %v2839, 0.0
    %2846 = vadd.xlane.f32.xlu0 %v2845
    %v2847 = vpop.xlane.xlu0 %2846
    %v2848 = vmul.f32 %v2844, %v360
    %v2849 = vmul.f32 %v2847, %v360
    %v2850 = vadd.f32 %v2848, 1e-05
    %v2851 = vadd.f32 %v2849, 1e-05
    %v2852 = vrsqrt.pop %v2850
    %v2853 = vrsqrt.pop %v2851
    %v2854 = vmul.f32 %v2830, %v2852
    %v2855 = vmul.f32 %v2831, %v2853
    %v2856 = vlaneseq
    %v2857 = vshrl.u32 %v2856, 7
    %v2858 = vsub.s32 2, %v2857
    %v2859 = vrot.slane %v1508, %v2858
    %2861 = vrot.lane.b32.xlu0 %v2859, 96
    %v2862 = vpop.permute.xlu0 %2861
    %v2864 = vmul.f32 %v2854, %v2862
    %v2865 = vmul.f32 %v2855, %v2862
    %v2866 = vlaneseq
    %v2867 = vshrl.u32 %v2866, 7
    %v2868 = vsub.s32 2, %v2867
    %v2869 = vrot.slane %v1509, %v2868
    %2871 = vrot.lane.b32.xlu0 %v2869, 96
    %v2872 = vpop.permute.xlu0 %2871
    %v2874 = vadd.f32 %v2864, %v2872
    %v2875 = vadd.f32 %v2865, %v2872
    %v2876 = vadd.f32 %v2874, %v2027
    %v2877 = vadd.f32 %v2875, %v2029
    %v2878 = vld [vmem:[%s49] sm:$0xff]
    %v2879 = vld [vmem:[%s49 + $0x8] sm:$0xff]
    %v2880 = vld [vmem:[%s49 + $0x10] sm:$0xff]
    %v2881 = vld [vmem:[%s49 + $0x18] sm:$0xff]
    %v2882 = vld [vmem:[%s51] sm:$0x1]
    %v2883 = vpack.c.bf16 %v2879, %v2878
    %v2884 = vpack.c.bf16 %v2881, %v2880
    %v2886 = vlaneseq
    %v2887 = vshrl.u32 %v2886, 7
    %v2888 = vsub.s32 0, %v2887
    %v2889 = vrot.slane %v2882, %v2888
    %2891 = vmatprep.subr.bf16.mxu0 0
    %2892 = vmatpush1.bf16.msra.mxu0 %v2883
    %2893 = vmatprep.subr.bf16.mxu0 0
    %2894 = vmatpush1.bf16.msra.mxu0 %v2884
    %2895 = vmatprep.subr.bf16.mxu0 0
    %2896 = vmatpush1.bf16.msra.mxu0 0
    %2897 = vmatprep.subr.bf16.mxu0 0
    %2898 = vmatpush1.bf16.msra.mxu0 0
    %2899 = vmatprep.subr.bf16.mxu0 0
    %2900 = vmatpush1.bf16.msra.mxu0 0
    %2901 = vmatprep.subr.bf16.mxu0 0
    %2902 = vmatpush1.bf16.msra.mxu0 0
    %2903 = vmatprep.subr.bf16.mxu0 0
    %2904 = vmatpush1.bf16.msra.mxu0 0
    %2905 = vmatprep.subr.bf16.mxu0 0
    %2906 = vmatpush1.bf16.msra.mxu0 0
    %2907 = vmatprep.subr.bf16.mxu0 0
    %2908 = vmatpush1.bf16.msra.mxu0 0
    %2909 = vmatprep.subr.bf16.mxu0 0
    %2910 = vmatpush1.bf16.msra.mxu0 0
    %2911 = vmatprep.subr.bf16.mxu0 0
    %2912 = vmatpush1.bf16.msra.mxu0 0
    %2913 = vmatprep.subr.bf16.mxu0 0
    %2914 = vmatpush1.bf16.msra.mxu0 0
    %2915 = vmatprep.subr.bf16.mxu0 0
    %2916 = vmatpush1.bf16.msra.mxu0 0
    %2917 = vmatprep.subr.bf16.mxu0 0
    %2918 = vmatpush1.bf16.msra.mxu0 0
    %2919 = vmatprep.subr.bf16.mxu0 0
    %2920 = vmatpush1.bf16.msra.mxu0 0
    %2921 = vmatprep.subr.bf16.mxu0 0
    %2922 = vmatpush1.bf16.msra.mxu0 0
    %2923 = vmatprep.mubr.bf16.mxu0 0
    %2924 = vmatmul.mubr.bf16.gmra.mrb[0].mxu0 %v2113
    %v2925 = vpop.f32.mrb[0].mxu0
    %v2926 = vadd.f32 %v2889, %v2925
    %v2927 = vpop.f32.mrb[0].mxu0
    %v2928 = vpop.f32.mrb[0].mxu0
    %v2929 = vadd.f32 %v2889, %v2928
    %v2930 = vpop.f32.mrb[0].mxu0
    %2931 = vmatprep.mubr.bf16.mxu0 0
    %2932 = vmatmul.mubr.bf16.gmra.mrb[0].mxu0 %v2116
    %v2933 = vpop.f32.mrb[0].mxu0
    %v2934 = vadd.f32 %v2889, %v2933
    %v2935 = vpop.f32.mrb[0].mxu0
    %v2936 = vpop.f32.mrb[0].mxu0
    %v2937 = vadd.f32 %v2889, %v2936
    %v2938 = vpop.f32.mrb[0].mxu0
    %2939 = vdwg.mxu0
    %v2940 = vpack.c.bf16 %v2877, %v2876
    %2942 = vrot.lane.b32.xlu0 %v2940, 32
    %v2943 = vpop.permute.xlu0 %2942
    %2946 = vrot.lane.b32.xlu0 %v2883, 96
    %v2947 = vpop.permute.xlu0 %2946
    %2948 = vrot.lane.b32.xlu0 %v2884, 96
    %v2949 = vpop.permute.xlu0 %2948
    %2952 = vrot.lane.b32.xlu0 %v2889, 96
    %v2953 = vpop.permute.xlu0 %2952
    %v2956 = vsel %vm347, %v2943, 0
    %2958 = vmatprep.subr.bf16.mxu0 0
    %2959 = vmatpush1.bf16.msra.mxu0 %v2947
    %2960 = vmatprep.subr.bf16.mxu0 0
    %2961 = vmatpush1.bf16.msra.mxu0 %v2949
    %2962 = vmatprep.subr.bf16.mxu0 0
    %2963 = vmatpush1.bf16.msra.mxu0 0
    %2964 = vmatprep.subr.bf16.mxu0 0
    %2965 = vmatpush1.bf16.msra.mxu0 0
    %2966 = vmatprep.subr.bf16.mxu0 0
    %2967 = vmatpush1.bf16.msra.mxu0 0
    %2968 = vmatprep.subr.bf16.mxu0 0
    %2969 = vmatpush1.bf16.msra.mxu0 0
    %2970 = vmatprep.subr.bf16.mxu0 0
    %2971 = vmatpush1.bf16.msra.mxu0 0
    %2972 = vmatprep.subr.bf16.mxu0 0
    %2973 = vmatpush1.bf16.msra.mxu0 0
    %2974 = vmatprep.subr.bf16.mxu0 0
    %2975 = vmatpush1.bf16.msra.mxu0 0
    %2976 = vmatprep.subr.bf16.mxu0 0
    %2977 = vmatpush1.bf16.msra.mxu0 0
    %2978 = vmatprep.subr.bf16.mxu0 0
    %2979 = vmatpush1.bf16.msra.mxu0 0
    %2980 = vmatprep.subr.bf16.mxu0 0
    %2981 = vmatpush1.bf16.msra.mxu0 0
    %2982 = vmatprep.subr.bf16.mxu0 0
    %2983 = vmatpush1.bf16.msra.mxu0 0
    %2984 = vmatprep.subr.bf16.mxu0 0
    %2985 = vmatpush1.bf16.msra.mxu0 0
    %2986 = vmatprep.subr.bf16.mxu0 0
    %2987 = vmatpush1.bf16.msra.mxu0 0
    %2988 = vmatprep.subr.bf16.mxu0 0
    %2989 = vmatpush1.bf16.msra.mxu0 0
    %2990 = vmatprep.mubr.bf16.mxu0 0
    %2991 = vmatmul.mubr.bf16.gmra.mrb[0].mxu0 %v2956
    %v2992 = vpop.f32.mrb[0].mxu0
    %v2993 = vadd.f32 %v2953, %v2992
    %v2994 = vpop.f32.mrb[0].mxu0
    %v2995 = vpop.f32.mrb[0].mxu0
    %v2996 = vadd.f32 %v2953, %v2995
    %v2997 = vpop.f32.mrb[0].mxu0
    %2998 = vdwg.mxu0
    %v2999 = vpack.c.bf16 %v2875, %v2874
    %3001 = vrot.lane.b32.xlu0 %v2999, 32
    %v3002 = vpop.permute.xlu0 %3001
    %3003 = vrot.lane.b32.xlu0 %v2883, 64
    %v3004 = vpop.permute.xlu0 %3003
    %3005 = vrot.lane.b32.xlu0 %v2884, 64
    %v3006 = vpop.permute.xlu0 %3005
    %3009 = vrot.lane.b32.xlu0 %v2889, 64
    %v3010 = vpop.permute.xlu0 %3009
    %v3013 = vsel %vm347, %v3002, 0
    %3015 = vmatprep.subr.bf16.mxu0 0
    %3016 = vmatpush1.bf16.msra.mxu0 %v3004
    %3017 = vmatprep.subr.bf16.mxu0 0
    %3018 = vmatpush1.bf16.msra.mxu0 %v3006
    %3019 = vmatprep.subr.bf16.mxu0 0
    %3020 = vmatpush1.bf16.msra.mxu0 0
    %3021 = vmatprep.subr.bf16.mxu0 0
    %3022 = vmatpush1.bf16.msra.mxu0 0
    %3023 = vmatprep.subr.bf16.mxu0 0
    %3024 = vmatpush1.bf16.msra.mxu0 0
    %3025 = vmatprep.subr.bf16.mxu0 0
    %3026 = vmatpush1.bf16.msra.mxu0 0
    %3027 = vmatprep.subr.bf16.mxu0 0
    %3028 = vmatpush1.bf16.msra.mxu0 0
    %3029 = vmatprep.subr.bf16.mxu0 0
    %3030 = vmatpush1.bf16.msra.mxu0 0
    %3031 = vmatprep.subr.bf16.mxu0 0
    %3032 = vmatpush1.bf16.msra.mxu0 0
    %3033 = vmatprep.subr.bf16.mxu0 0
    %3034 = vmatpush1.bf16.msra.mxu0 0
    %3035 = vmatprep.subr.bf16.mxu0 0
    %3036 = vmatpush1.bf16.msra.mxu0 0
    %3037 = vmatprep.subr.bf16.mxu0 0
    %3038 = vmatpush1.bf16.msra.mxu0 0
    %3039 = vmatprep.subr.bf16.mxu0 0
    %3040 = vmatpush1.bf16.msra.mxu0 0
    %3041 = vmatprep.subr.bf16.mxu0 0
    %3042 = vmatpush1.bf16.msra.mxu0 0
    %3043 = vmatprep.subr.bf16.mxu0 0
    %3044 = vmatpush1.bf16.msra.mxu0 0
    %3045 = vmatprep.subr.bf16.mxu0 0
    %3046 = vmatpush1.bf16.msra.mxu0 0
    %3047 = vmatprep.mubr.bf16.mxu0 0
    %3048 = vmatmul.mubr.bf16.gmra.mrb[0].mxu0 %v3013
    %v3049 = vpop.f32.mrb[0].mxu0
    %v3050 = vadd.f32 %v3010, %v3049
    %v3051 = vpop.f32.mrb[0].mxu0
    %v3052 = vpop.f32.mrb[0].mxu0
    %v3053 = vadd.f32 %v3010, %v3052
    %v3054 = vpop.f32.mrb[0].mxu0
    %3055 = vdwg.mxu0
    %v3056 = vpack.c.bf16 %v2929, %v2926
    %v3057 = vpack.c.bf16 %v2937, %v2934
    %v3058 = vpack.c.bf16 %v2996, %v2993
    %v3059 = vpack.c.bf16 %v3053, %v3050
    %v3061 = vsel %vm490, %v3056, 0
    %v3064 = vsel %vm490, %v3057, 0
    %v3067 = vsel %vm490, %v3058, 0
    %3069 = vmatprep.subr.bf16.mxu0 0
    %3070 = vmatpush1.bf16.xpose.msra.mxu0 %v3067
    %3071 = vmatprep.subr.bf16.mxu0 0
    %3072 = vmatpush1.bf16.xpose.msra.mxu0 0
    %3073 = vmatprep.subr.bf16.mxu0 0
    %3074 = vmatpush1.bf16.xpose.msra.mxu0 0
    %3075 = vmatprep.subr.bf16.mxu0 0
    %3076 = vmatpush1.bf16.xpose.msra.mxu0 0
    %3077 = vmatprep.subr.bf16.mxu0 0
    %3078 = vmatpush1.bf16.xpose.msra.mxu0 0
    %3079 = vmatprep.subr.bf16.mxu0 0
    %3080 = vmatpush1.bf16.xpose.msra.mxu0 0
    %3081 = vmatprep.subr.bf16.mxu0 0
    %3082 = vmatpush1.bf16.xpose.msra.mxu0 0
    %3083 = vmatprep.subr.bf16.mxu0 0
    %3084 = vmatpush1.bf16.xpose.msra.mxu0 0
    %3085 = vmatprep.subr.bf16.mxu0 0
    %3086 = vmatpush1.bf16.xpose.msra.mxu0 0
    %3087 = vmatprep.subr.bf16.mxu0 0
    %3088 = vmatpush1.bf16.xpose.msra.mxu0 0
    %3089 = vmatprep.subr.bf16.mxu0 0
    %3090 = vmatpush1.bf16.xpose.msra.mxu0 0
    %3091 = vmatprep.subr.bf16.mxu0 0
    %3092 = vmatpush1.bf16.xpose.msra.mxu0 0
    %3093 = vmatprep.subr.bf16.mxu0 0
    %3094 = vmatpush1.bf16.xpose.msra.mxu0 0
    %3095 = vmatprep.subr.bf16.mxu0 0
    %3096 = vmatpush1.bf16.xpose.msra.mxu0 0
    %3097 = vmatprep.subr.bf16.mxu0 0
    %3098 = vmatpush1.bf16.xpose.msra.mxu0 0
    %3099 = vmatprep.subr.bf16.mxu0 0
    %3100 = vmatpush1.bf16.xpose.msra.mxu0 0
    %3101 = vmatprep.mubr.bf16.mxu0 0
    %3102 = vmatmul.mubr.bf16.gmra.mrb[0].mxu0 %v3061
    %v3103 = vpop.f32.mrb[0].mxu0
    %v3104 = vadd.f32 0.0, %v3103
    %v3105 = vpop.f32.mrb[0].mxu0
    %v3106 = vpop.f32.mrb[0].mxu0
    %v3107 = vadd.f32 0.0, %v3106
    %v3108 = vpop.f32.mrb[0].mxu0
    %3109 = vmatprep.mubr.bf16.mxu0 0
    %3110 = vmatmul.mubr.bf16.gmra.mrb[0].mxu0 %v3064
    %v3111 = vpop.f32.mrb[0].mxu0
    %v3112 = vadd.f32 0.0, %v3111
    %v3113 = vpop.f32.mrb[0].mxu0
    %v3114 = vpop.f32.mrb[0].mxu0
    %v3115 = vadd.f32 0.0, %v3114
    %v3116 = vpop.f32.mrb[0].mxu0
    %3117 = vdwg.mxu0
    %v3118 = vmul.f32 %v3104, 0.25
    %v3119 = vmul.f32 %v3107, 0.25
    %v3120 = vmul.f32 %v3112, 0.25
    %v3121 = vmul.f32 %v3115, 0.25
    %v3122 = vadd.f32 %v3118, %v1525
    %v3123 = vadd.f32 %v3119, %v1526
    %v3124 = vadd.f32 %v3120, %v1527
    %v3125 = vadd.f32 %v3121, %v1528
    %v3126 = vsel %vm1642, %v3122, -inf
    %3127 = vmax.xlane.f32.xlu0 %v3126
    %v3128 = vpop.xlane.xlu0 %3127
    %v3129 = vsel %vm1642, %v3123, -inf
    %3130 = vmax.xlane.f32.xlu0 %v3129
    %v3131 = vpop.xlane.xlu0 %3130
    %v3132 = vsel %vm1642, %v3124, -inf
    %3133 = vmax.xlane.f32.xlu0 %v3132
    %v3134 = vpop.xlane.xlu0 %3133
    %v3135 = vsel %vm1642, %v3125, -inf
    %3136 = vmax.xlane.f32.xlu0 %v3135
    %v3137 = vpop.xlane.xlu0 %3136
    %v3138 = vsub.f32 %v3122, %v3128
    %v3139 = vsub.f32 %v3123, %v3131
    %v3140 = vsub.f32 %v3124, %v3134
    %v3141 = vsub.f32 %v3125, %v3137
    %v3142 = vmul.f32 %v3138, 1.442695
    %v3143 = vpow.pop %v3142
    %v3144 = vmul.f32 %v3139, 1.442695
    %v3145 = vpow.pop %v3144
    %v3146 = vmul.f32 %v3140, 1.442695
    %v3147 = vpow.pop %v3146
    %v3148 = vmul.f32 %v3141, 1.442695
    %v3149 = vpow.pop %v3148
    %v3150 = vsel %vm1642, %v3143, 0.0
    %3151 = vadd.xlane.f32.xlu0 %v3150
    %v3152 = vpop.xlane.xlu0 %3151
    %v3153 = vsel %vm1642, %v3145, 0.0
    %3154 = vadd.xlane.f32.xlu0 %v3153
    %v3155 = vpop.xlane.xlu0 %3154
    %v3156 = vsel %vm1642, %v3147, 0.0
    %3157 = vadd.xlane.f32.xlu0 %v3156
    %v3158 = vpop.xlane.xlu0 %3157
    %v3159 = vsel %vm1642, %v3149, 0.0
    %3160 = vadd.xlane.f32.xlu0 %v3159
    %v3161 = vpop.xlane.xlu0 %3160
    %v3162 = vrcp.pop %v3152
    %v3163 = vrcp.pop %v3155
    %v3164 = vrcp.pop %v3158
    %v3165 = vrcp.pop %v3161
    %v3166 = vmul.f32 %v3143, %v3162
    %v3167 = vmul.f32 %v3145, %v3163
    %v3168 = vmul.f32 %v3147, %v3164
    %v3169 = vmul.f32 %v3149, %v3165
    %v3170 = vpack.c.bf16 %v3167, %v3166
    %v3171 = vpack.c.bf16 %v3169, %v3168
    %v3173 = vsel %vm1642, %v3170, 0
    %v3176 = vsel %vm1642, %v3171, 0
    %v3179 = vsel %vm1493, %v3059, 0
    %3181 = vmatprep.subr.bf16.mxu0 0
    %3182 = vmatpush1.bf16.msra.mxu0 %v3179
    %3183 = vmatprep.subr.bf16.mxu0 0
    %3184 = vmatpush1.bf16.msra.mxu0 0
    %3185 = vmatprep.subr.bf16.mxu0 0
    %3186 = vmatpush1.bf16.msra.mxu0 0
    %3187 = vmatprep.subr.bf16.mxu0 0
    %3188 = vmatpush1.bf16.msra.mxu0 0
    %3189 = vmatprep.subr.bf16.mxu0 0
    %3190 = vmatpush1.bf16.msra.mxu0 0
    %3191 = vmatprep.subr.bf16.mxu0 0
    %3192 = vmatpush1.bf16.msra.mxu0 0
    %3193 = vmatprep.subr.bf16.mxu0 0
    %3194 = vmatpush1.bf16.msra.mxu0 0
    %3195 = vmatprep.subr.bf16.mxu0 0
    %3196 = vmatpush1.bf16.msra.mxu0 0
    %3197 = vmatprep.subr.bf16.mxu0 0
    %3198 = vmatpush1.bf16.msra.mxu0 0
    %3199 = vmatprep.subr.bf16.mxu0 0
    %3200 = vmatpush1.bf16.msra.mxu0 0
    %3201 = vmatprep.subr.bf16.mxu0 0
    %3202 = vmatpush1.bf16.msra.mxu0 0
    %3203 = vmatprep.subr.bf16.mxu0 0
    %3204 = vmatpush1.bf16.msra.mxu0 0
    %3205 = vmatprep.subr.bf16.mxu0 0
    %3206 = vmatpush1.bf16.msra.mxu0 0
    %3207 = vmatprep.subr.bf16.mxu0 0
    %3208 = vmatpush1.bf16.msra.mxu0 0
    %3209 = vmatprep.subr.bf16.mxu0 0
    %3210 = vmatpush1.bf16.msra.mxu0 0
    %3211 = vmatprep.subr.bf16.mxu0 0
    %3212 = vmatpush1.bf16.msra.mxu0 0
    %3213 = vmatprep.mubr.bf16.mxu0 0
    %3214 = vmatmul.mubr.bf16.gmra.mrb[0].mxu0 %v3173
    %v3215 = vpop.f32.mrb[0].mxu0
    %v3216 = vadd.f32 0.0, %v3215
    %v3217 = vpop.f32.mrb[0].mxu0
    %v3218 = vpop.f32.mrb[0].mxu0
    %v3219 = vadd.f32 0.0, %v3218
    %v3220 = vpop.f32.mrb[0].mxu0
    %3221 = vmatprep.mubr.bf16.mxu0 0
    %3222 = vmatmul.mubr.bf16.gmra.mrb[0].mxu0 %v3176
    %v3223 = vpop.f32.mrb[0].mxu0
    %v3224 = vadd.f32 0.0, %v3223
    %v3225 = vpop.f32.mrb[0].mxu0
    %v3226 = vpop.f32.mrb[0].mxu0
    %v3227 = vadd.f32 0.0, %v3226
    %v3228 = vpop.f32.mrb[0].mxu0
    %3229 = vdwg.mxu0
    %v3230 = vpack.c.bf16 %v3219, %v3216
    %v3231 = vpack.c.bf16 %v3227, %v3224
    %3232 = vrot.lane.b32.xlu0 %v2883, 32
    %v3233 = vpop.permute.xlu0 %3232
    %v3236 = vsel %vm490, %v3230, 0
    %v3239 = vsel %vm490, %v3231, 0
    %3241 = vmatprep.subr.bf16.mxu0 0
    %3242 = vmatpush1.bf16.msra.mxu0 %v3233
    %3243 = vmatprep.subr.bf16.mxu0 0
    %3244 = vmatpush1.bf16.msra.mxu0 0
    %3245 = vmatprep.subr.bf16.mxu0 0
    %3246 = vmatpush1.bf16.msra.mxu0 0
    %3247 = vmatprep.subr.bf16.mxu0 0
    %3248 = vmatpush1.bf16.msra.mxu0 0
    %3249 = vmatprep.subr.bf16.mxu0 0
    %3250 = vmatpush1.bf16.msra.mxu0 0
    %3251 = vmatprep.subr.bf16.mxu0 0
    %3252 = vmatpush1.bf16.msra.mxu0 0
    %3253 = vmatprep.subr.bf16.mxu0 0
    %3254 = vmatpush1.bf16.msra.mxu0 0
    %3255 = vmatprep.subr.bf16.mxu0 0
    %3256 = vmatpush1.bf16.msra.mxu0 0
    %3257 = vmatprep.subr.bf16.mxu0 0
    %3258 = vmatpush1.bf16.msra.mxu0 0
    %3259 = vmatprep.subr.bf16.mxu0 0
    %3260 = vmatpush1.bf16.msra.mxu0 0
    %3261 = vmatprep.subr.bf16.mxu0 0
    %3262 = vmatpush1.bf16.msra.mxu0 0
    %3263 = vmatprep.subr.bf16.mxu0 0
    %3264 = vmatpush1.bf16.msra.mxu0 0
    %3265 = vmatprep.subr.bf16.mxu0 0
    %3266 = vmatpush1.bf16.msra.mxu0 0
    %3267 = vmatprep.subr.bf16.mxu0 0
    %3268 = vmatpush1.bf16.msra.mxu0 0
    %3269 = vmatprep.subr.bf16.mxu0 0
    %3270 = vmatpush1.bf16.msra.mxu0 0
    %3271 = vmatprep.subr.bf16.mxu0 0
    %3272 = vmatpush1.bf16.msra.mxu0 0
    %3273 = vmatprep.mubr.bf16.mxu0 0
    %3274 = vmatmul.mubr.bf16.gmra.mrb[0].mxu0 %v3236
    %v3275 = vpop.f32.mrb[0].mxu0
    %v3276 = vadd.f32 0.0, %v3275
    %v3277 = vpop.f32.mrb[0].mxu0
    %v3278 = vpop.f32.mrb[0].mxu0
    %v3279 = vadd.f32 0.0, %v3278
    %v3280 = vpop.f32.mrb[0].mxu0
    %3281 = vmatprep.mubr.bf16.mxu0 0
    %3282 = vmatmul.mubr.bf16.gmra.mrb[0].mxu0 %v3239
    %v3283 = vpop.f32.mrb[0].mxu0
    %v3284 = vadd.f32 0.0, %v3283
    %v3285 = vpop.f32.mrb[0].mxu0
    %v3286 = vpop.f32.mrb[0].mxu0
    %v3287 = vadd.f32 0.0, %v3286
    %v3288 = vpop.f32.mrb[0].mxu0
    %3289 = vdwg.mxu0
    %3294 = vrot.lane.b32.xlu0 %v3276, 96
    %v3295 = vpop.permute.xlu0 %3294
    %3296 = vrot.lane.b32.xlu0 %v3279, 96
    %v3297 = vpop.permute.xlu0 %3296
    %3298 = vrot.lane.b32.xlu0 %v3284, 96
    %v3299 = vpop.permute.xlu0 %3298
    %3300 = vrot.lane.b32.xlu0 %v3287, 96
    %v3301 = vpop.permute.xlu0 %3300
    %v3306 = vadd.f32 %v2889, %v3295
    %v3307 = vadd.f32 %v2889, %v3297
    %v3308 = vadd.f32 %v2889, %v3299
    %v3309 = vadd.f32 %v2889, %v3301
    %3312 = vrot.lane.b32.xlu0 %v3056, 112
    %v3313 = vpop.permute.xlu0 %3312
    %3314 = vrot.lane.b32.xlu0 %v3057, 112
    %v3315 = vpop.permute.xlu0 %3314
    %3317 = vrot.lane.b32.xlu0 %v3058, 112
    %v3318 = vpop.permute.xlu0 %3317
    %v3320 = vsel %vm490, %v3313, 0
    %v3323 = vsel %vm490, %v3315, 0
    %v3326 = vsel %vm490, %v3318, 0
    %3328 = vmatprep.subr.bf16.mxu0 0
    %3329 = vmatpush1.bf16.xpose.msra.mxu0 %v3326
    %3330 = vmatprep.subr.bf16.mxu0 0
    %3331 = vmatpush1.bf16.xpose.msra.mxu0 0
    %3332 = vmatprep.subr.bf16.mxu0 0
    %3333 = vmatpush1.bf16.xpose.msra.mxu0 0
    %3334 = vmatprep.subr.bf16.mxu0 0
    %3335 = vmatpush1.bf16.xpose.msra.mxu0 0
    %3336 = vmatprep.subr.bf16.mxu0 0
    %3337 = vmatpush1.bf16.xpose.msra.mxu0 0
    %3338 = vmatprep.subr.bf16.mxu0 0
    %3339 = vmatpush1.bf16.xpose.msra.mxu0 0
    %3340 = vmatprep.subr.bf16.mxu0 0
    %3341 = vmatpush1.bf16.xpose.msra.mxu0 0
    %3342 = vmatprep.subr.bf16.mxu0 0
    %3343 = vmatpush1.bf16.xpose.msra.mxu0 0
    %3344 = vmatprep.subr.bf16.mxu0 0
    %3345 = vmatpush1.bf16.xpose.msra.mxu0 0
    %3346 = vmatprep.subr.bf16.mxu0 0
    %3347 = vmatpush1.bf16.xpose.msra.mxu0 0
    %3348 = vmatprep.subr.bf16.mxu0 0
    %3349 = vmatpush1.bf16.xpose.msra.mxu0 0
    %3350 = vmatprep.subr.bf16.mxu0 0
    %3351 = vmatpush1.bf16.xpose.msra.mxu0 0
    %3352 = vmatprep.subr.bf16.mxu0 0
    %3353 = vmatpush1.bf16.xpose.msra.mxu0 0
    %3354 = vmatprep.subr.bf16.mxu0 0
    %3355 = vmatpush1.bf16.xpose.msra.mxu0 0
    %3356 = vmatprep.subr.bf16.mxu0 0
    %3357 = vmatpush1.bf16.xpose.msra.mxu0 0
    %3358 = vmatprep.subr.bf16.mxu0 0
    %3359 = vmatpush1.bf16.xpose.msra.mxu0 0
    %3360 = vmatprep.mubr.bf16.mxu0 0
    %3361 = vmatmul.mubr.bf16.gmra.mrb[0].mxu0 %v3320
    %v3362 = vpop.f32.mrb[0].mxu0
    %v3363 = vadd.f32 0.0, %v3362
    %v3364 = vpop.f32.mrb[0].mxu0
    %v3365 = vpop.f32.mrb[0].mxu0
    %v3366 = vadd.f32 0.0, %v3365
    %v3367 = vpop.f32.mrb[0].mxu0
    %3368 = vmatprep.mubr.bf16.mxu0 0
    %3369 = vmatmul.mubr.bf16.gmra.mrb[0].mxu0 %v3323
    %v3370 = vpop.f32.mrb[0].mxu0
    %v3371 = vadd.f32 0.0, %v3370
    %v3372 = vpop.f32.mrb[0].mxu0
    %v3373 = vpop.f32.mrb[0].mxu0
    %v3374 = vadd.f32 0.0, %v3373
    %v3375 = vpop.f32.mrb[0].mxu0
    %3376 = vdwg.mxu0
    %v3377 = vmul.f32 %v3363, 0.25
    %v3378 = vmul.f32 %v3366, 0.25
    %v3379 = vmul.f32 %v3371, 0.25
    %v3380 = vmul.f32 %v3374, 0.25
    %v3381 = vadd.f32 %v3377, %v1525
    %v3382 = vadd.f32 %v3378, %v1526
    %v3383 = vadd.f32 %v3379, %v1527
    %v3384 = vadd.f32 %v3380, %v1528
    %v3385 = vsel %vm1642, %v3381, -inf
    %3386 = vmax.xlane.f32.xlu0 %v3385
    %v3387 = vpop.xlane.xlu0 %3386
    %v3388 = vsel %vm1642, %v3382, -inf
    %3389 = vmax.xlane.f32.xlu0 %v3388
    %v3390 = vpop.xlane.xlu0 %3389
    %v3391 = vsel %vm1642, %v3383, -inf
    %3392 = vmax.xlane.f32.xlu0 %v3391
    %v3393 = vpop.xlane.xlu0 %3392
    %v3394 = vsel %vm1642, %v3384, -inf
    %3395 = vmax.xlane.f32.xlu0 %v3394
    %v3396 = vpop.xlane.xlu0 %3395
    %v3397 = vsub.f32 %v3381, %v3387
    %v3398 = vsub.f32 %v3382, %v3390
    %v3399 = vsub.f32 %v3383, %v3393
    %v3400 = vsub.f32 %v3384, %v3396
    %v3401 = vmul.f32 %v3397, 1.442695
    %v3402 = vpow.pop %v3401
    %v3403 = vmul.f32 %v3398, 1.442695
    %v3404 = vpow.pop %v3403
    %v3405 = vmul.f32 %v3399, 1.442695
    %v3406 = vpow.pop %v3405
    %v3407 = vmul.f32 %v3400, 1.442695
    %v3408 = vpow.pop %v3407
    %v3409 = vsel %vm1642, %v3402, 0.0
    %3410 = vadd.xlane.f32.xlu0 %v3409
    %v3411 = vpop.xlane.xlu0 %3410
    %v3412 = vsel %vm1642, %v3404, 0.0
    %3413 = vadd.xlane.f32.xlu0 %v3412
    %v3414 = vpop.xlane.xlu0 %3413
    %v3415 = vsel %vm1642, %v3406, 0.0
    %3416 = vadd.xlane.f32.xlu0 %v3415
    %v3417 = vpop.xlane.xlu0 %3416
    %v3418 = vsel %vm1642, %v3408, 0.0
    %3419 = vadd.xlane.f32.xlu0 %v3418
    %v3420 = vpop.xlane.xlu0 %3419
    %v3421 = vrcp.pop %v3411
    %v3422 = vrcp.pop %v3414
    %v3423 = vrcp.pop %v3417
    %v3424 = vrcp.pop %v3420
    %v3425 = vmul.f32 %v3402, %v3421
    %v3426 = vmul.f32 %v3404, %v3422
    %v3427 = vmul.f32 %v3406, %v3423
    %v3428 = vmul.f32 %v3408, %v3424
    %v3429 = vpack.c.bf16 %v3426, %v3425
    %v3430 = vpack.c.bf16 %v3428, %v3427
    %3432 = vrot.lane.b32.xlu0 %v3059, 112
    %v3433 = vpop.permute.xlu0 %3432
    %v3435 = vsel %vm1642, %v3429, 0
    %v3438 = vsel %vm1642, %v3430, 0
    %v3441 = vsel %vm1493, %v3433, 0
    %3443 = vmatprep.subr.bf16.mxu0 0
    %3444 = vmatpush1.bf16.msra.mxu0 %v3441
    %3445 = vmatprep.subr.bf16.mxu0 0
    %3446 = vmatpush1.bf16.msra.mxu0 0
    %3447 = vmatprep.subr.bf16.mxu0 0
    %3448 = vmatpush1.bf16.msra.mxu0 0
    %3449 = vmatprep.subr.bf16.mxu0 0
    %3450 = vmatpush1.bf16.msra.mxu0 0
    %3451 = vmatprep.subr.bf16.mxu0 0
    %3452 = vmatpush1.bf16.msra.mxu0 0
    %3453 = vmatprep.subr.bf16.mxu0 0
    %3454 = vmatpush1.bf16.msra.mxu0 0
    %3455 = vmatprep.subr.bf16.mxu0 0
    %3456 = vmatpush1.bf16.msra.mxu0 0
    %3457 = vmatprep.subr.bf16.mxu0 0
    %3458 = vmatpush1.bf16.msra.mxu0 0
    %3459 = vmatprep.subr.bf16.mxu0 0
    %3460 = vmatpush1.bf16.msra.mxu0 0
    %3461 = vmatprep.subr.bf16.mxu0 0
    %3462 = vmatpush1.bf16.msra.mxu0 0
    %3463 = vmatprep.subr.bf16.mxu0 0
    %3464 = vmatpush1.bf16.msra.mxu0 0
    %3465 = vmatprep.subr.bf16.mxu0 0
    %3466 = vmatpush1.bf16.msra.mxu0 0
    %3467 = vmatprep.subr.bf16.mxu0 0
    %3468 = vmatpush1.bf16.msra.mxu0 0
    %3469 = vmatprep.subr.bf16.mxu0 0
    %3470 = vmatpush1.bf16.msra.mxu0 0
    %3471 = vmatprep.subr.bf16.mxu0 0
    %3472 = vmatpush1.bf16.msra.mxu0 0
    %3473 = vmatprep.subr.bf16.mxu0 0
    %3474 = vmatpush1.bf16.msra.mxu0 0
    %3475 = vmatprep.mubr.bf16.mxu0 0
    %3476 = vmatmul.mubr.bf16.gmra.mrb[0].mxu0 %v3435
    %v3477 = vpop.f32.mrb[0].mxu0
    %v3478 = vadd.f32 0.0, %v3477
    %v3479 = vpop.f32.mrb[0].mxu0
    %v3480 = vpop.f32.mrb[0].mxu0
    %v3481 = vadd.f32 0.0, %v3480
    %v3482 = vpop.f32.mrb[0].mxu0
    %3483 = vmatprep.mubr.bf16.mxu0 0
    %3484 = vmatmul.mubr.bf16.gmra.mrb[0].mxu0 %v3438
    %v3485 = vpop.f32.mrb[0].mxu0
    %v3486 = vadd.f32 0.0, %v3485
    %v3487 = vpop.f32.mrb[0].mxu0
    %v3488 = vpop.f32.mrb[0].mxu0
    %v3489 = vadd.f32 0.0, %v3488
    %v3490 = vpop.f32.mrb[0].mxu0
    %3491 = vdwg.mxu0
    %v3492 = vpack.c.bf16 %v3481, %v3478
    %v3493 = vpack.c.bf16 %v3489, %v3486
    %3494 = vrot.lane.b32.xlu0 %v2884, 32
    %v3495 = vpop.permute.xlu0 %3494
    %v3498 = vsel %vm490, %v3492, 0
    %v3501 = vsel %vm490, %v3493, 0
    %3503 = vmatprep.subr.bf16.mxu0 0
    %3504 = vmatpush1.bf16.msra.mxu0 %v3495
    %3505 = vmatprep.subr.bf16.mxu0 0
    %3506 = vmatpush1.bf16.msra.mxu0 0
    %3507 = vmatprep.subr.bf16.mxu0 0
    %3508 = vmatpush1.bf16.msra.mxu0 0
    %3509 = vmatprep.subr.bf16.mxu0 0
    %3510 = vmatpush1.bf16.msra.mxu0 0
    %3511 = vmatprep.subr.bf16.mxu0 0
    %3512 = vmatpush1.bf16.msra.mxu0 0
    %3513 = vmatprep.subr.bf16.mxu0 0
    %3514 = vmatpush1.bf16.msra.mxu0 0
    %3515 = vmatprep.subr.bf16.mxu0 0
    %3516 = vmatpush1.bf16.msra.mxu0 0
    %3517 = vmatprep.subr.bf16.mxu0 0
    %3518 = vmatpush1.bf16.msra.mxu0 0
    %3519 = vmatprep.subr.bf16.mxu0 0
    %3520 = vmatpush1.bf16.msra.mxu0 0
    %3521 = vmatprep.subr.bf16.mxu0 0
    %3522 = vmatpush1.bf16.msra.mxu0 0
    %3523 = vmatprep.subr.bf16.mxu0 0
    %3524 = vmatpush1.bf16.msra.mxu0 0
    %3525 = vmatprep.subr.bf16.mxu0 0
    %3526 = vmatpush1.bf16.msra.mxu0 0
    %3527 = vmatprep.subr.bf16.mxu0 0
    %3528 = vmatpush1.bf16.msra.mxu0 0
    %3529 = vmatprep.subr.bf16.mxu0 0
    %3530 = vmatpush1.bf16.msra.mxu0 0
    %3531 = vmatprep.subr.bf16.mxu0 0
    %3532 = vmatpush1.bf16.msra.mxu0 0
    %3533 = vmatprep.subr.bf16.mxu0 0
    %3534 = vmatpush1.bf16.msra.mxu0 0
    %3535 = vmatprep.mubr.bf16.mxu0 0
    %3536 = vmatmul.mubr.bf16.gmra.mrb[0].mxu0 %v3498
    %v3537 = vpop.f32.mrb[0].mxu0
    %v3538 = vadd.f32 0.0, %v3537
    %v3539 = vpop.f32.mrb[0].mxu0
    %v3540 = vpop.f32.mrb[0].mxu0
    %v3541 = vadd.f32 0.0, %v3540
    %v3542 = vpop.f32.mrb[0].mxu0
    %3543 = vmatprep.mubr.bf16.mxu0 0
    %3544 = vmatmul.mubr.bf16.gmra.mrb[0].mxu0 %v3501
    %v3545 = vpop.f32.mrb[0].mxu0
    %v3546 = vadd.f32 0.0, %v3545
    %v3547 = vpop.f32.mrb[0].mxu0
    %v3548 = vpop.f32.mrb[0].mxu0
    %v3549 = vadd.f32 0.0, %v3548
    %v3550 = vpop.f32.mrb[0].mxu0
    %3551 = vdwg.mxu0
    %3556 = vrot.lane.b32.xlu0 %v3538, 96
    %v3557 = vpop.permute.xlu0 %3556
    %3558 = vrot.lane.b32.xlu0 %v3541, 96
    %v3559 = vpop.permute.xlu0 %3558
    %3560 = vrot.lane.b32.xlu0 %v3546, 96
    %v3561 = vpop.permute.xlu0 %3560
    %3562 = vrot.lane.b32.xlu0 %v3549, 96
    %v3563 = vpop.permute.xlu0 %3562
    %v3568 = vadd.f32 %v3306, %v3557
    %v3569 = vadd.f32 %v3307, %v3559
    %v3570 = vadd.f32 %v3308, %v3561
    %v3571 = vadd.f32 %v3309, %v3563
    %3576 = vrot.lane.b32.xlu0 %v3568, 32
    %v3577 = vpop.permute.xlu0 %3576
    %3578 = vrot.lane.b32.xlu0 %v3569, 32
    %v3579 = vpop.permute.xlu0 %3578
    %3580 = vrot.lane.b32.xlu0 %v3570, 32
    %v3581 = vpop.permute.xlu0 %3580
    %3582 = vrot.lane.b32.xlu0 %v3571, 32
    %v3583 = vpop.permute.xlu0 %3582
    %v3588 = vadd.f32 %v1504, %v3577
    %v3589 = vadd.f32 %v1505, %v3579
    %v3590 = vadd.f32 %v1506, %v3581
    %v3591 = vadd.f32 %v1507, %v3583
    %v3592 = vsel %vm347, %v3588, 0.0
    %3593 = vadd.xlane.f32.xlu0 %v3592
    %v3594 = vpop.xlane.xlu0 %3593
    %v3595 = vsel %vm347, %v3589, 0.0
    %3596 = vadd.xlane.f32.xlu0 %v3595
    %v3597 = vpop.xlane.xlu0 %3596
    %v3598 = vsel %vm347, %v3590, 0.0
    %3599 = vadd.xlane.f32.xlu0 %v3598
    %v3600 = vpop.xlane.xlu0 %3599
    %v3601 = vsel %vm347, %v3591, 0.0
    %3602 = vadd.xlane.f32.xlu0 %v3601
    %v3603 = vpop.xlane.xlu0 %3602
    %v3604 = vmul.f32 %v3594, %v360
    %v3605 = vmul.f32 %v3597, %v360
    %v3606 = vmul.f32 %v3600, %v360
    %v3607 = vmul.f32 %v3603, %v360
    %v3608 = vsub.f32 %v3588, %v3604
    %v3609 = vsub.f32 %v3589, %v3605
    %v3610 = vsub.f32 %v3590, %v3606
    %v3611 = vsub.f32 %v3591, %v3607
    %v3612 = vmul.f32 %v3608, %v3608
    %v3613 = vmul.f32 %v3609, %v3609
    %v3614 = vmul.f32 %v3610, %v3610
    %v3615 = vmul.f32 %v3611, %v3611
    %v3616 = vsel %vm347, %v3612, 0.0
    %3617 = vadd.xlane.f32.xlu0 %v3616
    %v3618 = vpop.xlane.xlu0 %3617
    %v3619 = vsel %vm347, %v3613, 0.0
    %3620 = vadd.xlane.f32.xlu0 %v3619
    %v3621 = vpop.xlane.xlu0 %3620
    %v3622 = vsel %vm347, %v3614, 0.0
    %3623 = vadd.xlane.f32.xlu0 %v3622
    %v3624 = vpop.xlane.xlu0 %3623
    %v3625 = vsel %vm347, %v3615, 0.0
    %3626 = vadd.xlane.f32.xlu0 %v3625
    %v3627 = vpop.xlane.xlu0 %3626
    %v3628 = vmul.f32 %v3618, %v360
    %v3629 = vmul.f32 %v3621, %v360
    %v3630 = vmul.f32 %v3624, %v360
    %v3631 = vmul.f32 %v3627, %v360
    %v3632 = vadd.f32 %v3628, 1e-05
    %v3633 = vadd.f32 %v3629, 1e-05
    %v3634 = vadd.f32 %v3630, 1e-05
    %v3635 = vadd.f32 %v3631, 1e-05
    %v3636 = vrsqrt.pop %v3632
    %v3637 = vrsqrt.pop %v3633
    %v3638 = vrsqrt.pop %v3634
    %v3639 = vrsqrt.pop %v3635
    %v3640 = vmul.f32 %v3608, %v3636
    %v3641 = vmul.f32 %v3609, %v3637
    %v3642 = vmul.f32 %v3610, %v3638
    %v3643 = vmul.f32 %v3611, %v3639
    %v3644 = vlaneseq
    %v3645 = vshrl.u32 %v3644, 7
    %v3646 = vsub.s32 3, %v3645
    %v3647 = vrot.slane %v1508, %v3646
    %v3648 = vmul.f32 %v3640, %v3647
    %v3649 = vmul.f32 %v3641, %v3647
    %v3650 = vmul.f32 %v3642, %v3647
    %v3651 = vmul.f32 %v3643, %v3647
    %v3652 = vlaneseq
    %v3653 = vshrl.u32 %v3652, 7
    %v3654 = vsub.s32 3, %v3653
    %v3655 = vrot.slane %v1509, %v3654
    %v3656 = vadd.f32 %v3648, %v3655
    %v3657 = vadd.f32 %v3649, %v3655
    %v3658 = vadd.f32 %v3650, %v3655
    %v3659 = vadd.f32 %v3651, %v3655
    %v3660 = vadd.f32 %v3656, %v1425
    %v3661 = vadd.f32 %v3657, %v1426
    %v3662 = vadd.f32 %v3658, %v1425
    %v3663 = vadd.f32 %v3659, %v1426
    %v3664 = vld [vmem:[%s53] sm:$0xff]
    %v3665 = vld [vmem:[%s53 + $0x8] sm:$0xff]
    %v3666 = vld [vmem:[%s53 + $0x10] sm:$0xff]
    %v3667 = vld [vmem:[%s53 + $0x18] sm:$0xff]
    %v3668 = vld [vmem:[%s55] sm:$0x1]
    %v3669 = vpack.c.bf16 %v3665, %v3664
    %v3670 = vpack.c.bf16 %v3667, %v3666
    %v3672 = vlaneseq
    %v3673 = vshrl.u32 %v3672, 7
    %v3674 = vsub.s32 0, %v3673
    %v3675 = vrot.slane %v3668, %v3674
    %3677 = vmatprep.subr.bf16.mxu0 0
    %3678 = vmatpush1.bf16.msra.mxu0 %v3669
    %3679 = vmatprep.subr.bf16.mxu0 0
    %3680 = vmatpush1.bf16.msra.mxu0 %v3670
    %3681 = vmatprep.subr.bf16.mxu0 0
    %3682 = vmatpush1.bf16.msra.mxu0 0
    %3683 = vmatprep.subr.bf16.mxu0 0
    %3684 = vmatpush1.bf16.msra.mxu0 0
    %3685 = vmatprep.subr.bf16.mxu0 0
    %3686 = vmatpush1.bf16.msra.mxu0 0
    %3687 = vmatprep.subr.bf16.mxu0 0
    %3688 = vmatpush1.bf16.msra.mxu0 0
    %3689 = vmatprep.subr.bf16.mxu0 0
    %3690 = vmatpush1.bf16.msra.mxu0 0
    %3691 = vmatprep.subr.bf16.mxu0 0
    %3692 = vmatpush1.bf16.msra.mxu0 0
    %3693 = vmatprep.subr.bf16.mxu0 0
    %3694 = vmatpush1.bf16.msra.mxu0 0
    %3695 = vmatprep.subr.bf16.mxu0 0
    %3696 = vmatpush1.bf16.msra.mxu0 0
    %3697 = vmatprep.subr.bf16.mxu0 0
    %3698 = vmatpush1.bf16.msra.mxu0 0
    %3699 = vmatprep.subr.bf16.mxu0 0
    %3700 = vmatpush1.bf16.msra.mxu0 0
    %3701 = vmatprep.subr.bf16.mxu0 0
    %3702 = vmatpush1.bf16.msra.mxu0 0
    %3703 = vmatprep.subr.bf16.mxu0 0
    %3704 = vmatpush1.bf16.msra.mxu0 0
    %3705 = vmatprep.subr.bf16.mxu0 0
    %3706 = vmatpush1.bf16.msra.mxu0 0
    %3707 = vmatprep.subr.bf16.mxu0 0
    %3708 = vmatpush1.bf16.msra.mxu0 0
    %3709 = vmatprep.mubr.bf16.mxu0 0
    %3710 = vmatmul.mubr.bf16.gmra.mrb[0].mxu0 %v2956
    %v3711 = vpop.f32.mrb[0].mxu0
    %v3712 = vadd.f32 %v3675, %v3711
    %v3713 = vpop.f32.mrb[0].mxu0
    %v3714 = vpop.f32.mrb[0].mxu0
    %v3715 = vadd.f32 %v3675, %v3714
    %v3716 = vpop.f32.mrb[0].mxu0
    %3717 = vdwg.mxu0
    %v3718 = vpack.c.bf16 %v3661, %v3660
    %v3719 = vpack.c.bf16 %v3663, %v3662
    %3722 = vrot.lane.b32.xlu0 %v3669, 96
    %v3723 = vpop.permute.xlu0 %3722
    %3724 = vrot.lane.b32.xlu0 %v3670, 96
    %v3725 = vpop.permute.xlu0 %3724
    %3728 = vrot.lane.b32.xlu0 %v3675, 96
    %v3729 = vpop.permute.xlu0 %3728
    %v3732 = vsel %vm347, %v3718, 0
    %v3735 = vsel %vm347, %v3719, 0
    %3737 = vmatprep.subr.bf16.mxu0 0
    %3738 = vmatpush1.bf16.msra.mxu0 %v3723
    %3739 = vmatprep.subr.bf16.mxu0 0
    %3740 = vmatpush1.bf16.msra.mxu0 %v3725
    %3741 = vmatprep.subr.bf16.mxu0 0
    %3742 = vmatpush1.bf16.msra.mxu0 0
    %3743 = vmatprep.subr.bf16.mxu0 0
    %3744 = vmatpush1.bf16.msra.mxu0 0
    %3745 = vmatprep.subr.bf16.mxu0 0
    %3746 = vmatpush1.bf16.msra.mxu0 0
    %3747 = vmatprep.subr.bf16.mxu0 0
    %3748 = vmatpush1.bf16.msra.mxu0 0
    %3749 = vmatprep.subr.bf16.mxu0 0
    %3750 = vmatpush1.bf16.msra.mxu0 0
    %3751 = vmatprep.subr.bf16.mxu0 0
    %3752 = vmatpush1.bf16.msra.mxu0 0
    %3753 = vmatprep.subr.bf16.mxu0 0
    %3754 = vmatpush1.bf16.msra.mxu0 0
    %3755 = vmatprep.subr.bf16.mxu0 0
    %3756 = vmatpush1.bf16.msra.mxu0 0
    %3757 = vmatprep.subr.bf16.mxu0 0
    %3758 = vmatpush1.bf16.msra.mxu0 0
    %3759 = vmatprep.subr.bf16.mxu0 0
    %3760 = vmatpush1.bf16.msra.mxu0 0
    %3761 = vmatprep.subr.bf16.mxu0 0
    %3762 = vmatpush1.bf16.msra.mxu0 0
    %3763 = vmatprep.subr.bf16.mxu0 0
    %3764 = vmatpush1.bf16.msra.mxu0 0
    %3765 = vmatprep.subr.bf16.mxu0 0
    %3766 = vmatpush1.bf16.msra.mxu0 0
    %3767 = vmatprep.subr.bf16.mxu0 0
    %3768 = vmatpush1.bf16.msra.mxu0 0
    %3769 = vmatprep.mubr.bf16.mxu0 0
    %3770 = vmatmul.mubr.bf16.gmra.mrb[0].mxu0 %v3732
    %v3771 = vpop.f32.mrb[0].mxu0
    %v3772 = vadd.f32 %v3729, %v3771
    %v3773 = vpop.f32.mrb[0].mxu0
    %v3774 = vpop.f32.mrb[0].mxu0
    %v3775 = vadd.f32 %v3729, %v3774
    %v3776 = vpop.f32.mrb[0].mxu0
    %3777 = vmatprep.mubr.bf16.mxu0 0
    %3778 = vmatmul.mubr.bf16.gmra.mrb[0].mxu0 %v3735
    %v3779 = vpop.f32.mrb[0].mxu0
    %v3780 = vadd.f32 %v3729, %v3779
    %v3781 = vpop.f32.mrb[0].mxu0
    %v3782 = vpop.f32.mrb[0].mxu0
    %v3783 = vadd.f32 %v3729, %v3782
    %v3784 = vpop.f32.mrb[0].mxu0
    %3785 = vdwg.mxu0
    %v3786 = vpack.c.bf16 %v3657, %v3656
    %v3787 = vpack.c.bf16 %v3659, %v3658
    %3788 = vrot.lane.b32.xlu0 %v3669, 64
    %v3789 = vpop.permute.xlu0 %3788
    %3790 = vrot.lane.b32.xlu0 %v3670, 64
    %v3791 = vpop.permute.xlu0 %3790
    %3794 = vrot.lane.b32.xlu0 %v3675, 64
    %v3795 = vpop.permute.xlu0 %3794
    %v3798 = vsel %vm347, %v3786, 0
    %v3801 = vsel %vm347, %v3787, 0
    %3803 = vmatprep.subr.bf16.mxu0 0
    %3804 = vmatpush1.bf16.msra.mxu0 %v3789
    %3805 = vmatprep.subr.bf16.mxu0 0
    %3806 = vmatpush1.bf16.msra.mxu0 %v3791
    %3807 = vmatprep.subr.bf16.mxu0 0
    %3808 = vmatpush1.bf16.msra.mxu0 0
    %3809 = vmatprep.subr.bf16.mxu0 0
    %3810 = vmatpush1.bf16.msra.mxu0 0
    %3811 = vmatprep.subr.bf16.mxu0 0
    %3812 = vmatpush1.bf16.msra.mxu0 0
    %3813 = vmatprep.subr.bf16.mxu0 0
    %3814 = vmatpush1.bf16.msra.mxu0 0
    %3815 = vmatprep.subr.bf16.mxu0 0
    %3816 = vmatpush1.bf16.msra.mxu0 0
    %3817 = vmatprep.subr.bf16.mxu0 0
    %3818 = vmatpush1.bf16.msra.mxu0 0
    %3819 = vmatprep.subr.bf16.mxu0 0
    %3820 = vmatpush1.bf16.msra.mxu0 0
    %3821 = vmatprep.subr.bf16.mxu0 0
    %3822 = vmatpush1.bf16.msra.mxu0 0
    %3823 = vmatprep.subr.bf16.mxu0 0
    %3824 = vmatpush1.bf16.msra.mxu0 0
    %3825 = vmatprep.subr.bf16.mxu0 0
    %3826 = vmatpush1.bf16.msra.mxu0 0
    %3827 = vmatprep.subr.bf16.mxu0 0
    %3828 = vmatpush1.bf16.msra.mxu0 0
    %3829 = vmatprep.subr.bf16.mxu0 0
    %3830 = vmatpush1.bf16.msra.mxu0 0
    %3831 = vmatprep.subr.bf16.mxu0 0
    %3832 = vmatpush1.bf16.msra.mxu0 0
    %3833 = vmatprep.subr.bf16.mxu0 0
    %3834 = vmatpush1.bf16.msra.mxu0 0
    %3835 = vmatprep.mubr.bf16.mxu0 0
    %3836 = vmatmul.mubr.bf16.gmra.mrb[0].mxu0 %v3798
    %v3837 = vpop.f32.mrb[0].mxu0
    %v3838 = vadd.f32 %v3795, %v3837
    %v3839 = vpop.f32.mrb[0].mxu0
    %v3840 = vpop.f32.mrb[0].mxu0
    %v3841 = vadd.f32 %v3795, %v3840
    %v3842 = vpop.f32.mrb[0].mxu0
    %3843 = vmatprep.mubr.bf16.mxu0 0
    %3844 = vmatmul.mubr.bf16.gmra.mrb[0].mxu0 %v3801
    %v3845 = vpop.f32.mrb[0].mxu0
    %v3846 = vadd.f32 %v3795, %v3845
    %v3847 = vpop.f32.mrb[0].mxu0
    %v3848 = vpop.f32.mrb[0].mxu0
    %v3849 = vadd.f32 %v3795, %v3848
    %v3850 = vpop.f32.mrb[0].mxu0
    %3851 = vdwg.mxu0
    %v3852 = vpack.c.bf16 %v3715, %v3712
    %v3853 = vpack.c.bf16 %v3775, %v3772
    %v3854 = vpack.c.bf16 %v3783, %v3780
    %v3855 = vpack.c.bf16 %v3841, %v3838
    %v3856 = vpack.c.bf16 %v3849, %v3846
    %v3858 = vsel %vm490, %v3852, 0
    %v3861 = vsel %vm490, %v3853, 0
    %v3864 = vsel %vm490, %v3854, 0
    %3866 = vmatprep.subr.bf16.mxu0 0
    %3867 = vmatpush1.bf16.xpose.msra.mxu0 %v3861
    %3868 = vmatprep.subr.bf16.mxu0 0
    %3869 = vmatpush1.bf16.xpose.msra.mxu0 %v3864
    %3870 = vmatprep.subr.bf16.mxu0 0
    %3871 = vmatpush1.bf16.xpose.msra.mxu0 0
    %3872 = vmatprep.subr.bf16.mxu0 0
    %3873 = vmatpush1.bf16.xpose.msra.mxu0 0
    %3874 = vmatprep.subr.bf16.mxu0 0
    %3875 = vmatpush1.bf16.xpose.msra.mxu0 0
    %3876 = vmatprep.subr.bf16.mxu0 0
    %3877 = vmatpush1.bf16.xpose.msra.mxu0 0
    %3878 = vmatprep.subr.bf16.mxu0 0
    %3879 = vmatpush1.bf16.xpose.msra.mxu0 0
    %3880 = vmatprep.subr.bf16.mxu0 0
    %3881 = vmatpush1.bf16.xpose.msra.mxu0 0
    %3882 = vmatprep.subr.bf16.mxu0 0
    %3883 = vmatpush1.bf16.xpose.msra.mxu0 0
    %3884 = vmatprep.subr.bf16.mxu0 0
    %3885 = vmatpush1.bf16.xpose.msra.mxu0 0
    %3886 = vmatprep.subr.bf16.mxu0 0
    %3887 = vmatpush1.bf16.xpose.msra.mxu0 0
    %3888 = vmatprep.subr.bf16.mxu0 0
    %3889 = vmatpush1.bf16.xpose.msra.mxu0 0
    %3890 = vmatprep.subr.bf16.mxu0 0
    %3891 = vmatpush1.bf16.xpose.msra.mxu0 0
    %3892 = vmatprep.subr.bf16.mxu0 0
    %3893 = vmatpush1.bf16.xpose.msra.mxu0 0
    %3894 = vmatprep.subr.bf16.mxu0 0
    %3895 = vmatpush1.bf16.xpose.msra.mxu0 0
    %3896 = vmatprep.subr.bf16.mxu0 0
    %3897 = vmatpush1.bf16.xpose.msra.mxu0 0
    %3898 = vmatprep.mubr.bf16.mxu0 0
    %3899 = vmatmul.mubr.bf16.gmra.mrb[0].mxu0 %v3858
    %v3900 = vpop.f32.mrb[0].mxu0
    %v3901 = vadd.f32 0.0, %v3900
    %v3902 = vpop.f32.mrb[0].mxu0
    %v3903 = vpop.f32.mrb[0].mxu0
    %v3904 = vadd.f32 0.0, %v3903
    %v3905 = vpop.f32.mrb[0].mxu0
    %3906 = vdwg.mxu0
    %v3907 = vmul.f32 %v3901, 0.25
    %v3908 = vmul.f32 %v3904, 0.25
    %v3909 = vadd.f32 %v3907, %v1519
    %v3910 = vadd.f32 %v3908, %v1520
    %v3911 = vsel %vm347, %v3909, -inf
    %3912 = vmax.xlane.f32.xlu0 %v3911
    %v3913 = vpop.xlane.xlu0 %3912
    %v3914 = vsel %vm1972, %v3910, -inf
    %3915 = vmax.xlane.f32.xlu0 %v3914
    %v3916 = vpop.xlane.xlu0 %3915
    %v3917 = vsub.f32 %v3909, %v3913
    %v3918 = vsub.f32 %v3910, %v3916
    %v3919 = vmul.f32 %v3917, 1.442695
    %v3920 = vpow.pop %v3919
    %v3921 = vmul.f32 %v3918, 1.442695
    %v3922 = vpow.pop %v3921
    %v3923 = vsel %vm347, %v3920, 0.0
    %3924 = vadd.xlane.f32.xlu0 %v3923
    %v3925 = vpop.xlane.xlu0 %3924
    %v3926 = vsel %vm1972, %v3922, 0.0
    %3927 = vadd.xlane.f32.xlu0 %v3926
    %v3928 = vpop.xlane.xlu0 %3927
    %v3929 = vrcp.pop %v3925
    %v3930 = vrcp.pop %v3928
    %v3931 = vmul.f32 %v3920, %v3929
    %v3932 = vmul.f32 %v3922, %v3930
    %v3933 = vpack.c.bf16 %v3932, %v3931
    %v3935 = vsel %vm347, %v3933, 0
    %3937 = vmatprep.subr.bf16.mxu0 0
    %3938 = vmatpush1.bf16.msra.mxu0 %v3855
    %3939 = vmatprep.subr.bf16.mxu0 0
    %3940 = vmatpush1.bf16.msra.mxu0 %v3856
    %3941 = vmatprep.subr.bf16.mxu0 0
    %3942 = vmatpush1.bf16.msra.mxu0 0
    %3943 = vmatprep.subr.bf16.mxu0 0
    %3944 = vmatpush1.bf16.msra.mxu0 0
    %3945 = vmatprep.subr.bf16.mxu0 0
    %3946 = vmatpush1.bf16.msra.mxu0 0
    %3947 = vmatprep.subr.bf16.mxu0 0
    %3948 = vmatpush1.bf16.msra.mxu0 0
    %3949 = vmatprep.subr.bf16.mxu0 0
    %3950 = vmatpush1.bf16.msra.mxu0 0
    %3951 = vmatprep.subr.bf16.mxu0 0
    %3952 = vmatpush1.bf16.msra.mxu0 0
    %3953 = vmatprep.subr.bf16.mxu0 0
    %3954 = vmatpush1.bf16.msra.mxu0 0
    %3955 = vmatprep.subr.bf16.mxu0 0
    %3956 = vmatpush1.bf16.msra.mxu0 0
    %3957 = vmatprep.subr.bf16.mxu0 0
    %3958 = vmatpush1.bf16.msra.mxu0 0
    %3959 = vmatprep.subr.bf16.mxu0 0
    %3960 = vmatpush1.bf16.msra.mxu0 0
    %3961 = vmatprep.subr.bf16.mxu0 0
    %3962 = vmatpush1.bf16.msra.mxu0 0
    %3963 = vmatprep.subr.bf16.mxu0 0
    %3964 = vmatpush1.bf16.msra.mxu0 0
    %3965 = vmatprep.subr.bf16.mxu0 0
    %3966 = vmatpush1.bf16.msra.mxu0 0
    %3967 = vmatprep.subr.bf16.mxu0 0
    %3968 = vmatpush1.bf16.msra.mxu0 0
    %3969 = vmatprep.mubr.bf16.mxu0 0
    %3970 = vmatmul.mubr.bf16.gmra.mrb[0].mxu0 %v3935
    %v3971 = vpop.f32.mrb[0].mxu0
    %v3972 = vadd.f32 0.0, %v3971
    %v3973 = vpop.f32.mrb[0].mxu0
    %v3974 = vpop.f32.mrb[0].mxu0
    %v3975 = vadd.f32 0.0, %v3974
    %v3976 = vpop.f32.mrb[0].mxu0
    %3977 = vdwg.mxu0
    %v3978 = vpack.c.bf16 %v3975, %v3972
    %3979 = vrot.lane.b32.xlu0 %v3669, 32
    %v3980 = vpop.permute.xlu0 %3979
    %v3983 = vsel %vm490, %v3978, 0
    %3985 = vmatprep.subr.bf16.mxu0 0
    %3986 = vmatpush1.bf16.msra.mxu0 %v3980
    %3987 = vmatprep.subr.bf16.mxu0 0
    %3988 = vmatpush1.bf16.msra.mxu0 0
    %3989 = vmatprep.subr.bf16.mxu0 0
    %3990 = vmatpush1.bf16.msra.mxu0 0
    %3991 = vmatprep.subr.bf16.mxu0 0
    %3992 = vmatpush1.bf16.msra.mxu0 0
    %3993 = vmatprep.subr.bf16.mxu0 0
    %3994 = vmatpush1.bf16.msra.mxu0 0
    %3995 = vmatprep.subr.bf16.mxu0 0
    %3996 = vmatpush1.bf16.msra.mxu0 0
    %3997 = vmatprep.subr.bf16.mxu0 0
    %3998 = vmatpush1.bf16.msra.mxu0 0
    %3999 = vmatprep.subr.bf16.mxu0 0
    %4000 = vmatpush1.bf16.msra.mxu0 0
    %4001 = vmatprep.subr.bf16.mxu0 0
    %4002 = vmatpush1.bf16.msra.mxu0 0
    %4003 = vmatprep.subr.bf16.mxu0 0
    %4004 = vmatpush1.bf16.msra.mxu0 0
    %4005 = vmatprep.subr.bf16.mxu0 0
    %4006 = vmatpush1.bf16.msra.mxu0 0
    %4007 = vmatprep.subr.bf16.mxu0 0
    %4008 = vmatpush1.bf16.msra.mxu0 0
    %4009 = vmatprep.subr.bf16.mxu0 0
    %4010 = vmatpush1.bf16.msra.mxu0 0
    %4011 = vmatprep.subr.bf16.mxu0 0
    %4012 = vmatpush1.bf16.msra.mxu0 0
    %4013 = vmatprep.subr.bf16.mxu0 0
    %4014 = vmatpush1.bf16.msra.mxu0 0
    %4015 = vmatprep.subr.bf16.mxu0 0
    %4016 = vmatpush1.bf16.msra.mxu0 0
    %4017 = vmatprep.mubr.bf16.mxu0 0
    %4018 = vmatmul.mubr.bf16.gmra.mrb[0].mxu0 %v3983
    %v4019 = vpop.f32.mrb[0].mxu0
    %v4020 = vadd.f32 0.0, %v4019
    %v4021 = vpop.f32.mrb[0].mxu0
    %v4022 = vpop.f32.mrb[0].mxu0
    %v4023 = vadd.f32 0.0, %v4022
    %v4024 = vpop.f32.mrb[0].mxu0
    %4025 = vdwg.mxu0
    %4028 = vrot.lane.b32.xlu0 %v4020, 96
    %v4029 = vpop.permute.xlu0 %4028
    %4030 = vrot.lane.b32.xlu0 %v4023, 96
    %v4031 = vpop.permute.xlu0 %4030
    %v4034 = vadd.f32 %v3675, %v4029
    %v4035 = vadd.f32 %v3675, %v4031
    %4037 = vrot.lane.b32.xlu0 %v3852, 112
    %v4038 = vpop.permute.xlu0 %4037
    %4041 = vrot.lane.b32.xlu0 %v3853, 112
    %v4042 = vpop.permute.xlu0 %4041
    %4043 = vrot.lane.b32.xlu0 %v3854, 112
    %v4044 = vpop.permute.xlu0 %4043
    %v4046 = vsel %vm490, %v4038, 0
    %v4049 = vsel %vm490, %v4042, 0
    %v4052 = vsel %vm490, %v4044, 0
    %4054 = vmatprep.subr.bf16.mxu0 0
    %4055 = vmatpush1.bf16.xpose.msra.mxu0 %v4049
    %4056 = vmatprep.subr.bf16.mxu0 0
    %4057 = vmatpush1.bf16.xpose.msra.mxu0 %v4052
    %4058 = vmatprep.subr.bf16.mxu0 0
    %4059 = vmatpush1.bf16.xpose.msra.mxu0 0
    %4060 = vmatprep.subr.bf16.mxu0 0
    %4061 = vmatpush1.bf16.xpose.msra.mxu0 0
    %4062 = vmatprep.subr.bf16.mxu0 0
    %4063 = vmatpush1.bf16.xpose.msra.mxu0 0
    %4064 = vmatprep.subr.bf16.mxu0 0
    %4065 = vmatpush1.bf16.xpose.msra.mxu0 0
    %4066 = vmatprep.subr.bf16.mxu0 0
    %4067 = vmatpush1.bf16.xpose.msra.mxu0 0
    %4068 = vmatprep.subr.bf16.mxu0 0
    %4069 = vmatpush1.bf16.xpose.msra.mxu0 0
    %4070 = vmatprep.subr.bf16.mxu0 0
    %4071 = vmatpush1.bf16.xpose.msra.mxu0 0
    %4072 = vmatprep.subr.bf16.mxu0 0
    %4073 = vmatpush1.bf16.xpose.msra.mxu0 0
    %4074 = vmatprep.subr.bf16.mxu0 0
    %4075 = vmatpush1.bf16.xpose.msra.mxu0 0
    %4076 = vmatprep.subr.bf16.mxu0 0
    %4077 = vmatpush1.bf16.xpose.msra.mxu0 0
    %4078 = vmatprep.subr.bf16.mxu0 0
    %4079 = vmatpush1.bf16.xpose.msra.mxu0 0
    %4080 = vmatprep.subr.bf16.mxu0 0
    %4081 = vmatpush1.bf16.xpose.msra.mxu0 0
    %4082 = vmatprep.subr.bf16.mxu0 0
    %4083 = vmatpush1.bf16.xpose.msra.mxu0 0
    %4084 = vmatprep.subr.bf16.mxu0 0
    %4085 = vmatpush1.bf16.xpose.msra.mxu0 0
    %4086 = vmatprep.mubr.bf16.mxu0 0
    %4087 = vmatmul.mubr.bf16.gmra.mrb[0].mxu0 %v4046
    %v4088 = vpop.f32.mrb[0].mxu0
    %v4089 = vadd.f32 0.0, %v4088
    %v4090 = vpop.f32.mrb[0].mxu0
    %v4091 = vpop.f32.mrb[0].mxu0
    %v4092 = vadd.f32 0.0, %v4091
    %v4093 = vpop.f32.mrb[0].mxu0
    %4094 = vdwg.mxu0
    %v4095 = vmul.f32 %v4089, 0.25
    %v4096 = vmul.f32 %v4092, 0.25
    %v4097 = vadd.f32 %v4095, %v1519
    %v4098 = vadd.f32 %v4096, %v1520
    %v4099 = vsel %vm347, %v4097, -inf
    %4100 = vmax.xlane.f32.xlu0 %v4099
    %v4101 = vpop.xlane.xlu0 %4100
    %v4102 = vsel %vm1972, %v4098, -inf
    %4103 = vmax.xlane.f32.xlu0 %v4102
    %v4104 = vpop.xlane.xlu0 %4103
    %v4105 = vsub.f32 %v4097, %v4101
    %v4106 = vsub.f32 %v4098, %v4104
    %v4107 = vmul.f32 %v4105, 1.442695
    %v4108 = vpow.pop %v4107
    %v4109 = vmul.f32 %v4106, 1.442695
    %v4110 = vpow.pop %v4109
    %v4111 = vsel %vm347, %v4108, 0.0
    %4112 = vadd.xlane.f32.xlu0 %v4111
    %v4113 = vpop.xlane.xlu0 %4112
    %v4114 = vsel %vm1972, %v4110, 0.0
    %4115 = vadd.xlane.f32.xlu0 %v4114
    %v4116 = vpop.xlane.xlu0 %4115
    %v4117 = vrcp.pop %v4113
    %v4118 = vrcp.pop %v4116
    %v4119 = vmul.f32 %v4108, %v4117
    %v4120 = vmul.f32 %v4110, %v4118
    %v4121 = vpack.c.bf16 %v4120, %v4119
    %4124 = vrot.lane.b32.xlu0 %v3855, 112
    %v4125 = vpop.permute.xlu0 %4124
    %4126 = vrot.lane.b32.xlu0 %v3856, 112
    %v4127 = vpop.permute.xlu0 %4126
    %v4131 = vsel %vm347, %v4121, 0
    %4133 = vmatprep.subr.bf16.mxu0 0
    %4134 = vmatpush1.bf16.msra.mxu0 %v4125
    %4135 = vmatprep.subr.bf16.mxu0 0
    %4136 = vmatpush1.bf16.msra.mxu0 %v4127
    %4137 = vmatprep.subr.bf16.mxu0 0
    %4138 = vmatpush1.bf16.msra.mxu0 0
    %4139 = vmatprep.subr.bf16.mxu0 0
    %4140 = vmatpush1.bf16.msra.mxu0 0
    %4141 = vmatprep.subr.bf16.mxu0 0
    %4142 = vmatpush1.bf16.msra.mxu0 0
    %4143 = vmatprep.subr.bf16.mxu0 0
    %4144 = vmatpush1.bf16.msra.mxu0 0
    %4145 = vmatprep.subr.bf16.mxu0 0
    %4146 = vmatpush1.bf16.msra.mxu0 0
    %4147 = vmatprep.subr.bf16.mxu0 0
    %4148 = vmatpush1.bf16.msra.mxu0 0
    %4149 = vmatprep.subr.bf16.mxu0 0
    %4150 = vmatpush1.bf16.msra.mxu0 0
    %4151 = vmatprep.subr.bf16.mxu0 0
    %4152 = vmatpush1.bf16.msra.mxu0 0
    %4153 = vmatprep.subr.bf16.mxu0 0
    %4154 = vmatpush1.bf16.msra.mxu0 0
    %4155 = vmatprep.subr.bf16.mxu0 0
    %4156 = vmatpush1.bf16.msra.mxu0 0
    %4157 = vmatprep.subr.bf16.mxu0 0
    %4158 = vmatpush1.bf16.msra.mxu0 0
    %4159 = vmatprep.subr.bf16.mxu0 0
    %4160 = vmatpush1.bf16.msra.mxu0 0
    %4161 = vmatprep.subr.bf16.mxu0 0
    %4162 = vmatpush1.bf16.msra.mxu0 0
    %4163 = vmatprep.subr.bf16.mxu0 0
    %4164 = vmatpush1.bf16.msra.mxu0 0
    %4165 = vmatprep.mubr.bf16.mxu0 0
    %4166 = vmatmul.mubr.bf16.gmra.mrb[0].mxu0 %v4131
    %v4167 = vpop.f32.mrb[0].mxu0
    %v4168 = vadd.f32 0.0, %v4167
    %v4169 = vpop.f32.mrb[0].mxu0
    %v4170 = vpop.f32.mrb[0].mxu0
    %v4171 = vadd.f32 0.0, %v4170
    %v4172 = vpop.f32.mrb[0].mxu0
    %4173 = vdwg.mxu0
    %v4174 = vpack.c.bf16 %v4171, %v4168
    %4175 = vrot.lane.b32.xlu0 %v3670, 32
    %v4176 = vpop.permute.xlu0 %4175
    %v4179 = vsel %vm490, %v4174, 0
    %4181 = vmatprep.subr.bf16.mxu0 0
    %4182 = vmatpush1.bf16.msra.mxu0 %v4176
    %4183 = vmatprep.subr.bf16.mxu0 0
    %4184 = vmatpush1.bf16.msra.mxu0 0
    %4185 = vmatprep.subr.bf16.mxu0 0
    %4186 = vmatpush1.bf16.msra.mxu0 0
    %4187 = vmatprep.subr.bf16.mxu0 0
    %4188 = vmatpush1.bf16.msra.mxu0 0
    %4189 = vmatprep.subr.bf16.mxu0 0
    %4190 = vmatpush1.bf16.msra.mxu0 0
    %4191 = vmatprep.subr.bf16.mxu0 0
    %4192 = vmatpush1.bf16.msra.mxu0 0
    %4193 = vmatprep.subr.bf16.mxu0 0
    %4194 = vmatpush1.bf16.msra.mxu0 0
    %4195 = vmatprep.subr.bf16.mxu0 0
    %4196 = vmatpush1.bf16.msra.mxu0 0
    %4197 = vmatprep.subr.bf16.mxu0 0
    %4198 = vmatpush1.bf16.msra.mxu0 0
    %4199 = vmatprep.subr.bf16.mxu0 0
    %4200 = vmatpush1.bf16.msra.mxu0 0
    %4201 = vmatprep.subr.bf16.mxu0 0
    %4202 = vmatpush1.bf16.msra.mxu0 0
    %4203 = vmatprep.subr.bf16.mxu0 0
    %4204 = vmatpush1.bf16.msra.mxu0 0
    %4205 = vmatprep.subr.bf16.mxu0 0
    %4206 = vmatpush1.bf16.msra.mxu0 0
    %4207 = vmatprep.subr.bf16.mxu0 0
    %4208 = vmatpush1.bf16.msra.mxu0 0
    %4209 = vmatprep.subr.bf16.mxu0 0
    %4210 = vmatpush1.bf16.msra.mxu0 0
    %4211 = vmatprep.subr.bf16.mxu0 0
    %4212 = vmatpush1.bf16.msra.mxu0 0
    %4213 = vmatprep.mubr.bf16.mxu0 0
    %4214 = vmatmul.mubr.bf16.gmra.mrb[0].mxu0 %v4179
    %v4215 = vpop.f32.mrb[0].mxu0
    %v4216 = vadd.f32 0.0, %v4215
    %v4217 = vpop.f32.mrb[0].mxu0
    %v4218 = vpop.f32.mrb[0].mxu0
    %v4219 = vadd.f32 0.0, %v4218
    %v4220 = vpop.f32.mrb[0].mxu0
    %4221 = vdwg.mxu0
    %4224 = vrot.lane.b32.xlu0 %v4216, 96
    %v4225 = vpop.permute.xlu0 %4224
    %4226 = vrot.lane.b32.xlu0 %v4219, 96
    %v4227 = vpop.permute.xlu0 %4226
    %v4230 = vadd.f32 %v4034, %v4225
    %v4231 = vadd.f32 %v4035, %v4227
    %v4232 = vadd.f32 %v2874, %v4230
    %v4233 = vadd.f32 %v2875, %v4231
    %4236 = vrot.lane.b32.xlu0 %v4232, 32
    %v4237 = vpop.permute.xlu0 %4236
    %4238 = vrot.lane.b32.xlu0 %v4233, 32
    %v4239 = vpop.permute.xlu0 %4238
    %v4242 = vsel %vm347, %v4237, 0.0
    %4243 = vadd.xlane.f32.xlu0 %v4242
    %v4244 = vpop.xlane.xlu0 %4243
    %v4245 = vsel %vm1972, %v4239, 0.0
    %4246 = vadd.xlane.f32.xlu0 %v4245
    %v4247 = vpop.xlane.xlu0 %4246
    %v4248 = vmul.f32 %v4244, %v360
    %v4249 = vmul.f32 %v4247, %v360
    %v4250 = vsub.f32 %v4232, %v4248
    %v4251 = vsub.f32 %v4233, %v4249
    %v4252 = vmul.f32 %v4250, %v4250
    %v4253 = vmul.f32 %v4251, %v4251
    %4256 = vrot.lane.b32.xlu0 %v4252, 32
    %v4257 = vpop.permute.xlu0 %4256
    %4258 = vrot.lane.b32.xlu0 %v4253, 32
    %v4259 = vpop.permute.xlu0 %4258
    %v4262 = vsel %vm347, %v4257, 0.0
    %4263 = vadd.xlane.f32.xlu0 %v4262
    %v4264 = vpop.xlane.xlu0 %4263
    %v4265 = vsel %vm1972, %v4259, 0.0
    %4266 = vadd.xlane.f32.xlu0 %v4265
    %v4267 = vpop.xlane.xlu0 %4266
    %v4268 = vmul.f32 %v4264, %v360
    %v4269 = vmul.f32 %v4267, %v360
    %v4270 = vadd.f32 %v4268, 1e-05
    %v4271 = vadd.f32 %v4269, 1e-05
    %v4272 = vrsqrt.pop %v4270
    %v4273 = vrsqrt.pop %v4271
    %v4274 = vmul.f32 %v4250, %v4272
    %v4275 = vmul.f32 %v4251, %v4273
    %v4276 = vlaneseq
    %v4277 = vshrl.u32 %v4276, 7
    %v4278 = vsub.s32 4, %v4277
    %v4279 = vrot.slane %v1508, %v4278
    %4281 = vrot.lane.b32.xlu0 %v4279, 96
    %v4282 = vpop.permute.xlu0 %4281
    %v4284 = vmul.f32 %v4274, %v4282
    %v4285 = vmul.f32 %v4275, %v4282
    %v4286 = vlaneseq
    %v4287 = vshrl.u32 %v4286, 7
    %v4288 = vsub.s32 4, %v4287
    %v4289 = vrot.slane %v1509, %v4288
    %4291 = vrot.lane.b32.xlu0 %v4289, 96
    %v4292 = vpop.permute.xlu0 %4291
    %v4294 = vadd.f32 %v4284, %v4292
    %v4295 = vadd.f32 %v4285, %v4292
    %v4297 = vrot.slane %v4294, 1
    %v4300 = vrot.slane %v4295, 4
    %v4302 = vsel %vm1495, %v4297, %v4300
    %v4303 = vld [vmem:[%s81] sm:$0xff]
    %v4304 = vld [vmem:[%s81 + $0x8] sm:$0xff]
    %v4305 = vld [vmem:[%s81 + $0x10] sm:$0xff]
    %v4306 = vld [vmem:[%s81 + $0x18] sm:$0xff]
    %v4307 = vld [vmem:[%s83] sm:$0x1]
    %v4308 = vpack.c.bf16 %v4302, %v4302
    %v4309 = vpack.c.bf16 %v4304, %v4303
    %v4310 = vpack.c.bf16 %v4306, %v4305
    %v4312 = vlaneseq
    %v4313 = vshrl.u32 %v4312, 7
    %v4314 = vsub.s32 0, %v4313
    %v4315 = vrot.slane %v4307, %v4314
    %4318 = vrot.lane.b32.xlu0 %v4308, 32
    %v4319 = vpop.permute.xlu0 %4318
    %v4321 = vsel %vm347, %v4319, 0
    %4323 = vmatprep.subr.bf16.mxu0 0
    %4324 = vmatpush1.bf16.msra.mxu0 %v4309
    %4325 = vmatprep.subr.bf16.mxu0 0
    %4326 = vmatpush1.bf16.msra.mxu0 %v4310
    %4327 = vmatprep.subr.bf16.mxu0 0
    %4328 = vmatpush1.bf16.msra.mxu0 0
    %4329 = vmatprep.subr.bf16.mxu0 0
    %4330 = vmatpush1.bf16.msra.mxu0 0
    %4331 = vmatprep.subr.bf16.mxu0 0
    %4332 = vmatpush1.bf16.msra.mxu0 0
    %4333 = vmatprep.subr.bf16.mxu0 0
    %4334 = vmatpush1.bf16.msra.mxu0 0
    %4335 = vmatprep.subr.bf16.mxu0 0
    %4336 = vmatpush1.bf16.msra.mxu0 0
    %4337 = vmatprep.subr.bf16.mxu0 0
    %4338 = vmatpush1.bf16.msra.mxu0 0
    %4339 = vmatprep.subr.bf16.mxu0 0
    %4340 = vmatpush1.bf16.msra.mxu0 0
    %4341 = vmatprep.subr.bf16.mxu0 0
    %4342 = vmatpush1.bf16.msra.mxu0 0
    %4343 = vmatprep.subr.bf16.mxu0 0
    %4344 = vmatpush1.bf16.msra.mxu0 0
    %4345 = vmatprep.subr.bf16.mxu0 0
    %4346 = vmatpush1.bf16.msra.mxu0 0
    %4347 = vmatprep.subr.bf16.mxu0 0
    %4348 = vmatpush1.bf16.msra.mxu0 0
    %4349 = vmatprep.subr.bf16.mxu0 0
    %4350 = vmatpush1.bf16.msra.mxu0 0
    %4351 = vmatprep.subr.bf16.mxu0 0
    %4352 = vmatpush1.bf16.msra.mxu0 0
    %4353 = vmatprep.subr.bf16.mxu0 0
    %4354 = vmatpush1.bf16.msra.mxu0 0
    %4355 = vmatprep.mubr.bf16.mxu0 0
    %4356 = vmatmul.mubr.bf16.gmra.mrb[0].mxu0 %v4321
    %v4357 = vpop.f32.mrb[0].mxu0
    %v4358 = vadd.f32 %v4315, %v4357
    %v4359 = vpop.f32.mrb[0].mxu0
    %v4360 = vpop.f32.mrb[0].mxu0
    %v4361 = vpop.f32.mrb[0].mxu0
    %4362 = vdwg.mxu0
    %v4363 = vmax.f32 %v4358, 0.0
    %v4364 = vld [vmem:[%s85] sm:$0xff]
    %v4365 = vld [vmem:[%s85 + $0x8] sm:$0xff]
    %v4366 = vld [vmem:[%s85 + $0x10] sm:$0xff]
    %v4367 = vld [vmem:[%s85 + $0x18] sm:$0xff]
    %v4368 = vld [vmem:[%s85 + $0x20] sm:$0xff]
    %v4369 = vld [vmem:[%s85 + $0x28] sm:$0xff]
    %v4370 = vld [vmem:[%s85 + $0x30] sm:$0xff]
    %v4371 = vld [vmem:[%s85 + $0x38] sm:$0xff]
    %v4372 = vld [vmem:[%s85 + $0x40] sm:$0xff]
    %v4373 = vld [vmem:[%s85 + $0x48] sm:$0xff]
    %v4374 = vld [vmem:[%s85 + $0x50] sm:$0xff]
    %v4375 = vld [vmem:[%s85 + $0x58] sm:$0xff]
    %v4376 = vld [vmem:[%s85 + $0x60] sm:$0xff]
    %v4377 = vld [vmem:[%s85 + $0x68] sm:$0xff]
    %v4378 = vld [vmem:[%s85 + $0x70] sm:$0xff]
    %v4379 = vld [vmem:[%s85 + $0x78] sm:$0xff]
    %v4380 = vld [vmem:[%s87] sm:$0x1]
    %v4381 = vpack.c.bf16 %v4363, %v4363
    %v4382 = vpack.c.bf16 %v4365, %v4364
    %v4383 = vpack.c.bf16 %v4367, %v4366
    %v4384 = vpack.c.bf16 %v4369, %v4368
    %v4385 = vpack.c.bf16 %v4371, %v4370
    %v4386 = vpack.c.bf16 %v4373, %v4372
    %v4387 = vpack.c.bf16 %v4375, %v4374
    %v4388 = vpack.c.bf16 %v4377, %v4376
    %v4389 = vpack.c.bf16 %v4379, %v4378
    %v4391 = vlaneseq
    %v4392 = vshrl.u32 %v4391, 7
    %v4393 = vsub.s32 0, %v4392
    %v4394 = vrot.slane %v4380, %v4393
    %4396 = vmatprep.subr.bf16.mxu0 0
    %4397 = vmatpush1.bf16.msra.mxu0 %v4382
    %4398 = vmatprep.subr.bf16.mxu0 0
    %4399 = vmatpush1.bf16.msra.mxu0 %v4383
    %4400 = vmatprep.subr.bf16.mxu0 0
    %4401 = vmatpush1.bf16.msra.mxu0 %v4384
    %4402 = vmatprep.subr.bf16.mxu0 0
    %4403 = vmatpush1.bf16.msra.mxu0 %v4385
    %4404 = vmatprep.subr.bf16.mxu0 0
    %4405 = vmatpush1.bf16.msra.mxu0 %v4386
    %4406 = vmatprep.subr.bf16.mxu0 0
    %4407 = vmatpush1.bf16.msra.mxu0 %v4387
    %4408 = vmatprep.subr.bf16.mxu0 0
    %4409 = vmatpush1.bf16.msra.mxu0 %v4388
    %4410 = vmatprep.subr.bf16.mxu0 0
    %4411 = vmatpush1.bf16.msra.mxu0 %v4389
    %4412 = vmatprep.subr.bf16.mxu0 0
    %4413 = vmatpush1.bf16.msra.mxu0 0
    %4414 = vmatprep.subr.bf16.mxu0 0
    %4415 = vmatpush1.bf16.msra.mxu0 0
    %4416 = vmatprep.subr.bf16.mxu0 0
    %4417 = vmatpush1.bf16.msra.mxu0 0
    %4418 = vmatprep.subr.bf16.mxu0 0
    %4419 = vmatpush1.bf16.msra.mxu0 0
    %4420 = vmatprep.subr.bf16.mxu0 0
    %4421 = vmatpush1.bf16.msra.mxu0 0
    %4422 = vmatprep.subr.bf16.mxu0 0
    %4423 = vmatpush1.bf16.msra.mxu0 0
    %4424 = vmatprep.subr.bf16.mxu0 0
    %4425 = vmatpush1.bf16.msra.mxu0 0
    %4426 = vmatprep.subr.bf16.mxu0 0
    %4427 = vmatpush1.bf16.msra.mxu0 0
    %4428 = vmatprep.mubr.bf16.mxu0 0
    %4429 = vmatmul.mubr.bf16.gmra.mrb[0].mxu0 %v4381
    %v4430 = vpop.f32.mrb[0].mxu0
    %v4431 = vadd.f32 %v4394, %v4430
    %v4432 = vpop.f32.mrb[0].mxu0
    %v4433 = vpop.f32.mrb[0].mxu0
    %v4434 = vpop.f32.mrb[0].mxu0
    %4435 = vdwg.mxu0
    %v4436 = vmax.f32 %v4431, 0.0
    %v4437 = vld [vmem:[%s89] sm:$0xff]
    %v4438 = vld [vmem:[%s89 + $0x8] sm:$0xff]
    %v4439 = vld [vmem:[%s89 + $0x10] sm:$0xff]
    %v4440 = vld [vmem:[%s89 + $0x18] sm:$0xff]
    %v4441 = vld [vmem:[%s89 + $0x20] sm:$0xff]
    %v4442 = vld [vmem:[%s89 + $0x28] sm:$0xff]
    %v4443 = vld [vmem:[%s89 + $0x30] sm:$0xff]
    %v4444 = vld [vmem:[%s89 + $0x38] sm:$0xff]
    %v4445 = vld [vmem:[%s89 + $0x40] sm:$0xff]
    %v4446 = vld [vmem:[%s89 + $0x48] sm:$0xff]
    %v4447 = vld [vmem:[%s89 + $0x50] sm:$0xff]
    %v4448 = vld [vmem:[%s89 + $0x58] sm:$0xff]
    %v4449 = vld [vmem:[%s89 + $0x60] sm:$0xff]
    %v4450 = vld [vmem:[%s89 + $0x68] sm:$0xff]
    %v4451 = vld [vmem:[%s89 + $0x70] sm:$0xff]
    %v4452 = vld [vmem:[%s89 + $0x78] sm:$0xff]
    %v4453 = vld [vmem:[#allocation2] sm:$0x1]
    %v4454 = vpack.c.bf16 %v4436, %v4436
    %v4455 = vpack.c.bf16 %v4438, %v4437
    %v4456 = vpack.c.bf16 %v4440, %v4439
    %v4457 = vpack.c.bf16 %v4442, %v4441
    %v4458 = vpack.c.bf16 %v4444, %v4443
    %v4459 = vpack.c.bf16 %v4446, %v4445
    %v4460 = vpack.c.bf16 %v4448, %v4447
    %v4461 = vpack.c.bf16 %v4450, %v4449
    %v4462 = vpack.c.bf16 %v4452, %v4451
    %v4464 = vlaneseq
    %v4465 = vshrl.u32 %v4464, 7
    %v4466 = vsub.s32 0, %v4465
    %v4467 = vrot.slane %v4453, %v4466
    %4469 = vmatprep.subr.bf16.mxu0 0
    %4470 = vmatpush1.bf16.msra.mxu0 %v4455
    %4471 = vmatprep.subr.bf16.mxu0 0
    %4472 = vmatpush1.bf16.msra.mxu0 %v4456
    %4473 = vmatprep.subr.bf16.mxu0 0
    %4474 = vmatpush1.bf16.msra.mxu0 %v4457
    %4475 = vmatprep.subr.bf16.mxu0 0
    %4476 = vmatpush1.bf16.msra.mxu0 %v4458
    %4477 = vmatprep.subr.bf16.mxu0 0
    %4478 = vmatpush1.bf16.msra.mxu0 %v4459
    %4479 = vmatprep.subr.bf16.mxu0 0
    %4480 = vmatpush1.bf16.msra.mxu0 %v4460
    %4481 = vmatprep.subr.bf16.mxu0 0
    %4482 = vmatpush1.bf16.msra.mxu0 %v4461
    %4483 = vmatprep.subr.bf16.mxu0 0
    %4484 = vmatpush1.bf16.msra.mxu0 %v4462
    %4485 = vmatprep.subr.bf16.mxu0 0
    %4486 = vmatpush1.bf16.msra.mxu0 0
    %4487 = vmatprep.subr.bf16.mxu0 0
    %4488 = vmatpush1.bf16.msra.mxu0 0
    %4489 = vmatprep.subr.bf16.mxu0 0
    %4490 = vmatpush1.bf16.msra.mxu0 0
    %4491 = vmatprep.subr.bf16.mxu0 0
    %4492 = vmatpush1.bf16.msra.mxu0 0
    %4493 = vmatprep.subr.bf16.mxu0 0
    %4494 = vmatpush1.bf16.msra.mxu0 0
    %4495 = vmatprep.subr.bf16.mxu0 0
    %4496 = vmatpush1.bf16.msra.mxu0 0
    %4497 = vmatprep.subr.bf16.mxu0 0
    %4498 = vmatpush1.bf16.msra.mxu0 0
    %4499 = vmatprep.subr.bf16.mxu0 0
    %4500 = vmatpush1.bf16.msra.mxu0 0
    %4501 = vmatprep.mubr.bf16.mxu0 0
    %4502 = vmatmul.mubr.bf16.gmra.mrb[0].mxu0 %v4454
    %v4503 = vpop.f32.mrb[0].mxu0
    %v4504 = vadd.f32 %v4467, %v4503
    %v4505 = vpop.f32.mrb[0].mxu0
    %v4506 = vpop.f32.mrb[0].mxu0
    %v4507 = vpop.f32.mrb[0].mxu0
    %4508 = vdwg.mxu0
    %vm4509 = vcmp.eq.s32.totalorder %v328, 0
    %vm4510 = vcmp.eq.s32.totalorder %v328, 4
    %vm4511 = vmor %vm4509, %vm4510
    %v4512 = vsel %vm4511, %v4504, 0.0
    %v4513 = vadd.f32 %v4512, 0.0
    %vm4514 = vcmp.eq.s32.totalorder %v328, 1
    %vm4515 = vcmp.eq.s32.totalorder %v328, 5
    %vm4516 = vmor %vm4514, %vm4515
    %v4517 = vsel %vm4516, %v4504, 0.0
    %4519 = vrot.lane.b32.xlu0 %v4517, 124
    %v4520 = vpop.permute.xlu0 %4519
    %v4522 = vadd.f32 %v4513, %v4520
    %vm4523 = vcmp.eq.s32.totalorder %v328, 2
    %vm4524 = vcmp.eq.s32.totalorder %v328, 6
    %vm4525 = vmor %vm4523, %vm4524
    %v4526 = vsel %vm4525, %v4504, 0.0
    %4528 = vrot.lane.b32.xlu0 %v4526, 120
    %v4529 = vpop.permute.xlu0 %4528
    %v4531 = vadd.f32 %v4522, %v4529
    %vm4532 = vcmp.eq.s32.totalorder %v328, 3
    %vm4533 = vcmp.eq.s32.totalorder %v328, 7
    %vm4534 = vmor %vm4532, %vm4533
    %v4535 = vsel %vm4534, %v4504, 0.0
    %4537 = vrot.lane.b32.xlu0 %v4535, 116
    %v4538 = vpop.permute.xlu0 %4537
    %v4540 = vadd.f32 %v4531, %v4538
    %v4541 = vpack.c.bf16 %v4540, %v4540
    %v4542 = vld [vmem:[%s69] sm:$0xff]
    %v4543 = vld [vmem:[%s69 + $0x8] sm:$0xff]
    %v4544 = vld [vmem:[%s69 + $0x10] sm:$0xff]
    %v4545 = vld [vmem:[%s69 + $0x18] sm:$0xff]
    %v4546 = vpack.c.bf16 %v4543, %v4542
    %v4547 = vpack.c.bf16 %v4545, %v4544
    %v4548 = vld [vmem:[%s71] sm:$0x1]
    %v4549 = vld [vmem:[%s73] sm:$0x1]
    %v4550 = vld [vmem:[%s75] sm:$0x1]
    %v4551 = vld [vmem:[%s77] sm:$0xff]
    %v4552 = vpack.c.bf16 %v4551, %v4551
    %v4553 = vld [vmem:[%s79] sm:$0x1]
    %v4555 = vlaneseq
    %v4556 = vshrl.u32 %v4555, 7
    %v4557 = vsub.s32 0, %v4556
    %v4558 = vrot.slane %v4548, %v4557
    %4560 = vmatprep.subr.bf16.mxu0 0
    %4561 = vmatpush1.bf16.msra.mxu0 %v4546
    %4562 = vmatprep.subr.bf16.mxu0 0
    %4563 = vmatpush1.bf16.msra.mxu0 %v4547
    %4564 = vmatprep.subr.bf16.mxu0 0
    %4565 = vmatpush1.bf16.msra.mxu0 0
    %4566 = vmatprep.subr.bf16.mxu0 0
    %4567 = vmatpush1.bf16.msra.mxu0 0
    %4568 = vmatprep.subr.bf16.mxu0 0
    %4569 = vmatpush1.bf16.msra.mxu0 0
    %4570 = vmatprep.subr.bf16.mxu0 0
    %4571 = vmatpush1.bf16.msra.mxu0 0
    %4572 = vmatprep.subr.bf16.mxu0 0
    %4573 = vmatpush1.bf16.msra.mxu0 0
    %4574 = vmatprep.subr.bf16.mxu0 0
    %4575 = vmatpush1.bf16.msra.mxu0 0
    %4576 = vmatprep.subr.bf16.mxu0 0
    %4577 = vmatpush1.bf16.msra.mxu0 0
    %4578 = vmatprep.subr.bf16.mxu0 0
    %4579 = vmatpush1.bf16.msra.mxu0 0
    %4580 = vmatprep.subr.bf16.mxu0 0
    %4581 = vmatpush1.bf16.msra.mxu0 0
    %4582 = vmatprep.subr.bf16.mxu0 0
    %4583 = vmatpush1.bf16.msra.mxu0 0
    %4584 = vmatprep.subr.bf16.mxu0 0
    %4585 = vmatpush1.bf16.msra.mxu0 0
    %4586 = vmatprep.subr.bf16.mxu0 0
    %4587 = vmatpush1.bf16.msra.mxu0 0
    %4588 = vmatprep.subr.bf16.mxu0 0
    %4589 = vmatpush1.bf16.msra.mxu0 0
    %4590 = vmatprep.subr.bf16.mxu0 0
    %4591 = vmatpush1.bf16.msra.mxu0 0
    %4592 = vmatprep.mubr.bf16.mxu0 0
    %4593 = vmatmul.mubr.bf16.gmra.mrb[0].mxu0 %v3798
    %v4594 = vpop.f32.mrb[0].mxu0
    %v4595 = vadd.f32 %v4558, %v4594
    %v4596 = vpop.f32.mrb[0].mxu0
    %v4597 = vpop.f32.mrb[0].mxu0
    %v4598 = vadd.f32 %v4558, %v4597
    %v4599 = vpop.f32.mrb[0].mxu0
    %4600 = vmatprep.mubr.bf16.mxu0 0
    %4601 = vmatmul.mubr.bf16.gmra.mrb[0].mxu0 %v3801
    %v4602 = vpop.f32.mrb[0].mxu0
    %v4603 = vadd.f32 %v4558, %v4602
    %v4604 = vpop.f32.mrb[0].mxu0
    %v4605 = vpop.f32.mrb[0].mxu0
    %v4606 = vadd.f32 %v4558, %v4605
    %v4607 = vpop.f32.mrb[0].mxu0
    %4608 = vdwg.mxu0
    %vm4609 = vcmask 64512
    %v4610 = vsel %vm4609, %v4595, 0.0
    %4611 = vadd.xlane.f32.xlu0 %v4610
    %v4612 = vpop.xlane.xlu0 %4611
    %v4613 = vsel %vm4609, %v4598, 0.0
    %4614 = vadd.xlane.f32.xlu0 %v4613
    %v4615 = vpop.xlane.xlu0 %4614
    %v4616 = vsel %vm4609, %v4603, 0.0
    %4617 = vadd.xlane.f32.xlu0 %v4616
    %v4618 = vpop.xlane.xlu0 %4617
    %v4619 = vsel %vm4609, %v4606, 0.0
    %4620 = vadd.xlane.f32.xlu0 %v4619
    %v4621 = vpop.xlane.xlu0 %4620
    %v4622 = vrcp.pop 8.0
    %v4623 = vmul.f32 %v4612, %v4622
    %v4624 = vmul.f32 %v4615, %v4622
    %v4625 = vmul.f32 %v4618, %v4622
    %v4626 = vmul.f32 %v4621, %v4622
    %v4627 = vsub.f32 %v4595, %v4623
    %v4628 = vsub.f32 %v4598, %v4624
    %v4629 = vsub.f32 %v4603, %v4625
    %v4630 = vsub.f32 %v4606, %v4626
    %v4631 = vmul.f32 %v4627, %v4627
    %v4632 = vmul.f32 %v4628, %v4628
    %v4633 = vmul.f32 %v4629, %v4629
    %v4634 = vmul.f32 %v4630, %v4630
    %v4635 = vsel %vm4609, %v4631, 0.0
    %4636 = vadd.xlane.f32.xlu0 %v4635
    %v4637 = vpop.xlane.xlu0 %4636
    %v4638 = vsel %vm4609, %v4632, 0.0
    %4639 = vadd.xlane.f32.xlu0 %v4638
    %v4640 = vpop.xlane.xlu0 %4639
    %v4641 = vsel %vm4609, %v4633, 0.0
    %4642 = vadd.xlane.f32.xlu0 %v4641
    %v4643 = vpop.xlane.xlu0 %4642
    %v4644 = vsel %vm4609, %v4634, 0.0
    %4645 = vadd.xlane.f32.xlu0 %v4644
    %v4646 = vpop.xlane.xlu0 %4645
    %v4647 = vmul.f32 %v4637, %v4622
    %v4648 = vmul.f32 %v4640, %v4622
    %v4649 = vmul.f32 %v4643, %v4622
    %v4650 = vmul.f32 %v4646, %v4622
    %v4651 = vadd.f32 %v4647, 1e-06
    %v4652 = vadd.f32 %v4648, 1e-06
    %v4653 = vadd.f32 %v4649, 1e-06
    %v4654 = vadd.f32 %v4650, 1e-06
    %v4655 = vrsqrt.pop %v4651
    %v4656 = vrsqrt.pop %v4652
    %v4657 = vrsqrt.pop %v4653
    %v4658 = vrsqrt.pop %v4654
    %v4659 = vmul.f32 %v4627, %v4655
    %v4660 = vmul.f32 %v4628, %v4656
    %v4661 = vmul.f32 %v4629, %v4657
    %v4662 = vmul.f32 %v4630, %v4658
    %v4664 = vlaneseq
    %v4665 = vshrl.u32 %v4664, 7
    %v4666 = vsub.s32 0, %v4665
    %v4667 = vrot.slane %v4549, %v4666
    %v4669 = vmul.f32 %v4659, %v4667
    %v4670 = vmul.f32 %v4660, %v4667
    %v4671 = vmul.f32 %v4661, %v4667
    %v4672 = vmul.f32 %v4662, %v4667
    %v4674 = vlaneseq
    %v4675 = vshrl.u32 %v4674, 7
    %v4676 = vsub.s32 0, %v4675
    %v4677 = vrot.slane %v4550, %v4676
    %v4679 = vadd.f32 %v4669, %v4677
    %v4680 = vadd.f32 %v4670, %v4677
    %v4681 = vadd.f32 %v4671, %v4677
    %v4682 = vadd.f32 %v4672, %v4677
    %v4683 = vmul.f32 %v4679, %v4679
    %v4684 = vmul.f32 %v4680, %v4680
    %v4685 = vmul.f32 %v4681, %v4681
    %v4686 = vmul.f32 %v4682, %v4682
    %v4687 = vmul.f32 %v4679, %v4683
    %v4688 = vmul.f32 %v4680, %v4684
    %v4689 = vmul.f32 %v4681, %v4685
    %v4690 = vmul.f32 %v4682, %v4686
    %v4691 = vmul.f32 %v4687, 0.044715
    %v4692 = vmul.f32 %v4688, 0.044715
    %v4693 = vmul.f32 %v4689, 0.044715
    %v4694 = vmul.f32 %v4690, 0.044715
    %v4695 = vadd.f32 %v4679, %v4691
    %v4696 = vadd.f32 %v4680, %v4692
    %v4697 = vadd.f32 %v4681, %v4693
    %v4698 = vadd.f32 %v4682, %v4694
    %v4699 = vmul.f32 %v4695, 0.7978846
    %v4700 = vmul.f32 %v4696, 0.7978846
    %v4701 = vmul.f32 %v4697, 0.7978846
    %v4702 = vmul.f32 %v4698, 0.7978846
    %v4703 = vtanh.pop %v4699
    %v4704 = vtanh.pop %v4700
    %v4705 = vtanh.pop %v4701
    %v4706 = vtanh.pop %v4702
    %v4707 = vadd.f32 %v4703, 1.0
    %v4708 = vadd.f32 %v4704, 1.0
    %v4709 = vadd.f32 %v4705, 1.0
    %v4710 = vadd.f32 %v4706, 1.0
    %v4711 = vmul.f32 %v4707, 0.5
    %v4712 = vmul.f32 %v4708, 0.5
    %v4713 = vmul.f32 %v4709, 0.5
    %v4714 = vmul.f32 %v4710, 0.5
    %v4715 = vmul.f32 %v4679, %v4711
    %v4716 = vmul.f32 %v4680, %v4712
    %v4717 = vmul.f32 %v4681, %v4713
    %v4718 = vmul.f32 %v4682, %v4714
    %v4719 = vpack.c.bf16 %v4716, %v4715
    %v4720 = vpack.c.bf16 %v4718, %v4717
    %v4722 = vlaneseq
    %v4723 = vshrl.u32 %v4722, 7
    %v4724 = vsub.s32 0, %v4723
    %v4725 = vrot.slane %v4553, %v4724
    %v4728 = vsel %vm4609, %v4719, 0
    %v4731 = vsel %vm4609, %v4720, 0
    %v4734 = vsel %vm1495, %v4552, 0
    %4736 = vmatprep.subr.bf16.mxu0 0
    %4737 = vmatpush1.bf16.msra.mxu0 %v4734
    %4738 = vmatprep.subr.bf16.mxu0 0
    %4739 = vmatpush1.bf16.msra.mxu0 0
    %4740 = vmatprep.subr.bf16.mxu0 0
    %4741 = vmatpush1.bf16.msra.mxu0 0
    %4742 = vmatprep.subr.bf16.mxu0 0
    %4743 = vmatpush1.bf16.msra.mxu0 0
    %4744 = vmatprep.subr.bf16.mxu0 0
    %4745 = vmatpush1.bf16.msra.mxu0 0
    %4746 = vmatprep.subr.bf16.mxu0 0
    %4747 = vmatpush1.bf16.msra.mxu0 0
    %4748 = vmatprep.subr.bf16.mxu0 0
    %4749 = vmatpush1.bf16.msra.mxu0 0
    %4750 = vmatprep.subr.bf16.mxu0 0
    %4751 = vmatpush1.bf16.msra.mxu0 0
    %4752 = vmatprep.subr.bf16.mxu0 0
    %4753 = vmatpush1.bf16.msra.mxu0 0
    %4754 = vmatprep.subr.bf16.mxu0 0
    %4755 = vmatpush1.bf16.msra.mxu0 0
    %4756 = vmatprep.subr.bf16.mxu0 0
    %4757 = vmatpush1.bf16.msra.mxu0 0
    %4758 = vmatprep.subr.bf16.mxu0 0
    %4759 = vmatpush1.bf16.msra.mxu0 0
    %4760 = vmatprep.subr.bf16.mxu0 0
    %4761 = vmatpush1.bf16.msra.mxu0 0
    %4762 = vmatprep.subr.bf16.mxu0 0
    %4763 = vmatpush1.bf16.msra.mxu0 0
    %4764 = vmatprep.subr.bf16.mxu0 0
    %4765 = vmatpush1.bf16.msra.mxu0 0
    %4766 = vmatprep.subr.bf16.mxu0 0
    %4767 = vmatpush1.bf16.msra.mxu0 0
    %4768 = vmatprep.mubr.bf16.mxu0 0
    %4769 = vmatmul.mubr.bf16.gmra.mrb[0].mxu0 %v4728
    %v4770 = vpop.f32.mrb[0].mxu0
    %v4771 = vadd.f32 %v4725, %v4770
    %v4772 = vpop.f32.mrb[0].mxu0
    %v4773 = vpop.f32.mrb[0].mxu0
    %v4774 = vadd.f32 %v4725, %v4773
    %v4775 = vpop.f32.mrb[0].mxu0
    %4776 = vmatprep.mubr.bf16.mxu0 0
    %4777 = vmatmul.mubr.bf16.gmra.mrb[0].mxu0 %v4731
    %v4778 = vpop.f32.mrb[0].mxu0
    %v4779 = vadd.f32 %v4725, %v4778
    %v4780 = vpop.f32.mrb[0].mxu0
    %v4781 = vpop.f32.mrb[0].mxu0
    %v4782 = vadd.f32 %v4725, %v4781
    %v4783 = vpop.f32.mrb[0].mxu0
    %4784 = vdwg.mxu0
    %v4785 = vmul.f32 %v4771, %v4771
    %v4786 = vmul.f32 %v4774, %v4774
    %v4787 = vmul.f32 %v4779, %v4779
    %v4788 = vmul.f32 %v4782, %v4782
    %v4789 = vmul.f32 %v4771, %v4785
    %v4790 = vmul.f32 %v4774, %v4786
    %v4791 = vmul.f32 %v4779, %v4787
    %v4792 = vmul.f32 %v4782, %v4788
    %v4793 = vmul.f32 %v4789, 0.044715
    %v4794 = vmul.f32 %v4790, 0.044715
    %v4795 = vmul.f32 %v4791, 0.044715
    %v4796 = vmul.f32 %v4792, 0.044715
    %v4797 = vadd.f32 %v4771, %v4793
    %v4798 = vadd.f32 %v4774, %v4794
    %v4799 = vadd.f32 %v4779, %v4795
    %v4800 = vadd.f32 %v4782, %v4796
    %v4801 = vmul.f32 %v4797, 0.7978846
    %v4802 = vmul.f32 %v4798, 0.7978846
    %v4803 = vmul.f32 %v4799, 0.7978846
    %v4804 = vmul.f32 %v4800, 0.7978846
    %v4805 = vtanh.pop %v4801
    %v4806 = vtanh.pop %v4802
    %v4807 = vtanh.pop %v4803
    %v4808 = vtanh.pop %v4804
    %v4809 = vadd.f32 %v4805, 1.0
    %v4810 = vadd.f32 %v4806, 1.0
    %v4811 = vadd.f32 %v4807, 1.0
    %v4812 = vadd.f32 %v4808, 1.0
    %v4813 = vmul.f32 %v4809, 0.5
    %v4814 = vmul.f32 %v4810, 0.5
    %v4815 = vmul.f32 %v4811, 0.5
    %v4816 = vmul.f32 %v4812, 0.5
    %v4817 = vmul.f32 %v4771, %v4813
    %v4818 = vmul.f32 %v4774, %v4814
    %v4819 = vmul.f32 %v4779, %v4815
    %v4820 = vmul.f32 %v4782, %v4816
    %v4821 = vpack.c.bf16 %v4818, %v4817
    %v4822 = vpack.c.bf16 %v4820, %v4819
    %vm4823 = vcmask 31744
    %v4825 = vsel %vm4823, %v4821, 0
    %v4828 = vsel %vm4823, %v4822, 0
    %v4831 = vsel %vm4823, %v4541, 0
    %4833 = vmatprep.subr.bf16.mxu0 0
    %4834 = vmatpush1.bf16.xpose.msra.mxu0 %v4831
    %4835 = vmatprep.subr.bf16.mxu0 0
    %4836 = vmatpush1.bf16.xpose.msra.mxu0 0
    %4837 = vmatprep.subr.bf16.mxu0 0
    %4838 = vmatpush1.bf16.xpose.msra.mxu0 0
    %4839 = vmatprep.subr.bf16.mxu0 0
    %4840 = vmatpush1.bf16.xpose.msra.mxu0 0
    %4841 = vmatprep.subr.bf16.mxu0 0
    %4842 = vmatpush1.bf16.xpose.msra.mxu0 0
    %4843 = vmatprep.subr.bf16.mxu0 0
    %4844 = vmatpush1.bf16.xpose.msra.mxu0 0
    %4845 = vmatprep.subr.bf16.mxu0 0
    %4846 = vmatpush1.bf16.xpose.msra.mxu0 0
    %4847 = vmatprep.subr.bf16.mxu0 0
    %4848 = vmatpush1.bf16.xpose.msra.mxu0 0
    %4849 = vmatprep.subr.bf16.mxu0 0
    %4850 = vmatpush1.bf16.xpose.msra.mxu0 0
    %4851 = vmatprep.subr.bf16.mxu0 0
    %4852 = vmatpush1.bf16.xpose.msra.mxu0 0
    %4853 = vmatprep.subr.bf16.mxu0 0
    %4854 = vmatpush1.bf16.xpose.msra.mxu0 0
    %4855 = vmatprep.subr.bf16.mxu0 0
    %4856 = vmatpush1.bf16.xpose.msra.mxu0 0
    %4857 = vmatprep.subr.bf16.mxu0 0
    %4858 = vmatpush1.bf16.xpose.msra.mxu0 0
    %4859 = vmatprep.subr.bf16.mxu0 0
    %4860 = vmatpush1.bf16.xpose.msra.mxu0 0
    %4861 = vmatprep.subr.bf16.mxu0 0
    %4862 = vmatpush1.bf16.xpose.msra.mxu0 0
    %4863 = vmatprep.subr.bf16.mxu0 0
    %4864 = vmatpush1.bf16.xpose.msra.mxu0 0
    %4865 = vmatprep.mubr.bf16.mxu0 0
    %4866 = vmatmul.mubr.bf16.gmra.mrb[0].mxu0 %v4825
    %v4867 = vpop.f32.mrb[0].mxu0
    %v4868 = vadd.f32 0.0, %v4867
    %v4869 = vpop.f32.mrb[0].mxu0
    %v4870 = vpop.f32.mrb[0].mxu0
    %v4871 = vadd.f32 0.0, %v4870
    %v4872 = vpop.f32.mrb[0].mxu0
    %4873 = vmatprep.mubr.bf16.mxu0 0
    %4874 = vmatmul.mubr.bf16.gmra.mrb[0].mxu0 %v4828
    %v4875 = vpop.f32.mrb[0].mxu0
    %v4876 = vadd.f32 0.0, %v4875
    %v4877 = vpop.f32.mrb[0].mxu0
    %v4878 = vpop.f32.mrb[0].mxu0
    %v4879 = vadd.f32 0.0, %v4878
    %v4880 = vpop.f32.mrb[0].mxu0
    %4881 = vdwg.mxu0
    %4884 = vrot.lane.b32.xlu0 %v4821, 124
    %v4885 = vpop.permute.xlu0 %4884
    %4886 = vrot.lane.b32.xlu0 %v4822, 124
    %v4887 = vpop.permute.xlu0 %4886
    %v4889 = vsel %vm4823, %v4885, 0
    %v4892 = vsel %vm4823, %v4887, 0
    %4894 = vmatprep.subr.bf16.mxu0 0
    %4895 = vmatpush1.bf16.xpose.msra.mxu0 %v4831
    %4896 = vmatprep.subr.bf16.mxu0 0
    %4897 = vmatpush1.bf16.xpose.msra.mxu0 0
    %4898 = vmatprep.subr.bf16.mxu0 0
    %4899 = vmatpush1.bf16.xpose.msra.mxu0 0
    %4900 = vmatprep.subr.bf16.mxu0 0
    %4901 = vmatpush1.bf16.xpose.msra.mxu0 0
    %4902 = vmatprep.subr.bf16.mxu0 0
    %4903 = vmatpush1.bf16.xpose.msra.mxu0 0
    %4904 = vmatprep.subr.bf16.mxu0 0
    %4905 = vmatpush1.bf16.xpose.msra.mxu0 0
    %4906 = vmatprep.subr.bf16.mxu0 0
    %4907 = vmatpush1.bf16.xpose.msra.mxu0 0
    %4908 = vmatprep.subr.bf16.mxu0 0
    %4909 = vmatpush1.bf16.xpose.msra.mxu0 0
    %4910 = vmatprep.subr.bf16.mxu0 0
    %4911 = vmatpush1.bf16.xpose.msra.mxu0 0
    %4912 = vmatprep.subr.bf16.mxu0 0
    %4913 = vmatpush1.bf16.xpose.msra.mxu0 0
    %4914 = vmatprep.subr.bf16.mxu0 0
    %4915 = vmatpush1.bf16.xpose.msra.mxu0 0
    %4916 = vmatprep.subr.bf16.mxu0 0
    %4917 = vmatpush1.bf16.xpose.msra.mxu0 0
    %4918 = vmatprep.subr.bf16.mxu0 0
    %4919 = vmatpush1.bf16.xpose.msra.mxu0 0
    %4920 = vmatprep.subr.bf16.mxu0 0
    %4921 = vmatpush1.bf16.xpose.msra.mxu0 0
    %4922 = vmatprep.subr.bf16.mxu0 0
    %4923 = vmatpush1.bf16.xpose.msra.mxu0 0
    %4924 = vmatprep.subr.bf16.mxu0 0
    %4925 = vmatpush1.bf16.xpose.msra.mxu0 0
    %4926 = vmatprep.mubr.bf16.mxu0 0
    %4927 = vmatmul.mubr.bf16.gmra.mrb[0].mxu0 %v4889
    %v4928 = vpop.f32.mrb[0].mxu0
    %v4929 = vadd.f32 0.0, %v4928
    %v4930 = vpop.f32.mrb[0].mxu0
    %v4931 = vpop.f32.mrb[0].mxu0
    %v4932 = vadd.f32 0.0, %v4931
    %v4933 = vpop.f32.mrb[0].mxu0
    %4934 = vmatprep.mubr.bf16.mxu0 0
    %4935 = vmatmul.mubr.bf16.gmra.mrb[0].mxu0 %v4892
    %v4936 = vpop.f32.mrb[0].mxu0
    %v4937 = vadd.f32 0.0, %v4936
    %v4938 = vpop.f32.mrb[0].mxu0
    %v4939 = vpop.f32.mrb[0].mxu0
    %v4940 = vadd.f32 0.0, %v4939
    %v4941 = vpop.f32.mrb[0].mxu0
    %4942 = vdwg.mxu0
    %4943 = vrot.lane.b32.xlu0 %v4821, 120
    %v4944 = vpop.permute.xlu0 %4943
    %4945 = vrot.lane.b32.xlu0 %v4822, 120
    %v4946 = vpop.permute.xlu0 %4945
    %v4948 = vsel %vm4823, %v4944, 0
    %v4951 = vsel %vm4823, %v4946, 0
    %4953 = vmatprep.subr.bf16.mxu0 0
    %4954 = vmatpush1.bf16.xpose.msra.mxu0 %v4831
    %4955 = vmatprep.subr.bf16.mxu0 0
    %4956 = vmatpush1.bf16.xpose.msra.mxu0 0
    %4957 = vmatprep.subr.bf16.mxu0 0
    %4958 = vmatpush1.bf16.xpose.msra.mxu0 0
    %4959 = vmatprep.subr.bf16.mxu0 0
    %4960 = vmatpush1.bf16.xpose.msra.mxu0 0
    %4961 = vmatprep.subr.bf16.mxu0 0
    %4962 = vmatpush1.bf16.xpose.msra.mxu0 0
    %4963 = vmatprep.subr.bf16.mxu0 0
    %4964 = vmatpush1.bf16.xpose.msra.mxu0 0
    %4965 = vmatprep.subr.bf16.mxu0 0
    %4966 = vmatpush1.bf16.xpose.msra.mxu0 0
    %4967 = vmatprep.subr.bf16.mxu0 0
    %4968 = vmatpush1.bf16.xpose.msra.mxu0 0
    %4969 = vmatprep.subr.bf16.mxu0 0
    %4970 = vmatpush1.bf16.xpose.msra.mxu0 0
    %4971 = vmatprep.subr.bf16.mxu0 0
    %4972 = vmatpush1.bf16.xpose.msra.mxu0 0
    %4973 = vmatprep.subr.bf16.mxu0 0
    %4974 = vmatpush1.bf16.xpose.msra.mxu0 0
    %4975 = vmatprep.subr.bf16.mxu0 0
    %4976 = vmatpush1.bf16.xpose.msra.mxu0 0
    %4977 = vmatprep.subr.bf16.mxu0 0
    %4978 = vmatpush1.bf16.xpose.msra.mxu0 0
    %4979 = vmatprep.subr.bf16.mxu0 0
    %4980 = vmatpush1.bf16.xpose.msra.mxu0 0
    %4981 = vmatprep.subr.bf16.mxu0 0
    %4982 = vmatpush1.bf16.xpose.msra.mxu0 0
    %4983 = vmatprep.subr.bf16.mxu0 0
    %4984 = vmatpush1.bf16.xpose.msra.mxu0 0
    %4985 = vmatprep.mubr.bf16.mxu0 0
    %4986 = vmatmul.mubr.bf16.gmra.mrb[0].mxu0 %v4948
    %v4987 = vpop.f32.mrb[0].mxu0
    %v4988 = vadd.f32 0.0, %v4987
    %v4989 = vpop.f32.mrb[0].mxu0
    %v4990 = vpop.f32.mrb[0].mxu0
    %v4991 = vadd.f32 0.0, %v4990
    %v4992 = vpop.f32.mrb[0].mxu0
    %4993 = vmatprep.mubr.bf16.mxu0 0
    %4994 = vmatmul.mubr.bf16.gmra.mrb[0].mxu0 %v4951
    %v4995 = vpop.f32.mrb[0].mxu0
    %v4996 = vadd.f32 0.0, %v4995
    %v4997 = vpop.f32.mrb[0].mxu0
    %v4998 = vpop.f32.mrb[0].mxu0
    %v4999 = vadd.f32 0.0, %v4998
    %v5000 = vpop.f32.mrb[0].mxu0
    %5001 = vdwg.mxu0
    %5002 = vrot.lane.b32.xlu0 %v4821, 116
    %v5003 = vpop.permute.xlu0 %5002
    %5004 = vrot.lane.b32.xlu0 %v4822, 116
    %v5005 = vpop.permute.xlu0 %5004
    %v5007 = vsel %vm4823, %v5003, 0
    %v5010 = vsel %vm4823, %v5005, 0
    %5012 = vmatprep.subr.bf16.mxu0 0
    %5013 = vmatpush1.bf16.xpose.msra.mxu0 %v4831
    %5014 = vmatprep.subr.bf16.mxu0 0
    %5015 = vmatpush1.bf16.xpose.msra.mxu0 0
    %5016 = vmatprep.subr.bf16.mxu0 0
    %5017 = vmatpush1.bf16.xpose.msra.mxu0 0
    %5018 = vmatprep.subr.bf16.mxu0 0
    %5019 = vmatpush1.bf16.xpose.msra.mxu0 0
    %5020 = vmatprep.subr.bf16.mxu0 0
    %5021 = vmatpush1.bf16.xpose.msra.mxu0 0
    %5022 = vmatprep.subr.bf16.mxu0 0
    %5023 = vmatpush1.bf16.xpose.msra.mxu0 0
    %5024 = vmatprep.subr.bf16.mxu0 0
    %5025 = vmatpush1.bf16.xpose.msra.mxu0 0
    %5026 = vmatprep.subr.bf16.mxu0 0
    %5027 = vmatpush1.bf16.xpose.msra.mxu0 0
    %5028 = vmatprep.subr.bf16.mxu0 0
    %5029 = vmatpush1.bf16.xpose.msra.mxu0 0
    %5030 = vmatprep.subr.bf16.mxu0 0
    %5031 = vmatpush1.bf16.xpose.msra.mxu0 0
    %5032 = vmatprep.subr.bf16.mxu0 0
    %5033 = vmatpush1.bf16.xpose.msra.mxu0 0
    %5034 = vmatprep.subr.bf16.mxu0 0
    %5035 = vmatpush1.bf16.xpose.msra.mxu0 0
    %5036 = vmatprep.subr.bf16.mxu0 0
    %5037 = vmatpush1.bf16.xpose.msra.mxu0 0
    %5038 = vmatprep.subr.bf16.mxu0 0
    %5039 = vmatpush1.bf16.xpose.msra.mxu0 0
    %5040 = vmatprep.subr.bf16.mxu0 0
    %5041 = vmatpush1.bf16.xpose.msra.mxu0 0
    %5042 = vmatprep.subr.bf16.mxu0 0
    %5043 = vmatpush1.bf16.xpose.msra.mxu0 0
    %5044 = vmatprep.mubr.bf16.mxu0 0
    %5045 = vmatmul.mubr.bf16.gmra.mrb[0].mxu0 %v5007
    %v5046 = vpop.f32.mrb[0].mxu0
    %v5047 = vadd.f32 0.0, %v5046
    %v5048 = vpop.f32.mrb[0].mxu0
    %v5049 = vpop.f32.mrb[0].mxu0
    %v5050 = vadd.f32 0.0, %v5049
    %v5051 = vpop.f32.mrb[0].mxu0
    %5052 = vmatprep.mubr.bf16.mxu0 0
    %5053 = vmatmul.mubr.bf16.gmra.mrb[0].mxu0 %v5010
    %v5054 = vpop.f32.mrb[0].mxu0
    %v5055 = vadd.f32 0.0, %v5054
    %v5056 = vpop.f32.mrb[0].mxu0
    %v5057 = vpop.f32.mrb[0].mxu0
    %v5058 = vadd.f32 0.0, %v5057
    %v5059 = vpop.f32.mrb[0].mxu0
    %5060 = vdwg.mxu0
    %5063 = vrot.lane.b32.xlu0 %v4546, 120
    %v5064 = vpop.permute.xlu0 %5063
    %5065 = vrot.lane.b32.xlu0 %v4547, 120
    %v5066 = vpop.permute.xlu0 %5065
    %5069 = vmatprep.subr.bf16.mxu0 0
    %5070 = vmatpush1.bf16.msra.mxu0 %v5064
    %5071 = vmatprep.subr.bf16.mxu0 0
    %5072 = vmatpush1.bf16.msra.mxu0 %v5066
    %5073 = vmatprep.subr.bf16.mxu0 0
    %5074 = vmatpush1.bf16.msra.mxu0 0
    %5075 = vmatprep.subr.bf16.mxu0 0
    %5076 = vmatpush1.bf16.msra.mxu0 0
    %5077 = vmatprep.subr.bf16.mxu0 0
    %5078 = vmatpush1.bf16.msra.mxu0 0
    %5079 = vmatprep.subr.bf16.mxu0 0
    %5080 = vmatpush1.bf16.msra.mxu0 0
    %5081 = vmatprep.subr.bf16.mxu0 0
    %5082 = vmatpush1.bf16.msra.mxu0 0
    %5083 = vmatprep.subr.bf16.mxu0 0
    %5084 = vmatpush1.bf16.msra.mxu0 0
    %5085 = vmatprep.subr.bf16.mxu0 0
    %5086 = vmatpush1.bf16.msra.mxu0 0
    %5087 = vmatprep.subr.bf16.mxu0 0
    %5088 = vmatpush1.bf16.msra.mxu0 0
    %5089 = vmatprep.subr.bf16.mxu0 0
    %5090 = vmatpush1.bf16.msra.mxu0 0
    %5091 = vmatprep.subr.bf16.mxu0 0
    %5092 = vmatpush1.bf16.msra.mxu0 0
    %5093 = vmatprep.subr.bf16.mxu0 0
    %5094 = vmatpush1.bf16.msra.mxu0 0
    %5095 = vmatprep.subr.bf16.mxu0 0
    %5096 = vmatpush1.bf16.msra.mxu0 0
    %5097 = vmatprep.subr.bf16.mxu0 0
    %5098 = vmatpush1.bf16.msra.mxu0 0
    %5099 = vmatprep.subr.bf16.mxu0 0
    %5100 = vmatpush1.bf16.msra.mxu0 0
    %5101 = vmatprep.mubr.bf16.mxu0 0
    %5102 = vmatmul.mubr.bf16.gmra.mrb[0].mxu0 %v3798
    %v5103 = vpop.f32.mrb[0].mxu0
    %v5104 = vadd.f32 %v4558, %v5103
    %v5105 = vpop.f32.mrb[0].mxu0
    %v5106 = vpop.f32.mrb[0].mxu0
    %v5107 = vadd.f32 %v4558, %v5106
    %v5108 = vpop.f32.mrb[0].mxu0
    %5109 = vmatprep.mubr.bf16.mxu0 0
    %5110 = vmatmul.mubr.bf16.gmra.mrb[0].mxu0 %v3801
    %v5111 = vpop.f32.mrb[0].mxu0
    %v5112 = vadd.f32 %v4558, %v5111
    %v5113 = vpop.f32.mrb[0].mxu0
    %v5114 = vpop.f32.mrb[0].mxu0
    %v5115 = vadd.f32 %v4558, %v5114
    %v5116 = vpop.f32.mrb[0].mxu0
    %5117 = vdwg.mxu0
    %v5118 = vsel %vm4609, %v5104, 0.0
    %5119 = vadd.xlane.f32.xlu0 %v5118
    %v5120 = vpop.xlane.xlu0 %5119
    %v5121 = vsel %vm4609, %v5107, 0.0
    %5122 = vadd.xlane.f32.xlu0 %v5121
    %v5123 = vpop.xlane.xlu0 %5122
    %v5124 = vsel %vm4609, %v5112, 0.0
    %5125 = vadd.xlane.f32.xlu0 %v5124
    %v5126 = vpop.xlane.xlu0 %5125
    %v5127 = vsel %vm4609, %v5115, 0.0
    %5128 = vadd.xlane.f32.xlu0 %v5127
    %v5129 = vpop.xlane.xlu0 %5128
    %v5130 = vmul.f32 %v5120, %v4622
    %v5131 = vmul.f32 %v5123, %v4622
    %v5132 = vmul.f32 %v5126, %v4622
    %v5133 = vmul.f32 %v5129, %v4622
    %v5134 = vsub.f32 %v5104, %v5130
    %v5135 = vsub.f32 %v5107, %v5131
    %v5136 = vsub.f32 %v5112, %v5132
    %v5137 = vsub.f32 %v5115, %v5133
    %v5138 = vmul.f32 %v5134, %v5134
    %v5139 = vmul.f32 %v5135, %v5135
    %v5140 = vmul.f32 %v5136, %v5136
    %v5141 = vmul.f32 %v5137, %v5137
    %v5142 = vsel %vm4609, %v5138, 0.0
    %5143 = vadd.xlane.f32.xlu0 %v5142
    %v5144 = vpop.xlane.xlu0 %5143
    %v5145 = vsel %vm4609, %v5139, 0.0
    %5146 = vadd.xlane.f32.xlu0 %v5145
    %v5147 = vpop.xlane.xlu0 %5146
    %v5148 = vsel %vm4609, %v5140, 0.0
    %5149 = vadd.xlane.f32.xlu0 %v5148
    %v5150 = vpop.xlane.xlu0 %5149
    %v5151 = vsel %vm4609, %v5141, 0.0
    %5152 = vadd.xlane.f32.xlu0 %v5151
    %v5153 = vpop.xlane.xlu0 %5152
    %v5154 = vmul.f32 %v5144, %v4622
    %v5155 = vmul.f32 %v5147, %v4622
    %v5156 = vmul.f32 %v5150, %v4622
    %v5157 = vmul.f32 %v5153, %v4622
    %v5158 = vadd.f32 %v5154, 1e-06
    %v5159 = vadd.f32 %v5155, 1e-06
    %v5160 = vadd.f32 %v5156, 1e-06
    %v5161 = vadd.f32 %v5157, 1e-06
    %v5162 = vrsqrt.pop %v5158
    %v5163 = vrsqrt.pop %v5159
    %v5164 = vrsqrt.pop %v5160
    %v5165 = vrsqrt.pop %v5161
    %v5166 = vmul.f32 %v5134, %v5162
    %v5167 = vmul.f32 %v5135, %v5163
    %v5168 = vmul.f32 %v5136, %v5164
    %v5169 = vmul.f32 %v5137, %v5165
    %v5170 = vmul.f32 %v5166, %v4667
    %v5171 = vmul.f32 %v5167, %v4667
    %v5172 = vmul.f32 %v5168, %v4667
    %v5173 = vmul.f32 %v5169, %v4667
    %v5174 = vadd.f32 %v5170, %v4677
    %v5175 = vadd.f32 %v5171, %v4677
    %v5176 = vadd.f32 %v5172, %v4677
    %v5177 = vadd.f32 %v5173, %v4677
    %v5178 = vmul.f32 %v5174, %v5174
    %v5179 = vmul.f32 %v5175, %v5175
    %v5180 = vmul.f32 %v5176, %v5176
    %v5181 = vmul.f32 %v5177, %v5177
    %v5182 = vmul.f32 %v5174, %v5178
    %v5183 = vmul.f32 %v5175, %v5179
    %v5184 = vmul.f32 %v5176, %v5180
    %v5185 = vmul.f32 %v5177, %v5181
    %v5186 = vmul.f32 %v5182, 0.044715
    %v5187 = vmul.f32 %v5183, 0.044715
    %v5188 = vmul.f32 %v5184, 0.044715
    %v5189 = vmul.f32 %v5185, 0.044715
    %v5190 = vadd.f32 %v5174, %v5186
    %v5191 = vadd.f32 %v5175, %v5187
    %v5192 = vadd.f32 %v5176, %v5188
    %v5193 = vadd.f32 %v5177, %v5189
    %v5194 = vmul.f32 %v5190, 0.7978846
    %v5195 = vmul.f32 %v5191, 0.7978846
    %v5196 = vmul.f32 %v5192, 0.7978846
    %v5197 = vmul.f32 %v5193, 0.7978846
    %v5198 = vtanh.pop %v5194
    %v5199 = vtanh.pop %v5195
    %v5200 = vtanh.pop %v5196
    %v5201 = vtanh.pop %v5197
    %v5202 = vadd.f32 %v5198, 1.0
    %v5203 = vadd.f32 %v5199, 1.0
    %v5204 = vadd.f32 %v5200, 1.0
    %v5205 = vadd.f32 %v5201, 1.0
    %v5206 = vmul.f32 %v5202, 0.5
    %v5207 = vmul.f32 %v5203, 0.5
    %v5208 = vmul.f32 %v5204, 0.5
    %v5209 = vmul.f32 %v5205, 0.5
    %v5210 = vmul.f32 %v5174, %v5206
    %v5211 = vmul.f32 %v5175, %v5207
    %v5212 = vmul.f32 %v5176, %v5208
    %v5213 = vmul.f32 %v5177, %v5209
    %v5214 = vpack.c.bf16 %v5211, %v5210
    %v5215 = vpack.c.bf16 %v5213, %v5212
    %v5217 = vsel %vm4609, %v5214, 0
    %v5220 = vsel %vm4609, %v5215, 0
    %5222 = vmatprep.subr.bf16.mxu0 0
    %5223 = vmatpush1.bf16.msra.mxu0 %v4734
    %5224 = vmatprep.subr.bf16.mxu0 0
    %5225 = vmatpush1.bf16.msra.mxu0 0
    %5226 = vmatprep.subr.bf16.mxu0 0
    %5227 = vmatpush1.bf16.msra.mxu0 0
    %5228 = vmatprep.subr.bf16.mxu0 0
    %5229 = vmatpush1.bf16.msra.mxu0 0
    %5230 = vmatprep.subr.bf16.mxu0 0
    %5231 = vmatpush1.bf16.msra.mxu0 0
    %5232 = vmatprep.subr.bf16.mxu0 0
    %5233 = vmatpush1.bf16.msra.mxu0 0
    %5234 = vmatprep.subr.bf16.mxu0 0
    %5235 = vmatpush1.bf16.msra.mxu0 0
    %5236 = vmatprep.subr.bf16.mxu0 0
    %5237 = vmatpush1.bf16.msra.mxu0 0
    %5238 = vmatprep.subr.bf16.mxu0 0
    %5239 = vmatpush1.bf16.msra.mxu0 0
    %5240 = vmatprep.subr.bf16.mxu0 0
    %5241 = vmatpush1.bf16.msra.mxu0 0
    %5242 = vmatprep.subr.bf16.mxu0 0
    %5243 = vmatpush1.bf16.msra.mxu0 0
    %5244 = vmatprep.subr.bf16.mxu0 0
    %5245 = vmatpush1.bf16.msra.mxu0 0
    %5246 = vmatprep.subr.bf16.mxu0 0
    %5247 = vmatpush1.bf16.msra.mxu0 0
    %5248 = vmatprep.subr.bf16.mxu0 0
    %5249 = vmatpush1.bf16.msra.mxu0 0
    %5250 = vmatprep.subr.bf16.mxu0 0
    %5251 = vmatpush1.bf16.msra.mxu0 0
    %5252 = vmatprep.subr.bf16.mxu0 0
    %5253 = vmatpush1.bf16.msra.mxu0 0
    %5254 = vmatprep.mubr.bf16.mxu0 0
    %5255 = vmatmul.mubr.bf16.gmra.mrb[0].mxu0 %v5217
    %v5256 = vpop.f32.mrb[0].mxu0
    %v5257 = vadd.f32 %v4725, %v5256
    %v5258 = vpop.f32.mrb[0].mxu0
    %v5259 = vpop.f32.mrb[0].mxu0
    %v5260 = vadd.f32 %v4725, %v5259
    %v5261 = vpop.f32.mrb[0].mxu0
    %5262 = vmatprep.mubr.bf16.mxu0 0
    %5263 = vmatmul.mubr.bf16.gmra.mrb[0].mxu0 %v5220
    %v5264 = vpop.f32.mrb[0].mxu0
    %v5265 = vadd.f32 %v4725, %v5264
    %v5266 = vpop.f32.mrb[0].mxu0
    %v5267 = vpop.f32.mrb[0].mxu0
    %v5268 = vadd.f32 %v4725, %v5267
    %v5269 = vpop.f32.mrb[0].mxu0
    %5270 = vdwg.mxu0
    %v5271 = vmul.f32 %v5257, %v5257
    %v5272 = vmul.f32 %v5260, %v5260
    %v5273 = vmul.f32 %v5265, %v5265
    %v5274 = vmul.f32 %v5268, %v5268
    %v5275 = vmul.f32 %v5257, %v5271
    %v5276 = vmul.f32 %v5260, %v5272
    %v5277 = vmul.f32 %v5265, %v5273
    %v5278 = vmul.f32 %v5268, %v5274
    %v5279 = vmul.f32 %v5275, 0.044715
    %v5280 = vmul.f32 %v5276, 0.044715
    %v5281 = vmul.f32 %v5277, 0.044715
    %v5282 = vmul.f32 %v5278, 0.044715
    %v5283 = vadd.f32 %v5257, %v5279
    %v5284 = vadd.f32 %v5260, %v5280
    %v5285 = vadd.f32 %v5265, %v5281
    %v5286 = vadd.f32 %v5268, %v5282
    %v5287 = vmul.f32 %v5283, 0.7978846
    %v5288 = vmul.f32 %v5284, 0.7978846
    %v5289 = vmul.f32 %v5285, 0.7978846
    %v5290 = vmul.f32 %v5286, 0.7978846
    %v5291 = vtanh.pop %v5287
    %v5292 = vtanh.pop %v5288
    %v5293 = vtanh.pop %v5289
    %v5294 = vtanh.pop %v5290
    %v5295 = vadd.f32 %v5291, 1.0
    %v5296 = vadd.f32 %v5292, 1.0
    %v5297 = vadd.f32 %v5293, 1.0
    %v5298 = vadd.f32 %v5294, 1.0
    %v5299 = vmul.f32 %v5295, 0.5
    %v5300 = vmul.f32 %v5296, 0.5
    %v5301 = vmul.f32 %v5297, 0.5
    %v5302 = vmul.f32 %v5298, 0.5
    %v5303 = vmul.f32 %v5257, %v5299
    %v5304 = vmul.f32 %v5260, %v5300
    %v5305 = vmul.f32 %v5265, %v5301
    %v5306 = vmul.f32 %v5268, %v5302
    %v5307 = vpack.c.bf16 %v5304, %v5303
    %v5308 = vpack.c.bf16 %v5306, %v5305
    %v5310 = vsel %vm4823, %v5307, 0
    %v5313 = vsel %vm4823, %v5308, 0
    %5315 = vmatprep.subr.bf16.mxu0 0
    %5316 = vmatpush1.bf16.xpose.msra.mxu0 %v4831
    %5317 = vmatprep.subr.bf16.mxu0 0
    %5318 = vmatpush1.bf16.xpose.msra.mxu0 0
    %5319 = vmatprep.subr.bf16.mxu0 0
    %5320 = vmatpush1.bf16.xpose.msra.mxu0 0
    %5321 = vmatprep.subr.bf16.mxu0 0
    %5322 = vmatpush1.bf16.xpose.msra.mxu0 0
    %5323 = vmatprep.subr.bf16.mxu0 0
    %5324 = vmatpush1.bf16.xpose.msra.mxu0 0
    %5325 = vmatprep.subr.bf16.mxu0 0
    %5326 = vmatpush1.bf16.xpose.msra.mxu0 0
    %5327 = vmatprep.subr.bf16.mxu0 0
    %5328 = vmatpush1.bf16.xpose.msra.mxu0 0
    %5329 = vmatprep.subr.bf16.mxu0 0
    %5330 = vmatpush1.bf16.xpose.msra.mxu0 0
    %5331 = vmatprep.subr.bf16.mxu0 0
    %5332 = vmatpush1.bf16.xpose.msra.mxu0 0
    %5333 = vmatprep.subr.bf16.mxu0 0
    %5334 = vmatpush1.bf16.xpose.msra.mxu0 0
    %5335 = vmatprep.subr.bf16.mxu0 0
    %5336 = vmatpush1.bf16.xpose.msra.mxu0 0
    %5337 = vmatprep.subr.bf16.mxu0 0
    %5338 = vmatpush1.bf16.xpose.msra.mxu0 0
    %5339 = vmatprep.subr.bf16.mxu0 0
    %5340 = vmatpush1.bf16.xpose.msra.mxu0 0
    %5341 = vmatprep.subr.bf16.mxu0 0
    %5342 = vmatpush1.bf16.xpose.msra.mxu0 0
    %5343 = vmatprep.subr.bf16.mxu0 0
    %5344 = vmatpush1.bf16.xpose.msra.mxu0 0
    %5345 = vmatprep.subr.bf16.mxu0 0
    %5346 = vmatpush1.bf16.xpose.msra.mxu0 0
    %5347 = vmatprep.mubr.bf16.mxu0 0
    %5348 = vmatmul.mubr.bf16.gmra.mrb[0].mxu0 %v5310
    %v5349 = vpop.f32.mrb[0].mxu0
    %v5350 = vadd.f32 0.0, %v5349
    %v5351 = vpop.f32.mrb[0].mxu0
    %v5352 = vpop.f32.mrb[0].mxu0
    %v5353 = vadd.f32 0.0, %v5352
    %v5354 = vpop.f32.mrb[0].mxu0
    %5355 = vmatprep.mubr.bf16.mxu0 0
    %5356 = vmatmul.mubr.bf16.gmra.mrb[0].mxu0 %v5313
    %v5357 = vpop.f32.mrb[0].mxu0
    %v5358 = vadd.f32 0.0, %v5357
    %v5359 = vpop.f32.mrb[0].mxu0
    %v5360 = vpop.f32.mrb[0].mxu0
    %v5361 = vadd.f32 0.0, %v5360
    %v5362 = vpop.f32.mrb[0].mxu0
    %5363 = vdwg.mxu0
    %5366 = vrot.lane.b32.xlu0 %v5307, 124
    %v5367 = vpop.permute.xlu0 %5366
    %5368 = vrot.lane.b32.xlu0 %v5308, 124
    %v5369 = vpop.permute.xlu0 %5368
    %v5371 = vsel %vm4823, %v5367, 0
    %v5374 = vsel %vm4823, %v5369, 0
    %5376 = vmatprep.subr.bf16.mxu0 0
    %5377 = vmatpush1.bf16.xpose.msra.mxu0 %v4831
    %5378 = vmatprep.subr.bf16.mxu0 0
    %5379 = vmatpush1.bf16.xpose.msra.mxu0 0
    %5380 = vmatprep.subr.bf16.mxu0 0
    %5381 = vmatpush1.bf16.xpose.msra.mxu0 0
    %5382 = vmatprep.subr.bf16.mxu0 0
    %5383 = vmatpush1.bf16.xpose.msra.mxu0 0
    %5384 = vmatprep.subr.bf16.mxu0 0
    %5385 = vmatpush1.bf16.xpose.msra.mxu0 0
    %5386 = vmatprep.subr.bf16.mxu0 0
    %5387 = vmatpush1.bf16.xpose.msra.mxu0 0
    %5388 = vmatprep.subr.bf16.mxu0 0
    %5389 = vmatpush1.bf16.xpose.msra.mxu0 0
    %5390 = vmatprep.subr.bf16.mxu0 0
    %5391 = vmatpush1.bf16.xpose.msra.mxu0 0
    %5392 = vmatprep.subr.bf16.mxu0 0
    %5393 = vmatpush1.bf16.xpose.msra.mxu0 0
    %5394 = vmatprep.subr.bf16.mxu0 0
    %5395 = vmatpush1.bf16.xpose.msra.mxu0 0
    %5396 = vmatprep.subr.bf16.mxu0 0
    %5397 = vmatpush1.bf16.xpose.msra.mxu0 0
    %5398 = vmatprep.subr.bf16.mxu0 0
    %5399 = vmatpush1.bf16.xpose.msra.mxu0 0
    %5400 = vmatprep.subr.bf16.mxu0 0
    %5401 = vmatpush1.bf16.xpose.msra.mxu0 0
    %5402 = vmatprep.subr.bf16.mxu0 0
    %5403 = vmatpush1.bf16.xpose.msra.mxu0 0
    %5404 = vmatprep.subr.bf16.mxu0 0
    %5405 = vmatpush1.bf16.xpose.msra.mxu0 0
    %5406 = vmatprep.subr.bf16.mxu0 0
    %5407 = vmatpush1.bf16.xpose.msra.mxu0 0
    %5408 = vmatprep.mubr.bf16.mxu0 0
    %5409 = vmatmul.mubr.bf16.gmra.mrb[0].mxu0 %v5371
    %v5410 = vpop.f32.mrb[0].mxu0
    %v5411 = vadd.f32 0.0, %v5410
    %v5412 = vpop.f32.mrb[0].mxu0
    %v5413 = vpop.f32.mrb[0].mxu0
    %v5414 = vadd.f32 0.0, %v5413
    %v5415 = vpop.f32.mrb[0].mxu0
    %5416 = vmatprep.mubr.bf16.mxu0 0
    %5417 = vmatmul.mubr.bf16.gmra.mrb[0].mxu0 %v5374
    %v5418 = vpop.f32.mrb[0].mxu0
    %v5419 = vadd.f32 0.0, %v5418
    %v5420 = vpop.f32.mrb[0].mxu0
    %v5421 = vpop.f32.mrb[0].mxu0
    %v5422 = vadd.f32 0.0, %v5421
    %v5423 = vpop.f32.mrb[0].mxu0
    %5424 = vdwg.mxu0
    %5425 = vrot.lane.b32.xlu0 %v5307, 120
    %v5426 = vpop.permute.xlu0 %5425
    %5427 = vrot.lane.b32.xlu0 %v5308, 120
    %v5428 = vpop.permute.xlu0 %5427
    %v5430 = vsel %vm4823, %v5426, 0
    %v5433 = vsel %vm4823, %v5428, 0
    %5435 = vmatprep.subr.bf16.mxu0 0
    %5436 = vmatpush1.bf16.xpose.msra.mxu0 %v4831
    %5437 = vmatprep.subr.bf16.mxu0 0
    %5438 = vmatpush1.bf16.xpose.msra.mxu0 0
    %5439 = vmatprep.subr.bf16.mxu0 0
    %5440 = vmatpush1.bf16.xpose.msra.mxu0 0
    %5441 = vmatprep.subr.bf16.mxu0 0
    %5442 = vmatpush1.bf16.xpose.msra.mxu0 0
    %5443 = vmatprep.subr.bf16.mxu0 0
    %5444 = vmatpush1.bf16.xpose.msra.mxu0 0
    %5445 = vmatprep.subr.bf16.mxu0 0
    %5446 = vmatpush1.bf16.xpose.msra.mxu0 0
    %5447 = vmatprep.subr.bf16.mxu0 0
    %5448 = vmatpush1.bf16.xpose.msra.mxu0 0
    %5449 = vmatprep.subr.bf16.mxu0 0
    %5450 = vmatpush1.bf16.xpose.msra.mxu0 0
    %5451 = vmatprep.subr.bf16.mxu0 0
    %5452 = vmatpush1.bf16.xpose.msra.mxu0 0
    %5453 = vmatprep.subr.bf16.mxu0 0
    %5454 = vmatpush1.bf16.xpose.msra.mxu0 0
    %5455 = vmatprep.subr.bf16.mxu0 0
    %5456 = vmatpush1.bf16.xpose.msra.mxu0 0
    %5457 = vmatprep.subr.bf16.mxu0 0
    %5458 = vmatpush1.bf16.xpose.msra.mxu0 0
    %5459 = vmatprep.subr.bf16.mxu0 0
    %5460 = vmatpush1.bf16.xpose.msra.mxu0 0
    %5461 = vmatprep.subr.bf16.mxu0 0
    %5462 = vmatpush1.bf16.xpose.msra.mxu0 0
    %5463 = vmatprep.subr.bf16.mxu0 0
    %5464 = vmatpush1.bf16.xpose.msra.mxu0 0
    %5465 = vmatprep.subr.bf16.mxu0 0
    %5466 = vmatpush1.bf16.xpose.msra.mxu0 0
    %5467 = vmatprep.mubr.bf16.mxu0 0
    %5468 = vmatmul.mubr.bf16.gmra.mrb[0].mxu0 %v5430
    %v5469 = vpop.f32.mrb[0].mxu0
    %v5470 = vadd.f32 0.0, %v5469
    %v5471 = vpop.f32.mrb[0].mxu0
    %v5472 = vpop.f32.mrb[0].mxu0
    %v5473 = vadd.f32 0.0, %v5472
    %v5474 = vpop.f32.mrb[0].mxu0
    %5475 = vmatprep.mubr.bf16.mxu0 0
    %5476 = vmatmul.mubr.bf16.gmra.mrb[0].mxu0 %v5433
    %v5477 = vpop.f32.mrb[0].mxu0
    %v5478 = vadd.f32 0.0, %v5477
    %v5479 = vpop.f32.mrb[0].mxu0
    %v5480 = vpop.f32.mrb[0].mxu0
    %v5481 = vadd.f32 0.0, %v5480
    %v5482 = vpop.f32.mrb[0].mxu0
    %5483 = vdwg.mxu0
    %5484 = vrot.lane.b32.xlu0 %v5307, 116
    %v5485 = vpop.permute.xlu0 %5484
    %5486 = vrot.lane.b32.xlu0 %v5308, 116
    %v5487 = vpop.permute.xlu0 %5486
    %v5489 = vsel %vm4823, %v5485, 0
    %v5492 = vsel %vm4823, %v5487, 0
    %5494 = vmatprep.subr.bf16.mxu0 0
    %5495 = vmatpush1.bf16.xpose.msra.mxu0 %v4831
    %5496 = vmatprep.subr.bf16.mxu0 0
    %5497 = vmatpush1.bf16.xpose.msra.mxu0 0
    %5498 = vmatprep.subr.bf16.mxu0 0
    %5499 = vmatpush1.bf16.xpose.msra.mxu0 0
    %5500 = vmatprep.subr.bf16.mxu0 0
    %5501 = vmatpush1.bf16.xpose.msra.mxu0 0
    %5502 = vmatprep.subr.bf16.mxu0 0
    %5503 = vmatpush1.bf16.xpose.msra.mxu0 0
    %5504 = vmatprep.subr.bf16.mxu0 0
    %5505 = vmatpush1.bf16.xpose.msra.mxu0 0
    %5506 = vmatprep.subr.bf16.mxu0 0
    %5507 = vmatpush1.bf16.xpose.msra.mxu0 0
    %5508 = vmatprep.subr.bf16.mxu0 0
    %5509 = vmatpush1.bf16.xpose.msra.mxu0 0
    %5510 = vmatprep.subr.bf16.mxu0 0
    %5511 = vmatpush1.bf16.xpose.msra.mxu0 0
    %5512 = vmatprep.subr.bf16.mxu0 0
    %5513 = vmatpush1.bf16.xpose.msra.mxu0 0
    %5514 = vmatprep.subr.bf16.mxu0 0
    %5515 = vmatpush1.bf16.xpose.msra.mxu0 0
    %5516 = vmatprep.subr.bf16.mxu0 0
    %5517 = vmatpush1.bf16.xpose.msra.mxu0 0
    %5518 = vmatprep.subr.bf16.mxu0 0
    %5519 = vmatpush1.bf16.xpose.msra.mxu0 0
    %5520 = vmatprep.subr.bf16.mxu0 0
    %5521 = vmatpush1.bf16.xpose.msra.mxu0 0
    %5522 = vmatprep.subr.bf16.mxu0 0
    %5523 = vmatpush1.bf16.xpose.msra.mxu0 0
    %5524 = vmatprep.subr.bf16.mxu0 0
    %5525 = vmatpush1.bf16.xpose.msra.mxu0 0
    %5526 = vmatprep.mubr.bf16.mxu0 0
    %5527 = vmatmul.mubr.bf16.gmra.mrb[0].mxu0 %v5489
    %v5528 = vpop.f32.mrb[0].mxu0
    %v5529 = vadd.f32 0.0, %v5528
    %v5530 = vpop.f32.mrb[0].mxu0
    %v5531 = vpop.f32.mrb[0].mxu0
    %v5532 = vadd.f32 0.0, %v5531
    %v5533 = vpop.f32.mrb[0].mxu0
    %5534 = vmatprep.mubr.bf16.mxu0 0
    %5535 = vmatmul.mubr.bf16.gmra.mrb[0].mxu0 %v5492
    %v5536 = vpop.f32.mrb[0].mxu0
    %v5537 = vadd.f32 0.0, %v5536
    %v5538 = vpop.f32.mrb[0].mxu0
    %v5539 = vpop.f32.mrb[0].mxu0
    %v5540 = vadd.f32 0.0, %v5539
    %v5541 = vpop.f32.mrb[0].mxu0
    %5542 = vdwg.mxu0
    %5543 = vrot.lane.b32.xlu0 %v4546, 112
    %v5544 = vpop.permute.xlu0 %5543
    %5545 = vrot.lane.b32.xlu0 %v4547, 112
    %v5546 = vpop.permute.xlu0 %5545
    %5549 = vmatprep.subr.bf16.mxu0 0
    %5550 = vmatpush1.bf16.msra.mxu0 %v5544
    %5551 = vmatprep.subr.bf16.mxu0 0
    %5552 = vmatpush1.bf16.msra.mxu0 %v5546
    %5553 = vmatprep.subr.bf16.mxu0 0
    %5554 = vmatpush1.bf16.msra.mxu0 0
    %5555 = vmatprep.subr.bf16.mxu0 0
    %5556 = vmatpush1.bf16.msra.mxu0 0
    %5557 = vmatprep.subr.bf16.mxu0 0
    %5558 = vmatpush1.bf16.msra.mxu0 0
    %5559 = vmatprep.subr.bf16.mxu0 0
    %5560 = vmatpush1.bf16.msra.mxu0 0
    %5561 = vmatprep.subr.bf16.mxu0 0
    %5562 = vmatpush1.bf16.msra.mxu0 0
    %5563 = vmatprep.subr.bf16.mxu0 0
    %5564 = vmatpush1.bf16.msra.mxu0 0
    %5565 = vmatprep.subr.bf16.mxu0 0
    %5566 = vmatpush1.bf16.msra.mxu0 0
    %5567 = vmatprep.subr.bf16.mxu0 0
    %5568 = vmatpush1.bf16.msra.mxu0 0
    %5569 = vmatprep.subr.bf16.mxu0 0
    %5570 = vmatpush1.bf16.msra.mxu0 0
    %5571 = vmatprep.subr.bf16.mxu0 0
    %5572 = vmatpush1.bf16.msra.mxu0 0
    %5573 = vmatprep.subr.bf16.mxu0 0
    %5574 = vmatpush1.bf16.msra.mxu0 0
    %5575 = vmatprep.subr.bf16.mxu0 0
    %5576 = vmatpush1.bf16.msra.mxu0 0
    %5577 = vmatprep.subr.bf16.mxu0 0
    %5578 = vmatpush1.bf16.msra.mxu0 0
    %5579 = vmatprep.subr.bf16.mxu0 0
    %5580 = vmatpush1.bf16.msra.mxu0 0
    %5581 = vmatprep.mubr.bf16.mxu0 0
    %5582 = vmatmul.mubr.bf16.gmra.mrb[0].mxu0 %v3798
    %v5583 = vpop.f32.mrb[0].mxu0
    %v5584 = vadd.f32 %v4558, %v5583
    %v5585 = vpop.f32.mrb[0].mxu0
    %v5586 = vpop.f32.mrb[0].mxu0
    %v5587 = vadd.f32 %v4558, %v5586
    %v5588 = vpop.f32.mrb[0].mxu0
    %5589 = vmatprep.mubr.bf16.mxu0 0
    %5590 = vmatmul.mubr.bf16.gmra.mrb[0].mxu0 %v3801
    %v5591 = vpop.f32.mrb[0].mxu0
    %v5592 = vadd.f32 %v4558, %v5591
    %v5593 = vpop.f32.mrb[0].mxu0
    %v5594 = vpop.f32.mrb[0].mxu0
    %v5595 = vadd.f32 %v4558, %v5594
    %v5596 = vpop.f32.mrb[0].mxu0
    %5597 = vdwg.mxu0
    %v5598 = vsel %vm4609, %v5584, 0.0
    %5599 = vadd.xlane.f32.xlu0 %v5598
    %v5600 = vpop.xlane.xlu0 %5599
    %v5601 = vsel %vm4609, %v5587, 0.0
    %5602 = vadd.xlane.f32.xlu0 %v5601
    %v5603 = vpop.xlane.xlu0 %5602
    %v5604 = vsel %vm4609, %v5592, 0.0
    %5605 = vadd.xlane.f32.xlu0 %v5604
    %v5606 = vpop.xlane.xlu0 %5605
    %v5607 = vsel %vm4609, %v5595, 0.0
    %5608 = vadd.xlane.f32.xlu0 %v5607
    %v5609 = vpop.xlane.xlu0 %5608
    %v5610 = vmul.f32 %v5600, %v4622
    %v5611 = vmul.f32 %v5603, %v4622
    %v5612 = vmul.f32 %v5606, %v4622
    %v5613 = vmul.f32 %v5609, %v4622
    %v5614 = vsub.f32 %v5584, %v5610
    %v5615 = vsub.f32 %v5587, %v5611
    %v5616 = vsub.f32 %v5592, %v5612
    %v5617 = vsub.f32 %v5595, %v5613
    %v5618 = vmul.f32 %v5614, %v5614
    %v5619 = vmul.f32 %v5615, %v5615
    %v5620 = vmul.f32 %v5616, %v5616
    %v5621 = vmul.f32 %v5617, %v5617
    %v5622 = vsel %vm4609, %v5618, 0.0
    %5623 = vadd.xlane.f32.xlu0 %v5622
    %v5624 = vpop.xlane.xlu0 %5623
    %v5625 = vsel %vm4609, %v5619, 0.0
    %5626 = vadd.xlane.f32.xlu0 %v5625
    %v5627 = vpop.xlane.xlu0 %5626
    %v5628 = vsel %vm4609, %v5620, 0.0
    %5629 = vadd.xlane.f32.xlu0 %v5628
    %v5630 = vpop.xlane.xlu0 %5629
    %v5631 = vsel %vm4609, %v5621, 0.0
    %5632 = vadd.xlane.f32.xlu0 %v5631
    %v5633 = vpop.xlane.xlu0 %5632
    %v5634 = vmul.f32 %v5624, %v4622
    %v5635 = vmul.f32 %v5627, %v4622
    %v5636 = vmul.f32 %v5630, %v4622
    %v5637 = vmul.f32 %v5633, %v4622
    %v5638 = vadd.f32 %v5634, 1e-06
    %v5639 = vadd.f32 %v5635, 1e-06
    %v5640 = vadd.f32 %v5636, 1e-06
    %v5641 = vadd.f32 %v5637, 1e-06
    %v5642 = vrsqrt.pop %v5638
    %v5643 = vrsqrt.pop %v5639
    %v5644 = vrsqrt.pop %v5640
    %v5645 = vrsqrt.pop %v5641
    %v5646 = vmul.f32 %v5614, %v5642
    %v5647 = vmul.f32 %v5615, %v5643
    %v5648 = vmul.f32 %v5616, %v5644
    %v5649 = vmul.f32 %v5617, %v5645
    %v5650 = vmul.f32 %v5646, %v4667
    %v5651 = vmul.f32 %v5647, %v4667
    %v5652 = vmul.f32 %v5648, %v4667
    %v5653 = vmul.f32 %v5649, %v4667
    %v5654 = vadd.f32 %v5650, %v4677
    %v5655 = vadd.f32 %v5651, %v4677
    %v5656 = vadd.f32 %v5652, %v4677
    %v5657 = vadd.f32 %v5653, %v4677
    %v5658 = vmul.f32 %v5654, %v5654
    %v5659 = vmul.f32 %v5655, %v5655
    %v5660 = vmul.f32 %v5656, %v5656
    %v5661 = vmul.f32 %v5657, %v5657
    %v5662 = vmul.f32 %v5654, %v5658
    %v5663 = vmul.f32 %v5655, %v5659
    %v5664 = vmul.f32 %v5656, %v5660
    %v5665 = vmul.f32 %v5657, %v5661
    %v5666 = vmul.f32 %v5662, 0.044715
    %v5667 = vmul.f32 %v5663, 0.044715
    %v5668 = vmul.f32 %v5664, 0.044715
    %v5669 = vmul.f32 %v5665, 0.044715
    %v5670 = vadd.f32 %v5654, %v5666
    %v5671 = vadd.f32 %v5655, %v5667
    %v5672 = vadd.f32 %v5656, %v5668
    %v5673 = vadd.f32 %v5657, %v5669
    %v5674 = vmul.f32 %v5670, 0.7978846
    %v5675 = vmul.f32 %v5671, 0.7978846
    %v5676 = vmul.f32 %v5672, 0.7978846
    %v5677 = vmul.f32 %v5673, 0.7978846
    %v5678 = vtanh.pop %v5674
    %v5679 = vtanh.pop %v5675
    %v5680 = vtanh.pop %v5676
    %v5681 = vtanh.pop %v5677
    %v5682 = vadd.f32 %v5678, 1.0
    %v5683 = vadd.f32 %v5679, 1.0
    %v5684 = vadd.f32 %v5680, 1.0
    %v5685 = vadd.f32 %v5681, 1.0
    %v5686 = vmul.f32 %v5682, 0.5
    %v5687 = vmul.f32 %v5683, 0.5
    %v5688 = vmul.f32 %v5684, 0.5
    %v5689 = vmul.f32 %v5685, 0.5
    %v5690 = vmul.f32 %v5654, %v5686
    %v5691 = vmul.f32 %v5655, %v5687
    %v5692 = vmul.f32 %v5656, %v5688
    %v5693 = vmul.f32 %v5657, %v5689
    %v5694 = vpack.c.bf16 %v5691, %v5690
    %v5695 = vpack.c.bf16 %v5693, %v5692
    %v5697 = vsel %vm4609, %v5694, 0
    %v5700 = vsel %vm4609, %v5695, 0
    %5702 = vmatprep.subr.bf16.mxu0 0
    %5703 = vmatpush1.bf16.msra.mxu0 %v4734
    %5704 = vmatprep.subr.bf16.mxu0 0
    %5705 = vmatpush1.bf16.msra.mxu0 0
    %5706 = vmatprep.subr.bf16.mxu0 0
    %5707 = vmatpush1.bf16.msra.mxu0 0
    %5708 = vmatprep.subr.bf16.mxu0 0
    %5709 = vmatpush1.bf16.msra.mxu0 0
    %5710 = vmatprep.subr.bf16.mxu0 0
    %5711 = vmatpush1.bf16.msra.mxu0 0
    %5712 = vmatprep.subr.bf16.mxu0 0
    %5713 = vmatpush1.bf16.msra.mxu0 0
    %5714 = vmatprep.subr.bf16.mxu0 0
    %5715 = vmatpush1.bf16.msra.mxu0 0
    %5716 = vmatprep.subr.bf16.mxu0 0
    %5717 = vmatpush1.bf16.msra.mxu0 0
    %5718 = vmatprep.subr.bf16.mxu0 0
    %5719 = vmatpush1.bf16.msra.mxu0 0
    %5720 = vmatprep.subr.bf16.mxu0 0
    %5721 = vmatpush1.bf16.msra.mxu0 0
    %5722 = vmatprep.subr.bf16.mxu0 0
    %5723 = vmatpush1.bf16.msra.mxu0 0
    %5724 = vmatprep.subr.bf16.mxu0 0
    %5725 = vmatpush1.bf16.msra.mxu0 0
    %5726 = vmatprep.subr.bf16.mxu0 0
    %5727 = vmatpush1.bf16.msra.mxu0 0
    %5728 = vmatprep.subr.bf16.mxu0 0
    %5729 = vmatpush1.bf16.msra.mxu0 0
    %5730 = vmatprep.subr.bf16.mxu0 0
    %5731 = vmatpush1.bf16.msra.mxu0 0
    %5732 = vmatprep.subr.bf16.mxu0 0
    %5733 = vmatpush1.bf16.msra.mxu0 0
    %5734 = vmatprep.mubr.bf16.mxu0 0
    %5735 = vmatmul.mubr.bf16.gmra.mrb[0].mxu0 %v5697
    %v5736 = vpop.f32.mrb[0].mxu0
    %v5737 = vadd.f32 %v4725, %v5736
    %v5738 = vpop.f32.mrb[0].mxu0
    %v5739 = vpop.f32.mrb[0].mxu0
    %v5740 = vadd.f32 %v4725, %v5739
    %v5741 = vpop.f32.mrb[0].mxu0
    %5742 = vmatprep.mubr.bf16.mxu0 0
    %5743 = vmatmul.mubr.bf16.gmra.mrb[0].mxu0 %v5700
    %v5744 = vpop.f32.mrb[0].mxu0
    %v5745 = vadd.f32 %v4725, %v5744
    %v5746 = vpop.f32.mrb[0].mxu0
    %v5747 = vpop.f32.mrb[0].mxu0
    %v5748 = vadd.f32 %v4725, %v5747
    %v5749 = vpop.f32.mrb[0].mxu0
    %5750 = vdwg.mxu0
    %v5751 = vmul.f32 %v5737, %v5737
    %v5752 = vmul.f32 %v5740, %v5740
    %v5753 = vmul.f32 %v5745, %v5745
    %v5754 = vmul.f32 %v5748, %v5748
    %v5755 = vmul.f32 %v5737, %v5751
    %v5756 = vmul.f32 %v5740, %v5752
    %v5757 = vmul.f32 %v5745, %v5753
    %v5758 = vmul.f32 %v5748, %v5754
    %v5759 = vmul.f32 %v5755, 0.044715
    %v5760 = vmul.f32 %v5756, 0.044715
    %v5761 = vmul.f32 %v5757, 0.044715
    %v5762 = vmul.f32 %v5758, 0.044715
    %v5763 = vadd.f32 %v5737, %v5759
    %v5764 = vadd.f32 %v5740, %v5760
    %v5765 = vadd.f32 %v5745, %v5761
    %v5766 = vadd.f32 %v5748, %v5762
    %v5767 = vmul.f32 %v5763, 0.7978846
    %v5768 = vmul.f32 %v5764, 0.7978846
    %v5769 = vmul.f32 %v5765, 0.7978846
    %v5770 = vmul.f32 %v5766, 0.7978846
    %v5771 = vtanh.pop %v5767
    %v5772 = vtanh.pop %v5768
    %v5773 = vtanh.pop %v5769
    %v5774 = vtanh.pop %v5770
    %v5775 = vadd.f32 %v5771, 1.0
    %v5776 = vadd.f32 %v5772, 1.0
    %v5777 = vadd.f32 %v5773, 1.0
    %v5778 = vadd.f32 %v5774, 1.0
    %v5779 = vmul.f32 %v5775, 0.5
    %v5780 = vmul.f32 %v5776, 0.5
    %v5781 = vmul.f32 %v5777, 0.5
    %v5782 = vmul.f32 %v5778, 0.5
    %v5783 = vmul.f32 %v5737, %v5779
    %v5784 = vmul.f32 %v5740, %v5780
    %v5785 = vmul.f32 %v5745, %v5781
    %v5786 = vmul.f32 %v5748, %v5782
    %v5787 = vpack.c.bf16 %v5784, %v5783
    %v5788 = vpack.c.bf16 %v5786, %v5785
    %v5790 = vsel %vm4823, %v5787, 0
    %v5793 = vsel %vm4823, %v5788, 0
    %5795 = vmatprep.subr.bf16.mxu0 0
    %5796 = vmatpush1.bf16.xpose.msra.mxu0 %v4831
    %5797 = vmatprep.subr.bf16.mxu0 0
    %5798 = vmatpush1.bf16.xpose.msra.mxu0 0
    %5799 = vmatprep.subr.bf16.mxu0 0
    %5800 = vmatpush1.bf16.xpose.msra.mxu0 0
    %5801 = vmatprep.subr.bf16.mxu0 0
    %5802 = vmatpush1.bf16.xpose.msra.mxu0 0
    %5803 = vmatprep.subr.bf16.mxu0 0
    %5804 = vmatpush1.bf16.xpose.msra.mxu0 0
    %5805 = vmatprep.subr.bf16.mxu0 0
    %5806 = vmatpush1.bf16.xpose.msra.mxu0 0
    %5807 = vmatprep.subr.bf16.mxu0 0
    %5808 = vmatpush1.bf16.xpose.msra.mxu0 0
    %5809 = vmatprep.subr.bf16.mxu0 0
    %5810 = vmatpush1.bf16.xpose.msra.mxu0 0
    %5811 = vmatprep.subr.bf16.mxu0 0
    %5812 = vmatpush1.bf16.xpose.msra.mxu0 0
    %5813 = vmatprep.subr.bf16.mxu0 0
    %5814 = vmatpush1.bf16.xpose.msra.mxu0 0
    %5815 = vmatprep.subr.bf16.mxu0 0
    %5816 = vmatpush1.bf16.xpose.msra.mxu0 0
    %5817 = vmatprep.subr.bf16.mxu0 0
    %5818 = vmatpush1.bf16.xpose.msra.mxu0 0
    %5819 = vmatprep.subr.bf16.mxu0 0
    %5820 = vmatpush1.bf16.xpose.msra.mxu0 0
    %5821 = vmatprep.subr.bf16.mxu0 0
    %5822 = vmatpush1.bf16.xpose.msra.mxu0 0
    %5823 = vmatprep.subr.bf16.mxu0 0
    %5824 = vmatpush1.bf16.xpose.msra.mxu0 0
    %5825 = vmatprep.subr.bf16.mxu0 0
    %5826 = vmatpush1.bf16.xpose.msra.mxu0 0
    %5827 = vmatprep.mubr.bf16.mxu0 0
    %5828 = vmatmul.mubr.bf16.gmra.mrb[0].mxu0 %v5790
    %v5829 = vpop.f32.mrb[0].mxu0
    %v5830 = vadd.f32 0.0, %v5829
    %v5831 = vpop.f32.mrb[0].mxu0
    %v5832 = vpop.f32.mrb[0].mxu0
    %v5833 = vadd.f32 0.0, %v5832
    %v5834 = vpop.f32.mrb[0].mxu0
    %5835 = vmatprep.mubr.bf16.mxu0 0
    %5836 = vmatmul.mubr.bf16.gmra.mrb[0].mxu0 %v5793
    %v5837 = vpop.f32.mrb[0].mxu0
    %v5838 = vadd.f32 0.0, %v5837
    %v5839 = vpop.f32.mrb[0].mxu0
    %v5840 = vpop.f32.mrb[0].mxu0
    %v5841 = vadd.f32 0.0, %v5840
    %v5842 = vpop.f32.mrb[0].mxu0
    %5843 = vdwg.mxu0
    %5846 = vrot.lane.b32.xlu0 %v5787, 124
    %v5847 = vpop.permute.xlu0 %5846
    %5848 = vrot.lane.b32.xlu0 %v5788, 124
    %v5849 = vpop.permute.xlu0 %5848
    %v5851 = vsel %vm4823, %v5847, 0
    %v5854 = vsel %vm4823, %v5849, 0
    %5856 = vmatprep.subr.bf16.mxu0 0
    %5857 = vmatpush1.bf16.xpose.msra.mxu0 %v4831
    %5858 = vmatprep.subr.bf16.mxu0 0
    %5859 = vmatpush1.bf16.xpose.msra.mxu0 0
    %5860 = vmatprep.subr.bf16.mxu0 0
    %5861 = vmatpush1.bf16.xpose.msra.mxu0 0
    %5862 = vmatprep.subr.bf16.mxu0 0
    %5863 = vmatpush1.bf16.xpose.msra.mxu0 0
    %5864 = vmatprep.subr.bf16.mxu0 0
    %5865 = vmatpush1.bf16.xpose.msra.mxu0 0
    %5866 = vmatprep.subr.bf16.mxu0 0
    %5867 = vmatpush1.bf16.xpose.msra.mxu0 0
    %5868 = vmatprep.subr.bf16.mxu0 0
    %5869 = vmatpush1.bf16.xpose.msra.mxu0 0
    %5870 = vmatprep.subr.bf16.mxu0 0
    %5871 = vmatpush1.bf16.xpose.msra.mxu0 0
    %5872 = vmatprep.subr.bf16.mxu0 0
    %5873 = vmatpush1.bf16.xpose.msra.mxu0 0
    %5874 = vmatprep.subr.bf16.mxu0 0
    %5875 = vmatpush1.bf16.xpose.msra.mxu0 0
    %5876 = vmatprep.subr.bf16.mxu0 0
    %5877 = vmatpush1.bf16.xpose.msra.mxu0 0
    %5878 = vmatprep.subr.bf16.mxu0 0
    %5879 = vmatpush1.bf16.xpose.msra.mxu0 0
    %5880 = vmatprep.subr.bf16.mxu0 0
    %5881 = vmatpush1.bf16.xpose.msra.mxu0 0
    %5882 = vmatprep.subr.bf16.mxu0 0
    %5883 = vmatpush1.bf16.xpose.msra.mxu0 0
    %5884 = vmatprep.subr.bf16.mxu0 0
    %5885 = vmatpush1.bf16.xpose.msra.mxu0 0
    %5886 = vmatprep.subr.bf16.mxu0 0
    %5887 = vmatpush1.bf16.xpose.msra.mxu0 0
    %5888 = vmatprep.mubr.bf16.mxu0 0
    %5889 = vmatmul.mubr.bf16.gmra.mrb[0].mxu0 %v5851
    %v5890 = vpop.f32.mrb[0].mxu0
    %v5891 = vadd.f32 0.0, %v5890
    %v5892 = vpop.f32.mrb[0].mxu0
    %v5893 = vpop.f32.mrb[0].mxu0
    %v5894 = vadd.f32 0.0, %v5893
    %v5895 = vpop.f32.mrb[0].mxu0
    %5896 = vmatprep.mubr.bf16.mxu0 0
    %5897 = vmatmul.mubr.bf16.gmra.mrb[0].mxu0 %v5854
    %v5898 = vpop.f32.mrb[0].mxu0
    %v5899 = vadd.f32 0.0, %v5898
    %v5900 = vpop.f32.mrb[0].mxu0
    %v5901 = vpop.f32.mrb[0].mxu0
    %v5902 = vadd.f32 0.0, %v5901
    %v5903 = vpop.f32.mrb[0].mxu0
    %5904 = vdwg.mxu0
    %5905 = vrot.lane.b32.xlu0 %v5787, 120
    %v5906 = vpop.permute.xlu0 %5905
    %5907 = vrot.lane.b32.xlu0 %v5788, 120
    %v5908 = vpop.permute.xlu0 %5907
    %v5910 = vsel %vm4823, %v5906, 0
    %v5913 = vsel %vm4823, %v5908, 0
    %5915 = vmatprep.subr.bf16.mxu0 0
    %5916 = vmatpush1.bf16.xpose.msra.mxu0 %v4831
    %5917 = vmatprep.subr.bf16.mxu0 0
    %5918 = vmatpush1.bf16.xpose.msra.mxu0 0
    %5919 = vmatprep.subr.bf16.mxu0 0
    %5920 = vmatpush1.bf16.xpose.msra.mxu0 0
    %5921 = vmatprep.subr.bf16.mxu0 0
    %5922 = vmatpush1.bf16.xpose.msra.mxu0 0
    %5923 = vmatprep.subr.bf16.mxu0 0
    %5924 = vmatpush1.bf16.xpose.msra.mxu0 0
    %5925 = vmatprep.subr.bf16.mxu0 0
    %5926 = vmatpush1.bf16.xpose.msra.mxu0 0
    %5927 = vmatprep.subr.bf16.mxu0 0
    %5928 = vmatpush1.bf16.xpose.msra.mxu0 0
    %5929 = vmatprep.subr.bf16.mxu0 0
    %5930 = vmatpush1.bf16.xpose.msra.mxu0 0
    %5931 = vmatprep.subr.bf16.mxu0 0
    %5932 = vmatpush1.bf16.xpose.msra.mxu0 0
    %5933 = vmatprep.subr.bf16.mxu0 0
    %5934 = vmatpush1.bf16.xpose.msra.mxu0 0
    %5935 = vmatprep.subr.bf16.mxu0 0
    %5936 = vmatpush1.bf16.xpose.msra.mxu0 0
    %5937 = vmatprep.subr.bf16.mxu0 0
    %5938 = vmatpush1.bf16.xpose.msra.mxu0 0
    %5939 = vmatprep.subr.bf16.mxu0 0
    %5940 = vmatpush1.bf16.xpose.msra.mxu0 0
    %5941 = vmatprep.subr.bf16.mxu0 0
    %5942 = vmatpush1.bf16.xpose.msra.mxu0 0
    %5943 = vmatprep.subr.bf16.mxu0 0
    %5944 = vmatpush1.bf16.xpose.msra.mxu0 0
    %5945 = vmatprep.subr.bf16.mxu0 0
    %5946 = vmatpush1.bf16.xpose.msra.mxu0 0
    %5947 = vmatprep.mubr.bf16.mxu0 0
    %5948 = vmatmul.mubr.bf16.gmra.mrb[0].mxu0 %v5910
    %v5949 = vpop.f32.mrb[0].mxu0
    %v5950 = vadd.f32 0.0, %v5949
    %v5951 = vpop.f32.mrb[0].mxu0
    %v5952 = vpop.f32.mrb[0].mxu0
    %v5953 = vadd.f32 0.0, %v5952
    %v5954 = vpop.f32.mrb[0].mxu0
    %5955 = vmatprep.mubr.bf16.mxu0 0
    %5956 = vmatmul.mubr.bf16.gmra.mrb[0].mxu0 %v5913
    %v5957 = vpop.f32.mrb[0].mxu0
    %v5958 = vadd.f32 0.0, %v5957
    %v5959 = vpop.f32.mrb[0].mxu0
    %v5960 = vpop.f32.mrb[0].mxu0
    %v5961 = vadd.f32 0.0, %v5960
    %v5962 = vpop.f32.mrb[0].mxu0
    %5963 = vdwg.mxu0
    %5964 = vrot.lane.b32.xlu0 %v5787, 116
    %v5965 = vpop.permute.xlu0 %5964
    %5966 = vrot.lane.b32.xlu0 %v5788, 116
    %v5967 = vpop.permute.xlu0 %5966
    %v5969 = vsel %vm4823, %v5965, 0
    %v5972 = vsel %vm4823, %v5967, 0
    %5974 = vmatprep.subr.bf16.mxu0 0
    %5975 = vmatpush1.bf16.xpose.msra.mxu0 %v4831
    %5976 = vmatprep.subr.bf16.mxu0 0
    %5977 = vmatpush1.bf16.xpose.msra.mxu0 0
    %5978 = vmatprep.subr.bf16.mxu0 0
    %5979 = vmatpush1.bf16.xpose.msra.mxu0 0
    %5980 = vmatprep.subr.bf16.mxu0 0
    %5981 = vmatpush1.bf16.xpose.msra.mxu0 0
    %5982 = vmatprep.subr.bf16.mxu0 0
    %5983 = vmatpush1.bf16.xpose.msra.mxu0 0
    %5984 = vmatprep.subr.bf16.mxu0 0
    %5985 = vmatpush1.bf16.xpose.msra.mxu0 0
    %5986 = vmatprep.subr.bf16.mxu0 0
    %5987 = vmatpush1.bf16.xpose.msra.mxu0 0
    %5988 = vmatprep.subr.bf16.mxu0 0
    %5989 = vmatpush1.bf16.xpose.msra.mxu0 0
    %5990 = vmatprep.subr.bf16.mxu0 0
    %5991 = vmatpush1.bf16.xpose.msra.mxu0 0
    %5992 = vmatprep.subr.bf16.mxu0 0
    %5993 = vmatpush1.bf16.xpose.msra.mxu0 0
    %5994 = vmatprep.subr.bf16.mxu0 0
    %5995 = vmatpush1.bf16.xpose.msra.mxu0 0
    %5996 = vmatprep.subr.bf16.mxu0 0
    %5997 = vmatpush1.bf16.xpose.msra.mxu0 0
    %5998 = vmatprep.subr.bf16.mxu0 0
    %5999 = vmatpush1.bf16.xpose.msra.mxu0 0
    %6000 = vmatprep.subr.bf16.mxu0 0
    %6001 = vmatpush1.bf16.xpose.msra.mxu0 0
    %6002 = vmatprep.subr.bf16.mxu0 0
    %6003 = vmatpush1.bf16.xpose.msra.mxu0 0
    %6004 = vmatprep.subr.bf16.mxu0 0
    %6005 = vmatpush1.bf16.xpose.msra.mxu0 0
    %6006 = vmatprep.mubr.bf16.mxu0 0
    %6007 = vmatmul.mubr.bf16.gmra.mrb[0].mxu0 %v5969
    %v6008 = vpop.f32.mrb[0].mxu0
    %v6009 = vadd.f32 0.0, %v6008
    %v6010 = vpop.f32.mrb[0].mxu0
    %v6011 = vpop.f32.mrb[0].mxu0
    %v6012 = vadd.f32 0.0, %v6011
    %v6013 = vpop.f32.mrb[0].mxu0
    %6014 = vmatprep.mubr.bf16.mxu0 0
    %6015 = vmatmul.mubr.bf16.gmra.mrb[0].mxu0 %v5972
    %v6016 = vpop.f32.mrb[0].mxu0
    %v6017 = vadd.f32 0.0, %v6016
    %v6018 = vpop.f32.mrb[0].mxu0
    %v6019 = vpop.f32.mrb[0].mxu0
    %v6020 = vadd.f32 0.0, %v6019
    %v6021 = vpop.f32.mrb[0].mxu0
    %6022 = vdwg.mxu0
    %6023 = vrot.lane.b32.xlu0 %v4546, 104
    %v6024 = vpop.permute.xlu0 %6023
    %6025 = vrot.lane.b32.xlu0 %v4547, 104
    %v6026 = vpop.permute.xlu0 %6025
    %6029 = vmatprep.subr.bf16.mxu0 0
    %6030 = vmatpush1.bf16.msra.mxu0 %v6024
    %6031 = vmatprep.subr.bf16.mxu0 0
    %6032 = vmatpush1.bf16.msra.mxu0 %v6026
    %6033 = vmatprep.subr.bf16.mxu0 0
    %6034 = vmatpush1.bf16.msra.mxu0 0
    %6035 = vmatprep.subr.bf16.mxu0 0
    %6036 = vmatpush1.bf16.msra.mxu0 0
    %6037 = vmatprep.subr.bf16.mxu0 0
    %6038 = vmatpush1.bf16.msra.mxu0 0
    %6039 = vmatprep.subr.bf16.mxu0 0
    %6040 = vmatpush1.bf16.msra.mxu0 0
    %6041 = vmatprep.subr.bf16.mxu0 0
    %6042 = vmatpush1.bf16.msra.mxu0 0
    %6043 = vmatprep.subr.bf16.mxu0 0
    %6044 = vmatpush1.bf16.msra.mxu0 0
    %6045 = vmatprep.subr.bf16.mxu0 0
    %6046 = vmatpush1.bf16.msra.mxu0 0
    %6047 = vmatprep.subr.bf16.mxu0 0
    %6048 = vmatpush1.bf16.msra.mxu0 0
    %6049 = vmatprep.subr.bf16.mxu0 0
    %6050 = vmatpush1.bf16.msra.mxu0 0
    %6051 = vmatprep.subr.bf16.mxu0 0
    %6052 = vmatpush1.bf16.msra.mxu0 0
    %6053 = vmatprep.subr.bf16.mxu0 0
    %6054 = vmatpush1.bf16.msra.mxu0 0
    %6055 = vmatprep.subr.bf16.mxu0 0
    %6056 = vmatpush1.bf16.msra.mxu0 0
    %6057 = vmatprep.subr.bf16.mxu0 0
    %6058 = vmatpush1.bf16.msra.mxu0 0
    %6059 = vmatprep.subr.bf16.mxu0 0
    %6060 = vmatpush1.bf16.msra.mxu0 0
    %6061 = vmatprep.mubr.bf16.mxu0 0
    %6062 = vmatmul.mubr.bf16.gmra.mrb[0].mxu0 %v3798
    %v6063 = vpop.f32.mrb[0].mxu0
    %v6064 = vadd.f32 %v4558, %v6063
    %v6065 = vpop.f32.mrb[0].mxu0
    %v6066 = vpop.f32.mrb[0].mxu0
    %v6067 = vadd.f32 %v4558, %v6066
    %v6068 = vpop.f32.mrb[0].mxu0
    %6069 = vmatprep.mubr.bf16.mxu0 0
    %6070 = vmatmul.mubr.bf16.gmra.mrb[0].mxu0 %v3801
    %v6071 = vpop.f32.mrb[0].mxu0
    %v6072 = vadd.f32 %v4558, %v6071
    %v6073 = vpop.f32.mrb[0].mxu0
    %v6074 = vpop.f32.mrb[0].mxu0
    %v6075 = vadd.f32 %v4558, %v6074
    %v6076 = vpop.f32.mrb[0].mxu0
    %6077 = vdwg.mxu0
    %v6078 = vsel %vm4609, %v6064, 0.0
    %6079 = vadd.xlane.f32.xlu0 %v6078
    %v6080 = vpop.xlane.xlu0 %6079
    %v6081 = vsel %vm4609, %v6067, 0.0
    %6082 = vadd.xlane.f32.xlu0 %v6081
    %v6083 = vpop.xlane.xlu0 %6082
    %v6084 = vsel %vm4609, %v6072, 0.0
    %6085 = vadd.xlane.f32.xlu0 %v6084
    %v6086 = vpop.xlane.xlu0 %6085
    %v6087 = vsel %vm4609, %v6075, 0.0
    %6088 = vadd.xlane.f32.xlu0 %v6087
    %v6089 = vpop.xlane.xlu0 %6088
    %v6090 = vmul.f32 %v6080, %v4622
    %v6091 = vmul.f32 %v6083, %v4622
    %v6092 = vmul.f32 %v6086, %v4622
    %v6093 = vmul.f32 %v6089, %v4622
    %v6094 = vsub.f32 %v6064, %v6090
    %v6095 = vsub.f32 %v6067, %v6091
    %v6096 = vsub.f32 %v6072, %v6092
    %v6097 = vsub.f32 %v6075, %v6093
    %v6098 = vmul.f32 %v6094, %v6094
    %v6099 = vmul.f32 %v6095, %v6095
    %v6100 = vmul.f32 %v6096, %v6096
    %v6101 = vmul.f32 %v6097, %v6097
    %v6102 = vsel %vm4609, %v6098, 0.0
    %6103 = vadd.xlane.f32.xlu0 %v6102
    %v6104 = vpop.xlane.xlu0 %6103
    %v6105 = vsel %vm4609, %v6099, 0.0
    %6106 = vadd.xlane.f32.xlu0 %v6105
    %v6107 = vpop.xlane.xlu0 %6106
    %v6108 = vsel %vm4609, %v6100, 0.0
    %6109 = vadd.xlane.f32.xlu0 %v6108
    %v6110 = vpop.xlane.xlu0 %6109
    %v6111 = vsel %vm4609, %v6101, 0.0
    %6112 = vadd.xlane.f32.xlu0 %v6111
    %v6113 = vpop.xlane.xlu0 %6112
    %v6114 = vmul.f32 %v6104, %v4622
    %v6115 = vmul.f32 %v6107, %v4622
    %v6116 = vmul.f32 %v6110, %v4622
    %v6117 = vmul.f32 %v6113, %v4622
    %v6118 = vadd.f32 %v6114, 1e-06
    %v6119 = vadd.f32 %v6115, 1e-06
    %v6120 = vadd.f32 %v6116, 1e-06
    %v6121 = vadd.f32 %v6117, 1e-06
    %v6122 = vrsqrt.pop %v6118
    %v6123 = vrsqrt.pop %v6119
    %v6124 = vrsqrt.pop %v6120
    %v6125 = vrsqrt.pop %v6121
    %v6126 = vmul.f32 %v6094, %v6122
    %v6127 = vmul.f32 %v6095, %v6123
    %v6128 = vmul.f32 %v6096, %v6124
    %v6129 = vmul.f32 %v6097, %v6125
    %v6130 = vmul.f32 %v6126, %v4667
    %v6131 = vmul.f32 %v6127, %v4667
    %v6132 = vmul.f32 %v6128, %v4667
    %v6133 = vmul.f32 %v6129, %v4667
    %v6134 = vadd.f32 %v6130, %v4677
    %v6135 = vadd.f32 %v6131, %v4677
    %v6136 = vadd.f32 %v6132, %v4677
    %v6137 = vadd.f32 %v6133, %v4677
    %v6138 = vmul.f32 %v6134, %v6134
    %v6139 = vmul.f32 %v6135, %v6135
    %v6140 = vmul.f32 %v6136, %v6136
    %v6141 = vmul.f32 %v6137, %v6137
    %v6142 = vmul.f32 %v6134, %v6138
    %v6143 = vmul.f32 %v6135, %v6139
    %v6144 = vmul.f32 %v6136, %v6140
    %v6145 = vmul.f32 %v6137, %v6141
    %v6146 = vmul.f32 %v6142, 0.044715
    %v6147 = vmul.f32 %v6143, 0.044715
    %v6148 = vmul.f32 %v6144, 0.044715
    %v6149 = vmul.f32 %v6145, 0.044715
    %v6150 = vadd.f32 %v6134, %v6146
    %v6151 = vadd.f32 %v6135, %v6147
    %v6152 = vadd.f32 %v6136, %v6148
    %v6153 = vadd.f32 %v6137, %v6149
    %v6154 = vmul.f32 %v6150, 0.7978846
    %v6155 = vmul.f32 %v6151, 0.7978846
    %v6156 = vmul.f32 %v6152, 0.7978846
    %v6157 = vmul.f32 %v6153, 0.7978846
    %v6158 = vtanh.pop %v6154
    %v6159 = vtanh.pop %v6155
    %v6160 = vtanh.pop %v6156
    %v6161 = vtanh.pop %v6157
    %v6162 = vadd.f32 %v6158, 1.0
    %v6163 = vadd.f32 %v6159, 1.0
    %v6164 = vadd.f32 %v6160, 1.0
    %v6165 = vadd.f32 %v6161, 1.0
    %v6166 = vmul.f32 %v6162, 0.5
    %v6167 = vmul.f32 %v6163, 0.5
    %v6168 = vmul.f32 %v6164, 0.5
    %v6169 = vmul.f32 %v6165, 0.5
    %v6170 = vmul.f32 %v6134, %v6166
    %v6171 = vmul.f32 %v6135, %v6167
    %v6172 = vmul.f32 %v6136, %v6168
    %v6173 = vmul.f32 %v6137, %v6169
    %v6174 = vpack.c.bf16 %v6171, %v6170
    %v6175 = vpack.c.bf16 %v6173, %v6172
    %v6177 = vsel %vm4609, %v6174, 0
    %v6180 = vsel %vm4609, %v6175, 0
    %6182 = vmatprep.subr.bf16.mxu0 0
    %6183 = vmatpush1.bf16.msra.mxu0 %v4734
    %6184 = vmatprep.subr.bf16.mxu0 0
    %6185 = vmatpush1.bf16.msra.mxu0 0
    %6186 = vmatprep.subr.bf16.mxu0 0
    %6187 = vmatpush1.bf16.msra.mxu0 0
    %6188 = vmatprep.subr.bf16.mxu0 0
    %6189 = vmatpush1.bf16.msra.mxu0 0
    %6190 = vmatprep.subr.bf16.mxu0 0
    %6191 = vmatpush1.bf16.msra.mxu0 0
    %6192 = vmatprep.subr.bf16.mxu0 0
    %6193 = vmatpush1.bf16.msra.mxu0 0
    %6194 = vmatprep.subr.bf16.mxu0 0
    %6195 = vmatpush1.bf16.msra.mxu0 0
    %6196 = vmatprep.subr.bf16.mxu0 0
    %6197 = vmatpush1.bf16.msra.mxu0 0
    %6198 = vmatprep.subr.bf16.mxu0 0
    %6199 = vmatpush1.bf16.msra.mxu0 0
    %6200 = vmatprep.subr.bf16.mxu0 0
    %6201 = vmatpush1.bf16.msra.mxu0 0
    %6202 = vmatprep.subr.bf16.mxu0 0
    %6203 = vmatpush1.bf16.msra.mxu0 0
    %6204 = vmatprep.subr.bf16.mxu0 0
    %6205 = vmatpush1.bf16.msra.mxu0 0
    %6206 = vmatprep.subr.bf16.mxu0 0
    %6207 = vmatpush1.bf16.msra.mxu0 0
    %6208 = vmatprep.subr.bf16.mxu0 0
    %6209 = vmatpush1.bf16.msra.mxu0 0
    %6210 = vmatprep.subr.bf16.mxu0 0
    %6211 = vmatpush1.bf16.msra.mxu0 0
    %6212 = vmatprep.subr.bf16.mxu0 0
    %6213 = vmatpush1.bf16.msra.mxu0 0
    %6214 = vmatprep.mubr.bf16.mxu0 0
    %6215 = vmatmul.mubr.bf16.gmra.mrb[0].mxu0 %v6177
    %v6216 = vpop.f32.mrb[0].mxu0
    %v6217 = vadd.f32 %v4725, %v6216
    %v6218 = vpop.f32.mrb[0].mxu0
    %v6219 = vpop.f32.mrb[0].mxu0
    %v6220 = vadd.f32 %v4725, %v6219
    %v6221 = vpop.f32.mrb[0].mxu0
    %6222 = vmatprep.mubr.bf16.mxu0 0
    %6223 = vmatmul.mubr.bf16.gmra.mrb[0].mxu0 %v6180
    %v6224 = vpop.f32.mrb[0].mxu0
    %v6225 = vadd.f32 %v4725, %v6224
    %v6226 = vpop.f32.mrb[0].mxu0
    %v6227 = vpop.f32.mrb[0].mxu0
    %v6228 = vadd.f32 %v4725, %v6227
    %v6229 = vpop.f32.mrb[0].mxu0
    %6230 = vdwg.mxu0
    %v6231 = vmul.f32 %v6217, %v6217
    %v6232 = vmul.f32 %v6220, %v6220
    %v6233 = vmul.f32 %v6225, %v6225
    %v6234 = vmul.f32 %v6228, %v6228
    %v6235 = vmul.f32 %v6217, %v6231
    %v6236 = vmul.f32 %v6220, %v6232
    %v6237 = vmul.f32 %v6225, %v6233
    %v6238 = vmul.f32 %v6228, %v6234
    %v6239 = vmul.f32 %v6235, 0.044715
    %v6240 = vmul.f32 %v6236, 0.044715
    %v6241 = vmul.f32 %v6237, 0.044715
    %v6242 = vmul.f32 %v6238, 0.044715
    %v6243 = vadd.f32 %v6217, %v6239
    %v6244 = vadd.f32 %v6220, %v6240
    %v6245 = vadd.f32 %v6225, %v6241
    %v6246 = vadd.f32 %v6228, %v6242
    %v6247 = vmul.f32 %v6243, 0.7978846
    %v6248 = vmul.f32 %v6244, 0.7978846
    %v6249 = vmul.f32 %v6245, 0.7978846
    %v6250 = vmul.f32 %v6246, 0.7978846
    %v6251 = vtanh.pop %v6247
    %v6252 = vtanh.pop %v6248
    %v6253 = vtanh.pop %v6249
    %v6254 = vtanh.pop %v6250
    %v6255 = vadd.f32 %v6251, 1.0
    %v6256 = vadd.f32 %v6252, 1.0
    %v6257 = vadd.f32 %v6253, 1.0
    %v6258 = vadd.f32 %v6254, 1.0
    %v6259 = vmul.f32 %v6255, 0.5
    %v6260 = vmul.f32 %v6256, 0.5
    %v6261 = vmul.f32 %v6257, 0.5
    %v6262 = vmul.f32 %v6258, 0.5
    %v6263 = vmul.f32 %v6217, %v6259
    %v6264 = vmul.f32 %v6220, %v6260
    %v6265 = vmul.f32 %v6225, %v6261
    %v6266 = vmul.f32 %v6228, %v6262
    %v6267 = vpack.c.bf16 %v6264, %v6263
    %v6268 = vpack.c.bf16 %v6266, %v6265
    %v6270 = vsel %vm4823, %v6267, 0
    %v6273 = vsel %vm4823, %v6268, 0
    %6275 = vmatprep.subr.bf16.mxu0 0
    %6276 = vmatpush1.bf16.xpose.msra.mxu0 %v4831
    %6277 = vmatprep.subr.bf16.mxu0 0
    %6278 = vmatpush1.bf16.xpose.msra.mxu0 0
    %6279 = vmatprep.subr.bf16.mxu0 0
    %6280 = vmatpush1.bf16.xpose.msra.mxu0 0
    %6281 = vmatprep.subr.bf16.mxu0 0
    %6282 = vmatpush1.bf16.xpose.msra.mxu0 0
    %6283 = vmatprep.subr.bf16.mxu0 0
    %6284 = vmatpush1.bf16.xpose.msra.mxu0 0
    %6285 = vmatprep.subr.bf16.mxu0 0
    %6286 = vmatpush1.bf16.xpose.msra.mxu0 0
    %6287 = vmatprep.subr.bf16.mxu0 0
    %6288 = vmatpush1.bf16.xpose.msra.mxu0 0
    %6289 = vmatprep.subr.bf16.mxu0 0
    %6290 = vmatpush1.bf16.xpose.msra.mxu0 0
    %6291 = vmatprep.subr.bf16.mxu0 0
    %6292 = vmatpush1.bf16.xpose.msra.mxu0 0
    %6293 = vmatprep.subr.bf16.mxu0 0
    %6294 = vmatpush1.bf16.xpose.msra.mxu0 0
    %6295 = vmatprep.subr.bf16.mxu0 0
    %6296 = vmatpush1.bf16.xpose.msra.mxu0 0
    %6297 = vmatprep.subr.bf16.mxu0 0
    %6298 = vmatpush1.bf16.xpose.msra.mxu0 0
    %6299 = vmatprep.subr.bf16.mxu0 0
    %6300 = vmatpush1.bf16.xpose.msra.mxu0 0
    %6301 = vmatprep.subr.bf16.mxu0 0
    %6302 = vmatpush1.bf16.xpose.msra.mxu0 0
    %6303 = vmatprep.subr.bf16.mxu0 0
    %6304 = vmatpush1.bf16.xpose.msra.mxu0 0
    %6305 = vmatprep.subr.bf16.mxu0 0
    %6306 = vmatpush1.bf16.xpose.msra.mxu0 0
    %6307 = vmatprep.mubr.bf16.mxu0 0
    %6308 = vmatmul.mubr.bf16.gmra.mrb[0].mxu0 %v6270
    %v6309 = vpop.f32.mrb[0].mxu0
    %v6310 = vadd.f32 0.0, %v6309
    %v6311 = vpop.f32.mrb[0].mxu0
    %v6312 = vpop.f32.mrb[0].mxu0
    %v6313 = vadd.f32 0.0, %v6312
    %v6314 = vpop.f32.mrb[0].mxu0
    %6315 = vmatprep.mubr.bf16.mxu0 0
    %6316 = vmatmul.mubr.bf16.gmra.mrb[0].mxu0 %v6273
    %v6317 = vpop.f32.mrb[0].mxu0
    %v6318 = vadd.f32 0.0, %v6317
    %v6319 = vpop.f32.mrb[0].mxu0
    %v6320 = vpop.f32.mrb[0].mxu0
    %v6321 = vadd.f32 0.0, %v6320
    %v6322 = vpop.f32.mrb[0].mxu0
    %6323 = vdwg.mxu0
    %6326 = vrot.lane.b32.xlu0 %v6267, 124
    %v6327 = vpop.permute.xlu0 %6326
    %6328 = vrot.lane.b32.xlu0 %v6268, 124
    %v6329 = vpop.permute.xlu0 %6328
    %v6331 = vsel %vm4823, %v6327, 0
    %v6334 = vsel %vm4823, %v6329, 0
    %6336 = vmatprep.subr.bf16.mxu0 0
    %6337 = vmatpush1.bf16.xpose.msra.mxu0 %v4831
    %6338 = vmatprep.subr.bf16.mxu0 0
    %6339 = vmatpush1.bf16.xpose.msra.mxu0 0
    %6340 = vmatprep.subr.bf16.mxu0 0
    %6341 = vmatpush1.bf16.xpose.msra.mxu0 0
    %6342 = vmatprep.subr.bf16.mxu0 0
    %6343 = vmatpush1.bf16.xpose.msra.mxu0 0
    %6344 = vmatprep.subr.bf16.mxu0 0
    %6345 = vmatpush1.bf16.xpose.msra.mxu0 0
    %6346 = vmatprep.subr.bf16.mxu0 0
    %6347 = vmatpush1.bf16.xpose.msra.mxu0 0
    %6348 = vmatprep.subr.bf16.mxu0 0
    %6349 = vmatpush1.bf16.xpose.msra.mxu0 0
    %6350 = vmatprep.subr.bf16.mxu0 0
    %6351 = vmatpush1.bf16.xpose.msra.mxu0 0
    %6352 = vmatprep.subr.bf16.mxu0 0
    %6353 = vmatpush1.bf16.xpose.msra.mxu0 0
    %6354 = vmatprep.subr.bf16.mxu0 0
    %6355 = vmatpush1.bf16.xpose.msra.mxu0 0
    %6356 = vmatprep.subr.bf16.mxu0 0
    %6357 = vmatpush1.bf16.xpose.msra.mxu0 0
    %6358 = vmatprep.subr.bf16.mxu0 0
    %6359 = vmatpush1.bf16.xpose.msra.mxu0 0
    %6360 = vmatprep.subr.bf16.mxu0 0
    %6361 = vmatpush1.bf16.xpose.msra.mxu0 0
    %6362 = vmatprep.subr.bf16.mxu0 0
    %6363 = vmatpush1.bf16.xpose.msra.mxu0 0
    %6364 = vmatprep.subr.bf16.mxu0 0
    %6365 = vmatpush1.bf16.xpose.msra.mxu0 0
    %6366 = vmatprep.subr.bf16.mxu0 0
    %6367 = vmatpush1.bf16.xpose.msra.mxu0 0
    %6368 = vmatprep.mubr.bf16.mxu0 0
    %6369 = vmatmul.mubr.bf16.gmra.mrb[0].mxu0 %v6331
    %v6370 = vpop.f32.mrb[0].mxu0
    %v6371 = vadd.f32 0.0, %v6370
    %v6372 = vpop.f32.mrb[0].mxu0
    %v6373 = vpop.f32.mrb[0].mxu0
    %v6374 = vadd.f32 0.0, %v6373
    %v6375 = vpop.f32.mrb[0].mxu0
    %6376 = vmatprep.mubr.bf16.mxu0 0
    %6377 = vmatmul.mubr.bf16.gmra.mrb[0].mxu0 %v6334
    %v6378 = vpop.f32.mrb[0].mxu0
    %v6379 = vadd.f32 0.0, %v6378
    %v6380 = vpop.f32.mrb[0].mxu0
    %v6381 = vpop.f32.mrb[0].mxu0
    %v6382 = vadd.f32 0.0, %v6381
    %v6383 = vpop.f32.mrb[0].mxu0
    %6384 = vdwg.mxu0
    %6385 = vrot.lane.b32.xlu0 %v6267, 120
    %v6386 = vpop.permute.xlu0 %6385
    %6387 = vrot.lane.b32.xlu0 %v6268, 120
    %v6388 = vpop.permute.xlu0 %6387
    %v6390 = vsel %vm4823, %v6386, 0
    %v6393 = vsel %vm4823, %v6388, 0
    %6395 = vmatprep.subr.bf16.mxu0 0
    %6396 = vmatpush1.bf16.xpose.msra.mxu0 %v4831
    %6397 = vmatprep.subr.bf16.mxu0 0
    %6398 = vmatpush1.bf16.xpose.msra.mxu0 0
    %6399 = vmatprep.subr.bf16.mxu0 0
    %6400 = vmatpush1.bf16.xpose.msra.mxu0 0
    %6401 = vmatprep.subr.bf16.mxu0 0
    %6402 = vmatpush1.bf16.xpose.msra.mxu0 0
    %6403 = vmatprep.subr.bf16.mxu0 0
    %6404 = vmatpush1.bf16.xpose.msra.mxu0 0
    %6405 = vmatprep.subr.bf16.mxu0 0
    %6406 = vmatpush1.bf16.xpose.msra.mxu0 0
    %6407 = vmatprep.subr.bf16.mxu0 0
    %6408 = vmatpush1.bf16.xpose.msra.mxu0 0
    %6409 = vmatprep.subr.bf16.mxu0 0
    %6410 = vmatpush1.bf16.xpose.msra.mxu0 0
    %6411 = vmatprep.subr.bf16.mxu0 0
    %6412 = vmatpush1.bf16.xpose.msra.mxu0 0
    %6413 = vmatprep.subr.bf16.mxu0 0
    %6414 = vmatpush1.bf16.xpose.msra.mxu0 0
    %6415 = vmatprep.subr.bf16.mxu0 0
    %6416 = vmatpush1.bf16.xpose.msra.mxu0 0
    %6417 = vmatprep.subr.bf16.mxu0 0
    %6418 = vmatpush1.bf16.xpose.msra.mxu0 0
    %6419 = vmatprep.subr.bf16.mxu0 0
    %6420 = vmatpush1.bf16.xpose.msra.mxu0 0
    %6421 = vmatprep.subr.bf16.mxu0 0
    %6422 = vmatpush1.bf16.xpose.msra.mxu0 0
    %6423 = vmatprep.subr.bf16.mxu0 0
    %6424 = vmatpush1.bf16.xpose.msra.mxu0 0
    %6425 = vmatprep.subr.bf16.mxu0 0
    %6426 = vmatpush1.bf16.xpose.msra.mxu0 0
    %6427 = vmatprep.mubr.bf16.mxu0 0
    %6428 = vmatmul.mubr.bf16.gmra.mrb[0].mxu0 %v6390
    %v6429 = vpop.f32.mrb[0].mxu0
    %v6430 = vadd.f32 0.0, %v6429
    %v6431 = vpop.f32.mrb[0].mxu0
    %v6432 = vpop.f32.mrb[0].mxu0
    %v6433 = vadd.f32 0.0, %v6432
    %v6434 = vpop.f32.mrb[0].mxu0
    %6435 = vmatprep.mubr.bf16.mxu0 0
    %6436 = vmatmul.mubr.bf16.gmra.mrb[0].mxu0 %v6393
    %v6437 = vpop.f32.mrb[0].mxu0
    %v6438 = vadd.f32 0.0, %v6437
    %v6439 = vpop.f32.mrb[0].mxu0
    %v6440 = vpop.f32.mrb[0].mxu0
    %v6441 = vadd.f32 0.0, %v6440
    %v6442 = vpop.f32.mrb[0].mxu0
    %6443 = vdwg.mxu0
    %6444 = vrot.lane.b32.xlu0 %v6267, 116
    %v6445 = vpop.permute.xlu0 %6444
    %6446 = vrot.lane.b32.xlu0 %v6268, 116
    %v6447 = vpop.permute.xlu0 %6446
    %v6449 = vsel %vm4823, %v6445, 0
    %v6452 = vsel %vm4823, %v6447, 0
    %6454 = vmatprep.subr.bf16.mxu0 0
    %6455 = vmatpush1.bf16.xpose.msra.mxu0 %v4831
    %6456 = vmatprep.subr.bf16.mxu0 0
    %6457 = vmatpush1.bf16.xpose.msra.mxu0 0
    %6458 = vmatprep.subr.bf16.mxu0 0
    %6459 = vmatpush1.bf16.xpose.msra.mxu0 0
    %6460 = vmatprep.subr.bf16.mxu0 0
    %6461 = vmatpush1.bf16.xpose.msra.mxu0 0
    %6462 = vmatprep.subr.bf16.mxu0 0
    %6463 = vmatpush1.bf16.xpose.msra.mxu0 0
    %6464 = vmatprep.subr.bf16.mxu0 0
    %6465 = vmatpush1.bf16.xpose.msra.mxu0 0
    %6466 = vmatprep.subr.bf16.mxu0 0
    %6467 = vmatpush1.bf16.xpose.msra.mxu0 0
    %6468 = vmatprep.subr.bf16.mxu0 0
    %6469 = vmatpush1.bf16.xpose.msra.mxu0 0
    %6470 = vmatprep.subr.bf16.mxu0 0
    %6471 = vmatpush1.bf16.xpose.msra.mxu0 0
    %6472 = vmatprep.subr.bf16.mxu0 0
    %6473 = vmatpush1.bf16.xpose.msra.mxu0 0
    %6474 = vmatprep.subr.bf16.mxu0 0
    %6475 = vmatpush1.bf16.xpose.msra.mxu0 0
    %6476 = vmatprep.subr.bf16.mxu0 0
    %6477 = vmatpush1.bf16.xpose.msra.mxu0 0
    %6478 = vmatprep.subr.bf16.mxu0 0
    %6479 = vmatpush1.bf16.xpose.msra.mxu0 0
    %6480 = vmatprep.subr.bf16.mxu0 0
    %6481 = vmatpush1.bf16.xpose.msra.mxu0 0
    %6482 = vmatprep.subr.bf16.mxu0 0
    %6483 = vmatpush1.bf16.xpose.msra.mxu0 0
    %6484 = vmatprep.subr.bf16.mxu0 0
    %6485 = vmatpush1.bf16.xpose.msra.mxu0 0
    %6486 = vmatprep.mubr.bf16.mxu0 0
    %6487 = vmatmul.mubr.bf16.gmra.mrb[0].mxu0 %v6449
    %v6488 = vpop.f32.mrb[0].mxu0
    %v6489 = vadd.f32 0.0, %v6488
    %v6490 = vpop.f32.mrb[0].mxu0
    %v6491 = vpop.f32.mrb[0].mxu0
    %v6492 = vadd.f32 0.0, %v6491
    %v6493 = vpop.f32.mrb[0].mxu0
    %6494 = vmatprep.mubr.bf16.mxu0 0
    %6495 = vmatmul.mubr.bf16.gmra.mrb[0].mxu0 %v6452
    %v6496 = vpop.f32.mrb[0].mxu0
    %v6497 = vadd.f32 0.0, %v6496
    %v6498 = vpop.f32.mrb[0].mxu0
    %v6499 = vpop.f32.mrb[0].mxu0
    %v6500 = vadd.f32 0.0, %v6499
    %v6501 = vpop.f32.mrb[0].mxu0
    %6502 = vdwg.mxu0
    %6507 = vrot.lane.b32.xlu0 %v4929, 8
    %v6508 = vpop.permute.xlu0 %6507
    %6509 = vrot.lane.b32.xlu0 %v4932, 8
    %v6510 = vpop.permute.xlu0 %6509
    %6511 = vrot.lane.b32.xlu0 %v4937, 8
    %v6512 = vpop.permute.xlu0 %6511
    %6513 = vrot.lane.b32.xlu0 %v4940, 8
    %v6514 = vpop.permute.xlu0 %6513
    %6523 = vrot.lane.b32.xlu0 %v4988, 16
    %v6524 = vpop.permute.xlu0 %6523
    %6525 = vrot.lane.b32.xlu0 %v4991, 16
    %v6526 = vpop.permute.xlu0 %6525
    %6527 = vrot.lane.b32.xlu0 %v4996, 16
    %v6528 = vpop.permute.xlu0 %6527
    %6529 = vrot.lane.b32.xlu0 %v4999, 16
    %v6530 = vpop.permute.xlu0 %6529
    %6539 = vrot.lane.b32.xlu0 %v5047, 24
    %v6540 = vpop.permute.xlu0 %6539
    %6541 = vrot.lane.b32.xlu0 %v5050, 24
    %v6542 = vpop.permute.xlu0 %6541
    %6543 = vrot.lane.b32.xlu0 %v5055, 24
    %v6544 = vpop.permute.xlu0 %6543
    %6545 = vrot.lane.b32.xlu0 %v5058, 24
    %v6546 = vpop.permute.xlu0 %6545
    %6555 = vrot.lane.b32.xlu0 %v5350, 32
    %v6556 = vpop.permute.xlu0 %6555
    %6557 = vrot.lane.b32.xlu0 %v5353, 32
    %v6558 = vpop.permute.xlu0 %6557
    %6559 = vrot.lane.b32.xlu0 %v5358, 32
    %v6560 = vpop.permute.xlu0 %6559
    %6561 = vrot.lane.b32.xlu0 %v5361, 32
    %v6562 = vpop.permute.xlu0 %6561
    %6571 = vrot.lane.b32.xlu0 %v5411, 40
    %v6572 = vpop.permute.xlu0 %6571
    %6573 = vrot.lane.b32.xlu0 %v5414, 40
    %v6574 = vpop.permute.xlu0 %6573
    %6575 = vrot.lane.b32.xlu0 %v5419, 40
    %v6576 = vpop.permute.xlu0 %6575
    %6577 = vrot.lane.b32.xlu0 %v5422, 40
    %v6578 = vpop.permute.xlu0 %6577
    %6587 = vrot.lane.b32.xlu0 %v5470, 48
    %v6588 = vpop.permute.xlu0 %6587
    %6589 = vrot.lane.b32.xlu0 %v5473, 48
    %v6590 = vpop.permute.xlu0 %6589
    %6591 = vrot.lane.b32.xlu0 %v5478, 48
    %v6592 = vpop.permute.xlu0 %6591
    %6593 = vrot.lane.b32.xlu0 %v5481, 48
    %v6594 = vpop.permute.xlu0 %6593
    %6603 = vrot.lane.b32.xlu0 %v5529, 56
    %v6604 = vpop.permute.xlu0 %6603
    %6605 = vrot.lane.b32.xlu0 %v5532, 56
    %v6606 = vpop.permute.xlu0 %6605
    %6607 = vrot.lane.b32.xlu0 %v5537, 56
    %v6608 = vpop.permute.xlu0 %6607
    %6609 = vrot.lane.b32.xlu0 %v5540, 56
    %v6610 = vpop.permute.xlu0 %6609
    %6619 = vrot.lane.b32.xlu0 %v5830, 64
    %v6620 = vpop.permute.xlu0 %6619
    %6621 = vrot.lane.b32.xlu0 %v5833, 64
    %v6622 = vpop.permute.xlu0 %6621
    %6623 = vrot.lane.b32.xlu0 %v5838, 64
    %v6624 = vpop.permute.xlu0 %6623
    %6625 = vrot.lane.b32.xlu0 %v5841, 64
    %v6626 = vpop.permute.xlu0 %6625
    %6635 = vrot.lane.b32.xlu0 %v5891, 72
    %v6636 = vpop.permute.xlu0 %6635
    %6637 = vrot.lane.b32.xlu0 %v5894, 72
    %v6638 = vpop.permute.xlu0 %6637
    %6639 = vrot.lane.b32.xlu0 %v5899, 72
    %v6640 = vpop.permute.xlu0 %6639
    %6641 = vrot.lane.b32.xlu0 %v5902, 72
    %v6642 = vpop.permute.xlu0 %6641
    %6651 = vrot.lane.b32.xlu0 %v5950, 80
    %v6652 = vpop.permute.xlu0 %6651
    %6653 = vrot.lane.b32.xlu0 %v5953, 80
    %v6654 = vpop.permute.xlu0 %6653
    %6655 = vrot.lane.b32.xlu0 %v5958, 80
    %v6656 = vpop.permute.xlu0 %6655
    %6657 = vrot.lane.b32.xlu0 %v5961, 80
    %v6658 = vpop.permute.xlu0 %6657
    %6667 = vrot.lane.b32.xlu0 %v6009, 88
    %v6668 = vpop.permute.xlu0 %6667
    %6669 = vrot.lane.b32.xlu0 %v6012, 88
    %v6670 = vpop.permute.xlu0 %6669
    %6671 = vrot.lane.b32.xlu0 %v6017, 88
    %v6672 = vpop.permute.xlu0 %6671
    %6673 = vrot.lane.b32.xlu0 %v6020, 88
    %v6674 = vpop.permute.xlu0 %6673
    %6683 = vrot.lane.b32.xlu0 %v6310, 96
    %v6684 = vpop.permute.xlu0 %6683
    %6685 = vrot.lane.b32.xlu0 %v6313, 96
    %v6686 = vpop.permute.xlu0 %6685
    %6687 = vrot.lane.b32.xlu0 %v6318, 96
    %v6688 = vpop.permute.xlu0 %6687
    %6689 = vrot.lane.b32.xlu0 %v6321, 96
    %v6690 = vpop.permute.xlu0 %6689
    %6699 = vrot.lane.b32.xlu0 %v6371, 104
    %v6700 = vpop.permute.xlu0 %6699
    %6701 = vrot.lane.b32.xlu0 %v6374, 104
    %v6702 = vpop.permute.xlu0 %6701
    %6703 = vrot.lane.b32.xlu0 %v6379, 104
    %v6704 = vpop.permute.xlu0 %6703
    %6705 = vrot.lane.b32.xlu0 %v6382, 104
    %v6706 = vpop.permute.xlu0 %6705
    %6715 = vrot.lane.b32.xlu0 %v6430, 112
    %v6716 = vpop.permute.xlu0 %6715
    %6717 = vrot.lane.b32.xlu0 %v6433, 112
    %v6718 = vpop.permute.xlu0 %6717
    %6719 = vrot.lane.b32.xlu0 %v6438, 112
    %v6720 = vpop.permute.xlu0 %6719
    %6721 = vrot.lane.b32.xlu0 %v6441, 112
    %v6722 = vpop.permute.xlu0 %6721
    %6731 = vrot.lane.b32.xlu0 %v6489, 120
    %v6732 = vpop.permute.xlu0 %6731
    %6733 = vrot.lane.b32.xlu0 %v6492, 120
    %v6734 = vpop.permute.xlu0 %6733
    %6735 = vrot.lane.b32.xlu0 %v6497, 120
    %v6736 = vpop.permute.xlu0 %6735
    %6737 = vrot.lane.b32.xlu0 %v6500, 120
    %v6738 = vpop.permute.xlu0 %6737
    %v6743 = vsel %vm4609, %v4868, %v6508
    %v6744 = vsel %vm4609, %v4871, %v6510
    %v6745 = vsel %vm4609, %v4876, %v6512
    %v6746 = vsel %vm4609, %v4879, %v6514
    %v6747 = vsel %vm490, %v6743, %v6524
    %v6748 = vsel %vm490, %v6744, %v6526
    %v6749 = vsel %vm490, %v6745, %v6528
    %v6750 = vsel %vm490, %v6746, %v6530
    %vm6751 = vcmask 195584
    %v6752 = vsel %vm6751, %v6747, %v6540
    %v6753 = vsel %vm6751, %v6748, %v6542
    %v6754 = vsel %vm6751, %v6749, %v6544
    %v6755 = vsel %vm6751, %v6750, %v6546
    %v6756 = vsel %vm347, %v6752, %v6556
    %v6757 = vsel %vm347, %v6753, %v6558
    %v6758 = vsel %vm347, %v6754, %v6560
    %v6759 = vsel %vm347, %v6755, %v6562
    %vm6760 = vcmask 326656
    %v6761 = vsel %vm6760, %v6756, %v6572
    %v6762 = vsel %vm6760, %v6757, %v6574
    %v6763 = vsel %vm6760, %v6758, %v6576
    %v6764 = vsel %vm6760, %v6759, %v6578
    %vm6765 = vcmask 392192
    %v6766 = vsel %vm6765, %v6761, %v6588
    %v6767 = vsel %vm6765, %v6762, %v6590
    %v6768 = vsel %vm6765, %v6763, %v6592
    %v6769 = vsel %vm6765, %v6764, %v6594
    %vm6770 = vcmask 457728
    %v6771 = vsel %vm6770, %v6766, %v6604
    %v6772 = vsel %vm6770, %v6767, %v6606
    %v6773 = vsel %vm6770, %v6768, %v6608
    %v6774 = vsel %vm6770, %v6769, %v6610
    %v6775 = vsel %vm260, %v6771, %v6620
    %v6776 = vsel %vm260, %v6772, %v6622
    %v6777 = vsel %vm260, %v6773, %v6624
    %v6778 = vsel %vm260, %v6774, %v6626
    %vm6779 = vcmask 588800
    %v6780 = vsel %vm6779, %v6775, %v6636
    %v6781 = vsel %vm6779, %v6776, %v6638
    %v6782 = vsel %vm6779, %v6777, %v6640
    %v6783 = vsel %vm6779, %v6778, %v6642
    %vm6784 = vcmask 654336
    %v6785 = vsel %vm6784, %v6780, %v6652
    %v6786 = vsel %vm6784, %v6781, %v6654
    %v6787 = vsel %vm6784, %v6782, %v6656
    %v6788 = vsel %vm6784, %v6783, %v6658
    %vm6789 = vcmask 719872
    %v6790 = vsel %vm6789, %v6785, %v6668
    %v6791 = vsel %vm6789, %v6786, %v6670
    %v6792 = vsel %vm6789, %v6787, %v6672
    %v6793 = vsel %vm6789, %v6788, %v6674
    %vm6794 = vcmask 785408
    %v6795 = vsel %vm6794, %v6790, %v6684
    %v6796 = vsel %vm6794, %v6791, %v6686
    %v6797 = vsel %vm6794, %v6792, %v6688
    %v6798 = vsel %vm6794, %v6793, %v6690
    %vm6799 = vcmask 850944
    %v6800 = vsel %vm6799, %v6795, %v6700
    %v6801 = vsel %vm6799, %v6796, %v6702
    %v6802 = vsel %vm6799, %v6797, %v6704
    %v6803 = vsel %vm6799, %v6798, %v6706
    %vm6804 = vcmask 916480
    %v6805 = vsel %vm6804, %v6800, %v6716
    %v6806 = vsel %vm6804, %v6801, %v6718
    %v6807 = vsel %vm6804, %v6802, %v6720
    %v6808 = vsel %vm6804, %v6803, %v6722
    %vm6809 = vcmask 982016
    %v6810 = vsel %vm6809, %v6805, %v6732
    %v6811 = vsel %vm6809, %v6806, %v6734
    %v6812 = vsel %vm6809, %v6807, %v6736
    %v6813 = vsel %vm6809, %v6808, %v6738
    %6814 = vst [vmem:[%s93] sm:$0xff] %v6810
    %6815 = vst [vmem:[%s93 + $0x8] sm:$0xff] %v6811
    %6816 = vst [vmem:[%s93 + $0x10] sm:$0xff] %v6812
    %6817 = vst [vmem:[%s93 + $0x18] sm:$0xff] %v6813
    // Predicated region
    $region190: #{medsam_text_forward.1} parent=1 // pred_check
      _
    $region191: #{medsam_text_forward.1} parent=1 // pred_check_branch
      %6819 = sbr.rel (0) target = $region193
    $region192: #{medsam_text_forward.1} parent=1 // pred_region
      _
    $region193: #{medsam_text_forward.1} parent=1 // pred_fallthru
      _
    // Predicated region
    $region194: #{medsam_text_forward.1} parent=1 // pred_check
      _
    $region195: #{medsam_text_forward.1} parent=1 // pred_check_branch
      %6821 = sbr.rel (0) target = $region197
    $region196: #{medsam_text_forward.1} parent=1 // pred_region
      _
    $region197: #{medsam_text_forward.1} parent=1 // pred_fallthru
      _
    %6822 = vsyncpa [#allocation3], 1

</llo_original>
